<compile_context>
chip_gen: v5e
topology: v5e:2x2
jax: 0.10.0
libtpu: 0.0.40
codegen_flags: <defaults>
</compile_context>

<pallas_src>
import functools

import jax
import jax.numpy as jnp
from jax.experimental import pallas as pl
from jax.experimental.pallas import tpu as pltpu

EPS = 1e-5  # PyTorch BatchNorm2d default eps


def _round_up(x, m):
    return (x + m - 1) // m * m


# ----------------------------------------------------------------------------- #
# Pallas kernel: K-tiled (X @ W) with f32 accumulator, fused bias/ReLU/BN epilogue
# ----------------------------------------------------------------------------- #
def _fused_mm_kernel(*refs, relu, bn):
    if bn:
        x_ref, w_ref, b_ref, s_ref, t_ref, o_ref, acc_ref = refs
    else:
        x_ref, w_ref, b_ref, o_ref, acc_ref = refs
        s_ref = t_ref = None

    @pl.when(pl.program_id(2) == 0)
    def _():
        acc_ref[...] = jnp.zeros_like(acc_ref)

    acc_ref[...] += jnp.dot(x_ref[...], w_ref[...],
                            preferred_element_type=jnp.float32)

    @pl.when(pl.program_id(2) == pl.num_programs(2) - 1)
    def _():
        acc = acc_ref[...] + b_ref[...]            # (bm, bn) + (1, bn)
        if relu:
            acc = jnp.maximum(acc, 0.0)
        if bn:
            acc = acc * s_ref[...] + t_ref[...]    # folded inference-mode BatchNorm
        o_ref[...] = acc.astype(o_ref.dtype)


def fused_matmul(x, w, b, scale=None, shift=None, *, relu, bn):
    """y = bn(act(x @ w + b)), tiled over (M, N, K), bf16 MXU inputs, f32 accum."""
    M, K = x.shape
    K2, N = w.shape
    assert K == K2

    # --- tile sizes -----------------------------------------------------------
    bm = min(512, _round_up(M, 8))             # big row tiles for conv/im2col
    bn_cols = 128 if N <= 128 else 256         # lane-dense; 2 parallel N blocks at N=512
    bk = _round_up(K, 8) if K <= 1024 else 1024  # stream big K (fc1) in tiles

    Mp = _round_up(M, bm)
    Np = _round_up(N, bn_cols)
    Kp = _round_up(K, bk)

    # --- pad + cast (zero padding is numerically inert; padded rows/cols sliced off)
    xb = jnp.pad(x.astype(jnp.bfloat16), ((0, Mp - M), (0, Kp - K)))
    wb = jnp.pad(w.astype(jnp.bfloat16), ((0, Kp - K), (0, Np - N)))
    bp = jnp.pad(b.astype(jnp.float32), (0, Np - N)).reshape(1, Np)

    inputs = [xb, wb, bp]
    in_specs = [
        pl.BlockSpec((bm, bk), lambda i, j, k: (i, k)),        # X row/K tile
        pl.BlockSpec((bk, bn_cols), lambda i, j, k: (k, j)),   # streamed weight tile
        pl.BlockSpec((1, bn_cols), lambda i, j, k: (0, j)),    # bias
    ]
    if bn:
        sp = jnp.pad(scale.astype(jnp.float32), (0, Np - N),
                     constant_values=1.0).reshape(1, Np)
        tp = jnp.pad(shift.astype(jnp.float32), (0, Np - N)).reshape(1, Np)
        inputs += [sp, tp]
        in_specs += [
            pl.BlockSpec((1, bn_cols), lambda i, j, k: (0, j)),  # BN scale
            pl.BlockSpec((1, bn_cols), lambda i, j, k: (0, j)),  # BN shift
        ]

    kernel = functools.partial(_fused_mm_kernel, relu=relu, bn=bn)
    out = pl.pallas_call(
        kernel,
        out_shape=jax.ShapeDtypeStruct((Mp, Np), jnp.float32),
        grid=(Mp // bm, Np // bn_cols, Kp // bk),
        in_specs=in_specs,
        out_specs=pl.BlockSpec((bm, bn_cols), lambda i, j, k: (i, j)),
        scratch_shapes=[pltpu.VMEM((bm, bn_cols), jnp.float32)],
        compiler_params=pltpu.CompilerParams(
            dimension_semantics=("parallel", "parallel", "arbitrary"),
            vmem_limit_bytes=32 * 1024 * 1024,
        ),
    )(*inputs)
    return out[:M, :N]


# ----------------------------------------------------------------------------- #
# Conv block: ReflectionPad2d(1) + Conv2d(3x3) + ReLU + BatchNorm2d
# ----------------------------------------------------------------------------- #
# TODO(synk): BatchNorm2d is implemented in inference mode (folded running-stat
# affine); training-mode batch statistics are not reproduced.
# TODO(synk): reflect-pad + im2col remain plain-JAX glue between conv kernels
# (not in-kernel halo BlockSpec windows); the matmul + epilogue is the Pallas part.
def conv3x3_relu_bn(x, w, b, gamma, beta, mean, var):
    # x: (N, H, W, Cin), w: (3, 3, Cin, Cout)
    n, h, wd, cin = x.shape
    cout = w.shape[-1]
    xp = jnp.pad(x, ((0, 0), (1, 1), (1, 1), (0, 0)), mode="reflect")
    # im2col: feature order is (kh, kw, cin) to match w.reshape below.
    patches = [xp[:, kh:kh + h, kw:kw + wd, :]
               for kh in range(3) for kw in range(3)]
    cols = jnp.concatenate(patches, axis=-1)          # (N, H, W, 9*Cin)
    x2d = cols.reshape(n * h * wd, 9 * cin)
    w2d = w.reshape(9 * cin, cout)

    scale = gamma / jnp.sqrt(var + EPS)
    shift = beta - mean * scale
    y2d = fused_matmul(x2d, w2d, b, scale, shift, relu=True, bn=True)
    return y2d.reshape(n, h, wd, cout)


# ----------------------------------------------------------------------------- #
# Parameters (deterministic, synthetic)
# ----------------------------------------------------------------------------- #
def init_params(key, h, w):
    ks = jax.random.split(key, 6)

    def conv_p(k, cin, cout):
        k1, k2, k3, k4, k5, k6 = jax.random.split(k, 6)
        return dict(
            w=0.1 * jax.random.normal(k1, (3, 3, cin, cout), jnp.float32),
            b=0.1 * jax.random.normal(k2, (cout,), jnp.float32),
            gamma=1.0 + 0.1 * jax.random.normal(k3, (cout,), jnp.float32),
            beta=0.1 * jax.random.normal(k4, (cout,), jnp.float32),
            mean=0.1 * jax.random.normal(k5, (cout,), jnp.float32),
            var=1.0 + 0.1 * jnp.abs(jax.random.normal(k6, (cout,), jnp.float32)),
        )

    def lin_p(k, fin, fout):
        k1, k2 = jax.random.split(k)
        s = 1.0 / jnp.sqrt(jnp.float32(fin))
        return dict(
            w=jax.random.uniform(k1, (fin, fout), jnp.float32, -s, s),
            b=jax.random.uniform(k2, (fout,), jnp.float32, -s, s),
        )

    feat = 8 * h * w  # analogue of 8 * 100 * 100 at the reduced spatial size
    return dict(
        conv1=conv_p(ks[0], 1, 4),
        conv2=conv_p(ks[1], 4, 8),
        conv3=conv_p(ks[2], 8, 8),
        fc1=lin_p(ks[3], feat, 500),
        fc2=lin_p(ks[4], 500, 500),
        fc3=lin_p(ks[5], 500, 5),
    )


# ----------------------------------------------------------------------------- #
# Forward
# ----------------------------------------------------------------------------- #
def forward_once(params, x_nchw):
    n = x_nchw.shape[0]
    x = jnp.transpose(x_nchw, (0, 2, 3, 1))           # NCHW -> NHWC
    for name in ("conv1", "conv2", "conv3"):
        p = params[name]
        x = conv3x3_relu_bn(x, p["w"], p["b"], p["gamma"], p["beta"],
                            p["mean"], p["var"])
    # flatten in (C, H, W) order to mirror torch's output.view(N, -1) on NCHW
    feat = jnp.transpose(x, (0, 3, 1, 2)).reshape(n, -1)
    h = fused_matmul(feat, params["fc1"]["w"], params["fc1"]["b"],
                     relu=True, bn=False)
    h = fused_matmul(h, params["fc2"]["w"], params["fc2"]["b"],
                     relu=True, bn=False)
    out = fused_matmul(h, params["fc3"]["w"], params["fc3"]["b"],
                       relu=False, bn=False)
    return out


def siamese_forward(params, input1, input2):
    # Batch the two branches into one pass: weights stream from HBM only once.
    n = input1.shape[0]
    x = jnp.concatenate([input1, input2], axis=0)
    out = forward_once(params, x)
    return out[:n], out[n:]


if __name__ == "__main__":
    key = jax.random.PRNGKey(0)
    kp, k1, k2 = jax.random.split(key, 3)

    B, H, W = 2, 16, 16
    params = init_params(kp, H, W)
    input1 = jax.random.normal(k1, (B, 1, H, W), jnp.float32)
    input2 = jax.random.normal(k2, (B, 1, H, W), jnp.float32)

    fwd = jax.jit(lambda a, b: siamese_forward(params, a, b))
    out1, out2 = fwd(input1, input2)
    jax.block_until_ready((out1, out2))

    assert out1.shape == (B, 5) and out2.shape == (B, 5)
    assert out1.dtype == jnp.float32 and out2.dtype == jnp.float32
    print("KERNEL_OK")
</pallas_src>

<mosaic_0001>
module attributes {stable_mosaic.version = 11 : i64} {
  func.func @_fused_mm_kernel(%arg0: i32, %arg1: i32, %arg2: i32, %arg3: memref<512x16xbf16, #tpu.memory_space<vmem>>, %arg4: memref<16x128xbf16, #tpu.memory_space<vmem>>, %arg5: memref<1x128xf32, #tpu.memory_space<vmem>>, %arg6: memref<1x128xf32, #tpu.memory_space<vmem>>, %arg7: memref<1x128xf32, #tpu.memory_space<vmem>>, %arg8: memref<512x128xf32, #tpu.memory_space<vmem>>, %arg9: memref<512x128xf32, #tpu.memory_space<vmem>>) attributes {dimension_semantics = [#tpu.dimension_semantics<parallel>, #tpu.dimension_semantics<parallel>, #tpu.dimension_semantics<arbitrary>], iteration_bounds = array<i64: 2, 1, 1>, scalar_prefetch = 0 : i64, scratch_operands = 1 : i64, tpu.core_type = #tpu.core_type<tc>, window_params = [{transform_indices = @transform_0, window_bounds = array<i64: 512, 16>}, {transform_indices = @transform_1, window_bounds = array<i64: 16, 128>}, {transform_indices = @transform_2, window_bounds = array<i64: 1, 128>}, {transform_indices = @transform_3, window_bounds = array<i64: 1, 128>}, {transform_indices = @transform_4, window_bounds = array<i64: 1, 128>}, {transform_indices = @transform_5, window_bounds = array<i64: 512, 128>}]} {
    %c0_i32 = arith.constant 0 : i32
    %0 = arith.cmpi eq, %arg2, %c0_i32 : i32
    %1 = arith.extui %0 : i1 to i32
    %c0_i32_0 = arith.constant 0 : i32
    %2 = arith.cmpi ne, %1, %c0_i32_0 : i32
    scf.if %2 {
      %cst_10 = arith.constant 0.000000e+00 : f32
      %12 = vector.broadcast %cst_10 : f32 to vector<512x128xf32>
      %c0_11 = arith.constant 0 : index
      %c0_12 = arith.constant 0 : index
      %13 = vector.load %arg9[%c0_11, %c0_12] : memref<512x128xf32, #tpu.memory_space<vmem>>, vector<512x128xf32>
      tpu.vector_store %arg9[%c0_11, %c0_12], %12 {strides = array<i32>} : memref<512x128xf32, #tpu.memory_space<vmem>>, vector<512x128xf32>,
    } else {
    }
    %c0 = arith.constant 0 : index
    %c0_1 = arith.constant 0 : index
    %3 = vector.load %arg9[%c0, %c0_1] : memref<512x128xf32, #tpu.memory_space<vmem>>, vector<512x128xf32>
    %c0_2 = arith.constant 0 : index
    %c0_3 = arith.constant 0 : index
    %4 = vector.load %arg3[%c0_2, %c0_3] : memref<512x16xbf16, #tpu.memory_space<vmem>>, vector<512x16xbf16>
    %c0_4 = arith.constant 0 : index
    %c0_5 = arith.constant 0 : index
    %5 = vector.load %arg4[%c0_4, %c0_5] : memref<16x128xbf16, #tpu.memory_space<vmem>>, vector<16x128xbf16>
    %cst = arith.constant dense<0.000000e+00> : vector<512x128xf32>
    %6 = tpu.matmul %4, %5, %cst {dimension_numbers = #tpu.dot_dimension_numbers<[1], [0], [0], [1], [0, 0, 1, 1], [], []>} : vector<512x16xbf16>, vector<16x128xbf16>, vector<512x128xf32> -> vector<512x128xf32>
    %7 = arith.addf %3, %6 : vector<512x128xf32>
    %c0_6 = arith.constant 0 : index
    %c0_7 = arith.constant 0 : index
    %8 = vector.load %arg9[%c0_6, %c0_7] : memref<512x128xf32, #tpu.memory_space<vmem>>, vector<512x128xf32>
    tpu.vector_store %arg9[%c0_6, %c0_7], %7 {strides = array<i32>} : memref<512x128xf32, #tpu.memory_space<vmem>>, vector<512x128xf32>,
    %c0_i32_8 = arith.constant 0 : i32
    %9 = arith.cmpi eq, %arg2, %c0_i32_8 : i32
    %10 = arith.extui %9 : i1 to i32
    %c0_i32_9 = arith.constant 0 : i32
    %11 = arith.cmpi ne, %10, %c0_i32_9 : i32
    scf.if %11 {
      %c0_10 = arith.constant 0 : index
      %c0_11 = arith.constant 0 : index
      %12 = vector.load %arg9[%c0_10, %c0_11] : memref<512x128xf32, #tpu.memory_space<vmem>>, vector<512x128xf32>
      %c0_12 = arith.constant 0 : index
      %c0_13 = arith.constant 0 : index
      %13 = vector.load %arg5[%c0_12, %c0_13] : memref<1x128xf32, #tpu.memory_space<vmem>>, vector<1x128xf32>
      %14 = vector.broadcast %13 : vector<1x128xf32> to vector<512x128xf32>
      %15 = arith.addf %12, %14 : vector<512x128xf32>
      %cst_14 = arith.constant 0.000000e+00 : f32
      %16 = vector.broadcast %cst_14 : f32 to vector<512x128xf32>
      %17 = arith.maximumf %15, %16 : vector<512x128xf32>
      %c0_15 = arith.constant 0 : index
      %c0_16 = arith.constant 0 : index
      %18 = vector.load %arg6[%c0_15, %c0_16] : memref<1x128xf32, #tpu.memory_space<vmem>>, vector<1x128xf32>
      %19 = vector.broadcast %18 : vector<1x128xf32> to vector<512x128xf32>
      %20 = arith.mulf %17, %19 : vector<512x128xf32>
      %c0_17 = arith.constant 0 : index
      %c0_18 = arith.constant 0 : index
      %21 = vector.load %arg7[%c0_17, %c0_18] : memref<1x128xf32, #tpu.memory_space<vmem>>, vector<1x128xf32>
      %22 = vector.broadcast %21 : vector<1x128xf32> to vector<512x128xf32>
      %23 = arith.addf %20, %22 : vector<512x128xf32>
      %c0_19 = arith.constant 0 : index
      %c0_20 = arith.constant 0 : index
      %24 = vector.load %arg8[%c0_19, %c0_20] : memref<512x128xf32, #tpu.memory_space<vmem>>, vector<512x128xf32>
      tpu.vector_store %arg8[%c0_19, %c0_20], %23 {strides = array<i32>} : memref<512x128xf32, #tpu.memory_space<vmem>>, vector<512x128xf32>,
    } else {
    }
    return
  }
  func.func @transform_0(%arg0: i32, %arg1: i32, %arg2: i32) -> (i32, i32) {
    %c0_i32 = arith.constant 0 : i32
    return %arg0, %arg2 : i32, i32
  }
  func.func @transform_1(%arg0: i32, %arg1: i32, %arg2: i32) -> (i32, i32) {
    %c0_i32 = arith.constant 0 : i32
    return %arg2, %arg1 : i32, i32
  }
  func.func @transform_2(%arg0: i32, %arg1: i32, %arg2: i32) -> (i32, i32) {
    %c0_i32 = arith.constant 0 : i32
    %c0_i32_0 = arith.constant 0 : i32
    return %c0_i32, %arg1 : i32, i32
  }
  func.func @transform_3(%arg0: i32, %arg1: i32, %arg2: i32) -> (i32, i32) {
    %c0_i32 = arith.constant 0 : i32
    %c0_i32_0 = arith.constant 0 : i32
    return %c0_i32, %arg1 : i32, i32
  }
  func.func @transform_4(%arg0: i32, %arg1: i32, %arg2: i32) -> (i32, i32) {
    %c0_i32 = arith.constant 0 : i32
    %c0_i32_0 = arith.constant 0 : i32
    return %c0_i32, %arg1 : i32, i32
  }
  func.func @transform_5(%arg0: i32, %arg1: i32, %arg2: i32) -> (i32, i32) {
    %c0_i32 = arith.constant 0 : i32
    return %arg0, %arg1 : i32, i32
  }
}

module attributes {stable_mosaic.version = 11 : i64} {
  func.func @_fused_mm_kernel(%arg0: i32, %arg1: i32, %arg2: i32, %arg3: memref<512x40xbf16, #tpu.memory_space<vmem>>, %arg4: memref<40x128xbf16, #tpu.memory_space<vmem>>, %arg5: memref<1x128xf32, #tpu.memory_space<vmem>>, %arg6: memref<1x128xf32, #tpu.memory_space<vmem>>, %arg7: memref<1x128xf32, #tpu.memory_space<vmem>>, %arg8: memref<512x128xf32, #tpu.memory_space<vmem>>, %arg9: memref<512x128xf32, #tpu.memory_space<vmem>>) attributes {dimension_semantics = [#tpu.dimension_semantics<parallel>, #tpu.dimension_semantics<parallel>, #tpu.dimension_semantics<arbitrary>], iteration_bounds = array<i64: 2, 1, 1>, scalar_prefetch = 0 : i64, scratch_operands = 1 : i64, tpu.core_type = #tpu.core_type<tc>, window_params = [{transform_indices = @transform_0, window_bounds = array<i64: 512, 40>}, {transform_indices = @transform_1, window_bounds = array<i64: 40, 128>}, {transform_indices = @transform_2, window_bounds = array<i64: 1, 128>}, {transform_indices = @transform_3, window_bounds = array<i64: 1, 128>}, {transform_indices = @transform_4, window_bounds = array<i64: 1, 128>}, {transform_indices = @transform_5, window_bounds = array<i64: 512, 128>}]} {
    %c0_i32 = arith.constant 0 : i32
    %0 = arith.cmpi eq, %arg2, %c0_i32 : i32
    %1 = arith.extui %0 : i1 to i32
    %c0_i32_0 = arith.constant 0 : i32
    %2 = arith.cmpi ne, %1, %c0_i32_0 : i32
    scf.if %2 {
      %cst_10 = arith.constant 0.000000e+00 : f32
      %12 = vector.broadcast %cst_10 : f32 to vector<512x128xf32>
      %c0_11 = arith.constant 0 : index
      %c0_12 = arith.constant 0 : index
      %13 = vector.load %arg9[%c0_11, %c0_12] : memref<512x128xf32, #tpu.memory_space<vmem>>, vector<512x128xf32>
      tpu.vector_store %arg9[%c0_11, %c0_12], %12 {strides = array<i32>} : memref<512x128xf32, #tpu.memory_space<vmem>>, vector<512x128xf32>,
    } else {
    }
    %c0 = arith.constant 0 : index
    %c0_1 = arith.constant 0 : index
    %3 = vector.load %arg9[%c0, %c0_1] : memref<512x128xf32, #tpu.memory_space<vmem>>, vector<512x128xf32>
    %c0_2 = arith.constant 0 : index
    %c0_3 = arith.constant 0 : index
    %4 = vector.load %arg3[%c0_2, %c0_3] : memref<512x40xbf16, #tpu.memory_space<vmem>>, vector<512x40xbf16>
    %c0_4 = arith.constant 0 : index
    %c0_5 = arith.constant 0 : index
    %5 = vector.load %arg4[%c0_4, %c0_5] : memref<40x128xbf16, #tpu.memory_space<vmem>>, vector<40x128xbf16>
    %cst = arith.constant dense<0.000000e+00> : vector<512x128xf32>
    %6 = tpu.matmul %4, %5, %cst {dimension_numbers = #tpu.dot_dimension_numbers<[1], [0], [0], [1], [0, 0, 1, 1], [], []>} : vector<512x40xbf16>, vector<40x128xbf16>, vector<512x128xf32> -> vector<512x128xf32>
    %7 = arith.addf %3, %6 : vector<512x128xf32>
    %c0_6 = arith.constant 0 : index
    %c0_7 = arith.constant 0 : index
    %8 = vector.load %arg9[%c0_6, %c0_7] : memref<512x128xf32, #tpu.memory_space<vmem>>, vector<512x128xf32>
    tpu.vector_store %arg9[%c0_6, %c0_7], %7 {strides = array<i32>} : memref<512x128xf32, #tpu.memory_space<vmem>>, vector<512x128xf32>,
    %c0_i32_8 = arith.constant 0 : i32
    %9 = arith.cmpi eq, %arg2, %c0_i32_8 : i32
    %10 = arith.extui %9 : i1 to i32
    %c0_i32_9 = arith.constant 0 : i32
    %11 = arith.cmpi ne, %10, %c0_i32_9 : i32
    scf.if %11 {
      %c0_10 = arith.constant 0 : index
      %c0_11 = arith.constant 0 : index
      %12 = vector.load %arg9[%c0_10, %c0_11] : memref<512x128xf32, #tpu.memory_space<vmem>>, vector<512x128xf32>
      %c0_12 = arith.constant 0 : index
      %c0_13 = arith.constant 0 : index
      %13 = vector.load %arg5[%c0_12, %c0_13] : memref<1x128xf32, #tpu.memory_space<vmem>>, vector<1x128xf32>
      %14 = vector.broadcast %13 : vector<1x128xf32> to vector<512x128xf32>
      %15 = arith.addf %12, %14 : vector<512x128xf32>
      %cst_14 = arith.constant 0.000000e+00 : f32
      %16 = vector.broadcast %cst_14 : f32 to vector<512x128xf32>
      %17 = arith.maximumf %15, %16 : vector<512x128xf32>
      %c0_15 = arith.constant 0 : index
      %c0_16 = arith.constant 0 : index
      %18 = vector.load %arg6[%c0_15, %c0_16] : memref<1x128xf32, #tpu.memory_space<vmem>>, vector<1x128xf32>
      %19 = vector.broadcast %18 : vector<1x128xf32> to vector<512x128xf32>
      %20 = arith.mulf %17, %19 : vector<512x128xf32>
      %c0_17 = arith.constant 0 : index
      %c0_18 = arith.constant 0 : index
      %21 = vector.load %arg7[%c0_17, %c0_18] : memref<1x128xf32, #tpu.memory_space<vmem>>, vector<1x128xf32>
      %22 = vector.broadcast %21 : vector<1x128xf32> to vector<512x128xf32>
      %23 = arith.addf %20, %22 : vector<512x128xf32>
      %c0_19 = arith.constant 0 : index
      %c0_20 = arith.constant 0 : index
      %24 = vector.load %arg8[%c0_19, %c0_20] : memref<512x128xf32, #tpu.memory_space<vmem>>, vector<512x128xf32>
      tpu.vector_store %arg8[%c0_19, %c0_20], %23 {strides = array<i32>} : memref<512x128xf32, #tpu.memory_space<vmem>>, vector<512x128xf32>,
    } else {
    }
    return
  }
  func.func @transform_0(%arg0: i32, %arg1: i32, %arg2: i32) -> (i32, i32) {
    %c0_i32 = arith.constant 0 : i32
    return %arg0, %arg2 : i32, i32
  }
  func.func @transform_1(%arg0: i32, %arg1: i32, %arg2: i32) -> (i32, i32) {
    %c0_i32 = arith.constant 0 : i32
    return %arg2, %arg1 : i32, i32
  }
  func.func @transform_2(%arg0: i32, %arg1: i32, %arg2: i32) -> (i32, i32) {
    %c0_i32 = arith.constant 0 : i32
    %c0_i32_0 = arith.constant 0 : i32
    return %c0_i32, %arg1 : i32, i32
  }
  func.func @transform_3(%arg0: i32, %arg1: i32, %arg2: i32) -> (i32, i32) {
    %c0_i32 = arith.constant 0 : i32
    %c0_i32_0 = arith.constant 0 : i32
    return %c0_i32, %arg1 : i32, i32
  }
  func.func @transform_4(%arg0: i32, %arg1: i32, %arg2: i32) -> (i32, i32) {
    %c0_i32 = arith.constant 0 : i32
    %c0_i32_0 = arith.constant 0 : i32
    return %c0_i32, %arg1 : i32, i32
  }
  func.func @transform_5(%arg0: i32, %arg1: i32, %arg2: i32) -> (i32, i32) {
    %c0_i32 = arith.constant 0 : i32
    return %arg0, %arg1 : i32, i32
  }
}

module attributes {stable_mosaic.version = 11 : i64} {
  func.func @_fused_mm_kernel(%arg0: i32, %arg1: i32, %arg2: i32, %arg3: memref<512x72xbf16, #tpu.memory_space<vmem>>, %arg4: memref<72x128xbf16, #tpu.memory_space<vmem>>, %arg5: memref<1x128xf32, #tpu.memory_space<vmem>>, %arg6: memref<1x128xf32, #tpu.memory_space<vmem>>, %arg7: memref<1x128xf32, #tpu.memory_space<vmem>>, %arg8: memref<512x128xf32, #tpu.memory_space<vmem>>, %arg9: memref<512x128xf32, #tpu.memory_space<vmem>>) attributes {dimension_semantics = [#tpu.dimension_semantics<parallel>, #tpu.dimension_semantics<parallel>, #tpu.dimension_semantics<arbitrary>], iteration_bounds = array<i64: 2, 1, 1>, scalar_prefetch = 0 : i64, scratch_operands = 1 : i64, tpu.core_type = #tpu.core_type<tc>, window_params = [{transform_indices = @transform_0, window_bounds = array<i64: 512, 72>}, {transform_indices = @transform_1, window_bounds = array<i64: 72, 128>}, {transform_indices = @transform_2, window_bounds = array<i64: 1, 128>}, {transform_indices = @transform_3, window_bounds = array<i64: 1, 128>}, {transform_indices = @transform_4, window_bounds = array<i64: 1, 128>}, {transform_indices = @transform_5, window_bounds = array<i64: 512, 128>}]} {
    %c0_i32 = arith.constant 0 : i32
    %0 = arith.cmpi eq, %arg2, %c0_i32 : i32
    %1 = arith.extui %0 : i1 to i32
    %c0_i32_0 = arith.constant 0 : i32
    %2 = arith.cmpi ne, %1, %c0_i32_0 : i32
    scf.if %2 {
      %cst_10 = arith.constant 0.000000e+00 : f32
      %12 = vector.broadcast %cst_10 : f32 to vector<512x128xf32>
      %c0_11 = arith.constant 0 : index
      %c0_12 = arith.constant 0 : index
      %13 = vector.load %arg9[%c0_11, %c0_12] : memref<512x128xf32, #tpu.memory_space<vmem>>, vector<512x128xf32>
      tpu.vector_store %arg9[%c0_11, %c0_12], %12 {strides = array<i32>} : memref<512x128xf32, #tpu.memory_space<vmem>>, vector<512x128xf32>,
    } else {
    }
    %c0 = arith.constant 0 : index
    %c0_1 = arith.constant 0 : index
    %3 = vector.load %arg9[%c0, %c0_1] : memref<512x128xf32, #tpu.memory_space<vmem>>, vector<512x128xf32>
    %c0_2 = arith.constant 0 : index
    %c0_3 = arith.constant 0 : index
    %4 = vector.load %arg3[%c0_2, %c0_3] : memref<512x72xbf16, #tpu.memory_space<vmem>>, vector<512x72xbf16>
    %c0_4 = arith.constant 0 : index
    %c0_5 = arith.constant 0 : index
    %5 = vector.load %arg4[%c0_4, %c0_5] : memref<72x128xbf16, #tpu.memory_space<vmem>>, vector<72x128xbf16>
    %cst = arith.constant dense<0.000000e+00> : vector<512x128xf32>
    %6 = tpu.matmul %4, %5, %cst {dimension_numbers = #tpu.dot_dimension_numbers<[1], [0], [0], [1], [0, 0, 1, 1], [], []>} : vector<512x72xbf16>, vector<72x128xbf16>, vector<512x128xf32> -> vector<512x128xf32>
    %7 = arith.addf %3, %6 : vector<512x128xf32>
    %c0_6 = arith.constant 0 : index
    %c0_7 = arith.constant 0 : index
    %8 = vector.load %arg9[%c0_6, %c0_7] : memref<512x128xf32, #tpu.memory_space<vmem>>, vector<512x128xf32>
    tpu.vector_store %arg9[%c0_6, %c0_7], %7 {strides = array<i32>} : memref<512x128xf32, #tpu.memory_space<vmem>>, vector<512x128xf32>,
    %c0_i32_8 = arith.constant 0 : i32
    %9 = arith.cmpi eq, %arg2, %c0_i32_8 : i32
    %10 = arith.extui %9 : i1 to i32
    %c0_i32_9 = arith.constant 0 : i32
    %11 = arith.cmpi ne, %10, %c0_i32_9 : i32
    scf.if %11 {
      %c0_10 = arith.constant 0 : index
      %c0_11 = arith.constant 0 : index
      %12 = vector.load %arg9[%c0_10, %c0_11] : memref<512x128xf32, #tpu.memory_space<vmem>>, vector<512x128xf32>
      %c0_12 = arith.constant 0 : index
      %c0_13 = arith.constant 0 : index
      %13 = vector.load %arg5[%c0_12, %c0_13] : memref<1x128xf32, #tpu.memory_space<vmem>>, vector<1x128xf32>
      %14 = vector.broadcast %13 : vector<1x128xf32> to vector<512x128xf32>
      %15 = arith.addf %12, %14 : vector<512x128xf32>
      %cst_14 = arith.constant 0.000000e+00 : f32
      %16 = vector.broadcast %cst_14 : f32 to vector<512x128xf32>
      %17 = arith.maximumf %15, %16 : vector<512x128xf32>
      %c0_15 = arith.constant 0 : index
      %c0_16 = arith.constant 0 : index
      %18 = vector.load %arg6[%c0_15, %c0_16] : memref<1x128xf32, #tpu.memory_space<vmem>>, vector<1x128xf32>
      %19 = vector.broadcast %18 : vector<1x128xf32> to vector<512x128xf32>
      %20 = arith.mulf %17, %19 : vector<512x128xf32>
      %c0_17 = arith.constant 0 : index
      %c0_18 = arith.constant 0 : index
      %21 = vector.load %arg7[%c0_17, %c0_18] : memref<1x128xf32, #tpu.memory_space<vmem>>, vector<1x128xf32>
      %22 = vector.broadcast %21 : vector<1x128xf32> to vector<512x128xf32>
      %23 = arith.addf %20, %22 : vector<512x128xf32>
      %c0_19 = arith.constant 0 : index
      %c0_20 = arith.constant 0 : index
      %24 = vector.load %arg8[%c0_19, %c0_20] : memref<512x128xf32, #tpu.memory_space<vmem>>, vector<512x128xf32>
      tpu.vector_store %arg8[%c0_19, %c0_20], %23 {strides = array<i32>} : memref<512x128xf32, #tpu.memory_space<vmem>>, vector<512x128xf32>,
    } else {
    }
    return
  }
  func.func @transform_0(%arg0: i32, %arg1: i32, %arg2: i32) -> (i32, i32) {
    %c0_i32 = arith.constant 0 : i32
    return %arg0, %arg2 : i32, i32
  }
  func.func @transform_1(%arg0: i32, %arg1: i32, %arg2: i32) -> (i32, i32) {
    %c0_i32 = arith.constant 0 : i32
    return %arg2, %arg1 : i32, i32
  }
  func.func @transform_2(%arg0: i32, %arg1: i32, %arg2: i32) -> (i32, i32) {
    %c0_i32 = arith.constant 0 : i32
    %c0_i32_0 = arith.constant 0 : i32
    return %c0_i32, %arg1 : i32, i32
  }
  func.func @transform_3(%arg0: i32, %arg1: i32, %arg2: i32) -> (i32, i32) {
    %c0_i32 = arith.constant 0 : i32
    %c0_i32_0 = arith.constant 0 : i32
    return %c0_i32, %arg1 : i32, i32
  }
  func.func @transform_4(%arg0: i32, %arg1: i32, %arg2: i32) -> (i32, i32) {
    %c0_i32 = arith.constant 0 : i32
    %c0_i32_0 = arith.constant 0 : i32
    return %c0_i32, %arg1 : i32, i32
  }
  func.func @transform_5(%arg0: i32, %arg1: i32, %arg2: i32) -> (i32, i32) {
    %c0_i32 = arith.constant 0 : i32
    return %arg0, %arg1 : i32, i32
  }
}

module attributes {stable_mosaic.version = 11 : i64} {
  func.func @_fused_mm_kernel(%arg0: i32, %arg1: i32, %arg2: i32, %arg3: memref<8x1024xbf16, #tpu.memory_space<vmem>>, %arg4: memref<1024x256xbf16, #tpu.memory_space<vmem>>, %arg5: memref<1x256xf32, #tpu.memory_space<vmem>>, %arg6: memref<8x256xf32, #tpu.memory_space<vmem>>, %arg7: memref<8x256xf32, #tpu.memory_space<vmem>>) attributes {dimension_semantics = [#tpu.dimension_semantics<parallel>, #tpu.dimension_semantics<parallel>, #tpu.dimension_semantics<arbitrary>], iteration_bounds = array<i64: 1, 2, 2>, scalar_prefetch = 0 : i64, scratch_operands = 1 : i64, tpu.core_type = #tpu.core_type<tc>, window_params = [{transform_indices = @transform_0, window_bounds = array<i64: 8, 1024>}, {transform_indices = @transform_1, window_bounds = array<i64: 1024, 256>}, {transform_indices = @transform_2, window_bounds = array<i64: 1, 256>}, {transform_indices = @transform_3, window_bounds = array<i64: 8, 256>}]} {
    %c0_i32 = arith.constant 0 : i32
    %0 = arith.cmpi eq, %arg2, %c0_i32 : i32
    %1 = arith.extui %0 : i1 to i32
    %c0_i32_0 = arith.constant 0 : i32
    %2 = arith.cmpi ne, %1, %c0_i32_0 : i32
    scf.if %2 {
      %cst_9 = arith.constant 0.000000e+00 : f32
      %12 = vector.broadcast %cst_9 : f32 to vector<8x256xf32>
      %c0_10 = arith.constant 0 : index
      %c0_11 = arith.constant 0 : index
      %13 = vector.load %arg7[%c0_10, %c0_11] : memref<8x256xf32, #tpu.memory_space<vmem>>, vector<8x256xf32>
      tpu.vector_store %arg7[%c0_10, %c0_11], %12 {strides = array<i32>} : memref<8x256xf32, #tpu.memory_space<vmem>>, vector<8x256xf32>,
    } else {
    }
    %c0 = arith.constant 0 : index
    %c0_1 = arith.constant 0 : index
    %3 = vector.load %arg7[%c0, %c0_1] : memref<8x256xf32, #tpu.memory_space<vmem>>, vector<8x256xf32>
    %c0_2 = arith.constant 0 : index
    %c0_3 = arith.constant 0 : index
    %4 = vector.load %arg3[%c0_2, %c0_3] : memref<8x1024xbf16, #tpu.memory_space<vmem>>, vector<8x1024xbf16>
    %c0_4 = arith.constant 0 : index
    %c0_5 = arith.constant 0 : index
    %5 = vector.load %arg4[%c0_4, %c0_5] : memref<1024x256xbf16, #tpu.memory_space<vmem>>, vector<1024x256xbf16>
    %cst = arith.constant dense<0.000000e+00> : vector<8x256xf32>
    %6 = tpu.matmul %4, %5, %cst {dimension_numbers = #tpu.dot_dimension_numbers<[1], [0], [0], [1], [0, 0, 1, 1], [], []>} : vector<8x1024xbf16>, vector<1024x256xbf16>, vector<8x256xf32> -> vector<8x256xf32>
    %7 = arith.addf %3, %6 : vector<8x256xf32>
    %c0_6 = arith.constant 0 : index
    %c0_7 = arith.constant 0 : index
    %8 = vector.load %arg7[%c0_6, %c0_7] : memref<8x256xf32, #tpu.memory_space<vmem>>, vector<8x256xf32>
    tpu.vector_store %arg7[%c0_6, %c0_7], %7 {strides = array<i32>} : memref<8x256xf32, #tpu.memory_space<vmem>>, vector<8x256xf32>,
    %c1_i32 = arith.constant 1 : i32
    %9 = arith.cmpi eq, %arg2, %c1_i32 : i32
    %10 = arith.extui %9 : i1 to i32
    %c0_i32_8 = arith.constant 0 : i32
    %11 = arith.cmpi ne, %10, %c0_i32_8 : i32
    scf.if %11 {
      %c0_9 = arith.constant 0 : index
      %c0_10 = arith.constant 0 : index
      %12 = vector.load %arg7[%c0_9, %c0_10] : memref<8x256xf32, #tpu.memory_space<vmem>>, vector<8x256xf32>
      %c0_11 = arith.constant 0 : index
      %c0_12 = arith.constant 0 : index
      %13 = vector.load %arg5[%c0_11, %c0_12] : memref<1x256xf32, #tpu.memory_space<vmem>>, vector<1x256xf32>
      %14 = vector.broadcast %13 : vector<1x256xf32> to vector<8x256xf32>
      %15 = arith.addf %12, %14 : vector<8x256xf32>
      %cst_13 = arith.constant 0.000000e+00 : f32
      %16 = vector.broadcast %cst_13 : f32 to vector<8x256xf32>
      %17 = arith.maximumf %15, %16 : vector<8x256xf32>
      %c0_14 = arith.constant 0 : index
      %c0_15 = arith.constant 0 : index
      %18 = vector.load %arg6[%c0_14, %c0_15] : memref<8x256xf32, #tpu.memory_space<vmem>>, vector<8x256xf32>
      tpu.vector_store %arg6[%c0_14, %c0_15], %17 {strides = array<i32>} : memref<8x256xf32, #tpu.memory_space<vmem>>, vector<8x256xf32>,
    } else {
    }
    return
  }
  func.func @transform_0(%arg0: i32, %arg1: i32, %arg2: i32) -> (i32, i32) {
    %c0_i32 = arith.constant 0 : i32
    return %arg0, %arg2 : i32, i32
  }
  func.func @transform_1(%arg0: i32, %arg1: i32, %arg2: i32) -> (i32, i32) {
    %c0_i32 = arith.constant 0 : i32
    return %arg2, %arg1 : i32, i32
  }
  func.func @transform_2(%arg0: i32, %arg1: i32, %arg2: i32) -> (i32, i32) {
    %c0_i32 = arith.constant 0 : i32
    %c0_i32_0 = arith.constant 0 : i32
    return %c0_i32, %arg1 : i32, i32
  }
  func.func @transform_3(%arg0: i32, %arg1: i32, %arg2: i32) -> (i32, i32) {
    %c0_i32 = arith.constant 0 : i32
    return %arg0, %arg1 : i32, i32
  }
}

module attributes {stable_mosaic.version = 11 : i64} {
  func.func @_fused_mm_kernel(%arg0: i32, %arg1: i32, %arg2: i32, %arg3: memref<8x504xbf16, #tpu.memory_space<vmem>>, %arg4: memref<504x256xbf16, #tpu.memory_space<vmem>>, %arg5: memref<1x256xf32, #tpu.memory_space<vmem>>, %arg6: memref<8x256xf32, #tpu.memory_space<vmem>>, %arg7: memref<8x256xf32, #tpu.memory_space<vmem>>) attributes {dimension_semantics = [#tpu.dimension_semantics<parallel>, #tpu.dimension_semantics<parallel>, #tpu.dimension_semantics<arbitrary>], iteration_bounds = array<i64: 1, 2, 1>, scalar_prefetch = 0 : i64, scratch_operands = 1 : i64, tpu.core_type = #tpu.core_type<tc>, window_params = [{transform_indices = @transform_0, window_bounds = array<i64: 8, 504>}, {transform_indices = @transform_1, window_bounds = array<i64: 504, 256>}, {transform_indices = @transform_2, window_bounds = array<i64: 1, 256>}, {transform_indices = @transform_3, window_bounds = array<i64: 8, 256>}]} {
    %c0_i32 = arith.constant 0 : i32
    %0 = arith.cmpi eq, %arg2, %c0_i32 : i32
    %1 = arith.extui %0 : i1 to i32
    %c0_i32_0 = arith.constant 0 : i32
    %2 = arith.cmpi ne, %1, %c0_i32_0 : i32
    scf.if %2 {
      %cst_10 = arith.constant 0.000000e+00 : f32
      %12 = vector.broadcast %cst_10 : f32 to vector<8x256xf32>
      %c0_11 = arith.constant 0 : index
      %c0_12 = arith.constant 0 : index
      %13 = vector.load %arg7[%c0_11, %c0_12] : memref<8x256xf32, #tpu.memory_space<vmem>>, vector<8x256xf32>
      tpu.vector_store %arg7[%c0_11, %c0_12], %12 {strides = array<i32>} : memref<8x256xf32, #tpu.memory_space<vmem>>, vector<8x256xf32>,
    } else {
    }
    %c0 = arith.constant 0 : index
    %c0_1 = arith.constant 0 : index
    %3 = vector.load %arg7[%c0, %c0_1] : memref<8x256xf32, #tpu.memory_space<vmem>>, vector<8x256xf32>
    %c0_2 = arith.constant 0 : index
    %c0_3 = arith.constant 0 : index
    %4 = vector.load %arg3[%c0_2, %c0_3] : memref<8x504xbf16, #tpu.memory_space<vmem>>, vector<8x504xbf16>
    %c0_4 = arith.constant 0 : index
    %c0_5 = arith.constant 0 : index
    %5 = vector.load %arg4[%c0_4, %c0_5] : memref<504x256xbf16, #tpu.memory_space<vmem>>, vector<504x256xbf16>
    %cst = arith.constant dense<0.000000e+00> : vector<8x256xf32>
    %6 = tpu.matmul %4, %5, %cst {dimension_numbers = #tpu.dot_dimension_numbers<[1], [0], [0], [1], [0, 0, 1, 1], [], []>} : vector<8x504xbf16>, vector<504x256xbf16>, vector<8x256xf32> -> vector<8x256xf32>
    %7 = arith.addf %3, %6 : vector<8x256xf32>
    %c0_6 = arith.constant 0 : index
    %c0_7 = arith.constant 0 : index
    %8 = vector.load %arg7[%c0_6, %c0_7] : memref<8x256xf32, #tpu.memory_space<vmem>>, vector<8x256xf32>
    tpu.vector_store %arg7[%c0_6, %c0_7], %7 {strides = array<i32>} : memref<8x256xf32, #tpu.memory_space<vmem>>, vector<8x256xf32>,
    %c0_i32_8 = arith.constant 0 : i32
    %9 = arith.cmpi eq, %arg2, %c0_i32_8 : i32
    %10 = arith.extui %9 : i1 to i32
    %c0_i32_9 = arith.constant 0 : i32
    %11 = arith.cmpi ne, %10, %c0_i32_9 : i32
    scf.if %11 {
      %c0_10 = arith.constant 0 : index
      %c0_11 = arith.constant 0 : index
      %12 = vector.load %arg7[%c0_10, %c0_11] : memref<8x256xf32, #tpu.memory_space<vmem>>, vector<8x256xf32>
      %c0_12 = arith.constant 0 : index
      %c0_13 = arith.constant 0 : index
      %13 = vector.load %arg5[%c0_12, %c0_13] : memref<1x256xf32, #tpu.memory_space<vmem>>, vector<1x256xf32>
      %14 = vector.broadcast %13 : vector<1x256xf32> to vector<8x256xf32>
      %15 = arith.addf %12, %14 : vector<8x256xf32>
      %cst_14 = arith.constant 0.000000e+00 : f32
      %16 = vector.broadcast %cst_14 : f32 to vector<8x256xf32>
      %17 = arith.maximumf %15, %16 : vector<8x256xf32>
      %c0_15 = arith.constant 0 : index
      %c0_16 = arith.constant 0 : index
      %18 = vector.load %arg6[%c0_15, %c0_16] : memref<8x256xf32, #tpu.memory_space<vmem>>, vector<8x256xf32>
      tpu.vector_store %arg6[%c0_15, %c0_16], %17 {strides = array<i32>} : memref<8x256xf32, #tpu.memory_space<vmem>>, vector<8x256xf32>,
    } else {
    }
    return
  }
  func.func @transform_0(%arg0: i32, %arg1: i32, %arg2: i32) -> (i32, i32) {
    %c0_i32 = arith.constant 0 : i32
    return %arg0, %arg2 : i32, i32
  }
  func.func @transform_1(%arg0: i32, %arg1: i32, %arg2: i32) -> (i32, i32) {
    %c0_i32 = arith.constant 0 : i32
    return %arg2, %arg1 : i32, i32
  }
  func.func @transform_2(%arg0: i32, %arg1: i32, %arg2: i32) -> (i32, i32) {
    %c0_i32 = arith.constant 0 : i32
    %c0_i32_0 = arith.constant 0 : i32
    return %c0_i32, %arg1 : i32, i32
  }
  func.func @transform_3(%arg0: i32, %arg1: i32, %arg2: i32) -> (i32, i32) {
    %c0_i32 = arith.constant 0 : i32
    return %arg0, %arg1 : i32, i32
  }
}

module attributes {stable_mosaic.version = 11 : i64} {
  func.func @_fused_mm_kernel(%arg0: i32, %arg1: i32, %arg2: i32, %arg3: memref<8x504xbf16, #tpu.memory_space<vmem>>, %arg4: memref<504x128xbf16, #tpu.memory_space<vmem>>, %arg5: memref<1x128xf32, #tpu.memory_space<vmem>>, %arg6: memref<8x128xf32, #tpu.memory_space<vmem>>, %arg7: memref<8x128xf32, #tpu.memory_space<vmem>>) attributes {dimension_semantics = [#tpu.dimension_semantics<parallel>, #tpu.dimension_semantics<parallel>, #tpu.dimension_semantics<arbitrary>], iteration_bounds = array<i64: 1, 1, 1>, scalar_prefetch = 0 : i64, scratch_operands = 1 : i64, tpu.core_type = #tpu.core_type<tc>, window_params = [{transform_indices = @transform_0, window_bounds = array<i64: 8, 504>}, {transform_indices = @transform_1, window_bounds = array<i64: 504, 128>}, {transform_indices = @transform_2, window_bounds = array<i64: 1, 128>}, {transform_indices = @transform_3, window_bounds = array<i64: 8, 128>}]} {
    %c0_i32 = arith.constant 0 : i32
    %0 = arith.cmpi eq, %arg2, %c0_i32 : i32
    %1 = arith.extui %0 : i1 to i32
    %c0_i32_0 = arith.constant 0 : i32
    %2 = arith.cmpi ne, %1, %c0_i32_0 : i32
    scf.if %2 {
      %cst_10 = arith.constant 0.000000e+00 : f32
      %12 = vector.broadcast %cst_10 : f32 to vector<8x128xf32>
      %c0_11 = arith.constant 0 : index
      %c0_12 = arith.constant 0 : index
      %13 = vector.load %arg7[%c0_11, %c0_12] : memref<8x128xf32, #tpu.memory_space<vmem>>, vector<8x128xf32>
      tpu.vector_store %arg7[%c0_11, %c0_12], %12 {strides = array<i32>} : memref<8x128xf32, #tpu.memory_space<vmem>>, vector<8x128xf32>,
    } else {
    }
    %c0 = arith.constant 0 : index
    %c0_1 = arith.constant 0 : index
    %3 = vector.load %arg7[%c0, %c0_1] : memref<8x128xf32, #tpu.memory_space<vmem>>, vector<8x128xf32>
    %c0_2 = arith.constant 0 : index
    %c0_3 = arith.constant 0 : index
    %4 = vector.load %arg3[%c0_2, %c0_3] : memref<8x504xbf16, #tpu.memory_space<vmem>>, vector<8x504xbf16>
    %c0_4 = arith.constant 0 : index
    %c0_5 = arith.constant 0 : index
    %5 = vector.load %arg4[%c0_4, %c0_5] : memref<504x128xbf16, #tpu.memory_space<vmem>>, vector<504x128xbf16>
    %cst = arith.constant dense<0.000000e+00> : vector<8x128xf32>
    %6 = tpu.matmul %4, %5, %cst {dimension_numbers = #tpu.dot_dimension_numbers<[1], [0], [0], [1], [0, 0, 1, 1], [], []>} : vector<8x504xbf16>, vector<504x128xbf16>, vector<8x128xf32> -> vector<8x128xf32>
    %7 = arith.addf %3, %6 : vector<8x128xf32>
    %c0_6 = arith.constant 0 : index
    %c0_7 = arith.constant 0 : index
    %8 = vector.load %arg7[%c0_6, %c0_7] : memref<8x128xf32, #tpu.memory_space<vmem>>, vector<8x128xf32>
    tpu.vector_store %arg7[%c0_6, %c0_7], %7 {strides = array<i32>} : memref<8x128xf32, #tpu.memory_space<vmem>>, vector<8x128xf32>,
    %c0_i32_8 = arith.constant 0 : i32
    %9 = arith.cmpi eq, %arg2, %c0_i32_8 : i32
    %10 = arith.extui %9 : i1 to i32
    %c0_i32_9 = arith.constant 0 : i32
    %11 = arith.cmpi ne, %10, %c0_i32_9 : i32
    scf.if %11 {
      %c0_10 = arith.constant 0 : index
      %c0_11 = arith.constant 0 : index
      %12 = vector.load %arg7[%c0_10, %c0_11] : memref<8x128xf32, #tpu.memory_space<vmem>>, vector<8x128xf32>
      %c0_12 = arith.constant 0 : index
      %c0_13 = arith.constant 0 : index
      %13 = vector.load %arg5[%c0_12, %c0_13] : memref<1x128xf32, #tpu.memory_space<vmem>>, vector<1x128xf32>
      %14 = vector.broadcast %13 : vector<1x128xf32> to vector<8x128xf32>
      %15 = arith.addf %12, %14 : vector<8x128xf32>
      %c0_14 = arith.constant 0 : index
      %c0_15 = arith.constant 0 : index
      %16 = vector.load %arg6[%c0_14, %c0_15] : memref<8x128xf32, #tpu.memory_space<vmem>>, vector<8x128xf32>
      tpu.vector_store %arg6[%c0_14, %c0_15], %15 {strides = array<i32>} : memref<8x128xf32, #tpu.memory_space<vmem>>, vector<8x128xf32>,
    } else {
    }
    return
  }
  func.func @transform_0(%arg0: i32, %arg1: i32, %arg2: i32) -> (i32, i32) {
    %c0_i32 = arith.constant 0 : i32
    return %arg0, %arg2 : i32, i32
  }
  func.func @transform_1(%arg0: i32, %arg1: i32, %arg2: i32) -> (i32, i32) {
    %c0_i32 = arith.constant 0 : i32
    return %arg2, %arg1 : i32, i32
  }
  func.func @transform_2(%arg0: i32, %arg1: i32, %arg2: i32) -> (i32, i32) {
    %c0_i32 = arith.constant 0 : i32
    %c0_i32_0 = arith.constant 0 : i32
    return %c0_i32, %arg1 : i32, i32
  }
  func.func @transform_3(%arg0: i32, %arg1: i32, %arg2: i32) -> (i32, i32) {
    %c0_i32 = arith.constant 0 : i32
    return %arg0, %arg1 : i32, i32
  }
}

</mosaic_0001>

<llo_original>
// kernel: _lambda_.6
$region0: #{_lambda_.6}
  #allocation0 [shape = 'u32[]', space=smem, size = 0x4, offset = 0x4, fixed_abs, tag = 'smem constant byte address 0x4 - core index']
  #allocation1 [shape = 'u32[72,128]{1,0:T(1,128)}', space=vmem, size = 0x9000, scoped, tag = 'internal scratch']
  #allocation2 [shape = 'f32[512,128]{1,0:T(8,128)}', space=vmem, size = 0x40000, scoped, tag = 'scratch operand']
  %s0 = inlined_call_operand.vmem [shape: bf16[1024,16], index: 0, kind: input, shape index: {}]
  %s1 = inlined_call_operand.hbm [shape: bf16[16,128], index: 1, kind: input, shape index: {}]
  %s2 = inlined_call_operand.hbm [shape: f32[1,128], index: 2, kind: input, shape index: {}]
  %s3 = inlined_call_operand.hbm [shape: f32[1,128], index: 3, kind: input, shape index: {}]
  %s4 = inlined_call_operand.hbm [shape: f32[1,128], index: 4, kind: input, shape index: {}]
  %s5 = inlined_call_operand.vmem [shape: f32[1024,128], index: 5, kind: output, shape index: {}]
  %s6 = sld [smem:[#allocation0]]
  $region77: #{_lambda_.6} parent=0
    _
  %s8 = ssub.s32 1, %s6
  %s9 = scalar_select 0, %s8, %s6
  $region1: #{_lambda_.6} parent=0
    #allocation3 [shape = 'u8[4096]{0}', space=vmem, size = 0x1000, scoped, tag = 'input window, operand 1, single buffered']
    #allocation4 [shape = 's32[2]{0}', space=sflag, size = 0x8, scoped, tag = 'scoped memory for _lambda_.6']
    #allocation5 [shape = 'u8[512]{0}', space=vmem, size = 0x400, scoped, tag = 'input window, operand 2, single buffered']
    #allocation6 [shape = 's32[1]{0}', space=sflag, size = 0x4, scoped, tag = 'scoped memory for _lambda_.6']
    #allocation7 [shape = 'u8[512]{0}', space=vmem, size = 0x400, scoped, tag = 'input window, operand 3, single buffered']
    #allocation8 [shape = 'u8[512]{0}', space=vmem, size = 0x400, scoped, tag = 'input window, operand 4, single buffered']
    #allocation9 [shape = 's32[1]{0}', space=sflag, size = 0x4, scoped, tag = 'scoped memory for _lambda_.6']
    %10 = vsyncpa [#allocation4], 0
    %11 = vsyncpa [#allocation6], 0
    %12 = vsyncpa [#allocation9], 0
    loop: start=0, step=1, limit=4
    $region2: #{_lambda_.6} parent=1 // loop_pre_header
      _
    $region3: #{_lambda_.6} parent=1 // loop_header
      %s14 = sphi 0, %s18
      %p15 = scmp.ge.s32.totalorder %s14, 4
      %s21 = sphi 0, %s40
      %s22 = sphi 0, %s36
      %s23 = sphi 0, %s32
      %s24 = sphi 0, %s21
      %s25 = sphi 0, %s22
      %s26 = sphi 0, %s23
      %s27 = sphi 0, %s24
      %s28 = sphi 0, %s25
      %s29 = sphi 0, %s26
      %s45 = sphi 0, %s47
      %s48 = sphi 0, %s45
      %s49 = sphi 0, %s48
      %s65 = sphi 0, %s49
      %s73 = sphi 0, %s75
      %s76 = sphi 0, %s73
      %s77 = sphi 0, %s76
      %s93 = sphi 0, %s77
      %s99 = sphi 0, %s101
      %s102 = sphi 0, %s99
      %s103 = sphi 0, %s102
      %s119 = sphi 0, %s103
      %s125 = sphi 0, %s127
      %s128 = sphi 0, %s125
      %s129 = sphi 0, %s128
      %s145 = sphi 0, %s129
      %s151 = sphi 0, %s153
      %s154 = sphi 0, %s151
      %s155 = sphi 0, %s154
      %s171 = sphi 0, %s155
      %s179 = sphi 0, %s181
      %s182 = sphi 0, %s179
      %s183 = sphi 0, %s182
      %s199 = sphi 0, %s183
    $region4: #{_lambda_.6} parent=1 // loop_header_branch
      %17 = sbr.rel (%p15) target = $region8
    $region5: #{_lambda_.6} parent=1 // loop_body
      %s19 = ssub.s32 %s14, 1
      %s20 = ssub.s32 %s14, 2
      %s30 = sadd.s32 1, %s23
      %p31 = scmp.ge.s32.totalorder %s30, 1
      %s32 = scalar_select %p31, 0, %s30
      %s33 = sadd.s32 1, %s22
      %s34 = scalar_select %p31, %s33, %s22
      %p35 = scmp.ge.s32.totalorder %s34, 1
      %s36 = scalar_select %p35, 0, %s34
      %s37 = sadd.s32 1, %s21
      %s38 = scalar_select %p35, %s37, %s21
      %p39 = scmp.ge.s32.totalorder %s38, 2
      %s40 = scalar_select %p39, 0, %s38
      %s41 = ssub.s32 %s21, %s40
      %s42 = ssub.s32 %s23, %s32
      %s43 = sor.u32 %s41, %s42
      %p44 = scmp.eq.s32.totalorder %s43, 0
      %s46 = sadd.s32 %s45, 1
      %s47 = scalar_select %p44, %s45, %s46
      %p50 = pneg %p44
      %p51 = scmp.eq.s32.totalorder %s14, 1
      %p52 = por %p50, %p51
      %p53 = scmp.ne.s32.totalorder %s45, %s48
      %p54 = scmp.eq.s32.totalorder %s14, 0
      %p55 = por %p53, %p54
      %p56 = scmp.ne.s32.totalorder %s45, %s48
      %p57 = scmp.eq.s32.totalorder %s19, 1
      %p58 = por %p56, %p57
      %p59 = scmp.ne.s32.totalorder %s48, %s49
      %p60 = scmp.eq.s32.totalorder %s19, 0
      %p61 = por %p59, %p60
      %p62 = scmp.ne.s32.totalorder %s48, %s49
      %p63 = scmp.eq.s32.totalorder %s20, 1
      %p64 = por %p62, %p63
      %p66 = scmp.ne.s32.totalorder %s49, %s65
      %p67 = scmp.eq.s32.totalorder %s20, 0
      %p68 = por %p66, %p67
      %s69 = ssub.s32 %s23, %s32
      %s70 = ssub.s32 %s22, %s36
      %s71 = sor.u32 %s69, %s70
      %p72 = scmp.eq.s32.totalorder %s71, 0
      %s74 = sadd.s32 %s73, 1
      %s75 = scalar_select %p72, %s73, %s74
      %p78 = pneg %p72
      %p79 = scmp.eq.s32.totalorder %s14, 1
      %p80 = por %p78, %p79
      %p81 = scmp.ne.s32.totalorder %s73, %s76
      %p82 = scmp.eq.s32.totalorder %s14, 0
      %p83 = por %p81, %p82
      %p84 = scmp.ne.s32.totalorder %s73, %s76
      %p85 = scmp.eq.s32.totalorder %s19, 1
      %p86 = por %p84, %p85
      %p87 = scmp.ne.s32.totalorder %s76, %s77
      %p88 = scmp.eq.s32.totalorder %s19, 0
      %p89 = por %p87, %p88
      %p90 = scmp.ne.s32.totalorder %s76, %s77
      %p91 = scmp.eq.s32.totalorder %s20, 1
      %p92 = por %p90, %p91
      %p94 = scmp.ne.s32.totalorder %s77, %s93
      %p95 = scmp.eq.s32.totalorder %s20, 0
      %p96 = por %p94, %p95
      %s97 = ssub.s32 %s22, %s36
      %p98 = scmp.eq.s32.totalorder %s97, 0
      %s100 = sadd.s32 %s99, 1
      %s101 = scalar_select %p98, %s99, %s100
      %p104 = pneg %p98
      %p105 = scmp.eq.s32.totalorder %s14, 1
      %p106 = por %p104, %p105
      %p107 = scmp.ne.s32.totalorder %s99, %s102
      %p108 = scmp.eq.s32.totalorder %s14, 0
      %p109 = por %p107, %p108
      %p110 = scmp.ne.s32.totalorder %s99, %s102
      %p111 = scmp.eq.s32.totalorder %s19, 1
      %p112 = por %p110, %p111
      %p113 = scmp.ne.s32.totalorder %s102, %s103
      %p114 = scmp.eq.s32.totalorder %s19, 0
      %p115 = por %p113, %p114
      %p116 = scmp.ne.s32.totalorder %s102, %s103
      %p117 = scmp.eq.s32.totalorder %s20, 1
      %p118 = por %p116, %p117
      %p120 = scmp.ne.s32.totalorder %s103, %s119
      %p121 = scmp.eq.s32.totalorder %s20, 0
      %p122 = por %p120, %p121
      %s123 = ssub.s32 %s22, %s36
      %p124 = scmp.eq.s32.totalorder %s123, 0
      %s126 = sadd.s32 %s125, 1
      %s127 = scalar_select %p124, %s125, %s126
      %p130 = pneg %p124
      %p131 = scmp.eq.s32.totalorder %s14, 1
      %p132 = por %p130, %p131
      %p133 = scmp.ne.s32.totalorder %s125, %s128
      %p134 = scmp.eq.s32.totalorder %s14, 0
      %p135 = por %p133, %p134
      %p136 = scmp.ne.s32.totalorder %s125, %s128
      %p137 = scmp.eq.s32.totalorder %s19, 1
      %p138 = por %p136, %p137
      %p139 = scmp.ne.s32.totalorder %s128, %s129
      %p140 = scmp.eq.s32.totalorder %s19, 0
      %p141 = por %p139, %p140
      %p142 = scmp.ne.s32.totalorder %s128, %s129
      %p143 = scmp.eq.s32.totalorder %s20, 1
      %p144 = por %p142, %p143
      %p146 = scmp.ne.s32.totalorder %s129, %s145
      %p147 = scmp.eq.s32.totalorder %s20, 0
      %p148 = por %p146, %p147
      %s149 = ssub.s32 %s22, %s36
      %p150 = scmp.eq.s32.totalorder %s149, 0
      %s152 = sadd.s32 %s151, 1
      %s153 = scalar_select %p150, %s151, %s152
      %p156 = pneg %p150
      %p157 = scmp.eq.s32.totalorder %s14, 1
      %p158 = por %p156, %p157
      %p159 = scmp.ne.s32.totalorder %s151, %s154
      %p160 = scmp.eq.s32.totalorder %s14, 0
      %p161 = por %p159, %p160
      %p162 = scmp.ne.s32.totalorder %s151, %s154
      %p163 = scmp.eq.s32.totalorder %s19, 1
      %p164 = por %p162, %p163
      %p165 = scmp.ne.s32.totalorder %s154, %s155
      %p166 = scmp.eq.s32.totalorder %s19, 0
      %p167 = por %p165, %p166
      %p168 = scmp.ne.s32.totalorder %s154, %s155
      %p169 = scmp.eq.s32.totalorder %s20, 1
      %p170 = por %p168, %p169
      %p172 = scmp.ne.s32.totalorder %s155, %s171
      %p173 = scmp.eq.s32.totalorder %s20, 0
      %p174 = por %p172, %p173
      %s175 = ssub.s32 %s21, %s40
      %s176 = ssub.s32 %s22, %s36
      %s177 = sor.u32 %s175, %s176
      %p178 = scmp.eq.s32.totalorder %s177, 0
      %s180 = sadd.s32 %s179, 1
      %s181 = scalar_select %p178, %s179, %s180
      %p184 = pneg %p178
      %p185 = scmp.eq.s32.totalorder %s14, 1
      %p186 = por %p184, %p185
      %p187 = scmp.ne.s32.totalorder %s179, %s182
      %p188 = scmp.eq.s32.totalorder %s14, 0
      %p189 = por %p187, %p188
      %p190 = scmp.ne.s32.totalorder %s179, %s182
      %p191 = scmp.eq.s32.totalorder %s19, 1
      %p192 = por %p190, %p191
      %p193 = scmp.ne.s32.totalorder %s182, %s183
      %p194 = scmp.eq.s32.totalorder %s19, 0
      %p195 = por %p193, %p194
      %p196 = scmp.ne.s32.totalorder %s182, %s183
      %p197 = scmp.eq.s32.totalorder %s20, 1
      %p198 = por %p196, %p197
      %p200 = scmp.ne.s32.totalorder %s183, %s199
      %p201 = scmp.eq.s32.totalorder %s20, 0
      %p202 = por %p200, %p201
      %p203 = scmp.le.s32.totalorder 1, %s14
      %p204 = scmp.lt.s32.totalorder %s14, 3
      %p205 = pnand %p203, %p204
      %p206 = pneg %p205
      // Predicated region
      $region9: #{_lambda_.6} parent=5 // pred_check
        _
      $region10: #{_lambda_.6} parent=5 // pred_check_branch
        %208 = sbr.rel (%p205) target = $region12
      $region11: #{_lambda_.6} parent=5 // pred_region
        %s209 = ssub.s32 %s14, 1
        // Predicated region
        $region13: #{_lambda_.6} parent=11 // pred_check
          %p210 = pneg %p89
        $region14: #{_lambda_.6} parent=11 // pred_check_branch
          %212 = sbr.rel (%p210) target = $region16
        $region15: #{_lambda_.6} parent=11 // pred_region
          %s213 = smul.u32 2, %s26
          %215 = vsyncadd [#allocation4], 0
          %s216 = sadd.s32 %s25, %s213
          %s217 = smul.addr %s216, 4
          %s218 = scalar_lea.hbm %s1, %s217
          %s219 = sshll.u32 %s218, 4
          %s220 = int_to_ptr.hbm [resolvable:$true] %s219
          %s221 = sshll.u32 [#allocation3], 4
          %s222 = int_to_ptr.vmem [resolvable:$true] %s221
          %227 = dma.hbm_to_vmem [thread:$0]  %s220, 128, %s222, [#allocation4], 64, 64, 4
        $region16: #{_lambda_.6} parent=11 // pred_fallthru
          _
        // Predicated region
        $region17: #{_lambda_.6} parent=11 // pred_check
          %p228 = pneg %p115
        $region18: #{_lambda_.6} parent=11 // pred_check_branch
          %230 = sbr.rel (%p228) target = $region20
        $region19: #{_lambda_.6} parent=11 // pred_region
          %232 = vsyncadd [#allocation6], 0
          %s233 = scalar_lea.hbm %s2, %s25
          %s235 = sshll.u32 %s233, 4
          %s236 = int_to_ptr.hbm [resolvable:$true] %s235
          %s237 = sshll.u32 [#allocation5], 4
          %s238 = int_to_ptr.vmem [resolvable:$true] %s237
          %240 = dma.hbm_to_vmem [thread:$0]  %s236, 16, %s238, [#allocation6]
        $region20: #{_lambda_.6} parent=11 // pred_fallthru
          _
        // Predicated region
        $region21: #{_lambda_.6} parent=11 // pred_check
          %p241 = pneg %p141
        $region22: #{_lambda_.6} parent=11 // pred_check_branch
          %243 = sbr.rel (%p241) target = $region24
        $region23: #{_lambda_.6} parent=11 // pred_region
          %245 = vsyncadd [#allocation6], 0
          %s246 = scalar_lea.hbm %s3, %s25
          %s248 = sshll.u32 %s246, 4
          %s249 = int_to_ptr.hbm [resolvable:$true] %s248
          %s250 = sshll.u32 [#allocation7], 4
          %s251 = int_to_ptr.vmem [resolvable:$true] %s250
          %253 = dma.hbm_to_vmem [thread:$0]  %s249, 16, %s251, [#allocation6]
        $region24: #{_lambda_.6} parent=11 // pred_fallthru
          _
        // Predicated region
        $region25: #{_lambda_.6} parent=11 // pred_check
          %p254 = pneg %p167
        $region26: #{_lambda_.6} parent=11 // pred_check_branch
          %256 = sbr.rel (%p254) target = $region28
        $region27: #{_lambda_.6} parent=11 // pred_region
          %258 = vsyncadd [#allocation9], 0
          %s259 = scalar_lea.hbm %s4, %s25
          %s261 = sshll.u32 %s259, 4
          %s262 = int_to_ptr.hbm [resolvable:$true] %s261
          %s263 = sshll.u32 [#allocation8], 4
          %s264 = int_to_ptr.vmem [resolvable:$true] %s263
          %266 = dma.hbm_to_vmem [thread:$0]  %s262, 16, %s264, [#allocation9]
        $region28: #{_lambda_.6} parent=11 // pred_fallthru
          _
      $region12: #{_lambda_.6} parent=5 // pred_fallthru
        _
      %p267 = scmp.lt.s32.totalorder %s14, 2
      // Predicated region
      $region29: #{_lambda_.6} parent=5 // pred_check
        %p268 = pneg %p267
      $region30: #{_lambda_.6} parent=5 // pred_check_branch
        %270 = sbr.rel (%p268) target = $region32
      $region31: #{_lambda_.6} parent=5 // pred_region
        // Predicated region
        $region33: #{_lambda_.6} parent=31 // pred_check
          %p271 = pneg %p55
        $region34: #{_lambda_.6} parent=31 // pred_check_branch
          %273 = sbr.rel (%p271) target = $region36
        $region35: #{_lambda_.6} parent=31 // pred_region
          %s274 = smul.u32 64, %s21
          %p275 = scmp.lt.s32.totalorder %s274, 127
          %s276 = scalar_select %p275, %s274, 127
          %p277 = scmp.lt.s32.totalorder %s23, 0
          %s278 = scalar_select %p277, %s23, 0
          %s279 = sadd.s32 %s278, %s276
          %s280 = smul.addr %s279, 4
          %s281 = scalar_lea.vmem %s0, %s280
          %s282 = smul.u32 64, %s21
        $region36: #{_lambda_.6} parent=31 // pred_fallthru
          _
      $region32: #{_lambda_.6} parent=5 // pred_fallthru
        _
      %p283 = scmp.le.s32.totalorder 1, %s14
      %p284 = scmp.lt.s32.totalorder %s14, 3
      %p285 = pnand %p283, %p284
      %p286 = pneg %p285
      // Predicated region
      $region37: #{_lambda_.6} parent=5 // pred_check
        _
      $region38: #{_lambda_.6} parent=5 // pred_check_branch
        %288 = sbr.rel (%p285) target = $region40
      $region39: #{_lambda_.6} parent=5 // pred_region
        %s289 = ssub.s32 %s14, 1
        // Predicated region
        $region41: #{_lambda_.6} parent=39 // pred_check
          %p290 = pneg %p89
        $region42: #{_lambda_.6} parent=39 // pred_check_branch
          %292 = sbr.rel (%p290) target = $region44
        $region43: #{_lambda_.6} parent=39 // pred_region
          %294 = dma.done [#allocation4], 128
        $region44: #{_lambda_.6} parent=39 // pred_fallthru
          _
        // Predicated region
        $region45: #{_lambda_.6} parent=39 // pred_check
          %p295 = pneg %p115
        $region46: #{_lambda_.6} parent=39 // pred_check_branch
          %297 = sbr.rel (%p295) target = $region48
        $region47: #{_lambda_.6} parent=39 // pred_region
          %299 = dma.done [#allocation6], 16
        $region48: #{_lambda_.6} parent=39 // pred_fallthru
          _
        // Predicated region
        $region49: #{_lambda_.6} parent=39 // pred_check
          %p300 = pneg %p141
        $region50: #{_lambda_.6} parent=39 // pred_check_branch
          %302 = sbr.rel (%p300) target = $region52
        $region51: #{_lambda_.6} parent=39 // pred_region
          %304 = dma.done [#allocation6], 16
        $region52: #{_lambda_.6} parent=39 // pred_fallthru
          _
        // Predicated region
        $region53: #{_lambda_.6} parent=39 // pred_check
          %p305 = pneg %p167
        $region54: #{_lambda_.6} parent=39 // pred_check_branch
          %307 = sbr.rel (%p305) target = $region56
        $region55: #{_lambda_.6} parent=39 // pred_region
          %309 = dma.done [#allocation9], 16
        $region56: #{_lambda_.6} parent=39 // pred_fallthru
          _
        %s310 = smul.u32 64, %s24
        %p311 = scmp.lt.s32.totalorder %s310, 127
        %s312 = scalar_select %p311, %s310, 127
        %p313 = scmp.lt.s32.totalorder %s26, 0
        %s314 = scalar_select %p313, %s26, 0
        %s315 = sadd.s32 %s314, %s312
        %s316 = smul.addr %s315, 4
        %s317 = scalar_lea.vmem %s0, %s316
        %p318 = pneg %p61
        %p319 = pneg %p58
        %p320 = pneg %p89
        %p321 = pneg %p86
        %p322 = pneg %p115
        %p323 = pneg %p112
        %p324 = pneg %p141
        %p325 = pneg %p138
        %p326 = pneg %p167
        %p327 = pneg %p164
        %p328 = pneg %p195
        %p329 = pneg %p192
        %s330 = smul.u32 64, %s24
        %p331 = scmp.lt.s32.totalorder %s330, 127
        %s332 = scalar_select %p331, %s330, 127
        %p333 = scmp.lt.s32.totalorder %s25, 0
        %s334 = scalar_select %p333, %s25, 0
        %s335 = sadd.s32 %s334, %s332
        %s336 = smul.addr %s335, 8
        %s337 = scalar_lea.vmem %s5, %s336
        %s338 = smul.u32 64, %s24
        %p339 = scmp.lt.s32.totalorder %s338, 127
        %s340 = scalar_select %p339, %s338, 127
        %p341 = scmp.lt.s32.totalorder %s26, 0
        %s342 = scalar_select %p341, %s26, 0
        %s343 = sadd.s32 %s342, %s340
        %s344 = smul.addr %s343, 4
        %s345 = scalar_lea.vmem %s0, %s344
        %s346 = smul.u32 64, %s24
        %s347 = smul.u32 2, %s26
        %s348 = smul.u32 64, %s24
        %p349 = scmp.lt.s32.totalorder %s348, 127
        %s350 = scalar_select %p349, %s348, 127
        %p351 = scmp.lt.s32.totalorder %s25, 0
        %s352 = scalar_select %p351, %s25, 0
        %s353 = sadd.s32 %s352, %s350
        %s354 = smul.addr %s353, 8
        %s355 = scalar_lea.vmem %s5, %s354
        %s356 = smul.u32 64, %s24
        %p358 = scmp.eq.s32.totalorder %s26, 0
        // Predicated region
        $region57: #{_lambda_.6} parent=39 // pred_check
          %p359 = pneg %p358
        $region58: #{_lambda_.6} parent=39 // pred_check_branch
          %361 = sbr.rel (%p359) target = $region60
        $region59: #{_lambda_.6} parent=39 // pred_region
          %362 = vst [vmem:[#allocation2] sm:$0xff] 0.0
          %363 = vst [vmem:[#allocation2 + $0x8] sm:$0xff] 0.0
          %364 = vst [vmem:[#allocation2 + $0x10] sm:$0xff] 0.0
          %365 = vst [vmem:[#allocation2 + $0x18] sm:$0xff] 0.0
          %366 = vst [vmem:[#allocation2 + $0x20] sm:$0xff] 0.0
          %367 = vst [vmem:[#allocation2 + $0x28] sm:$0xff] 0.0
          %368 = vst [vmem:[#allocation2 + $0x30] sm:$0xff] 0.0
          %369 = vst [vmem:[#allocation2 + $0x38] sm:$0xff] 0.0
          %370 = vst [vmem:[#allocation2 + $0x40] sm:$0xff] 0.0
          %371 = vst [vmem:[#allocation2 + $0x48] sm:$0xff] 0.0
          %372 = vst [vmem:[#allocation2 + $0x50] sm:$0xff] 0.0
          %373 = vst [vmem:[#allocation2 + $0x58] sm:$0xff] 0.0
          %374 = vst [vmem:[#allocation2 + $0x60] sm:$0xff] 0.0
          %375 = vst [vmem:[#allocation2 + $0x68] sm:$0xff] 0.0
          %376 = vst [vmem:[#allocation2 + $0x70] sm:$0xff] 0.0
          %377 = vst [vmem:[#allocation2 + $0x78] sm:$0xff] 0.0
          %378 = vst [vmem:[#allocation2 + $0x80] sm:$0xff] 0.0
          %379 = vst [vmem:[#allocation2 + $0x88] sm:$0xff] 0.0
          %380 = vst [vmem:[#allocation2 + $0x90] sm:$0xff] 0.0
          %381 = vst [vmem:[#allocation2 + $0x98] sm:$0xff] 0.0
          %382 = vst [vmem:[#allocation2 + $0xa0] sm:$0xff] 0.0
          %383 = vst [vmem:[#allocation2 + $0xa8] sm:$0xff] 0.0
          %384 = vst [vmem:[#allocation2 + $0xb0] sm:$0xff] 0.0
          %385 = vst [vmem:[#allocation2 + $0xb8] sm:$0xff] 0.0
          %386 = vst [vmem:[#allocation2 + $0xc0] sm:$0xff] 0.0
          %387 = vst [vmem:[#allocation2 + $0xc8] sm:$0xff] 0.0
          %388 = vst [vmem:[#allocation2 + $0xd0] sm:$0xff] 0.0
          %389 = vst [vmem:[#allocation2 + $0xd8] sm:$0xff] 0.0
          %390 = vst [vmem:[#allocation2 + $0xe0] sm:$0xff] 0.0
          %391 = vst [vmem:[#allocation2 + $0xe8] sm:$0xff] 0.0
          %392 = vst [vmem:[#allocation2 + $0xf0] sm:$0xff] 0.0
          %393 = vst [vmem:[#allocation2 + $0xf8] sm:$0xff] 0.0
          %394 = vst [vmem:[#allocation2 + $0x100] sm:$0xff] 0.0
          %395 = vst [vmem:[#allocation2 + $0x108] sm:$0xff] 0.0
          %396 = vst [vmem:[#allocation2 + $0x110] sm:$0xff] 0.0
          %397 = vst [vmem:[#allocation2 + $0x118] sm:$0xff] 0.0
          %398 = vst [vmem:[#allocation2 + $0x120] sm:$0xff] 0.0
          %399 = vst [vmem:[#allocation2 + $0x128] sm:$0xff] 0.0
          %400 = vst [vmem:[#allocation2 + $0x130] sm:$0xff] 0.0
          %401 = vst [vmem:[#allocation2 + $0x138] sm:$0xff] 0.0
          %402 = vst [vmem:[#allocation2 + $0x140] sm:$0xff] 0.0
          %403 = vst [vmem:[#allocation2 + $0x148] sm:$0xff] 0.0
          %404 = vst [vmem:[#allocation2 + $0x150] sm:$0xff] 0.0
          %405 = vst [vmem:[#allocation2 + $0x158] sm:$0xff] 0.0
          %406 = vst [vmem:[#allocation2 + $0x160] sm:$0xff] 0.0
          %407 = vst [vmem:[#allocation2 + $0x168] sm:$0xff] 0.0
          %408 = vst [vmem:[#allocation2 + $0x170] sm:$0xff] 0.0
          %409 = vst [vmem:[#allocation2 + $0x178] sm:$0xff] 0.0
          %410 = vst [vmem:[#allocation2 + $0x180] sm:$0xff] 0.0
          %411 = vst [vmem:[#allocation2 + $0x188] sm:$0xff] 0.0
          %412 = vst [vmem:[#allocation2 + $0x190] sm:$0xff] 0.0
          %413 = vst [vmem:[#allocation2 + $0x198] sm:$0xff] 0.0
          %414 = vst [vmem:[#allocation2 + $0x1a0] sm:$0xff] 0.0
          %415 = vst [vmem:[#allocation2 + $0x1a8] sm:$0xff] 0.0
          %416 = vst [vmem:[#allocation2 + $0x1b0] sm:$0xff] 0.0
          %417 = vst [vmem:[#allocation2 + $0x1b8] sm:$0xff] 0.0
          %418 = vst [vmem:[#allocation2 + $0x1c0] sm:$0xff] 0.0
          %419 = vst [vmem:[#allocation2 + $0x1c8] sm:$0xff] 0.0
          %420 = vst [vmem:[#allocation2 + $0x1d0] sm:$0xff] 0.0
          %421 = vst [vmem:[#allocation2 + $0x1d8] sm:$0xff] 0.0
          %422 = vst [vmem:[#allocation2 + $0x1e0] sm:$0xff] 0.0
          %423 = vst [vmem:[#allocation2 + $0x1e8] sm:$0xff] 0.0
          %424 = vst [vmem:[#allocation2 + $0x1f0] sm:$0xff] 0.0
          %425 = vst [vmem:[#allocation2 + $0x1f8] sm:$0xff] 0.0
        $region60: #{_lambda_.6} parent=39 // pred_fallthru
          _
        %v426 = vld [vmem:[#allocation2] sm:$0xff]
        %v427 = vld [vmem:[#allocation2 + $0x8] sm:$0xff]
        %v428 = vld [vmem:[#allocation2 + $0x10] sm:$0xff]
        %v429 = vld [vmem:[#allocation2 + $0x18] sm:$0xff]
        %v430 = vld [vmem:[#allocation2 + $0x20] sm:$0xff]
        %v431 = vld [vmem:[#allocation2 + $0x28] sm:$0xff]
        %v432 = vld [vmem:[#allocation2 + $0x30] sm:$0xff]
        %v433 = vld [vmem:[#allocation2 + $0x38] sm:$0xff]
        %v434 = vld [vmem:[#allocation2 + $0x40] sm:$0xff]
        %v435 = vld [vmem:[#allocation2 + $0x48] sm:$0xff]
        %v436 = vld [vmem:[#allocation2 + $0x50] sm:$0xff]
        %v437 = vld [vmem:[#allocation2 + $0x58] sm:$0xff]
        %v438 = vld [vmem:[#allocation2 + $0x60] sm:$0xff]
        %v439 = vld [vmem:[#allocation2 + $0x68] sm:$0xff]
        %v440 = vld [vmem:[#allocation2 + $0x70] sm:$0xff]
        %v441 = vld [vmem:[#allocation2 + $0x78] sm:$0xff]
        %v442 = vld [vmem:[#allocation2 + $0x80] sm:$0xff]
        %v443 = vld [vmem:[#allocation2 + $0x88] sm:$0xff]
        %v444 = vld [vmem:[#allocation2 + $0x90] sm:$0xff]
        %v445 = vld [vmem:[#allocation2 + $0x98] sm:$0xff]
        %v446 = vld [vmem:[#allocation2 + $0xa0] sm:$0xff]
        %v447 = vld [vmem:[#allocation2 + $0xa8] sm:$0xff]
        %v448 = vld [vmem:[#allocation2 + $0xb0] sm:$0xff]
        %v449 = vld [vmem:[#allocation2 + $0xb8] sm:$0xff]
        %v450 = vld [vmem:[#allocation2 + $0xc0] sm:$0xff]
        %v451 = vld [vmem:[#allocation2 + $0xc8] sm:$0xff]
        %v452 = vld [vmem:[#allocation2 + $0xd0] sm:$0xff]
        %v453 = vld [vmem:[#allocation2 + $0xd8] sm:$0xff]
        %v454 = vld [vmem:[#allocation2 + $0xe0] sm:$0xff]
        %v455 = vld [vmem:[#allocation2 + $0xe8] sm:$0xff]
        %v456 = vld [vmem:[#allocation2 + $0xf0] sm:$0xff]
        %v457 = vld [vmem:[#allocation2 + $0xf8] sm:$0xff]
        %v458 = vld [vmem:[#allocation2 + $0x100] sm:$0xff]
        %v459 = vld [vmem:[#allocation2 + $0x108] sm:$0xff]
        %v460 = vld [vmem:[#allocation2 + $0x110] sm:$0xff]
        %v461 = vld [vmem:[#allocation2 + $0x118] sm:$0xff]
        %v462 = vld [vmem:[#allocation2 + $0x120] sm:$0xff]
        %v463 = vld [vmem:[#allocation2 + $0x128] sm:$0xff]
        %v464 = vld [vmem:[#allocation2 + $0x130] sm:$0xff]
        %v465 = vld [vmem:[#allocation2 + $0x138] sm:$0xff]
        %v466 = vld [vmem:[#allocation2 + $0x140] sm:$0xff]
        %v467 = vld [vmem:[#allocation2 + $0x148] sm:$0xff]
        %v468 = vld [vmem:[#allocation2 + $0x150] sm:$0xff]
        %v469 = vld [vmem:[#allocation2 + $0x158] sm:$0xff]
        %v470 = vld [vmem:[#allocation2 + $0x160] sm:$0xff]
        %v471 = vld [vmem:[#allocation2 + $0x168] sm:$0xff]
        %v472 = vld [vmem:[#allocation2 + $0x170] sm:$0xff]
        %v473 = vld [vmem:[#allocation2 + $0x178] sm:$0xff]
        %v474 = vld [vmem:[#allocation2 + $0x180] sm:$0xff]
        %v475 = vld [vmem:[#allocation2 + $0x188] sm:$0xff]
        %v476 = vld [vmem:[#allocation2 + $0x190] sm:$0xff]
        %v477 = vld [vmem:[#allocation2 + $0x198] sm:$0xff]
        %v478 = vld [vmem:[#allocation2 + $0x1a0] sm:$0xff]
        %v479 = vld [vmem:[#allocation2 + $0x1a8] sm:$0xff]
        %v480 = vld [vmem:[#allocation2 + $0x1b0] sm:$0xff]
        %v481 = vld [vmem:[#allocation2 + $0x1b8] sm:$0xff]
        %v482 = vld [vmem:[#allocation2 + $0x1c0] sm:$0xff]
        %v483 = vld [vmem:[#allocation2 + $0x1c8] sm:$0xff]
        %v484 = vld [vmem:[#allocation2 + $0x1d0] sm:$0xff]
        %v485 = vld [vmem:[#allocation2 + $0x1d8] sm:$0xff]
        %v486 = vld [vmem:[#allocation2 + $0x1e0] sm:$0xff]
        %v487 = vld [vmem:[#allocation2 + $0x1e8] sm:$0xff]
        %v488 = vld [vmem:[#allocation2 + $0x1f0] sm:$0xff]
        %v489 = vld [vmem:[#allocation2 + $0x1f8] sm:$0xff]
        %v490 = vld [vmem:[%s345] sm:$0xf]
        %v491 = vld [vmem:[%s345 + $0x4] sm:$0xf]
        %v492 = vld [vmem:[%s345 + $0x8] sm:$0xf]
        %v493 = vld [vmem:[%s345 + $0xc] sm:$0xf]
        %v494 = vld [vmem:[%s345 + $0x10] sm:$0xf]
        %v495 = vld [vmem:[%s345 + $0x14] sm:$0xf]
        %v496 = vld [vmem:[%s345 + $0x18] sm:$0xf]
        %v497 = vld [vmem:[%s345 + $0x1c] sm:$0xf]
        %v498 = vld [vmem:[%s345 + $0x20] sm:$0xf]
        %v499 = vld [vmem:[%s345 + $0x24] sm:$0xf]
        %v500 = vld [vmem:[%s345 + $0x28] sm:$0xf]
        %v501 = vld [vmem:[%s345 + $0x2c] sm:$0xf]
        %v502 = vld [vmem:[%s345 + $0x30] sm:$0xf]
        %v503 = vld [vmem:[%s345 + $0x34] sm:$0xf]
        %v504 = vld [vmem:[%s345 + $0x38] sm:$0xf]
        %v505 = vld [vmem:[%s345 + $0x3c] sm:$0xf]
        %v506 = vld [vmem:[%s345 + $0x40] sm:$0xf]
        %v507 = vld [vmem:[%s345 + $0x44] sm:$0xf]
        %v508 = vld [vmem:[%s345 + $0x48] sm:$0xf]
        %v509 = vld [vmem:[%s345 + $0x4c] sm:$0xf]
        %v510 = vld [vmem:[%s345 + $0x50] sm:$0xf]
        %v511 = vld [vmem:[%s345 + $0x54] sm:$0xf]
        %v512 = vld [vmem:[%s345 + $0x58] sm:$0xf]
        %v513 = vld [vmem:[%s345 + $0x5c] sm:$0xf]
        %v514 = vld [vmem:[%s345 + $0x60] sm:$0xf]
        %v515 = vld [vmem:[%s345 + $0x64] sm:$0xf]
        %v516 = vld [vmem:[%s345 + $0x68] sm:$0xf]
        %v517 = vld [vmem:[%s345 + $0x6c] sm:$0xf]
        %v518 = vld [vmem:[%s345 + $0x70] sm:$0xf]
        %v519 = vld [vmem:[%s345 + $0x74] sm:$0xf]
        %v520 = vld [vmem:[%s345 + $0x78] sm:$0xf]
        %v521 = vld [vmem:[%s345 + $0x7c] sm:$0xf]
        %v522 = vld [vmem:[%s345 + $0x80] sm:$0xf]
        %v523 = vld [vmem:[%s345 + $0x84] sm:$0xf]
        %v524 = vld [vmem:[%s345 + $0x88] sm:$0xf]
        %v525 = vld [vmem:[%s345 + $0x8c] sm:$0xf]
        %v526 = vld [vmem:[%s345 + $0x90] sm:$0xf]
        %v527 = vld [vmem:[%s345 + $0x94] sm:$0xf]
        %v528 = vld [vmem:[%s345 + $0x98] sm:$0xf]
        %v529 = vld [vmem:[%s345 + $0x9c] sm:$0xf]
        %v530 = vld [vmem:[%s345 + $0xa0] sm:$0xf]
        %v531 = vld [vmem:[%s345 + $0xa4] sm:$0xf]
        %v532 = vld [vmem:[%s345 + $0xa8] sm:$0xf]
        %v533 = vld [vmem:[%s345 + $0xac] sm:$0xf]
        %v534 = vld [vmem:[%s345 + $0xb0] sm:$0xf]
        %v535 = vld [vmem:[%s345 + $0xb4] sm:$0xf]
        %v536 = vld [vmem:[%s345 + $0xb8] sm:$0xf]
        %v537 = vld [vmem:[%s345 + $0xbc] sm:$0xf]
        %v538 = vld [vmem:[%s345 + $0xc0] sm:$0xf]
        %v539 = vld [vmem:[%s345 + $0xc4] sm:$0xf]
        %v540 = vld [vmem:[%s345 + $0xc8] sm:$0xf]
        %v541 = vld [vmem:[%s345 + $0xcc] sm:$0xf]
        %v542 = vld [vmem:[%s345 + $0xd0] sm:$0xf]
        %v543 = vld [vmem:[%s345 + $0xd4] sm:$0xf]
        %v544 = vld [vmem:[%s345 + $0xd8] sm:$0xf]
        %v545 = vld [vmem:[%s345 + $0xdc] sm:$0xf]
        %v546 = vld [vmem:[%s345 + $0xe0] sm:$0xf]
        %v547 = vld [vmem:[%s345 + $0xe4] sm:$0xf]
        %v548 = vld [vmem:[%s345 + $0xe8] sm:$0xf]
        %v549 = vld [vmem:[%s345 + $0xec] sm:$0xf]
        %v550 = vld [vmem:[%s345 + $0xf0] sm:$0xf]
        %v551 = vld [vmem:[%s345 + $0xf4] sm:$0xf]
        %v552 = vld [vmem:[%s345 + $0xf8] sm:$0xf]
        %v553 = vld [vmem:[%s345 + $0xfc] sm:$0xf]
        %v554 = vld [vmem:[#allocation3] sm:$0xf]
        %v555 = vld [vmem:[#allocation3 + $0x4] sm:$0xf]
        %v620 = vunpack.c.l.b16 %v490
        %v621 = vunpack.c.l.b16 %v491
        %v622 = vunpack.c.l.b16 %v492
        %v623 = vunpack.c.l.b16 %v493
        %v624 = vunpack.c.l.b16 %v494
        %v625 = vunpack.c.l.b16 %v495
        %v626 = vunpack.c.l.b16 %v496
        %v627 = vunpack.c.l.b16 %v497
        %v628 = vunpack.c.l.b16 %v498
        %v629 = vunpack.c.l.b16 %v499
        %v630 = vunpack.c.l.b16 %v500
        %v631 = vunpack.c.l.b16 %v501
        %v632 = vunpack.c.l.b16 %v502
        %v633 = vunpack.c.l.b16 %v503
        %v634 = vunpack.c.l.b16 %v504
        %v635 = vunpack.c.l.b16 %v505
        %v636 = vunpack.c.l.b16 %v506
        %v637 = vunpack.c.l.b16 %v507
        %v638 = vunpack.c.l.b16 %v508
        %v639 = vunpack.c.l.b16 %v509
        %v640 = vunpack.c.l.b16 %v510
        %v641 = vunpack.c.l.b16 %v511
        %v642 = vunpack.c.l.b16 %v512
        %v643 = vunpack.c.l.b16 %v513
        %v644 = vunpack.c.l.b16 %v514
        %v645 = vunpack.c.l.b16 %v515
        %v646 = vunpack.c.l.b16 %v516
        %v647 = vunpack.c.l.b16 %v517
        %v648 = vunpack.c.l.b16 %v518
        %v649 = vunpack.c.l.b16 %v519
        %v650 = vunpack.c.l.b16 %v520
        %v651 = vunpack.c.l.b16 %v521
        %v652 = vunpack.c.l.b16 %v522
        %v653 = vunpack.c.l.b16 %v523
        %v654 = vunpack.c.l.b16 %v524
        %v655 = vunpack.c.l.b16 %v525
        %v656 = vunpack.c.l.b16 %v526
        %v657 = vunpack.c.l.b16 %v527
        %v658 = vunpack.c.l.b16 %v528
        %v659 = vunpack.c.l.b16 %v529
        %v660 = vunpack.c.l.b16 %v530
        %v661 = vunpack.c.l.b16 %v531
        %v662 = vunpack.c.l.b16 %v532
        %v663 = vunpack.c.l.b16 %v533
        %v664 = vunpack.c.l.b16 %v534
        %v665 = vunpack.c.l.b16 %v535
        %v666 = vunpack.c.l.b16 %v536
        %v667 = vunpack.c.l.b16 %v537
        %v668 = vunpack.c.l.b16 %v538
        %v669 = vunpack.c.l.b16 %v539
        %v670 = vunpack.c.l.b16 %v540
        %v671 = vunpack.c.l.b16 %v541
        %v672 = vunpack.c.l.b16 %v542
        %v673 = vunpack.c.l.b16 %v543
        %v674 = vunpack.c.l.b16 %v544
        %v675 = vunpack.c.l.b16 %v545
        %v676 = vunpack.c.l.b16 %v546
        %v677 = vunpack.c.l.b16 %v547
        %v678 = vunpack.c.l.b16 %v548
        %v679 = vunpack.c.l.b16 %v549
        %v680 = vunpack.c.l.b16 %v550
        %v681 = vunpack.c.l.b16 %v551
        %v682 = vunpack.c.l.b16 %v552
        %v683 = vunpack.c.l.b16 %v553
        %v684 = vpack.c.b16 %v621, %v620
        %v685 = vpack.c.b16 %v623, %v622
        %v686 = vpack.c.b16 %v625, %v624
        %v687 = vpack.c.b16 %v627, %v626
        %v688 = vpack.c.b16 %v629, %v628
        %v689 = vpack.c.b16 %v631, %v630
        %v690 = vpack.c.b16 %v633, %v632
        %v691 = vpack.c.b16 %v635, %v634
        %v692 = vpack.c.b16 %v637, %v636
        %v693 = vpack.c.b16 %v639, %v638
        %v694 = vpack.c.b16 %v641, %v640
        %v695 = vpack.c.b16 %v643, %v642
        %v696 = vpack.c.b16 %v645, %v644
        %v697 = vpack.c.b16 %v647, %v646
        %v698 = vpack.c.b16 %v649, %v648
        %v699 = vpack.c.b16 %v651, %v650
        %v700 = vpack.c.b16 %v653, %v652
        %v701 = vpack.c.b16 %v655, %v654
        %v702 = vpack.c.b16 %v657, %v656
        %v703 = vpack.c.b16 %v659, %v658
        %v704 = vpack.c.b16 %v661, %v660
        %v705 = vpack.c.b16 %v663, %v662
        %v706 = vpack.c.b16 %v665, %v664
        %v707 = vpack.c.b16 %v667, %v666
        %v708 = vpack.c.b16 %v669, %v668
        %v709 = vpack.c.b16 %v671, %v670
        %v710 = vpack.c.b16 %v673, %v672
        %v711 = vpack.c.b16 %v675, %v674
        %v712 = vpack.c.b16 %v677, %v676
        %v713 = vpack.c.b16 %v679, %v678
        %v714 = vpack.c.b16 %v681, %v680
        %v715 = vpack.c.b16 %v683, %v682
        %v718 = vunpack.c.l.b16 %v554
        %v719 = vunpack.c.l.b16 %v555
        %v720 = vpack.c.b16 %v719, %v718
        %vm722 = vcmask 130048
        %v724 = vsel %vm722, %v684, 0
        %v727 = vsel %vm722, %v685, 0
        %v730 = vsel %vm722, %v686, 0
        %v733 = vsel %vm722, %v687, 0
        %v736 = vsel %vm722, %v688, 0
        %v739 = vsel %vm722, %v689, 0
        %v742 = vsel %vm722, %v690, 0
        %v745 = vsel %vm722, %v691, 0
        %v748 = vsel %vm722, %v692, 0
        %v751 = vsel %vm722, %v693, 0
        %v754 = vsel %vm722, %v694, 0
        %v757 = vsel %vm722, %v695, 0
        %v760 = vsel %vm722, %v696, 0
        %v763 = vsel %vm722, %v697, 0
        %v766 = vsel %vm722, %v698, 0
        %v769 = vsel %vm722, %v699, 0
        %v772 = vsel %vm722, %v700, 0
        %v775 = vsel %vm722, %v701, 0
        %v778 = vsel %vm722, %v702, 0
        %v781 = vsel %vm722, %v703, 0
        %v784 = vsel %vm722, %v704, 0
        %v787 = vsel %vm722, %v705, 0
        %v790 = vsel %vm722, %v706, 0
        %v793 = vsel %vm722, %v707, 0
        %v796 = vsel %vm722, %v708, 0
        %v799 = vsel %vm722, %v709, 0
        %v802 = vsel %vm722, %v710, 0
        %v805 = vsel %vm722, %v711, 0
        %v808 = vsel %vm722, %v712, 0
        %v811 = vsel %vm722, %v713, 0
        %v814 = vsel %vm722, %v714, 0
        %v817 = vsel %vm722, %v715, 0
        %819 = vmatpush.bf16.msra.mxu0 0
        %820 = vmatpush.bf16.msra.mxu0 0
        %821 = vmatpush.bf16.msra.mxu0 0
        %822 = vmatpush.bf16.msra.mxu0 0
        %823 = vmatpush.bf16.msra.mxu0 0
        %824 = vmatpush.bf16.msra.mxu0 0
        %825 = vmatpush.bf16.msra.mxu0 0
        %826 = vmatpush.bf16.msra.mxu0 %v720
        %827 = vmatmul.bf16.gmra.mxu0 %v724
        %v828 = vpop.f32.mrf.mxu0
        %v829 = vadd.f32 0.0, %v828
        %v830 = vpop.f32.mrf.mxu0
        %v831 = vadd.f32 0.0, %v830
        %832 = vmatmul.bf16.gmra.mxu0 %v727
        %v833 = vpop.f32.mrf.mxu0
        %v834 = vadd.f32 0.0, %v833
        %v835 = vpop.f32.mrf.mxu0
        %v836 = vadd.f32 0.0, %v835
        %837 = vmatmul.bf16.gmra.mxu0 %v730
        %v838 = vpop.f32.mrf.mxu0
        %v839 = vadd.f32 0.0, %v838
        %v840 = vpop.f32.mrf.mxu0
        %v841 = vadd.f32 0.0, %v840
        %842 = vmatmul.bf16.gmra.mxu0 %v733
        %v843 = vpop.f32.mrf.mxu0
        %v844 = vadd.f32 0.0, %v843
        %v845 = vpop.f32.mrf.mxu0
        %v846 = vadd.f32 0.0, %v845
        %847 = vmatmul.bf16.gmra.mxu0 %v736
        %v848 = vpop.f32.mrf.mxu0
        %v849 = vadd.f32 0.0, %v848
        %v850 = vpop.f32.mrf.mxu0
        %v851 = vadd.f32 0.0, %v850
        %852 = vmatmul.bf16.gmra.mxu0 %v739
        %v853 = vpop.f32.mrf.mxu0
        %v854 = vadd.f32 0.0, %v853
        %v855 = vpop.f32.mrf.mxu0
        %v856 = vadd.f32 0.0, %v855
        %857 = vmatmul.bf16.gmra.mxu0 %v742
        %v858 = vpop.f32.mrf.mxu0
        %v859 = vadd.f32 0.0, %v858
        %v860 = vpop.f32.mrf.mxu0
        %v861 = vadd.f32 0.0, %v860
        %862 = vmatmul.bf16.gmra.mxu0 %v745
        %v863 = vpop.f32.mrf.mxu0
        %v864 = vadd.f32 0.0, %v863
        %v865 = vpop.f32.mrf.mxu0
        %v866 = vadd.f32 0.0, %v865
        %867 = vmatmul.bf16.gmra.mxu0 %v748
        %v868 = vpop.f32.mrf.mxu0
        %v869 = vadd.f32 0.0, %v868
        %v870 = vpop.f32.mrf.mxu0
        %v871 = vadd.f32 0.0, %v870
        %872 = vmatmul.bf16.gmra.mxu0 %v751
        %v873 = vpop.f32.mrf.mxu0
        %v874 = vadd.f32 0.0, %v873
        %v875 = vpop.f32.mrf.mxu0
        %v876 = vadd.f32 0.0, %v875
        %877 = vmatmul.bf16.gmra.mxu0 %v754
        %v878 = vpop.f32.mrf.mxu0
        %v879 = vadd.f32 0.0, %v878
        %v880 = vpop.f32.mrf.mxu0
        %v881 = vadd.f32 0.0, %v880
        %882 = vmatmul.bf16.gmra.mxu0 %v757
        %v883 = vpop.f32.mrf.mxu0
        %v884 = vadd.f32 0.0, %v883
        %v885 = vpop.f32.mrf.mxu0
        %v886 = vadd.f32 0.0, %v885
        %887 = vmatmul.bf16.gmra.mxu0 %v760
        %v888 = vpop.f32.mrf.mxu0
        %v889 = vadd.f32 0.0, %v888
        %v890 = vpop.f32.mrf.mxu0
        %v891 = vadd.f32 0.0, %v890
        %892 = vmatmul.bf16.gmra.mxu0 %v763
        %v893 = vpop.f32.mrf.mxu0
        %v894 = vadd.f32 0.0, %v893
        %v895 = vpop.f32.mrf.mxu0
        %v896 = vadd.f32 0.0, %v895
        %897 = vmatmul.bf16.gmra.mxu0 %v766
        %v898 = vpop.f32.mrf.mxu0
        %v899 = vadd.f32 0.0, %v898
        %v900 = vpop.f32.mrf.mxu0
        %v901 = vadd.f32 0.0, %v900
        %902 = vmatmul.bf16.gmra.mxu0 %v769
        %v903 = vpop.f32.mrf.mxu0
        %v904 = vadd.f32 0.0, %v903
        %v905 = vpop.f32.mrf.mxu0
        %v906 = vadd.f32 0.0, %v905
        %907 = vmatmul.bf16.gmra.mxu0 %v772
        %v908 = vpop.f32.mrf.mxu0
        %v909 = vadd.f32 0.0, %v908
        %v910 = vpop.f32.mrf.mxu0
        %v911 = vadd.f32 0.0, %v910
        %912 = vmatmul.bf16.gmra.mxu0 %v775
        %v913 = vpop.f32.mrf.mxu0
        %v914 = vadd.f32 0.0, %v913
        %v915 = vpop.f32.mrf.mxu0
        %v916 = vadd.f32 0.0, %v915
        %917 = vmatmul.bf16.gmra.mxu0 %v778
        %v918 = vpop.f32.mrf.mxu0
        %v919 = vadd.f32 0.0, %v918
        %v920 = vpop.f32.mrf.mxu0
        %v921 = vadd.f32 0.0, %v920
        %922 = vmatmul.bf16.gmra.mxu0 %v781
        %v923 = vpop.f32.mrf.mxu0
        %v924 = vadd.f32 0.0, %v923
        %v925 = vpop.f32.mrf.mxu0
        %v926 = vadd.f32 0.0, %v925
        %927 = vmatmul.bf16.gmra.mxu0 %v784
        %v928 = vpop.f32.mrf.mxu0
        %v929 = vadd.f32 0.0, %v928
        %v930 = vpop.f32.mrf.mxu0
        %v931 = vadd.f32 0.0, %v930
        %932 = vmatmul.bf16.gmra.mxu0 %v787
        %v933 = vpop.f32.mrf.mxu0
        %v934 = vadd.f32 0.0, %v933
        %v935 = vpop.f32.mrf.mxu0
        %v936 = vadd.f32 0.0, %v935
        %937 = vmatmul.bf16.gmra.mxu0 %v790
        %v938 = vpop.f32.mrf.mxu0
        %v939 = vadd.f32 0.0, %v938
        %v940 = vpop.f32.mrf.mxu0
        %v941 = vadd.f32 0.0, %v940
        %942 = vmatmul.bf16.gmra.mxu0 %v793
        %v943 = vpop.f32.mrf.mxu0
        %v944 = vadd.f32 0.0, %v943
        %v945 = vpop.f32.mrf.mxu0
        %v946 = vadd.f32 0.0, %v945
        %947 = vmatmul.bf16.gmra.mxu0 %v796
        %v948 = vpop.f32.mrf.mxu0
        %v949 = vadd.f32 0.0, %v948
        %v950 = vpop.f32.mrf.mxu0
        %v951 = vadd.f32 0.0, %v950
        %952 = vmatmul.bf16.gmra.mxu0 %v799
        %v953 = vpop.f32.mrf.mxu0
        %v954 = vadd.f32 0.0, %v953
        %v955 = vpop.f32.mrf.mxu0
        %v956 = vadd.f32 0.0, %v955
        %957 = vmatmul.bf16.gmra.mxu0 %v802
        %v958 = vpop.f32.mrf.mxu0
        %v959 = vadd.f32 0.0, %v958
        %v960 = vpop.f32.mrf.mxu0
        %v961 = vadd.f32 0.0, %v960
        %962 = vmatmul.bf16.gmra.mxu0 %v805
        %v963 = vpop.f32.mrf.mxu0
        %v964 = vadd.f32 0.0, %v963
        %v965 = vpop.f32.mrf.mxu0
        %v966 = vadd.f32 0.0, %v965
        %967 = vmatmul.bf16.gmra.mxu0 %v808
        %v968 = vpop.f32.mrf.mxu0
        %v969 = vadd.f32 0.0, %v968
        %v970 = vpop.f32.mrf.mxu0
        %v971 = vadd.f32 0.0, %v970
        %972 = vmatmul.bf16.gmra.mxu0 %v811
        %v973 = vpop.f32.mrf.mxu0
        %v974 = vadd.f32 0.0, %v973
        %v975 = vpop.f32.mrf.mxu0
        %v976 = vadd.f32 0.0, %v975
        %977 = vmatmul.bf16.gmra.mxu0 %v814
        %v978 = vpop.f32.mrf.mxu0
        %v979 = vadd.f32 0.0, %v978
        %v980 = vpop.f32.mrf.mxu0
        %v981 = vadd.f32 0.0, %v980
        %982 = vmatmul.bf16.gmra.mxu0 %v817
        %v983 = vpop.f32.mrf.mxu0
        %v984 = vadd.f32 0.0, %v983
        %v985 = vpop.f32.mrf.mxu0
        %v986 = vadd.f32 0.0, %v985
        %987 = vdwg.mxu0
        %v988 = vadd.f32 %v426, %v829
        %v989 = vadd.f32 %v427, %v831
        %v990 = vadd.f32 %v428, %v834
        %v991 = vadd.f32 %v429, %v836
        %v992 = vadd.f32 %v430, %v839
        %v993 = vadd.f32 %v431, %v841
        %v994 = vadd.f32 %v432, %v844
        %v995 = vadd.f32 %v433, %v846
        %v996 = vadd.f32 %v434, %v849
        %v997 = vadd.f32 %v435, %v851
        %v998 = vadd.f32 %v436, %v854
        %v999 = vadd.f32 %v437, %v856
        %v1000 = vadd.f32 %v438, %v859
        %v1001 = vadd.f32 %v439, %v861
        %v1002 = vadd.f32 %v440, %v864
        %v1003 = vadd.f32 %v441, %v866
        %v1004 = vadd.f32 %v442, %v869
        %v1005 = vadd.f32 %v443, %v871
        %v1006 = vadd.f32 %v444, %v874
        %v1007 = vadd.f32 %v445, %v876
        %v1008 = vadd.f32 %v446, %v879
        %v1009 = vadd.f32 %v447, %v881
        %v1010 = vadd.f32 %v448, %v884
        %v1011 = vadd.f32 %v449, %v886
        %v1012 = vadd.f32 %v450, %v889
        %v1013 = vadd.f32 %v451, %v891
        %v1014 = vadd.f32 %v452, %v894
        %v1015 = vadd.f32 %v453, %v896
        %v1016 = vadd.f32 %v454, %v899
        %v1017 = vadd.f32 %v455, %v901
        %v1018 = vadd.f32 %v456, %v904
        %v1019 = vadd.f32 %v457, %v906
        %v1020 = vadd.f32 %v458, %v909
        %v1021 = vadd.f32 %v459, %v911
        %v1022 = vadd.f32 %v460, %v914
        %v1023 = vadd.f32 %v461, %v916
        %v1024 = vadd.f32 %v462, %v919
        %v1025 = vadd.f32 %v463, %v921
        %v1026 = vadd.f32 %v464, %v924
        %v1027 = vadd.f32 %v465, %v926
        %v1028 = vadd.f32 %v466, %v929
        %v1029 = vadd.f32 %v467, %v931
        %v1030 = vadd.f32 %v468, %v934
        %v1031 = vadd.f32 %v469, %v936
        %v1032 = vadd.f32 %v470, %v939
        %v1033 = vadd.f32 %v471, %v941
        %v1034 = vadd.f32 %v472, %v944
        %v1035 = vadd.f32 %v473, %v946
        %v1036 = vadd.f32 %v474, %v949
        %v1037 = vadd.f32 %v475, %v951
        %v1038 = vadd.f32 %v476, %v954
        %v1039 = vadd.f32 %v477, %v956
        %v1040 = vadd.f32 %v478, %v959
        %v1041 = vadd.f32 %v479, %v961
        %v1042 = vadd.f32 %v480, %v964
        %v1043 = vadd.f32 %v481, %v966
        %v1044 = vadd.f32 %v482, %v969
        %v1045 = vadd.f32 %v483, %v971
        %v1046 = vadd.f32 %v484, %v974
        %v1047 = vadd.f32 %v485, %v976
        %v1048 = vadd.f32 %v486, %v979
        %v1049 = vadd.f32 %v487, %v981
        %v1050 = vadd.f32 %v488, %v984
        %v1051 = vadd.f32 %v489, %v986
        %1052 = vst [vmem:[#allocation2] sm:$0xff] %v988
        %1053 = vst [vmem:[#allocation2 + $0x8] sm:$0xff] %v989
        %1054 = vst [vmem:[#allocation2 + $0x10] sm:$0xff] %v990
        %1055 = vst [vmem:[#allocation2 + $0x18] sm:$0xff] %v991
        %1056 = vst [vmem:[#allocation2 + $0x20] sm:$0xff] %v992
        %1057 = vst [vmem:[#allocation2 + $0x28] sm:$0xff] %v993
        %1058 = vst [vmem:[#allocation2 + $0x30] sm:$0xff] %v994
        %1059 = vst [vmem:[#allocation2 + $0x38] sm:$0xff] %v995
        %1060 = vst [vmem:[#allocation2 + $0x40] sm:$0xff] %v996
        %1061 = vst [vmem:[#allocation2 + $0x48] sm:$0xff] %v997
        %1062 = vst [vmem:[#allocation2 + $0x50] sm:$0xff] %v998
        %1063 = vst [vmem:[#allocation2 + $0x58] sm:$0xff] %v999
        %1064 = vst [vmem:[#allocation2 + $0x60] sm:$0xff] %v1000
        %1065 = vst [vmem:[#allocation2 + $0x68] sm:$0xff] %v1001
        %1066 = vst [vmem:[#allocation2 + $0x70] sm:$0xff] %v1002
        %1067 = vst [vmem:[#allocation2 + $0x78] sm:$0xff] %v1003
        %1068 = vst [vmem:[#allocation2 + $0x80] sm:$0xff] %v1004
        %1069 = vst [vmem:[#allocation2 + $0x88] sm:$0xff] %v1005
        %1070 = vst [vmem:[#allocation2 + $0x90] sm:$0xff] %v1006
        %1071 = vst [vmem:[#allocation2 + $0x98] sm:$0xff] %v1007
        %1072 = vst [vmem:[#allocation2 + $0xa0] sm:$0xff] %v1008
        %1073 = vst [vmem:[#allocation2 + $0xa8] sm:$0xff] %v1009
        %1074 = vst [vmem:[#allocation2 + $0xb0] sm:$0xff] %v1010
        %1075 = vst [vmem:[#allocation2 + $0xb8] sm:$0xff] %v1011
        %1076 = vst [vmem:[#allocation2 + $0xc0] sm:$0xff] %v1012
        %1077 = vst [vmem:[#allocation2 + $0xc8] sm:$0xff] %v1013
        %1078 = vst [vmem:[#allocation2 + $0xd0] sm:$0xff] %v1014
        %1079 = vst [vmem:[#allocation2 + $0xd8] sm:$0xff] %v1015
        %1080 = vst [vmem:[#allocation2 + $0xe0] sm:$0xff] %v1016
        %1081 = vst [vmem:[#allocation2 + $0xe8] sm:$0xff] %v1017
        %1082 = vst [vmem:[#allocation2 + $0xf0] sm:$0xff] %v1018
        %1083 = vst [vmem:[#allocation2 + $0xf8] sm:$0xff] %v1019
        %1084 = vst [vmem:[#allocation2 + $0x100] sm:$0xff] %v1020
        %1085 = vst [vmem:[#allocation2 + $0x108] sm:$0xff] %v1021
        %1086 = vst [vmem:[#allocation2 + $0x110] sm:$0xff] %v1022
        %1087 = vst [vmem:[#allocation2 + $0x118] sm:$0xff] %v1023
        %1088 = vst [vmem:[#allocation2 + $0x120] sm:$0xff] %v1024
        %1089 = vst [vmem:[#allocation2 + $0x128] sm:$0xff] %v1025
        %1090 = vst [vmem:[#allocation2 + $0x130] sm:$0xff] %v1026
        %1091 = vst [vmem:[#allocation2 + $0x138] sm:$0xff] %v1027
        %1092 = vst [vmem:[#allocation2 + $0x140] sm:$0xff] %v1028
        %1093 = vst [vmem:[#allocation2 + $0x148] sm:$0xff] %v1029
        %1094 = vst [vmem:[#allocation2 + $0x150] sm:$0xff] %v1030
        %1095 = vst [vmem:[#allocation2 + $0x158] sm:$0xff] %v1031
        %1096 = vst [vmem:[#allocation2 + $0x160] sm:$0xff] %v1032
        %1097 = vst [vmem:[#allocation2 + $0x168] sm:$0xff] %v1033
        %1098 = vst [vmem:[#allocation2 + $0x170] sm:$0xff] %v1034
        %1099 = vst [vmem:[#allocation2 + $0x178] sm:$0xff] %v1035
        %1100 = vst [vmem:[#allocation2 + $0x180] sm:$0xff] %v1036
        %1101 = vst [vmem:[#allocation2 + $0x188] sm:$0xff] %v1037
        %1102 = vst [vmem:[#allocation2 + $0x190] sm:$0xff] %v1038
        %1103 = vst [vmem:[#allocation2 + $0x198] sm:$0xff] %v1039
        %1104 = vst [vmem:[#allocation2 + $0x1a0] sm:$0xff] %v1040
        %1105 = vst [vmem:[#allocation2 + $0x1a8] sm:$0xff] %v1041
        %1106 = vst [vmem:[#allocation2 + $0x1b0] sm:$0xff] %v1042
        %1107 = vst [vmem:[#allocation2 + $0x1b8] sm:$0xff] %v1043
        %1108 = vst [vmem:[#allocation2 + $0x1c0] sm:$0xff] %v1044
        %1109 = vst [vmem:[#allocation2 + $0x1c8] sm:$0xff] %v1045
        %1110 = vst [vmem:[#allocation2 + $0x1d0] sm:$0xff] %v1046
        %1111 = vst [vmem:[#allocation2 + $0x1d8] sm:$0xff] %v1047
        %1112 = vst [vmem:[#allocation2 + $0x1e0] sm:$0xff] %v1048
        %1113 = vst [vmem:[#allocation2 + $0x1e8] sm:$0xff] %v1049
        %1114 = vst [vmem:[#allocation2 + $0x1f0] sm:$0xff] %v1050
        %1115 = vst [vmem:[#allocation2 + $0x1f8] sm:$0xff] %v1051
        // Predicated region
        $region61: #{_lambda_.6} parent=39 // pred_check
          %p1116 = pneg %p358
        $region62: #{_lambda_.6} parent=39 // pred_check_branch
          %1118 = sbr.rel (%p1116) target = $region64
        $region63: #{_lambda_.6} parent=39 // pred_region
          %v1119 = vld [vmem:[#allocation2] sm:$0xff]
          %v1120 = vld [vmem:[#allocation2 + $0x8] sm:$0xff]
          %v1121 = vld [vmem:[#allocation2 + $0x10] sm:$0xff]
          %v1122 = vld [vmem:[#allocation2 + $0x18] sm:$0xff]
          %v1123 = vld [vmem:[#allocation2 + $0x20] sm:$0xff]
          %v1124 = vld [vmem:[#allocation2 + $0x28] sm:$0xff]
          %v1125 = vld [vmem:[#allocation2 + $0x30] sm:$0xff]
          %v1126 = vld [vmem:[#allocation2 + $0x38] sm:$0xff]
          %v1127 = vld [vmem:[#allocation2 + $0x40] sm:$0xff]
          %v1128 = vld [vmem:[#allocation2 + $0x48] sm:$0xff]
          %v1129 = vld [vmem:[#allocation2 + $0x50] sm:$0xff]
          %v1130 = vld [vmem:[#allocation2 + $0x58] sm:$0xff]
          %v1131 = vld [vmem:[#allocation2 + $0x60] sm:$0xff]
          %v1132 = vld [vmem:[#allocation2 + $0x68] sm:$0xff]
          %v1133 = vld [vmem:[#allocation2 + $0x70] sm:$0xff]
          %v1134 = vld [vmem:[#allocation2 + $0x78] sm:$0xff]
          %v1135 = vld [vmem:[#allocation2 + $0x80] sm:$0xff]
          %v1136 = vld [vmem:[#allocation2 + $0x88] sm:$0xff]
          %v1137 = vld [vmem:[#allocation2 + $0x90] sm:$0xff]
          %v1138 = vld [vmem:[#allocation2 + $0x98] sm:$0xff]
          %v1139 = vld [vmem:[#allocation2 + $0xa0] sm:$0xff]
          %v1140 = vld [vmem:[#allocation2 + $0xa8] sm:$0xff]
          %v1141 = vld [vmem:[#allocation2 + $0xb0] sm:$0xff]
          %v1142 = vld [vmem:[#allocation2 + $0xb8] sm:$0xff]
          %v1143 = vld [vmem:[#allocation2 + $0xc0] sm:$0xff]
          %v1144 = vld [vmem:[#allocation2 + $0xc8] sm:$0xff]
          %v1145 = vld [vmem:[#allocation2 + $0xd0] sm:$0xff]
          %v1146 = vld [vmem:[#allocation2 + $0xd8] sm:$0xff]
          %v1147 = vld [vmem:[#allocation2 + $0xe0] sm:$0xff]
          %v1148 = vld [vmem:[#allocation2 + $0xe8] sm:$0xff]
          %v1149 = vld [vmem:[#allocation2 + $0xf0] sm:$0xff]
          %v1150 = vld [vmem:[#allocation2 + $0xf8] sm:$0xff]
          %v1151 = vld [vmem:[#allocation2 + $0x100] sm:$0xff]
          %v1152 = vld [vmem:[#allocation2 + $0x108] sm:$0xff]
          %v1153 = vld [vmem:[#allocation2 + $0x110] sm:$0xff]
          %v1154 = vld [vmem:[#allocation2 + $0x118] sm:$0xff]
          %v1155 = vld [vmem:[#allocation2 + $0x120] sm:$0xff]
          %v1156 = vld [vmem:[#allocation2 + $0x128] sm:$0xff]
          %v1157 = vld [vmem:[#allocation2 + $0x130] sm:$0xff]
          %v1158 = vld [vmem:[#allocation2 + $0x138] sm:$0xff]
          %v1159 = vld [vmem:[#allocation2 + $0x140] sm:$0xff]
          %v1160 = vld [vmem:[#allocation2 + $0x148] sm:$0xff]
          %v1161 = vld [vmem:[#allocation2 + $0x150] sm:$0xff]
          %v1162 = vld [vmem:[#allocation2 + $0x158] sm:$0xff]
          %v1163 = vld [vmem:[#allocation2 + $0x160] sm:$0xff]
          %v1164 = vld [vmem:[#allocation2 + $0x168] sm:$0xff]
          %v1165 = vld [vmem:[#allocation2 + $0x170] sm:$0xff]
          %v1166 = vld [vmem:[#allocation2 + $0x178] sm:$0xff]
          %v1167 = vld [vmem:[#allocation2 + $0x180] sm:$0xff]
          %v1168 = vld [vmem:[#allocation2 + $0x188] sm:$0xff]
          %v1169 = vld [vmem:[#allocation2 + $0x190] sm:$0xff]
          %v1170 = vld [vmem:[#allocation2 + $0x198] sm:$0xff]
          %v1171 = vld [vmem:[#allocation2 + $0x1a0] sm:$0xff]
          %v1172 = vld [vmem:[#allocation2 + $0x1a8] sm:$0xff]
          %v1173 = vld [vmem:[#allocation2 + $0x1b0] sm:$0xff]
          %v1174 = vld [vmem:[#allocation2 + $0x1b8] sm:$0xff]
          %v1175 = vld [vmem:[#allocation2 + $0x1c0] sm:$0xff]
          %v1176 = vld [vmem:[#allocation2 + $0x1c8] sm:$0xff]
          %v1177 = vld [vmem:[#allocation2 + $0x1d0] sm:$0xff]
          %v1178 = vld [vmem:[#allocation2 + $0x1d8] sm:$0xff]
          %v1179 = vld [vmem:[#allocation2 + $0x1e0] sm:$0xff]
          %v1180 = vld [vmem:[#allocation2 + $0x1e8] sm:$0xff]
          %v1181 = vld [vmem:[#allocation2 + $0x1f0] sm:$0xff]
          %v1182 = vld [vmem:[#allocation2 + $0x1f8] sm:$0xff]
          %v1183 = vld [vmem:[#allocation5] sm:$0x1]
          %v1185 = vperm.slane %v1183, 0
          %v1187 = vadd.f32 %v1119, %v1185
          %v1188 = vadd.f32 %v1120, %v1185
          %v1189 = vadd.f32 %v1121, %v1185
          %v1190 = vadd.f32 %v1122, %v1185
          %v1191 = vadd.f32 %v1123, %v1185
          %v1192 = vadd.f32 %v1124, %v1185
          %v1193 = vadd.f32 %v1125, %v1185
          %v1194 = vadd.f32 %v1126, %v1185
          %v1195 = vadd.f32 %v1127, %v1185
          %v1196 = vadd.f32 %v1128, %v1185
          %v1197 = vadd.f32 %v1129, %v1185
          %v1198 = vadd.f32 %v1130, %v1185
          %v1199 = vadd.f32 %v1131, %v1185
          %v1200 = vadd.f32 %v1132, %v1185
          %v1201 = vadd.f32 %v1133, %v1185
          %v1202 = vadd.f32 %v1134, %v1185
          %v1203 = vadd.f32 %v1135, %v1185
          %v1204 = vadd.f32 %v1136, %v1185
          %v1205 = vadd.f32 %v1137, %v1185
          %v1206 = vadd.f32 %v1138, %v1185
          %v1207 = vadd.f32 %v1139, %v1185
          %v1208 = vadd.f32 %v1140, %v1185
          %v1209 = vadd.f32 %v1141, %v1185
          %v1210 = vadd.f32 %v1142, %v1185
          %v1211 = vadd.f32 %v1143, %v1185
          %v1212 = vadd.f32 %v1144, %v1185
          %v1213 = vadd.f32 %v1145, %v1185
          %v1214 = vadd.f32 %v1146, %v1185
          %v1215 = vadd.f32 %v1147, %v1185
          %v1216 = vadd.f32 %v1148, %v1185
          %v1217 = vadd.f32 %v1149, %v1185
          %v1218 = vadd.f32 %v1150, %v1185
          %v1219 = vadd.f32 %v1151, %v1185
          %v1220 = vadd.f32 %v1152, %v1185
          %v1221 = vadd.f32 %v1153, %v1185
          %v1222 = vadd.f32 %v1154, %v1185
          %v1223 = vadd.f32 %v1155, %v1185
          %v1224 = vadd.f32 %v1156, %v1185
          %v1225 = vadd.f32 %v1157, %v1185
          %v1226 = vadd.f32 %v1158, %v1185
          %v1227 = vadd.f32 %v1159, %v1185
          %v1228 = vadd.f32 %v1160, %v1185
          %v1229 = vadd.f32 %v1161, %v1185
          %v1230 = vadd.f32 %v1162, %v1185
          %v1231 = vadd.f32 %v1163, %v1185
          %v1232 = vadd.f32 %v1164, %v1185
          %v1233 = vadd.f32 %v1165, %v1185
          %v1234 = vadd.f32 %v1166, %v1185
          %v1235 = vadd.f32 %v1167, %v1185
          %v1236 = vadd.f32 %v1168, %v1185
          %v1237 = vadd.f32 %v1169, %v1185
          %v1238 = vadd.f32 %v1170, %v1185
          %v1239 = vadd.f32 %v1171, %v1185
          %v1240 = vadd.f32 %v1172, %v1185
          %v1241 = vadd.f32 %v1173, %v1185
          %v1242 = vadd.f32 %v1174, %v1185
          %v1243 = vadd.f32 %v1175, %v1185
          %v1244 = vadd.f32 %v1176, %v1185
          %v1245 = vadd.f32 %v1177, %v1185
          %v1246 = vadd.f32 %v1178, %v1185
          %v1247 = vadd.f32 %v1179, %v1185
          %v1248 = vadd.f32 %v1180, %v1185
          %v1249 = vadd.f32 %v1181, %v1185
          %v1250 = vadd.f32 %v1182, %v1185
          %v1251 = vmax.f32 %v1187, 0.0
          %v1252 = vmax.f32 %v1188, 0.0
          %v1253 = vmax.f32 %v1189, 0.0
          %v1254 = vmax.f32 %v1190, 0.0
          %v1255 = vmax.f32 %v1191, 0.0
          %v1256 = vmax.f32 %v1192, 0.0
          %v1257 = vmax.f32 %v1193, 0.0
          %v1258 = vmax.f32 %v1194, 0.0
          %v1259 = vmax.f32 %v1195, 0.0
          %v1260 = vmax.f32 %v1196, 0.0
          %v1261 = vmax.f32 %v1197, 0.0
          %v1262 = vmax.f32 %v1198, 0.0
          %v1263 = vmax.f32 %v1199, 0.0
          %v1264 = vmax.f32 %v1200, 0.0
          %v1265 = vmax.f32 %v1201, 0.0
          %v1266 = vmax.f32 %v1202, 0.0
          %v1267 = vmax.f32 %v1203, 0.0
          %v1268 = vmax.f32 %v1204, 0.0
          %v1269 = vmax.f32 %v1205, 0.0
          %v1270 = vmax.f32 %v1206, 0.0
          %v1271 = vmax.f32 %v1207, 0.0
          %v1272 = vmax.f32 %v1208, 0.0
          %v1273 = vmax.f32 %v1209, 0.0
          %v1274 = vmax.f32 %v1210, 0.0
          %v1275 = vmax.f32 %v1211, 0.0
          %v1276 = vmax.f32 %v1212, 0.0
          %v1277 = vmax.f32 %v1213, 0.0
          %v1278 = vmax.f32 %v1214, 0.0
          %v1279 = vmax.f32 %v1215, 0.0
          %v1280 = vmax.f32 %v1216, 0.0
          %v1281 = vmax.f32 %v1217, 0.0
          %v1282 = vmax.f32 %v1218, 0.0
          %v1283 = vmax.f32 %v1219, 0.0
          %v1284 = vmax.f32 %v1220, 0.0
          %v1285 = vmax.f32 %v1221, 0.0
          %v1286 = vmax.f32 %v1222, 0.0
          %v1287 = vmax.f32 %v1223, 0.0
          %v1288 = vmax.f32 %v1224, 0.0
          %v1289 = vmax.f32 %v1225, 0.0
          %v1290 = vmax.f32 %v1226, 0.0
          %v1291 = vmax.f32 %v1227, 0.0
          %v1292 = vmax.f32 %v1228, 0.0
          %v1293 = vmax.f32 %v1229, 0.0
          %v1294 = vmax.f32 %v1230, 0.0
          %v1295 = vmax.f32 %v1231, 0.0
          %v1296 = vmax.f32 %v1232, 0.0
          %v1297 = vmax.f32 %v1233, 0.0
          %v1298 = vmax.f32 %v1234, 0.0
          %v1299 = vmax.f32 %v1235, 0.0
          %v1300 = vmax.f32 %v1236, 0.0
          %v1301 = vmax.f32 %v1237, 0.0
          %v1302 = vmax.f32 %v1238, 0.0
          %v1303 = vmax.f32 %v1239, 0.0
          %v1304 = vmax.f32 %v1240, 0.0
          %v1305 = vmax.f32 %v1241, 0.0
          %v1306 = vmax.f32 %v1242, 0.0
          %v1307 = vmax.f32 %v1243, 0.0
          %v1308 = vmax.f32 %v1244, 0.0
          %v1309 = vmax.f32 %v1245, 0.0
          %v1310 = vmax.f32 %v1246, 0.0
          %v1311 = vmax.f32 %v1247, 0.0
          %v1312 = vmax.f32 %v1248, 0.0
          %v1313 = vmax.f32 %v1249, 0.0
          %v1314 = vmax.f32 %v1250, 0.0
          %v1315 = vld [vmem:[#allocation7] sm:$0x1]
          %v1317 = vperm.slane %v1315, 0
          %v1319 = vmul.f32 %v1251, %v1317
          %v1320 = vmul.f32 %v1252, %v1317
          %v1321 = vmul.f32 %v1253, %v1317
          %v1322 = vmul.f32 %v1254, %v1317
          %v1323 = vmul.f32 %v1255, %v1317
          %v1324 = vmul.f32 %v1256, %v1317
          %v1325 = vmul.f32 %v1257, %v1317
          %v1326 = vmul.f32 %v1258, %v1317
          %v1327 = vmul.f32 %v1259, %v1317
          %v1328 = vmul.f32 %v1260, %v1317
          %v1329 = vmul.f32 %v1261, %v1317
          %v1330 = vmul.f32 %v1262, %v1317
          %v1331 = vmul.f32 %v1263, %v1317
          %v1332 = vmul.f32 %v1264, %v1317
          %v1333 = vmul.f32 %v1265, %v1317
          %v1334 = vmul.f32 %v1266, %v1317
          %v1335 = vmul.f32 %v1267, %v1317
          %v1336 = vmul.f32 %v1268, %v1317
          %v1337 = vmul.f32 %v1269, %v1317
          %v1338 = vmul.f32 %v1270, %v1317
          %v1339 = vmul.f32 %v1271, %v1317
          %v1340 = vmul.f32 %v1272, %v1317
          %v1341 = vmul.f32 %v1273, %v1317
          %v1342 = vmul.f32 %v1274, %v1317
          %v1343 = vmul.f32 %v1275, %v1317
          %v1344 = vmul.f32 %v1276, %v1317
          %v1345 = vmul.f32 %v1277, %v1317
          %v1346 = vmul.f32 %v1278, %v1317
          %v1347 = vmul.f32 %v1279, %v1317
          %v1348 = vmul.f32 %v1280, %v1317
          %v1349 = vmul.f32 %v1281, %v1317
          %v1350 = vmul.f32 %v1282, %v1317
          %v1351 = vmul.f32 %v1283, %v1317
          %v1352 = vmul.f32 %v1284, %v1317
          %v1353 = vmul.f32 %v1285, %v1317
          %v1354 = vmul.f32 %v1286, %v1317
          %v1355 = vmul.f32 %v1287, %v1317
          %v1356 = vmul.f32 %v1288, %v1317
          %v1357 = vmul.f32 %v1289, %v1317
          %v1358 = vmul.f32 %v1290, %v1317
          %v1359 = vmul.f32 %v1291, %v1317
          %v1360 = vmul.f32 %v1292, %v1317
          %v1361 = vmul.f32 %v1293, %v1317
          %v1362 = vmul.f32 %v1294, %v1317
          %v1363 = vmul.f32 %v1295, %v1317
          %v1364 = vmul.f32 %v1296, %v1317
          %v1365 = vmul.f32 %v1297, %v1317
          %v1366 = vmul.f32 %v1298, %v1317
          %v1367 = vmul.f32 %v1299, %v1317
          %v1368 = vmul.f32 %v1300, %v1317
          %v1369 = vmul.f32 %v1301, %v1317
          %v1370 = vmul.f32 %v1302, %v1317
          %v1371 = vmul.f32 %v1303, %v1317
          %v1372 = vmul.f32 %v1304, %v1317
          %v1373 = vmul.f32 %v1305, %v1317
          %v1374 = vmul.f32 %v1306, %v1317
          %v1375 = vmul.f32 %v1307, %v1317
          %v1376 = vmul.f32 %v1308, %v1317
          %v1377 = vmul.f32 %v1309, %v1317
          %v1378 = vmul.f32 %v1310, %v1317
          %v1379 = vmul.f32 %v1311, %v1317
          %v1380 = vmul.f32 %v1312, %v1317
          %v1381 = vmul.f32 %v1313, %v1317
          %v1382 = vmul.f32 %v1314, %v1317
          %v1383 = vld [vmem:[#allocation8] sm:$0x1]
          %v1385 = vperm.slane %v1383, 0
          %v1387 = vadd.f32 %v1319, %v1385
          %v1388 = vadd.f32 %v1320, %v1385
          %v1389 = vadd.f32 %v1321, %v1385
          %v1390 = vadd.f32 %v1322, %v1385
          %v1391 = vadd.f32 %v1323, %v1385
          %v1392 = vadd.f32 %v1324, %v1385
          %v1393 = vadd.f32 %v1325, %v1385
          %v1394 = vadd.f32 %v1326, %v1385
          %v1395 = vadd.f32 %v1327, %v1385
          %v1396 = vadd.f32 %v1328, %v1385
          %v1397 = vadd.f32 %v1329, %v1385
          %v1398 = vadd.f32 %v1330, %v1385
          %v1399 = vadd.f32 %v1331, %v1385
          %v1400 = vadd.f32 %v1332, %v1385
          %v1401 = vadd.f32 %v1333, %v1385
          %v1402 = vadd.f32 %v1334, %v1385
          %v1403 = vadd.f32 %v1335, %v1385
          %v1404 = vadd.f32 %v1336, %v1385
          %v1405 = vadd.f32 %v1337, %v1385
          %v1406 = vadd.f32 %v1338, %v1385
          %v1407 = vadd.f32 %v1339, %v1385
          %v1408 = vadd.f32 %v1340, %v1385
          %v1409 = vadd.f32 %v1341, %v1385
          %v1410 = vadd.f32 %v1342, %v1385
          %v1411 = vadd.f32 %v1343, %v1385
          %v1412 = vadd.f32 %v1344, %v1385
          %v1413 = vadd.f32 %v1345, %v1385
          %v1414 = vadd.f32 %v1346, %v1385
          %v1415 = vadd.f32 %v1347, %v1385
          %v1416 = vadd.f32 %v1348, %v1385
          %v1417 = vadd.f32 %v1349, %v1385
          %v1418 = vadd.f32 %v1350, %v1385
          %v1419 = vadd.f32 %v1351, %v1385
          %v1420 = vadd.f32 %v1352, %v1385
          %v1421 = vadd.f32 %v1353, %v1385
          %v1422 = vadd.f32 %v1354, %v1385
          %v1423 = vadd.f32 %v1355, %v1385
          %v1424 = vadd.f32 %v1356, %v1385
          %v1425 = vadd.f32 %v1357, %v1385
          %v1426 = vadd.f32 %v1358, %v1385
          %v1427 = vadd.f32 %v1359, %v1385
          %v1428 = vadd.f32 %v1360, %v1385
          %v1429 = vadd.f32 %v1361, %v1385
          %v1430 = vadd.f32 %v1362, %v1385
          %v1431 = vadd.f32 %v1363, %v1385
          %v1432 = vadd.f32 %v1364, %v1385
          %v1433 = vadd.f32 %v1365, %v1385
          %v1434 = vadd.f32 %v1366, %v1385
          %v1435 = vadd.f32 %v1367, %v1385
          %v1436 = vadd.f32 %v1368, %v1385
          %v1437 = vadd.f32 %v1369, %v1385
          %v1438 = vadd.f32 %v1370, %v1385
          %v1439 = vadd.f32 %v1371, %v1385
          %v1440 = vadd.f32 %v1372, %v1385
          %v1441 = vadd.f32 %v1373, %v1385
          %v1442 = vadd.f32 %v1374, %v1385
          %v1443 = vadd.f32 %v1375, %v1385
          %v1444 = vadd.f32 %v1376, %v1385
          %v1445 = vadd.f32 %v1377, %v1385
          %v1446 = vadd.f32 %v1378, %v1385
          %v1447 = vadd.f32 %v1379, %v1385
          %v1448 = vadd.f32 %v1380, %v1385
          %v1449 = vadd.f32 %v1381, %v1385
          %v1450 = vadd.f32 %v1382, %v1385
          %1451 = vst [vmem:[%s355] sm:$0xff] %v1387
          %1452 = vst [vmem:[%s355 + $0x8] sm:$0xff] %v1388
          %1453 = vst [vmem:[%s355 + $0x10] sm:$0xff] %v1389
          %1454 = vst [vmem:[%s355 + $0x18] sm:$0xff] %v1390
          %1455 = vst [vmem:[%s355 + $0x20] sm:$0xff] %v1391
          %1456 = vst [vmem:[%s355 + $0x28] sm:$0xff] %v1392
          %1457 = vst [vmem:[%s355 + $0x30] sm:$0xff] %v1393
          %1458 = vst [vmem:[%s355 + $0x38] sm:$0xff] %v1394
          %1459 = vst [vmem:[%s355 + $0x40] sm:$0xff] %v1395
          %1460 = vst [vmem:[%s355 + $0x48] sm:$0xff] %v1396
          %1461 = vst [vmem:[%s355 + $0x50] sm:$0xff] %v1397
          %1462 = vst [vmem:[%s355 + $0x58] sm:$0xff] %v1398
          %1463 = vst [vmem:[%s355 + $0x60] sm:$0xff] %v1399
          %1464 = vst [vmem:[%s355 + $0x68] sm:$0xff] %v1400
          %1465 = vst [vmem:[%s355 + $0x70] sm:$0xff] %v1401
          %1466 = vst [vmem:[%s355 + $0x78] sm:$0xff] %v1402
          %1467 = vst [vmem:[%s355 + $0x80] sm:$0xff] %v1403
          %1468 = vst [vmem:[%s355 + $0x88] sm:$0xff] %v1404
          %1469 = vst [vmem:[%s355 + $0x90] sm:$0xff] %v1405
          %1470 = vst [vmem:[%s355 + $0x98] sm:$0xff] %v1406
          %1471 = vst [vmem:[%s355 + $0xa0] sm:$0xff] %v1407
          %1472 = vst [vmem:[%s355 + $0xa8] sm:$0xff] %v1408
          %1473 = vst [vmem:[%s355 + $0xb0] sm:$0xff] %v1409
          %1474 = vst [vmem:[%s355 + $0xb8] sm:$0xff] %v1410
          %1475 = vst [vmem:[%s355 + $0xc0] sm:$0xff] %v1411
          %1476 = vst [vmem:[%s355 + $0xc8] sm:$0xff] %v1412
          %1477 = vst [vmem:[%s355 + $0xd0] sm:$0xff] %v1413
          %1478 = vst [vmem:[%s355 + $0xd8] sm:$0xff] %v1414
          %1479 = vst [vmem:[%s355 + $0xe0] sm:$0xff] %v1415
          %1480 = vst [vmem:[%s355 + $0xe8] sm:$0xff] %v1416
          %1481 = vst [vmem:[%s355 + $0xf0] sm:$0xff] %v1417
          %1482 = vst [vmem:[%s355 + $0xf8] sm:$0xff] %v1418
          %1483 = vst [vmem:[%s355 + $0x100] sm:$0xff] %v1419
          %1484 = vst [vmem:[%s355 + $0x108] sm:$0xff] %v1420
          %1485 = vst [vmem:[%s355 + $0x110] sm:$0xff] %v1421
          %1486 = vst [vmem:[%s355 + $0x118] sm:$0xff] %v1422
          %1487 = vst [vmem:[%s355 + $0x120] sm:$0xff] %v1423
          %1488 = vst [vmem:[%s355 + $0x128] sm:$0xff] %v1424
          %1489 = vst [vmem:[%s355 + $0x130] sm:$0xff] %v1425
          %1490 = vst [vmem:[%s355 + $0x138] sm:$0xff] %v1426
          %1491 = vst [vmem:[%s355 + $0x140] sm:$0xff] %v1427
          %1492 = vst [vmem:[%s355 + $0x148] sm:$0xff] %v1428
          %1493 = vst [vmem:[%s355 + $0x150] sm:$0xff] %v1429
          %1494 = vst [vmem:[%s355 + $0x158] sm:$0xff] %v1430
          %1495 = vst [vmem:[%s355 + $0x160] sm:$0xff] %v1431
          %1496 = vst [vmem:[%s355 + $0x168] sm:$0xff] %v1432
          %1497 = vst [vmem:[%s355 + $0x170] sm:$0xff] %v1433
          %1498 = vst [vmem:[%s355 + $0x178] sm:$0xff] %v1434
          %1499 = vst [vmem:[%s355 + $0x180] sm:$0xff] %v1435
          %1500 = vst [vmem:[%s355 + $0x188] sm:$0xff] %v1436
          %1501 = vst [vmem:[%s355 + $0x190] sm:$0xff] %v1437
          %1502 = vst [vmem:[%s355 + $0x198] sm:$0xff] %v1438
          %1503 = vst [vmem:[%s355 + $0x1a0] sm:$0xff] %v1439
          %1504 = vst [vmem:[%s355 + $0x1a8] sm:$0xff] %v1440
          %1505 = vst [vmem:[%s355 + $0x1b0] sm:$0xff] %v1441
          %1506 = vst [vmem:[%s355 + $0x1b8] sm:$0xff] %v1442
          %1507 = vst [vmem:[%s355 + $0x1c0] sm:$0xff] %v1443
          %1508 = vst [vmem:[%s355 + $0x1c8] sm:$0xff] %v1444
          %1509 = vst [vmem:[%s355 + $0x1d0] sm:$0xff] %v1445
          %1510 = vst [vmem:[%s355 + $0x1d8] sm:$0xff] %v1446
          %1511 = vst [vmem:[%s355 + $0x1e0] sm:$0xff] %v1447
          %1512 = vst [vmem:[%s355 + $0x1e8] sm:$0xff] %v1448
          %1513 = vst [vmem:[%s355 + $0x1f0] sm:$0xff] %v1449
          %1514 = vst [vmem:[%s355 + $0x1f8] sm:$0xff] %v1450
        $region64: #{_lambda_.6} parent=39 // pred_fallthru
          _
        %s1515 = smul.u32 64, %s24
        %p1516 = scmp.lt.s32.totalorder %s1515, 127
        %s1517 = scalar_select %p1516, %s1515, 127
        %p1518 = scmp.lt.s32.totalorder %s25, 0
        %s1519 = scalar_select %p1518, %s25, 0
        %s1520 = sadd.s32 %s1519, %s1517
        %s1521 = smul.addr %s1520, 8
        %s1522 = scalar_lea.vmem %s5, %s1521
        // Predicated region
        $region65: #{_lambda_.6} parent=39 // pred_check
          %p1523 = pneg %p192
        $region66: #{_lambda_.6} parent=39 // pred_check_branch
          %1525 = sbr.rel (%p1523) target = $region68
        $region67: #{_lambda_.6} parent=39 // pred_region
          %s1526 = smul.u32 64, %s24
        $region68: #{_lambda_.6} parent=39 // pred_fallthru
          _
      $region40: #{_lambda_.6} parent=5 // pred_fallthru
        _
      %p1527 = scmp.le.s32.totalorder 2, %s14
      // Predicated region
      $region69: #{_lambda_.6} parent=5 // pred_check
        %p1528 = pneg %p1527
      $region70: #{_lambda_.6} parent=5 // pred_check_branch
        %1530 = sbr.rel (%p1528) target = $region72
      $region71: #{_lambda_.6} parent=5 // pred_region
        %s1531 = ssub.s32 %s14, 2
        // Predicated region
        $region73: #{_lambda_.6} parent=71 // pred_check
          %p1532 = pneg %p198
        $region74: #{_lambda_.6} parent=71 // pred_check_branch
          %1534 = sbr.rel (%p1532) target = $region76
        $region75: #{_lambda_.6} parent=71 // pred_region
          %s1535 = smul.u32 64, %s27
          %p1536 = scmp.lt.s32.totalorder %s1535, 127
          %s1537 = scalar_select %p1536, %s1535, 127
          %p1538 = scmp.lt.s32.totalorder %s28, 0
          %s1539 = scalar_select %p1538, %s28, 0
          %s1540 = sadd.s32 %s1539, %s1537
          %s1541 = smul.addr %s1540, 8
          %s1542 = scalar_lea.vmem %s5, %s1541
        $region76: #{_lambda_.6} parent=71 // pred_fallthru
          _
      $region72: #{_lambda_.6} parent=5 // pred_fallthru
        _
    $region6: #{_lambda_.6} parent=1 // loop_footer
      %s18 = sadd.s32 1, %s14
    $region7: #{_lambda_.6} parent=1 // loop_footer_branch
      %13 = sbr.rel target = $region3
    $region8: #{_lambda_.6} parent=1 // loop_exit
      _
    %1543 = vsyncpa [#allocation4], 1
    %s1544 = scalar_lea.sflag [#allocation4], 1
    %1545 = vsyncpa %s1544, 1
    %1546 = vsyncpa [#allocation6], 1
    %1547 = vsyncpa [#allocation9], 1

// kernel: _lambda_.7
$region0: #{_lambda_.7}
  #allocation0 [shape = 'u32[]', space=smem, size = 0x4, offset = 0x4, fixed_abs, tag = 'smem constant byte address 0x4 - core index']
  #allocation1 [shape = 'u32[72,128]{1,0:T(1,128)}', space=vmem, size = 0x9000, scoped, tag = 'internal scratch']
  #allocation2 [shape = 'f32[512,128]{1,0:T(8,128)}', space=vmem, size = 0x40000, scoped, tag = 'scratch operand']
  %s0 = inlined_call_operand.vmem [shape: bf16[1024,40], index: 0, kind: input, shape index: {}]
  %s1 = inlined_call_operand.vmem [shape: bf16[40,128], index: 1, kind: input, shape index: {}]
  %s2 = inlined_call_operand.vmem [shape: f32[1,128], index: 2, kind: input, shape index: {}]
  %s3 = inlined_call_operand.vmem [shape: f32[1,128], index: 3, kind: input, shape index: {}]
  %s4 = inlined_call_operand.vmem [shape: f32[1,128], index: 4, kind: input, shape index: {}]
  %s5 = inlined_call_operand.vmem [shape: f32[1024,128], index: 5, kind: output, shape index: {}]
  %s6 = sld [smem:[#allocation0]]
  $region61: #{_lambda_.7} parent=0
    _
  %s8 = ssub.s32 1, %s6
  %s9 = scalar_select 0, %s8, %s6
  loop: start=0, step=1, limit=4
  $region2: #{_lambda_.7} parent=0 // loop_pre_header
    _
  $region3: #{_lambda_.7} parent=0 // loop_header
    %s11 = sphi 0, %s15
    %p12 = scmp.ge.s32.totalorder %s11, 4
    %s18 = sphi 0, %s37
    %s19 = sphi 0, %s33
    %s20 = sphi 0, %s29
    %s21 = sphi 0, %s18
    %s22 = sphi 0, %s19
    %s23 = sphi 0, %s20
    %s24 = sphi 0, %s21
    %s25 = sphi 0, %s22
    %s26 = sphi 0, %s23
    %s42 = sphi 0, %s44
    %s45 = sphi 0, %s42
    %s46 = sphi 0, %s45
    %s62 = sphi 0, %s46
    %s70 = sphi 0, %s72
    %s73 = sphi 0, %s70
    %s74 = sphi 0, %s73
    %s90 = sphi 0, %s74
    %s96 = sphi 0, %s98
    %s99 = sphi 0, %s96
    %s100 = sphi 0, %s99
    %s116 = sphi 0, %s100
    %s122 = sphi 0, %s124
    %s125 = sphi 0, %s122
    %s126 = sphi 0, %s125
    %s142 = sphi 0, %s126
    %s148 = sphi 0, %s150
    %s151 = sphi 0, %s148
    %s152 = sphi 0, %s151
    %s168 = sphi 0, %s152
    %s176 = sphi 0, %s178
    %s179 = sphi 0, %s176
    %s180 = sphi 0, %s179
    %s196 = sphi 0, %s180
  $region4: #{_lambda_.7} parent=0 // loop_header_branch
    %14 = sbr.rel (%p12) target = $region8
  $region5: #{_lambda_.7} parent=0 // loop_body
    %s16 = ssub.s32 %s11, 1
    %s17 = ssub.s32 %s11, 2
    %s27 = sadd.s32 1, %s20
    %p28 = scmp.ge.s32.totalorder %s27, 1
    %s29 = scalar_select %p28, 0, %s27
    %s30 = sadd.s32 1, %s19
    %s31 = scalar_select %p28, %s30, %s19
    %p32 = scmp.ge.s32.totalorder %s31, 1
    %s33 = scalar_select %p32, 0, %s31
    %s34 = sadd.s32 1, %s18
    %s35 = scalar_select %p32, %s34, %s18
    %p36 = scmp.ge.s32.totalorder %s35, 2
    %s37 = scalar_select %p36, 0, %s35
    %s38 = ssub.s32 %s18, %s37
    %s39 = ssub.s32 %s20, %s29
    %s40 = sor.u32 %s38, %s39
    %p41 = scmp.eq.s32.totalorder %s40, 0
    %s43 = sadd.s32 %s42, 1
    %s44 = scalar_select %p41, %s42, %s43
    %p47 = pneg %p41
    %p48 = scmp.eq.s32.totalorder %s11, 1
    %p49 = por %p47, %p48
    %p50 = scmp.ne.s32.totalorder %s42, %s45
    %p51 = scmp.eq.s32.totalorder %s11, 0
    %p52 = por %p50, %p51
    %p53 = scmp.ne.s32.totalorder %s42, %s45
    %p54 = scmp.eq.s32.totalorder %s16, 1
    %p55 = por %p53, %p54
    %p56 = scmp.ne.s32.totalorder %s45, %s46
    %p57 = scmp.eq.s32.totalorder %s16, 0
    %p58 = por %p56, %p57
    %p59 = scmp.ne.s32.totalorder %s45, %s46
    %p60 = scmp.eq.s32.totalorder %s17, 1
    %p61 = por %p59, %p60
    %p63 = scmp.ne.s32.totalorder %s46, %s62
    %p64 = scmp.eq.s32.totalorder %s17, 0
    %p65 = por %p63, %p64
    %s66 = ssub.s32 %s20, %s29
    %s67 = ssub.s32 %s19, %s33
    %s68 = sor.u32 %s66, %s67
    %p69 = scmp.eq.s32.totalorder %s68, 0
    %s71 = sadd.s32 %s70, 1
    %s72 = scalar_select %p69, %s70, %s71
    %p75 = pneg %p69
    %p76 = scmp.eq.s32.totalorder %s11, 1
    %p77 = por %p75, %p76
    %p78 = scmp.ne.s32.totalorder %s70, %s73
    %p79 = scmp.eq.s32.totalorder %s11, 0
    %p80 = por %p78, %p79
    %p81 = scmp.ne.s32.totalorder %s70, %s73
    %p82 = scmp.eq.s32.totalorder %s16, 1
    %p83 = por %p81, %p82
    %p84 = scmp.ne.s32.totalorder %s73, %s74
    %p85 = scmp.eq.s32.totalorder %s16, 0
    %p86 = por %p84, %p85
    %p87 = scmp.ne.s32.totalorder %s73, %s74
    %p88 = scmp.eq.s32.totalorder %s17, 1
    %p89 = por %p87, %p88
    %p91 = scmp.ne.s32.totalorder %s74, %s90
    %p92 = scmp.eq.s32.totalorder %s17, 0
    %p93 = por %p91, %p92
    %s94 = ssub.s32 %s19, %s33
    %p95 = scmp.eq.s32.totalorder %s94, 0
    %s97 = sadd.s32 %s96, 1
    %s98 = scalar_select %p95, %s96, %s97
    %p101 = pneg %p95
    %p102 = scmp.eq.s32.totalorder %s11, 1
    %p103 = por %p101, %p102
    %p104 = scmp.ne.s32.totalorder %s96, %s99
    %p105 = scmp.eq.s32.totalorder %s11, 0
    %p106 = por %p104, %p105
    %p107 = scmp.ne.s32.totalorder %s96, %s99
    %p108 = scmp.eq.s32.totalorder %s16, 1
    %p109 = por %p107, %p108
    %p110 = scmp.ne.s32.totalorder %s99, %s100
    %p111 = scmp.eq.s32.totalorder %s16, 0
    %p112 = por %p110, %p111
    %p113 = scmp.ne.s32.totalorder %s99, %s100
    %p114 = scmp.eq.s32.totalorder %s17, 1
    %p115 = por %p113, %p114
    %p117 = scmp.ne.s32.totalorder %s100, %s116
    %p118 = scmp.eq.s32.totalorder %s17, 0
    %p119 = por %p117, %p118
    %s120 = ssub.s32 %s19, %s33
    %p121 = scmp.eq.s32.totalorder %s120, 0
    %s123 = sadd.s32 %s122, 1
    %s124 = scalar_select %p121, %s122, %s123
    %p127 = pneg %p121
    %p128 = scmp.eq.s32.totalorder %s11, 1
    %p129 = por %p127, %p128
    %p130 = scmp.ne.s32.totalorder %s122, %s125
    %p131 = scmp.eq.s32.totalorder %s11, 0
    %p132 = por %p130, %p131
    %p133 = scmp.ne.s32.totalorder %s122, %s125
    %p134 = scmp.eq.s32.totalorder %s16, 1
    %p135 = por %p133, %p134
    %p136 = scmp.ne.s32.totalorder %s125, %s126
    %p137 = scmp.eq.s32.totalorder %s16, 0
    %p138 = por %p136, %p137
    %p139 = scmp.ne.s32.totalorder %s125, %s126
    %p140 = scmp.eq.s32.totalorder %s17, 1
    %p141 = por %p139, %p140
    %p143 = scmp.ne.s32.totalorder %s126, %s142
    %p144 = scmp.eq.s32.totalorder %s17, 0
    %p145 = por %p143, %p144
    %s146 = ssub.s32 %s19, %s33
    %p147 = scmp.eq.s32.totalorder %s146, 0
    %s149 = sadd.s32 %s148, 1
    %s150 = scalar_select %p147, %s148, %s149
    %p153 = pneg %p147
    %p154 = scmp.eq.s32.totalorder %s11, 1
    %p155 = por %p153, %p154
    %p156 = scmp.ne.s32.totalorder %s148, %s151
    %p157 = scmp.eq.s32.totalorder %s11, 0
    %p158 = por %p156, %p157
    %p159 = scmp.ne.s32.totalorder %s148, %s151
    %p160 = scmp.eq.s32.totalorder %s16, 1
    %p161 = por %p159, %p160
    %p162 = scmp.ne.s32.totalorder %s151, %s152
    %p163 = scmp.eq.s32.totalorder %s16, 0
    %p164 = por %p162, %p163
    %p165 = scmp.ne.s32.totalorder %s151, %s152
    %p166 = scmp.eq.s32.totalorder %s17, 1
    %p167 = por %p165, %p166
    %p169 = scmp.ne.s32.totalorder %s152, %s168
    %p170 = scmp.eq.s32.totalorder %s17, 0
    %p171 = por %p169, %p170
    %s172 = ssub.s32 %s18, %s37
    %s173 = ssub.s32 %s19, %s33
    %s174 = sor.u32 %s172, %s173
    %p175 = scmp.eq.s32.totalorder %s174, 0
    %s177 = sadd.s32 %s176, 1
    %s178 = scalar_select %p175, %s176, %s177
    %p181 = pneg %p175
    %p182 = scmp.eq.s32.totalorder %s11, 1
    %p183 = por %p181, %p182
    %p184 = scmp.ne.s32.totalorder %s176, %s179
    %p185 = scmp.eq.s32.totalorder %s11, 0
    %p186 = por %p184, %p185
    %p187 = scmp.ne.s32.totalorder %s176, %s179
    %p188 = scmp.eq.s32.totalorder %s16, 1
    %p189 = por %p187, %p188
    %p190 = scmp.ne.s32.totalorder %s179, %s180
    %p191 = scmp.eq.s32.totalorder %s16, 0
    %p192 = por %p190, %p191
    %p193 = scmp.ne.s32.totalorder %s179, %s180
    %p194 = scmp.eq.s32.totalorder %s17, 1
    %p195 = por %p193, %p194
    %p197 = scmp.ne.s32.totalorder %s180, %s196
    %p198 = scmp.eq.s32.totalorder %s17, 0
    %p199 = por %p197, %p198
    %p200 = scmp.le.s32.totalorder 1, %s11
    %p201 = scmp.lt.s32.totalorder %s11, 3
    %p202 = pnand %p200, %p201
    %p203 = pneg %p202
    // Predicated region
    $region9: #{_lambda_.7} parent=5 // pred_check
      _
    $region10: #{_lambda_.7} parent=5 // pred_check_branch
      %205 = sbr.rel (%p202) target = $region12
    $region11: #{_lambda_.7} parent=5 // pred_region
      %s206 = ssub.s32 %s11, 1
      // Predicated region
      $region13: #{_lambda_.7} parent=11 // pred_check
        %p207 = pneg %p86
      $region14: #{_lambda_.7} parent=11 // pred_check_branch
        %209 = sbr.rel (%p207) target = $region16
      $region15: #{_lambda_.7} parent=11 // pred_region
        %s210 = smul.u32 5, %s23
        %p211 = scmp.lt.s32.totalorder %s210, 4
        %s212 = scalar_select %p211, %s210, 4
        %p213 = scmp.lt.s32.totalorder %s22, 0
        %s214 = scalar_select %p213, %s22, 0
        %s215 = sadd.s32 %s214, %s212
        %s216 = smul.addr %s215, 4
        %s217 = scalar_lea.vmem %s1, %s216
        %s218 = smul.u32 5, %s23
      $region16: #{_lambda_.7} parent=11 // pred_fallthru
        _
      // Predicated region
      $region17: #{_lambda_.7} parent=11 // pred_check
        %p219 = pneg %p112
      $region18: #{_lambda_.7} parent=11 // pred_check_branch
        %221 = sbr.rel (%p219) target = $region20
      $region19: #{_lambda_.7} parent=11 // pred_region
        %p222 = scmp.lt.s32.totalorder %s22, 0
        %s223 = scalar_select %p222, %s22, 0
        %s224 = scalar_lea.vmem %s2, %s223
      $region20: #{_lambda_.7} parent=11 // pred_fallthru
        _
      // Predicated region
      $region21: #{_lambda_.7} parent=11 // pred_check
        %p225 = pneg %p138
      $region22: #{_lambda_.7} parent=11 // pred_check_branch
        %227 = sbr.rel (%p225) target = $region24
      $region23: #{_lambda_.7} parent=11 // pred_region
        %p228 = scmp.lt.s32.totalorder %s22, 0
        %s229 = scalar_select %p228, %s22, 0
        %s230 = scalar_lea.vmem %s3, %s229
      $region24: #{_lambda_.7} parent=11 // pred_fallthru
        _
      // Predicated region
      $region25: #{_lambda_.7} parent=11 // pred_check
        %p231 = pneg %p164
      $region26: #{_lambda_.7} parent=11 // pred_check_branch
        %233 = sbr.rel (%p231) target = $region28
      $region27: #{_lambda_.7} parent=11 // pred_region
        %p234 = scmp.lt.s32.totalorder %s22, 0
        %s235 = scalar_select %p234, %s22, 0
        %s236 = scalar_lea.vmem %s4, %s235
      $region28: #{_lambda_.7} parent=11 // pred_fallthru
        _
    $region12: #{_lambda_.7} parent=5 // pred_fallthru
      _
    %p237 = scmp.lt.s32.totalorder %s11, 2
    // Predicated region
    $region29: #{_lambda_.7} parent=5 // pred_check
      %p238 = pneg %p237
    $region30: #{_lambda_.7} parent=5 // pred_check_branch
      %240 = sbr.rel (%p238) target = $region32
    $region31: #{_lambda_.7} parent=5 // pred_region
      // Predicated region
      $region33: #{_lambda_.7} parent=31 // pred_check
        %p241 = pneg %p52
      $region34: #{_lambda_.7} parent=31 // pred_check_branch
        %243 = sbr.rel (%p241) target = $region36
      $region35: #{_lambda_.7} parent=31 // pred_region
        %s244 = smul.u32 64, %s18
        %p245 = scmp.lt.s32.totalorder %s244, 127
        %s246 = scalar_select %p245, %s244, 127
        %p247 = scmp.lt.s32.totalorder %s20, 0
        %s248 = scalar_select %p247, %s20, 0
        %s249 = sadd.s32 %s248, %s246
        %s250 = smul.addr %s249, 4
        %s251 = scalar_lea.vmem %s0, %s250
        %s252 = smul.u32 64, %s18
      $region36: #{_lambda_.7} parent=31 // pred_fallthru
        _
    $region32: #{_lambda_.7} parent=5 // pred_fallthru
      _
    %p253 = scmp.le.s32.totalorder 1, %s11
    %p254 = scmp.lt.s32.totalorder %s11, 3
    %p255 = pnand %p253, %p254
    %p256 = pneg %p255
    // Predicated region
    $region37: #{_lambda_.7} parent=5 // pred_check
      _
    $region38: #{_lambda_.7} parent=5 // pred_check_branch
      %258 = sbr.rel (%p255) target = $region40
    $region39: #{_lambda_.7} parent=5 // pred_region
      %s259 = ssub.s32 %s11, 1
      %s260 = smul.u32 64, %s21
      %p261 = scmp.lt.s32.totalorder %s260, 127
      %s262 = scalar_select %p261, %s260, 127
      %p263 = scmp.lt.s32.totalorder %s23, 0
      %s264 = scalar_select %p263, %s23, 0
      %s265 = sadd.s32 %s264, %s262
      %s266 = smul.addr %s265, 4
      %s267 = scalar_lea.vmem %s0, %s266
      %p268 = pneg %p58
      %p269 = pneg %p55
      %s270 = smul.u32 5, %s23
      %p271 = scmp.lt.s32.totalorder %s270, 4
      %s272 = scalar_select %p271, %s270, 4
      %p273 = scmp.lt.s32.totalorder %s22, 0
      %s274 = scalar_select %p273, %s22, 0
      %s275 = sadd.s32 %s274, %s272
      %s276 = smul.addr %s275, 4
      %s277 = scalar_lea.vmem %s1, %s276
      %p278 = pneg %p86
      %p279 = pneg %p83
      %p280 = scmp.lt.s32.totalorder %s22, 0
      %s281 = scalar_select %p280, %s22, 0
      %s282 = scalar_lea.vmem %s2, %s281
      %p283 = pneg %p112
      %p284 = pneg %p109
      %p285 = scmp.lt.s32.totalorder %s22, 0
      %s286 = scalar_select %p285, %s22, 0
      %s287 = scalar_lea.vmem %s3, %s286
      %p288 = pneg %p138
      %p289 = pneg %p135
      %p290 = scmp.lt.s32.totalorder %s22, 0
      %s291 = scalar_select %p290, %s22, 0
      %s292 = scalar_lea.vmem %s4, %s291
      %p293 = pneg %p164
      %p294 = pneg %p161
      %p295 = pneg %p192
      %p296 = pneg %p189
      %s297 = smul.u32 64, %s21
      %p298 = scmp.lt.s32.totalorder %s297, 127
      %s299 = scalar_select %p298, %s297, 127
      %p300 = scmp.lt.s32.totalorder %s22, 0
      %s301 = scalar_select %p300, %s22, 0
      %s302 = sadd.s32 %s301, %s299
      %s303 = smul.addr %s302, 8
      %s304 = scalar_lea.vmem %s5, %s303
      %s305 = smul.u32 64, %s21
      %p306 = scmp.lt.s32.totalorder %s305, 127
      %s307 = scalar_select %p306, %s305, 127
      %p308 = scmp.lt.s32.totalorder %s23, 0
      %s309 = scalar_select %p308, %s23, 0
      %s310 = sadd.s32 %s309, %s307
      %s311 = smul.addr %s310, 4
      %s312 = scalar_lea.vmem %s0, %s311
      %s313 = smul.u32 64, %s21
      %s314 = smul.u32 5, %s23
      %p315 = scmp.lt.s32.totalorder %s314, 4
      %s316 = scalar_select %p315, %s314, 4
      %p317 = scmp.lt.s32.totalorder %s22, 0
      %s318 = scalar_select %p317, %s22, 0
      %s319 = sadd.s32 %s318, %s316
      %s320 = smul.addr %s319, 4
      %s321 = scalar_lea.vmem %s1, %s320
      %s322 = smul.u32 5, %s23
      %p323 = scmp.lt.s32.totalorder %s22, 0
      %s324 = scalar_select %p323, %s22, 0
      %s325 = scalar_lea.vmem %s2, %s324
      %p326 = scmp.lt.s32.totalorder %s22, 0
      %s327 = scalar_select %p326, %s22, 0
      %s328 = scalar_lea.vmem %s3, %s327
      %p329 = scmp.lt.s32.totalorder %s22, 0
      %s330 = scalar_select %p329, %s22, 0
      %s331 = scalar_lea.vmem %s4, %s330
      %s332 = smul.u32 64, %s21
      %p333 = scmp.lt.s32.totalorder %s332, 127
      %s334 = scalar_select %p333, %s332, 127
      %p335 = scmp.lt.s32.totalorder %s22, 0
      %s336 = scalar_select %p335, %s22, 0
      %s337 = sadd.s32 %s336, %s334
      %s338 = smul.addr %s337, 8
      %s339 = scalar_lea.vmem %s5, %s338
      %s340 = smul.u32 64, %s21
      %p342 = scmp.eq.s32.totalorder %s23, 0
      // Predicated region
      $region41: #{_lambda_.7} parent=39 // pred_check
        %p343 = pneg %p342
      $region42: #{_lambda_.7} parent=39 // pred_check_branch
        %345 = sbr.rel (%p343) target = $region44
      $region43: #{_lambda_.7} parent=39 // pred_region
        %346 = vst [vmem:[#allocation2] sm:$0xff] 0.0
        %347 = vst [vmem:[#allocation2 + $0x8] sm:$0xff] 0.0
        %348 = vst [vmem:[#allocation2 + $0x10] sm:$0xff] 0.0
        %349 = vst [vmem:[#allocation2 + $0x18] sm:$0xff] 0.0
        %350 = vst [vmem:[#allocation2 + $0x20] sm:$0xff] 0.0
        %351 = vst [vmem:[#allocation2 + $0x28] sm:$0xff] 0.0
        %352 = vst [vmem:[#allocation2 + $0x30] sm:$0xff] 0.0
        %353 = vst [vmem:[#allocation2 + $0x38] sm:$0xff] 0.0
        %354 = vst [vmem:[#allocation2 + $0x40] sm:$0xff] 0.0
        %355 = vst [vmem:[#allocation2 + $0x48] sm:$0xff] 0.0
        %356 = vst [vmem:[#allocation2 + $0x50] sm:$0xff] 0.0
        %357 = vst [vmem:[#allocation2 + $0x58] sm:$0xff] 0.0
        %358 = vst [vmem:[#allocation2 + $0x60] sm:$0xff] 0.0
        %359 = vst [vmem:[#allocation2 + $0x68] sm:$0xff] 0.0
        %360 = vst [vmem:[#allocation2 + $0x70] sm:$0xff] 0.0
        %361 = vst [vmem:[#allocation2 + $0x78] sm:$0xff] 0.0
        %362 = vst [vmem:[#allocation2 + $0x80] sm:$0xff] 0.0
        %363 = vst [vmem:[#allocation2 + $0x88] sm:$0xff] 0.0
        %364 = vst [vmem:[#allocation2 + $0x90] sm:$0xff] 0.0
        %365 = vst [vmem:[#allocation2 + $0x98] sm:$0xff] 0.0
        %366 = vst [vmem:[#allocation2 + $0xa0] sm:$0xff] 0.0
        %367 = vst [vmem:[#allocation2 + $0xa8] sm:$0xff] 0.0
        %368 = vst [vmem:[#allocation2 + $0xb0] sm:$0xff] 0.0
        %369 = vst [vmem:[#allocation2 + $0xb8] sm:$0xff] 0.0
        %370 = vst [vmem:[#allocation2 + $0xc0] sm:$0xff] 0.0
        %371 = vst [vmem:[#allocation2 + $0xc8] sm:$0xff] 0.0
        %372 = vst [vmem:[#allocation2 + $0xd0] sm:$0xff] 0.0
        %373 = vst [vmem:[#allocation2 + $0xd8] sm:$0xff] 0.0
        %374 = vst [vmem:[#allocation2 + $0xe0] sm:$0xff] 0.0
        %375 = vst [vmem:[#allocation2 + $0xe8] sm:$0xff] 0.0
        %376 = vst [vmem:[#allocation2 + $0xf0] sm:$0xff] 0.0
        %377 = vst [vmem:[#allocation2 + $0xf8] sm:$0xff] 0.0
        %378 = vst [vmem:[#allocation2 + $0x100] sm:$0xff] 0.0
        %379 = vst [vmem:[#allocation2 + $0x108] sm:$0xff] 0.0
        %380 = vst [vmem:[#allocation2 + $0x110] sm:$0xff] 0.0
        %381 = vst [vmem:[#allocation2 + $0x118] sm:$0xff] 0.0
        %382 = vst [vmem:[#allocation2 + $0x120] sm:$0xff] 0.0
        %383 = vst [vmem:[#allocation2 + $0x128] sm:$0xff] 0.0
        %384 = vst [vmem:[#allocation2 + $0x130] sm:$0xff] 0.0
        %385 = vst [vmem:[#allocation2 + $0x138] sm:$0xff] 0.0
        %386 = vst [vmem:[#allocation2 + $0x140] sm:$0xff] 0.0
        %387 = vst [vmem:[#allocation2 + $0x148] sm:$0xff] 0.0
        %388 = vst [vmem:[#allocation2 + $0x150] sm:$0xff] 0.0
        %389 = vst [vmem:[#allocation2 + $0x158] sm:$0xff] 0.0
        %390 = vst [vmem:[#allocation2 + $0x160] sm:$0xff] 0.0
        %391 = vst [vmem:[#allocation2 + $0x168] sm:$0xff] 0.0
        %392 = vst [vmem:[#allocation2 + $0x170] sm:$0xff] 0.0
        %393 = vst [vmem:[#allocation2 + $0x178] sm:$0xff] 0.0
        %394 = vst [vmem:[#allocation2 + $0x180] sm:$0xff] 0.0
        %395 = vst [vmem:[#allocation2 + $0x188] sm:$0xff] 0.0
        %396 = vst [vmem:[#allocation2 + $0x190] sm:$0xff] 0.0
        %397 = vst [vmem:[#allocation2 + $0x198] sm:$0xff] 0.0
        %398 = vst [vmem:[#allocation2 + $0x1a0] sm:$0xff] 0.0
        %399 = vst [vmem:[#allocation2 + $0x1a8] sm:$0xff] 0.0
        %400 = vst [vmem:[#allocation2 + $0x1b0] sm:$0xff] 0.0
        %401 = vst [vmem:[#allocation2 + $0x1b8] sm:$0xff] 0.0
        %402 = vst [vmem:[#allocation2 + $0x1c0] sm:$0xff] 0.0
        %403 = vst [vmem:[#allocation2 + $0x1c8] sm:$0xff] 0.0
        %404 = vst [vmem:[#allocation2 + $0x1d0] sm:$0xff] 0.0
        %405 = vst [vmem:[#allocation2 + $0x1d8] sm:$0xff] 0.0
        %406 = vst [vmem:[#allocation2 + $0x1e0] sm:$0xff] 0.0
        %407 = vst [vmem:[#allocation2 + $0x1e8] sm:$0xff] 0.0
        %408 = vst [vmem:[#allocation2 + $0x1f0] sm:$0xff] 0.0
        %409 = vst [vmem:[#allocation2 + $0x1f8] sm:$0xff] 0.0
      $region44: #{_lambda_.7} parent=39 // pred_fallthru
        _
      %v410 = vld [vmem:[#allocation2] sm:$0xff]
      %v411 = vld [vmem:[#allocation2 + $0x8] sm:$0xff]
      %v412 = vld [vmem:[#allocation2 + $0x10] sm:$0xff]
      %v413 = vld [vmem:[#allocation2 + $0x18] sm:$0xff]
      %v414 = vld [vmem:[#allocation2 + $0x20] sm:$0xff]
      %v415 = vld [vmem:[#allocation2 + $0x28] sm:$0xff]
      %v416 = vld [vmem:[#allocation2 + $0x30] sm:$0xff]
      %v417 = vld [vmem:[#allocation2 + $0x38] sm:$0xff]
      %v418 = vld [vmem:[#allocation2 + $0x40] sm:$0xff]
      %v419 = vld [vmem:[#allocation2 + $0x48] sm:$0xff]
      %v420 = vld [vmem:[#allocation2 + $0x50] sm:$0xff]
      %v421 = vld [vmem:[#allocation2 + $0x58] sm:$0xff]
      %v422 = vld [vmem:[#allocation2 + $0x60] sm:$0xff]
      %v423 = vld [vmem:[#allocation2 + $0x68] sm:$0xff]
      %v424 = vld [vmem:[#allocation2 + $0x70] sm:$0xff]
      %v425 = vld [vmem:[#allocation2 + $0x78] sm:$0xff]
      %v426 = vld [vmem:[#allocation2 + $0x80] sm:$0xff]
      %v427 = vld [vmem:[#allocation2 + $0x88] sm:$0xff]
      %v428 = vld [vmem:[#allocation2 + $0x90] sm:$0xff]
      %v429 = vld [vmem:[#allocation2 + $0x98] sm:$0xff]
      %v430 = vld [vmem:[#allocation2 + $0xa0] sm:$0xff]
      %v431 = vld [vmem:[#allocation2 + $0xa8] sm:$0xff]
      %v432 = vld [vmem:[#allocation2 + $0xb0] sm:$0xff]
      %v433 = vld [vmem:[#allocation2 + $0xb8] sm:$0xff]
      %v434 = vld [vmem:[#allocation2 + $0xc0] sm:$0xff]
      %v435 = vld [vmem:[#allocation2 + $0xc8] sm:$0xff]
      %v436 = vld [vmem:[#allocation2 + $0xd0] sm:$0xff]
      %v437 = vld [vmem:[#allocation2 + $0xd8] sm:$0xff]
      %v438 = vld [vmem:[#allocation2 + $0xe0] sm:$0xff]
      %v439 = vld [vmem:[#allocation2 + $0xe8] sm:$0xff]
      %v440 = vld [vmem:[#allocation2 + $0xf0] sm:$0xff]
      %v441 = vld [vmem:[#allocation2 + $0xf8] sm:$0xff]
      %v442 = vld [vmem:[#allocation2 + $0x100] sm:$0xff]
      %v443 = vld [vmem:[#allocation2 + $0x108] sm:$0xff]
      %v444 = vld [vmem:[#allocation2 + $0x110] sm:$0xff]
      %v445 = vld [vmem:[#allocation2 + $0x118] sm:$0xff]
      %v446 = vld [vmem:[#allocation2 + $0x120] sm:$0xff]
      %v447 = vld [vmem:[#allocation2 + $0x128] sm:$0xff]
      %v448 = vld [vmem:[#allocation2 + $0x130] sm:$0xff]
      %v449 = vld [vmem:[#allocation2 + $0x138] sm:$0xff]
      %v450 = vld [vmem:[#allocation2 + $0x140] sm:$0xff]
      %v451 = vld [vmem:[#allocation2 + $0x148] sm:$0xff]
      %v452 = vld [vmem:[#allocation2 + $0x150] sm:$0xff]
      %v453 = vld [vmem:[#allocation2 + $0x158] sm:$0xff]
      %v454 = vld [vmem:[#allocation2 + $0x160] sm:$0xff]
      %v455 = vld [vmem:[#allocation2 + $0x168] sm:$0xff]
      %v456 = vld [vmem:[#allocation2 + $0x170] sm:$0xff]
      %v457 = vld [vmem:[#allocation2 + $0x178] sm:$0xff]
      %v458 = vld [vmem:[#allocation2 + $0x180] sm:$0xff]
      %v459 = vld [vmem:[#allocation2 + $0x188] sm:$0xff]
      %v460 = vld [vmem:[#allocation2 + $0x190] sm:$0xff]
      %v461 = vld [vmem:[#allocation2 + $0x198] sm:$0xff]
      %v462 = vld [vmem:[#allocation2 + $0x1a0] sm:$0xff]
      %v463 = vld [vmem:[#allocation2 + $0x1a8] sm:$0xff]
      %v464 = vld [vmem:[#allocation2 + $0x1b0] sm:$0xff]
      %v465 = vld [vmem:[#allocation2 + $0x1b8] sm:$0xff]
      %v466 = vld [vmem:[#allocation2 + $0x1c0] sm:$0xff]
      %v467 = vld [vmem:[#allocation2 + $0x1c8] sm:$0xff]
      %v468 = vld [vmem:[#allocation2 + $0x1d0] sm:$0xff]
      %v469 = vld [vmem:[#allocation2 + $0x1d8] sm:$0xff]
      %v470 = vld [vmem:[#allocation2 + $0x1e0] sm:$0xff]
      %v471 = vld [vmem:[#allocation2 + $0x1e8] sm:$0xff]
      %v472 = vld [vmem:[#allocation2 + $0x1f0] sm:$0xff]
      %v473 = vld [vmem:[#allocation2 + $0x1f8] sm:$0xff]
      %v474 = vld [vmem:[%s312] sm:$0xf]
      %v475 = vld [vmem:[%s312 + $0x4] sm:$0xf]
      %v476 = vld [vmem:[%s312 + $0x8] sm:$0xf]
      %v477 = vld [vmem:[%s312 + $0xc] sm:$0xf]
      %v478 = vld [vmem:[%s312 + $0x10] sm:$0xf]
      %v479 = vld [vmem:[%s312 + $0x14] sm:$0xf]
      %v480 = vld [vmem:[%s312 + $0x18] sm:$0xf]
      %v481 = vld [vmem:[%s312 + $0x1c] sm:$0xf]
      %v482 = vld [vmem:[%s312 + $0x20] sm:$0xf]
      %v483 = vld [vmem:[%s312 + $0x24] sm:$0xf]
      %v484 = vld [vmem:[%s312 + $0x28] sm:$0xf]
      %v485 = vld [vmem:[%s312 + $0x2c] sm:$0xf]
      %v486 = vld [vmem:[%s312 + $0x30] sm:$0xf]
      %v487 = vld [vmem:[%s312 + $0x34] sm:$0xf]
      %v488 = vld [vmem:[%s312 + $0x38] sm:$0xf]
      %v489 = vld [vmem:[%s312 + $0x3c] sm:$0xf]
      %v490 = vld [vmem:[%s312 + $0x40] sm:$0xf]
      %v491 = vld [vmem:[%s312 + $0x44] sm:$0xf]
      %v492 = vld [vmem:[%s312 + $0x48] sm:$0xf]
      %v493 = vld [vmem:[%s312 + $0x4c] sm:$0xf]
      %v494 = vld [vmem:[%s312 + $0x50] sm:$0xf]
      %v495 = vld [vmem:[%s312 + $0x54] sm:$0xf]
      %v496 = vld [vmem:[%s312 + $0x58] sm:$0xf]
      %v497 = vld [vmem:[%s312 + $0x5c] sm:$0xf]
      %v498 = vld [vmem:[%s312 + $0x60] sm:$0xf]
      %v499 = vld [vmem:[%s312 + $0x64] sm:$0xf]
      %v500 = vld [vmem:[%s312 + $0x68] sm:$0xf]
      %v501 = vld [vmem:[%s312 + $0x6c] sm:$0xf]
      %v502 = vld [vmem:[%s312 + $0x70] sm:$0xf]
      %v503 = vld [vmem:[%s312 + $0x74] sm:$0xf]
      %v504 = vld [vmem:[%s312 + $0x78] sm:$0xf]
      %v505 = vld [vmem:[%s312 + $0x7c] sm:$0xf]
      %v506 = vld [vmem:[%s312 + $0x80] sm:$0xf]
      %v507 = vld [vmem:[%s312 + $0x84] sm:$0xf]
      %v508 = vld [vmem:[%s312 + $0x88] sm:$0xf]
      %v509 = vld [vmem:[%s312 + $0x8c] sm:$0xf]
      %v510 = vld [vmem:[%s312 + $0x90] sm:$0xf]
      %v511 = vld [vmem:[%s312 + $0x94] sm:$0xf]
      %v512 = vld [vmem:[%s312 + $0x98] sm:$0xf]
      %v513 = vld [vmem:[%s312 + $0x9c] sm:$0xf]
      %v514 = vld [vmem:[%s312 + $0xa0] sm:$0xf]
      %v515 = vld [vmem:[%s312 + $0xa4] sm:$0xf]
      %v516 = vld [vmem:[%s312 + $0xa8] sm:$0xf]
      %v517 = vld [vmem:[%s312 + $0xac] sm:$0xf]
      %v518 = vld [vmem:[%s312 + $0xb0] sm:$0xf]
      %v519 = vld [vmem:[%s312 + $0xb4] sm:$0xf]
      %v520 = vld [vmem:[%s312 + $0xb8] sm:$0xf]
      %v521 = vld [vmem:[%s312 + $0xbc] sm:$0xf]
      %v522 = vld [vmem:[%s312 + $0xc0] sm:$0xf]
      %v523 = vld [vmem:[%s312 + $0xc4] sm:$0xf]
      %v524 = vld [vmem:[%s312 + $0xc8] sm:$0xf]
      %v525 = vld [vmem:[%s312 + $0xcc] sm:$0xf]
      %v526 = vld [vmem:[%s312 + $0xd0] sm:$0xf]
      %v527 = vld [vmem:[%s312 + $0xd4] sm:$0xf]
      %v528 = vld [vmem:[%s312 + $0xd8] sm:$0xf]
      %v529 = vld [vmem:[%s312 + $0xdc] sm:$0xf]
      %v530 = vld [vmem:[%s312 + $0xe0] sm:$0xf]
      %v531 = vld [vmem:[%s312 + $0xe4] sm:$0xf]
      %v532 = vld [vmem:[%s312 + $0xe8] sm:$0xf]
      %v533 = vld [vmem:[%s312 + $0xec] sm:$0xf]
      %v534 = vld [vmem:[%s312 + $0xf0] sm:$0xf]
      %v535 = vld [vmem:[%s312 + $0xf4] sm:$0xf]
      %v536 = vld [vmem:[%s312 + $0xf8] sm:$0xf]
      %v537 = vld [vmem:[%s312 + $0xfc] sm:$0xf]
      %v538 = vld [vmem:[%s321] sm:$0xf]
      %v539 = vld [vmem:[%s321 + $0x4] sm:$0xf]
      %v540 = vld [vmem:[%s321 + $0x8] sm:$0xf]
      %v541 = vld [vmem:[%s321 + $0xc] sm:$0xf]
      %v542 = vld [vmem:[%s321 + $0x10] sm:$0xf]
      %v607 = vunpack.c.l.b16 %v474
      %v608 = vunpack.c.l.b16 %v475
      %v609 = vunpack.c.l.b16 %v476
      %v610 = vunpack.c.l.b16 %v477
      %v611 = vunpack.c.l.b16 %v478
      %v612 = vunpack.c.l.b16 %v479
      %v613 = vunpack.c.l.b16 %v480
      %v614 = vunpack.c.l.b16 %v481
      %v615 = vunpack.c.l.b16 %v482
      %v616 = vunpack.c.l.b16 %v483
      %v617 = vunpack.c.l.b16 %v484
      %v618 = vunpack.c.l.b16 %v485
      %v619 = vunpack.c.l.b16 %v486
      %v620 = vunpack.c.l.b16 %v487
      %v621 = vunpack.c.l.b16 %v488
      %v622 = vunpack.c.l.b16 %v489
      %v623 = vunpack.c.l.b16 %v490
      %v624 = vunpack.c.l.b16 %v491
      %v625 = vunpack.c.l.b16 %v492
      %v626 = vunpack.c.l.b16 %v493
      %v627 = vunpack.c.l.b16 %v494
      %v628 = vunpack.c.l.b16 %v495
      %v629 = vunpack.c.l.b16 %v496
      %v630 = vunpack.c.l.b16 %v497
      %v631 = vunpack.c.l.b16 %v498
      %v632 = vunpack.c.l.b16 %v499
      %v633 = vunpack.c.l.b16 %v500
      %v634 = vunpack.c.l.b16 %v501
      %v635 = vunpack.c.l.b16 %v502
      %v636 = vunpack.c.l.b16 %v503
      %v637 = vunpack.c.l.b16 %v504
      %v638 = vunpack.c.l.b16 %v505
      %v639 = vunpack.c.l.b16 %v506
      %v640 = vunpack.c.l.b16 %v507
      %v641 = vunpack.c.l.b16 %v508
      %v642 = vunpack.c.l.b16 %v509
      %v643 = vunpack.c.l.b16 %v510
      %v644 = vunpack.c.l.b16 %v511
      %v645 = vunpack.c.l.b16 %v512
      %v646 = vunpack.c.l.b16 %v513
      %v647 = vunpack.c.l.b16 %v514
      %v648 = vunpack.c.l.b16 %v515
      %v649 = vunpack.c.l.b16 %v516
      %v650 = vunpack.c.l.b16 %v517
      %v651 = vunpack.c.l.b16 %v518
      %v652 = vunpack.c.l.b16 %v519
      %v653 = vunpack.c.l.b16 %v520
      %v654 = vunpack.c.l.b16 %v521
      %v655 = vunpack.c.l.b16 %v522
      %v656 = vunpack.c.l.b16 %v523
      %v657 = vunpack.c.l.b16 %v524
      %v658 = vunpack.c.l.b16 %v525
      %v659 = vunpack.c.l.b16 %v526
      %v660 = vunpack.c.l.b16 %v527
      %v661 = vunpack.c.l.b16 %v528
      %v662 = vunpack.c.l.b16 %v529
      %v663 = vunpack.c.l.b16 %v530
      %v664 = vunpack.c.l.b16 %v531
      %v665 = vunpack.c.l.b16 %v532
      %v666 = vunpack.c.l.b16 %v533
      %v667 = vunpack.c.l.b16 %v534
      %v668 = vunpack.c.l.b16 %v535
      %v669 = vunpack.c.l.b16 %v536
      %v670 = vunpack.c.l.b16 %v537
      %v671 = vpack.c.b16 %v608, %v607
      %v672 = vpack.c.b16 %v610, %v609
      %v673 = vpack.c.b16 %v612, %v611
      %v674 = vpack.c.b16 %v614, %v613
      %v675 = vpack.c.b16 %v616, %v615
      %v676 = vpack.c.b16 %v618, %v617
      %v677 = vpack.c.b16 %v620, %v619
      %v678 = vpack.c.b16 %v622, %v621
      %v679 = vpack.c.b16 %v624, %v623
      %v680 = vpack.c.b16 %v626, %v625
      %v681 = vpack.c.b16 %v628, %v627
      %v682 = vpack.c.b16 %v630, %v629
      %v683 = vpack.c.b16 %v632, %v631
      %v684 = vpack.c.b16 %v634, %v633
      %v685 = vpack.c.b16 %v636, %v635
      %v686 = vpack.c.b16 %v638, %v637
      %v687 = vpack.c.b16 %v640, %v639
      %v688 = vpack.c.b16 %v642, %v641
      %v689 = vpack.c.b16 %v644, %v643
      %v690 = vpack.c.b16 %v646, %v645
      %v691 = vpack.c.b16 %v648, %v647
      %v692 = vpack.c.b16 %v650, %v649
      %v693 = vpack.c.b16 %v652, %v651
      %v694 = vpack.c.b16 %v654, %v653
      %v695 = vpack.c.b16 %v656, %v655
      %v696 = vpack.c.b16 %v658, %v657
      %v697 = vpack.c.b16 %v660, %v659
      %v698 = vpack.c.b16 %v662, %v661
      %v699 = vpack.c.b16 %v664, %v663
      %v700 = vpack.c.b16 %v666, %v665
      %v701 = vpack.c.b16 %v668, %v667
      %v702 = vpack.c.b16 %v670, %v669
      %v708 = vunpack.c.l.b16 %v538
      %v709 = vunpack.c.l.b16 %v539
      %v710 = vunpack.c.l.b16 %v540
      %v711 = vunpack.c.l.b16 %v541
      %v712 = vunpack.c.l.b16 %v542
      %v713 = vpack.c.b16 %v709, %v708
      %v714 = vpack.c.b16 %v711, %v710
      %v715 = vpack.c.b16 %v712, %v712
      %vm718 = vcmask 326656
      %v720 = vsel %vm718, %v671, 0
      %v723 = vsel %vm718, %v672, 0
      %v726 = vsel %vm718, %v673, 0
      %v729 = vsel %vm718, %v674, 0
      %v732 = vsel %vm718, %v675, 0
      %v735 = vsel %vm718, %v676, 0
      %v738 = vsel %vm718, %v677, 0
      %v741 = vsel %vm718, %v678, 0
      %v744 = vsel %vm718, %v679, 0
      %v747 = vsel %vm718, %v680, 0
      %v750 = vsel %vm718, %v681, 0
      %v753 = vsel %vm718, %v682, 0
      %v756 = vsel %vm718, %v683, 0
      %v759 = vsel %vm718, %v684, 0
      %v762 = vsel %vm718, %v685, 0
      %v765 = vsel %vm718, %v686, 0
      %v768 = vsel %vm718, %v687, 0
      %v771 = vsel %vm718, %v688, 0
      %v774 = vsel %vm718, %v689, 0
      %v777 = vsel %vm718, %v690, 0
      %v780 = vsel %vm718, %v691, 0
      %v783 = vsel %vm718, %v692, 0
      %v786 = vsel %vm718, %v693, 0
      %v789 = vsel %vm718, %v694, 0
      %v792 = vsel %vm718, %v695, 0
      %v795 = vsel %vm718, %v696, 0
      %v798 = vsel %vm718, %v697, 0
      %v801 = vsel %vm718, %v698, 0
      %v804 = vsel %vm718, %v699, 0
      %v807 = vsel %vm718, %v700, 0
      %v810 = vsel %vm718, %v701, 0
      %v813 = vsel %vm718, %v702, 0
      %vm815 = vcmask 1043456
      %v817 = vsel %vm815, %v715, 0
      %819 = vmatpush.bf16.msra.mxu0 0
      %820 = vmatpush.bf16.msra.mxu0 0
      %821 = vmatpush.bf16.msra.mxu0 0
      %822 = vmatpush.bf16.msra.mxu0 0
      %823 = vmatpush.bf16.msra.mxu0 0
      %824 = vmatpush.bf16.msra.mxu0 %v817
      %825 = vmatpush.bf16.msra.mxu0 %v714
      %826 = vmatpush.bf16.msra.mxu0 %v713
      %827 = vmatmul.bf16.gmra.mxu0 %v720
      %v828 = vpop.f32.mrf.mxu0
      %v829 = vadd.f32 0.0, %v828
      %v830 = vpop.f32.mrf.mxu0
      %v831 = vadd.f32 0.0, %v830
      %832 = vmatmul.bf16.gmra.mxu0 %v723
      %v833 = vpop.f32.mrf.mxu0
      %v834 = vadd.f32 0.0, %v833
      %v835 = vpop.f32.mrf.mxu0
      %v836 = vadd.f32 0.0, %v835
      %837 = vmatmul.bf16.gmra.mxu0 %v726
      %v838 = vpop.f32.mrf.mxu0
      %v839 = vadd.f32 0.0, %v838
      %v840 = vpop.f32.mrf.mxu0
      %v841 = vadd.f32 0.0, %v840
      %842 = vmatmul.bf16.gmra.mxu0 %v729
      %v843 = vpop.f32.mrf.mxu0
      %v844 = vadd.f32 0.0, %v843
      %v845 = vpop.f32.mrf.mxu0
      %v846 = vadd.f32 0.0, %v845
      %847 = vmatmul.bf16.gmra.mxu0 %v732
      %v848 = vpop.f32.mrf.mxu0
      %v849 = vadd.f32 0.0, %v848
      %v850 = vpop.f32.mrf.mxu0
      %v851 = vadd.f32 0.0, %v850
      %852 = vmatmul.bf16.gmra.mxu0 %v735
      %v853 = vpop.f32.mrf.mxu0
      %v854 = vadd.f32 0.0, %v853
      %v855 = vpop.f32.mrf.mxu0
      %v856 = vadd.f32 0.0, %v855
      %857 = vmatmul.bf16.gmra.mxu0 %v738
      %v858 = vpop.f32.mrf.mxu0
      %v859 = vadd.f32 0.0, %v858
      %v860 = vpop.f32.mrf.mxu0
      %v861 = vadd.f32 0.0, %v860
      %862 = vmatmul.bf16.gmra.mxu0 %v741
      %v863 = vpop.f32.mrf.mxu0
      %v864 = vadd.f32 0.0, %v863
      %v865 = vpop.f32.mrf.mxu0
      %v866 = vadd.f32 0.0, %v865
      %867 = vmatmul.bf16.gmra.mxu0 %v744
      %v868 = vpop.f32.mrf.mxu0
      %v869 = vadd.f32 0.0, %v868
      %v870 = vpop.f32.mrf.mxu0
      %v871 = vadd.f32 0.0, %v870
      %872 = vmatmul.bf16.gmra.mxu0 %v747
      %v873 = vpop.f32.mrf.mxu0
      %v874 = vadd.f32 0.0, %v873
      %v875 = vpop.f32.mrf.mxu0
      %v876 = vadd.f32 0.0, %v875
      %877 = vmatmul.bf16.gmra.mxu0 %v750
      %v878 = vpop.f32.mrf.mxu0
      %v879 = vadd.f32 0.0, %v878
      %v880 = vpop.f32.mrf.mxu0
      %v881 = vadd.f32 0.0, %v880
      %882 = vmatmul.bf16.gmra.mxu0 %v753
      %v883 = vpop.f32.mrf.mxu0
      %v884 = vadd.f32 0.0, %v883
      %v885 = vpop.f32.mrf.mxu0
      %v886 = vadd.f32 0.0, %v885
      %887 = vmatmul.bf16.gmra.mxu0 %v756
      %v888 = vpop.f32.mrf.mxu0
      %v889 = vadd.f32 0.0, %v888
      %v890 = vpop.f32.mrf.mxu0
      %v891 = vadd.f32 0.0, %v890
      %892 = vmatmul.bf16.gmra.mxu0 %v759
      %v893 = vpop.f32.mrf.mxu0
      %v894 = vadd.f32 0.0, %v893
      %v895 = vpop.f32.mrf.mxu0
      %v896 = vadd.f32 0.0, %v895
      %897 = vmatmul.bf16.gmra.mxu0 %v762
      %v898 = vpop.f32.mrf.mxu0
      %v899 = vadd.f32 0.0, %v898
      %v900 = vpop.f32.mrf.mxu0
      %v901 = vadd.f32 0.0, %v900
      %902 = vmatmul.bf16.gmra.mxu0 %v765
      %v903 = vpop.f32.mrf.mxu0
      %v904 = vadd.f32 0.0, %v903
      %v905 = vpop.f32.mrf.mxu0
      %v906 = vadd.f32 0.0, %v905
      %907 = vmatmul.bf16.gmra.mxu0 %v768
      %v908 = vpop.f32.mrf.mxu0
      %v909 = vadd.f32 0.0, %v908
      %v910 = vpop.f32.mrf.mxu0
      %v911 = vadd.f32 0.0, %v910
      %912 = vmatmul.bf16.gmra.mxu0 %v771
      %v913 = vpop.f32.mrf.mxu0
      %v914 = vadd.f32 0.0, %v913
      %v915 = vpop.f32.mrf.mxu0
      %v916 = vadd.f32 0.0, %v915
      %917 = vmatmul.bf16.gmra.mxu0 %v774
      %v918 = vpop.f32.mrf.mxu0
      %v919 = vadd.f32 0.0, %v918
      %v920 = vpop.f32.mrf.mxu0
      %v921 = vadd.f32 0.0, %v920
      %922 = vmatmul.bf16.gmra.mxu0 %v777
      %v923 = vpop.f32.mrf.mxu0
      %v924 = vadd.f32 0.0, %v923
      %v925 = vpop.f32.mrf.mxu0
      %v926 = vadd.f32 0.0, %v925
      %927 = vmatmul.bf16.gmra.mxu0 %v780
      %v928 = vpop.f32.mrf.mxu0
      %v929 = vadd.f32 0.0, %v928
      %v930 = vpop.f32.mrf.mxu0
      %v931 = vadd.f32 0.0, %v930
      %932 = vmatmul.bf16.gmra.mxu0 %v783
      %v933 = vpop.f32.mrf.mxu0
      %v934 = vadd.f32 0.0, %v933
      %v935 = vpop.f32.mrf.mxu0
      %v936 = vadd.f32 0.0, %v935
      %937 = vmatmul.bf16.gmra.mxu0 %v786
      %v938 = vpop.f32.mrf.mxu0
      %v939 = vadd.f32 0.0, %v938
      %v940 = vpop.f32.mrf.mxu0
      %v941 = vadd.f32 0.0, %v940
      %942 = vmatmul.bf16.gmra.mxu0 %v789
      %v943 = vpop.f32.mrf.mxu0
      %v944 = vadd.f32 0.0, %v943
      %v945 = vpop.f32.mrf.mxu0
      %v946 = vadd.f32 0.0, %v945
      %947 = vmatmul.bf16.gmra.mxu0 %v792
      %v948 = vpop.f32.mrf.mxu0
      %v949 = vadd.f32 0.0, %v948
      %v950 = vpop.f32.mrf.mxu0
      %v951 = vadd.f32 0.0, %v950
      %952 = vmatmul.bf16.gmra.mxu0 %v795
      %v953 = vpop.f32.mrf.mxu0
      %v954 = vadd.f32 0.0, %v953
      %v955 = vpop.f32.mrf.mxu0
      %v956 = vadd.f32 0.0, %v955
      %957 = vmatmul.bf16.gmra.mxu0 %v798
      %v958 = vpop.f32.mrf.mxu0
      %v959 = vadd.f32 0.0, %v958
      %v960 = vpop.f32.mrf.mxu0
      %v961 = vadd.f32 0.0, %v960
      %962 = vmatmul.bf16.gmra.mxu0 %v801
      %v963 = vpop.f32.mrf.mxu0
      %v964 = vadd.f32 0.0, %v963
      %v965 = vpop.f32.mrf.mxu0
      %v966 = vadd.f32 0.0, %v965
      %967 = vmatmul.bf16.gmra.mxu0 %v804
      %v968 = vpop.f32.mrf.mxu0
      %v969 = vadd.f32 0.0, %v968
      %v970 = vpop.f32.mrf.mxu0
      %v971 = vadd.f32 0.0, %v970
      %972 = vmatmul.bf16.gmra.mxu0 %v807
      %v973 = vpop.f32.mrf.mxu0
      %v974 = vadd.f32 0.0, %v973
      %v975 = vpop.f32.mrf.mxu0
      %v976 = vadd.f32 0.0, %v975
      %977 = vmatmul.bf16.gmra.mxu0 %v810
      %v978 = vpop.f32.mrf.mxu0
      %v979 = vadd.f32 0.0, %v978
      %v980 = vpop.f32.mrf.mxu0
      %v981 = vadd.f32 0.0, %v980
      %982 = vmatmul.bf16.gmra.mxu0 %v813
      %v983 = vpop.f32.mrf.mxu0
      %v984 = vadd.f32 0.0, %v983
      %v985 = vpop.f32.mrf.mxu0
      %v986 = vadd.f32 0.0, %v985
      %987 = vdwg.mxu0
      %v988 = vadd.f32 %v410, %v829
      %v989 = vadd.f32 %v411, %v831
      %v990 = vadd.f32 %v412, %v834
      %v991 = vadd.f32 %v413, %v836
      %v992 = vadd.f32 %v414, %v839
      %v993 = vadd.f32 %v415, %v841
      %v994 = vadd.f32 %v416, %v844
      %v995 = vadd.f32 %v417, %v846
      %v996 = vadd.f32 %v418, %v849
      %v997 = vadd.f32 %v419, %v851
      %v998 = vadd.f32 %v420, %v854
      %v999 = vadd.f32 %v421, %v856
      %v1000 = vadd.f32 %v422, %v859
      %v1001 = vadd.f32 %v423, %v861
      %v1002 = vadd.f32 %v424, %v864
      %v1003 = vadd.f32 %v425, %v866
      %v1004 = vadd.f32 %v426, %v869
      %v1005 = vadd.f32 %v427, %v871
      %v1006 = vadd.f32 %v428, %v874
      %v1007 = vadd.f32 %v429, %v876
      %v1008 = vadd.f32 %v430, %v879
      %v1009 = vadd.f32 %v431, %v881
      %v1010 = vadd.f32 %v432, %v884
      %v1011 = vadd.f32 %v433, %v886
      %v1012 = vadd.f32 %v434, %v889
      %v1013 = vadd.f32 %v435, %v891
      %v1014 = vadd.f32 %v436, %v894
      %v1015 = vadd.f32 %v437, %v896
      %v1016 = vadd.f32 %v438, %v899
      %v1017 = vadd.f32 %v439, %v901
      %v1018 = vadd.f32 %v440, %v904
      %v1019 = vadd.f32 %v441, %v906
      %v1020 = vadd.f32 %v442, %v909
      %v1021 = vadd.f32 %v443, %v911
      %v1022 = vadd.f32 %v444, %v914
      %v1023 = vadd.f32 %v445, %v916
      %v1024 = vadd.f32 %v446, %v919
      %v1025 = vadd.f32 %v447, %v921
      %v1026 = vadd.f32 %v448, %v924
      %v1027 = vadd.f32 %v449, %v926
      %v1028 = vadd.f32 %v450, %v929
      %v1029 = vadd.f32 %v451, %v931
      %v1030 = vadd.f32 %v452, %v934
      %v1031 = vadd.f32 %v453, %v936
      %v1032 = vadd.f32 %v454, %v939
      %v1033 = vadd.f32 %v455, %v941
      %v1034 = vadd.f32 %v456, %v944
      %v1035 = vadd.f32 %v457, %v946
      %v1036 = vadd.f32 %v458, %v949
      %v1037 = vadd.f32 %v459, %v951
      %v1038 = vadd.f32 %v460, %v954
      %v1039 = vadd.f32 %v461, %v956
      %v1040 = vadd.f32 %v462, %v959
      %v1041 = vadd.f32 %v463, %v961
      %v1042 = vadd.f32 %v464, %v964
      %v1043 = vadd.f32 %v465, %v966
      %v1044 = vadd.f32 %v466, %v969
      %v1045 = vadd.f32 %v467, %v971
      %v1046 = vadd.f32 %v468, %v974
      %v1047 = vadd.f32 %v469, %v976
      %v1048 = vadd.f32 %v470, %v979
      %v1049 = vadd.f32 %v471, %v981
      %v1050 = vadd.f32 %v472, %v984
      %v1051 = vadd.f32 %v473, %v986
      %1052 = vst [vmem:[#allocation2] sm:$0xff] %v988
      %1053 = vst [vmem:[#allocation2 + $0x8] sm:$0xff] %v989
      %1054 = vst [vmem:[#allocation2 + $0x10] sm:$0xff] %v990
      %1055 = vst [vmem:[#allocation2 + $0x18] sm:$0xff] %v991
      %1056 = vst [vmem:[#allocation2 + $0x20] sm:$0xff] %v992
      %1057 = vst [vmem:[#allocation2 + $0x28] sm:$0xff] %v993
      %1058 = vst [vmem:[#allocation2 + $0x30] sm:$0xff] %v994
      %1059 = vst [vmem:[#allocation2 + $0x38] sm:$0xff] %v995
      %1060 = vst [vmem:[#allocation2 + $0x40] sm:$0xff] %v996
      %1061 = vst [vmem:[#allocation2 + $0x48] sm:$0xff] %v997
      %1062 = vst [vmem:[#allocation2 + $0x50] sm:$0xff] %v998
      %1063 = vst [vmem:[#allocation2 + $0x58] sm:$0xff] %v999
      %1064 = vst [vmem:[#allocation2 + $0x60] sm:$0xff] %v1000
      %1065 = vst [vmem:[#allocation2 + $0x68] sm:$0xff] %v1001
      %1066 = vst [vmem:[#allocation2 + $0x70] sm:$0xff] %v1002
      %1067 = vst [vmem:[#allocation2 + $0x78] sm:$0xff] %v1003
      %1068 = vst [vmem:[#allocation2 + $0x80] sm:$0xff] %v1004
      %1069 = vst [vmem:[#allocation2 + $0x88] sm:$0xff] %v1005
      %1070 = vst [vmem:[#allocation2 + $0x90] sm:$0xff] %v1006
      %1071 = vst [vmem:[#allocation2 + $0x98] sm:$0xff] %v1007
      %1072 = vst [vmem:[#allocation2 + $0xa0] sm:$0xff] %v1008
      %1073 = vst [vmem:[#allocation2 + $0xa8] sm:$0xff] %v1009
      %1074 = vst [vmem:[#allocation2 + $0xb0] sm:$0xff] %v1010
      %1075 = vst [vmem:[#allocation2 + $0xb8] sm:$0xff] %v1011
      %1076 = vst [vmem:[#allocation2 + $0xc0] sm:$0xff] %v1012
      %1077 = vst [vmem:[#allocation2 + $0xc8] sm:$0xff] %v1013
      %1078 = vst [vmem:[#allocation2 + $0xd0] sm:$0xff] %v1014
      %1079 = vst [vmem:[#allocation2 + $0xd8] sm:$0xff] %v1015
      %1080 = vst [vmem:[#allocation2 + $0xe0] sm:$0xff] %v1016
      %1081 = vst [vmem:[#allocation2 + $0xe8] sm:$0xff] %v1017
      %1082 = vst [vmem:[#allocation2 + $0xf0] sm:$0xff] %v1018
      %1083 = vst [vmem:[#allocation2 + $0xf8] sm:$0xff] %v1019
      %1084 = vst [vmem:[#allocation2 + $0x100] sm:$0xff] %v1020
      %1085 = vst [vmem:[#allocation2 + $0x108] sm:$0xff] %v1021
      %1086 = vst [vmem:[#allocation2 + $0x110] sm:$0xff] %v1022
      %1087 = vst [vmem:[#allocation2 + $0x118] sm:$0xff] %v1023
      %1088 = vst [vmem:[#allocation2 + $0x120] sm:$0xff] %v1024
      %1089 = vst [vmem:[#allocation2 + $0x128] sm:$0xff] %v1025
      %1090 = vst [vmem:[#allocation2 + $0x130] sm:$0xff] %v1026
      %1091 = vst [vmem:[#allocation2 + $0x138] sm:$0xff] %v1027
      %1092 = vst [vmem:[#allocation2 + $0x140] sm:$0xff] %v1028
      %1093 = vst [vmem:[#allocation2 + $0x148] sm:$0xff] %v1029
      %1094 = vst [vmem:[#allocation2 + $0x150] sm:$0xff] %v1030
      %1095 = vst [vmem:[#allocation2 + $0x158] sm:$0xff] %v1031
      %1096 = vst [vmem:[#allocation2 + $0x160] sm:$0xff] %v1032
      %1097 = vst [vmem:[#allocation2 + $0x168] sm:$0xff] %v1033
      %1098 = vst [vmem:[#allocation2 + $0x170] sm:$0xff] %v1034
      %1099 = vst [vmem:[#allocation2 + $0x178] sm:$0xff] %v1035
      %1100 = vst [vmem:[#allocation2 + $0x180] sm:$0xff] %v1036
      %1101 = vst [vmem:[#allocation2 + $0x188] sm:$0xff] %v1037
      %1102 = vst [vmem:[#allocation2 + $0x190] sm:$0xff] %v1038
      %1103 = vst [vmem:[#allocation2 + $0x198] sm:$0xff] %v1039
      %1104 = vst [vmem:[#allocation2 + $0x1a0] sm:$0xff] %v1040
      %1105 = vst [vmem:[#allocation2 + $0x1a8] sm:$0xff] %v1041
      %1106 = vst [vmem:[#allocation2 + $0x1b0] sm:$0xff] %v1042
      %1107 = vst [vmem:[#allocation2 + $0x1b8] sm:$0xff] %v1043
      %1108 = vst [vmem:[#allocation2 + $0x1c0] sm:$0xff] %v1044
      %1109 = vst [vmem:[#allocation2 + $0x1c8] sm:$0xff] %v1045
      %1110 = vst [vmem:[#allocation2 + $0x1d0] sm:$0xff] %v1046
      %1111 = vst [vmem:[#allocation2 + $0x1d8] sm:$0xff] %v1047
      %1112 = vst [vmem:[#allocation2 + $0x1e0] sm:$0xff] %v1048
      %1113 = vst [vmem:[#allocation2 + $0x1e8] sm:$0xff] %v1049
      %1114 = vst [vmem:[#allocation2 + $0x1f0] sm:$0xff] %v1050
      %1115 = vst [vmem:[#allocation2 + $0x1f8] sm:$0xff] %v1051
      // Predicated region
      $region45: #{_lambda_.7} parent=39 // pred_check
        %p1116 = pneg %p342
      $region46: #{_lambda_.7} parent=39 // pred_check_branch
        %1118 = sbr.rel (%p1116) target = $region48
      $region47: #{_lambda_.7} parent=39 // pred_region
        %v1119 = vld [vmem:[#allocation2] sm:$0xff]
        %v1120 = vld [vmem:[#allocation2 + $0x8] sm:$0xff]
        %v1121 = vld [vmem:[#allocation2 + $0x10] sm:$0xff]
        %v1122 = vld [vmem:[#allocation2 + $0x18] sm:$0xff]
        %v1123 = vld [vmem:[#allocation2 + $0x20] sm:$0xff]
        %v1124 = vld [vmem:[#allocation2 + $0x28] sm:$0xff]
        %v1125 = vld [vmem:[#allocation2 + $0x30] sm:$0xff]
        %v1126 = vld [vmem:[#allocation2 + $0x38] sm:$0xff]
        %v1127 = vld [vmem:[#allocation2 + $0x40] sm:$0xff]
        %v1128 = vld [vmem:[#allocation2 + $0x48] sm:$0xff]
        %v1129 = vld [vmem:[#allocation2 + $0x50] sm:$0xff]
        %v1130 = vld [vmem:[#allocation2 + $0x58] sm:$0xff]
        %v1131 = vld [vmem:[#allocation2 + $0x60] sm:$0xff]
        %v1132 = vld [vmem:[#allocation2 + $0x68] sm:$0xff]
        %v1133 = vld [vmem:[#allocation2 + $0x70] sm:$0xff]
        %v1134 = vld [vmem:[#allocation2 + $0x78] sm:$0xff]
        %v1135 = vld [vmem:[#allocation2 + $0x80] sm:$0xff]
        %v1136 = vld [vmem:[#allocation2 + $0x88] sm:$0xff]
        %v1137 = vld [vmem:[#allocation2 + $0x90] sm:$0xff]
        %v1138 = vld [vmem:[#allocation2 + $0x98] sm:$0xff]
        %v1139 = vld [vmem:[#allocation2 + $0xa0] sm:$0xff]
        %v1140 = vld [vmem:[#allocation2 + $0xa8] sm:$0xff]
        %v1141 = vld [vmem:[#allocation2 + $0xb0] sm:$0xff]
        %v1142 = vld [vmem:[#allocation2 + $0xb8] sm:$0xff]
        %v1143 = vld [vmem:[#allocation2 + $0xc0] sm:$0xff]
        %v1144 = vld [vmem:[#allocation2 + $0xc8] sm:$0xff]
        %v1145 = vld [vmem:[#allocation2 + $0xd0] sm:$0xff]
        %v1146 = vld [vmem:[#allocation2 + $0xd8] sm:$0xff]
        %v1147 = vld [vmem:[#allocation2 + $0xe0] sm:$0xff]
        %v1148 = vld [vmem:[#allocation2 + $0xe8] sm:$0xff]
        %v1149 = vld [vmem:[#allocation2 + $0xf0] sm:$0xff]
        %v1150 = vld [vmem:[#allocation2 + $0xf8] sm:$0xff]
        %v1151 = vld [vmem:[#allocation2 + $0x100] sm:$0xff]
        %v1152 = vld [vmem:[#allocation2 + $0x108] sm:$0xff]
        %v1153 = vld [vmem:[#allocation2 + $0x110] sm:$0xff]
        %v1154 = vld [vmem:[#allocation2 + $0x118] sm:$0xff]
        %v1155 = vld [vmem:[#allocation2 + $0x120] sm:$0xff]
        %v1156 = vld [vmem:[#allocation2 + $0x128] sm:$0xff]
        %v1157 = vld [vmem:[#allocation2 + $0x130] sm:$0xff]
        %v1158 = vld [vmem:[#allocation2 + $0x138] sm:$0xff]
        %v1159 = vld [vmem:[#allocation2 + $0x140] sm:$0xff]
        %v1160 = vld [vmem:[#allocation2 + $0x148] sm:$0xff]
        %v1161 = vld [vmem:[#allocation2 + $0x150] sm:$0xff]
        %v1162 = vld [vmem:[#allocation2 + $0x158] sm:$0xff]
        %v1163 = vld [vmem:[#allocation2 + $0x160] sm:$0xff]
        %v1164 = vld [vmem:[#allocation2 + $0x168] sm:$0xff]
        %v1165 = vld [vmem:[#allocation2 + $0x170] sm:$0xff]
        %v1166 = vld [vmem:[#allocation2 + $0x178] sm:$0xff]
        %v1167 = vld [vmem:[#allocation2 + $0x180] sm:$0xff]
        %v1168 = vld [vmem:[#allocation2 + $0x188] sm:$0xff]
        %v1169 = vld [vmem:[#allocation2 + $0x190] sm:$0xff]
        %v1170 = vld [vmem:[#allocation2 + $0x198] sm:$0xff]
        %v1171 = vld [vmem:[#allocation2 + $0x1a0] sm:$0xff]
        %v1172 = vld [vmem:[#allocation2 + $0x1a8] sm:$0xff]
        %v1173 = vld [vmem:[#allocation2 + $0x1b0] sm:$0xff]
        %v1174 = vld [vmem:[#allocation2 + $0x1b8] sm:$0xff]
        %v1175 = vld [vmem:[#allocation2 + $0x1c0] sm:$0xff]
        %v1176 = vld [vmem:[#allocation2 + $0x1c8] sm:$0xff]
        %v1177 = vld [vmem:[#allocation2 + $0x1d0] sm:$0xff]
        %v1178 = vld [vmem:[#allocation2 + $0x1d8] sm:$0xff]
        %v1179 = vld [vmem:[#allocation2 + $0x1e0] sm:$0xff]
        %v1180 = vld [vmem:[#allocation2 + $0x1e8] sm:$0xff]
        %v1181 = vld [vmem:[#allocation2 + $0x1f0] sm:$0xff]
        %v1182 = vld [vmem:[#allocation2 + $0x1f8] sm:$0xff]
        %v1183 = vld [vmem:[%s325] sm:$0x1]
        %v1185 = vperm.slane %v1183, 0
        %v1187 = vadd.f32 %v1119, %v1185
        %v1188 = vadd.f32 %v1120, %v1185
        %v1189 = vadd.f32 %v1121, %v1185
        %v1190 = vadd.f32 %v1122, %v1185
        %v1191 = vadd.f32 %v1123, %v1185
        %v1192 = vadd.f32 %v1124, %v1185
        %v1193 = vadd.f32 %v1125, %v1185
        %v1194 = vadd.f32 %v1126, %v1185
        %v1195 = vadd.f32 %v1127, %v1185
        %v1196 = vadd.f32 %v1128, %v1185
        %v1197 = vadd.f32 %v1129, %v1185
        %v1198 = vadd.f32 %v1130, %v1185
        %v1199 = vadd.f32 %v1131, %v1185
        %v1200 = vadd.f32 %v1132, %v1185
        %v1201 = vadd.f32 %v1133, %v1185
        %v1202 = vadd.f32 %v1134, %v1185
        %v1203 = vadd.f32 %v1135, %v1185
        %v1204 = vadd.f32 %v1136, %v1185
        %v1205 = vadd.f32 %v1137, %v1185
        %v1206 = vadd.f32 %v1138, %v1185
        %v1207 = vadd.f32 %v1139, %v1185
        %v1208 = vadd.f32 %v1140, %v1185
        %v1209 = vadd.f32 %v1141, %v1185
        %v1210 = vadd.f32 %v1142, %v1185
        %v1211 = vadd.f32 %v1143, %v1185
        %v1212 = vadd.f32 %v1144, %v1185
        %v1213 = vadd.f32 %v1145, %v1185
        %v1214 = vadd.f32 %v1146, %v1185
        %v1215 = vadd.f32 %v1147, %v1185
        %v1216 = vadd.f32 %v1148, %v1185
        %v1217 = vadd.f32 %v1149, %v1185
        %v1218 = vadd.f32 %v1150, %v1185
        %v1219 = vadd.f32 %v1151, %v1185
        %v1220 = vadd.f32 %v1152, %v1185
        %v1221 = vadd.f32 %v1153, %v1185
        %v1222 = vadd.f32 %v1154, %v1185
        %v1223 = vadd.f32 %v1155, %v1185
        %v1224 = vadd.f32 %v1156, %v1185
        %v1225 = vadd.f32 %v1157, %v1185
        %v1226 = vadd.f32 %v1158, %v1185
        %v1227 = vadd.f32 %v1159, %v1185
        %v1228 = vadd.f32 %v1160, %v1185
        %v1229 = vadd.f32 %v1161, %v1185
        %v1230 = vadd.f32 %v1162, %v1185
        %v1231 = vadd.f32 %v1163, %v1185
        %v1232 = vadd.f32 %v1164, %v1185
        %v1233 = vadd.f32 %v1165, %v1185
        %v1234 = vadd.f32 %v1166, %v1185
        %v1235 = vadd.f32 %v1167, %v1185
        %v1236 = vadd.f32 %v1168, %v1185
        %v1237 = vadd.f32 %v1169, %v1185
        %v1238 = vadd.f32 %v1170, %v1185
        %v1239 = vadd.f32 %v1171, %v1185
        %v1240 = vadd.f32 %v1172, %v1185
        %v1241 = vadd.f32 %v1173, %v1185
        %v1242 = vadd.f32 %v1174, %v1185
        %v1243 = vadd.f32 %v1175, %v1185
        %v1244 = vadd.f32 %v1176, %v1185
        %v1245 = vadd.f32 %v1177, %v1185
        %v1246 = vadd.f32 %v1178, %v1185
        %v1247 = vadd.f32 %v1179, %v1185
        %v1248 = vadd.f32 %v1180, %v1185
        %v1249 = vadd.f32 %v1181, %v1185
        %v1250 = vadd.f32 %v1182, %v1185
        %v1251 = vmax.f32 %v1187, 0.0
        %v1252 = vmax.f32 %v1188, 0.0
        %v1253 = vmax.f32 %v1189, 0.0
        %v1254 = vmax.f32 %v1190, 0.0
        %v1255 = vmax.f32 %v1191, 0.0
        %v1256 = vmax.f32 %v1192, 0.0
        %v1257 = vmax.f32 %v1193, 0.0
        %v1258 = vmax.f32 %v1194, 0.0
        %v1259 = vmax.f32 %v1195, 0.0
        %v1260 = vmax.f32 %v1196, 0.0
        %v1261 = vmax.f32 %v1197, 0.0
        %v1262 = vmax.f32 %v1198, 0.0
        %v1263 = vmax.f32 %v1199, 0.0
        %v1264 = vmax.f32 %v1200, 0.0
        %v1265 = vmax.f32 %v1201, 0.0
        %v1266 = vmax.f32 %v1202, 0.0
        %v1267 = vmax.f32 %v1203, 0.0
        %v1268 = vmax.f32 %v1204, 0.0
        %v1269 = vmax.f32 %v1205, 0.0
        %v1270 = vmax.f32 %v1206, 0.0
        %v1271 = vmax.f32 %v1207, 0.0
        %v1272 = vmax.f32 %v1208, 0.0
        %v1273 = vmax.f32 %v1209, 0.0
        %v1274 = vmax.f32 %v1210, 0.0
        %v1275 = vmax.f32 %v1211, 0.0
        %v1276 = vmax.f32 %v1212, 0.0
        %v1277 = vmax.f32 %v1213, 0.0
        %v1278 = vmax.f32 %v1214, 0.0
        %v1279 = vmax.f32 %v1215, 0.0
        %v1280 = vmax.f32 %v1216, 0.0
        %v1281 = vmax.f32 %v1217, 0.0
        %v1282 = vmax.f32 %v1218, 0.0
        %v1283 = vmax.f32 %v1219, 0.0
        %v1284 = vmax.f32 %v1220, 0.0
        %v1285 = vmax.f32 %v1221, 0.0
        %v1286 = vmax.f32 %v1222, 0.0
        %v1287 = vmax.f32 %v1223, 0.0
        %v1288 = vmax.f32 %v1224, 0.0
        %v1289 = vmax.f32 %v1225, 0.0
        %v1290 = vmax.f32 %v1226, 0.0
        %v1291 = vmax.f32 %v1227, 0.0
        %v1292 = vmax.f32 %v1228, 0.0
        %v1293 = vmax.f32 %v1229, 0.0
        %v1294 = vmax.f32 %v1230, 0.0
        %v1295 = vmax.f32 %v1231, 0.0
        %v1296 = vmax.f32 %v1232, 0.0
        %v1297 = vmax.f32 %v1233, 0.0
        %v1298 = vmax.f32 %v1234, 0.0
        %v1299 = vmax.f32 %v1235, 0.0
        %v1300 = vmax.f32 %v1236, 0.0
        %v1301 = vmax.f32 %v1237, 0.0
        %v1302 = vmax.f32 %v1238, 0.0
        %v1303 = vmax.f32 %v1239, 0.0
        %v1304 = vmax.f32 %v1240, 0.0
        %v1305 = vmax.f32 %v1241, 0.0
        %v1306 = vmax.f32 %v1242, 0.0
        %v1307 = vmax.f32 %v1243, 0.0
        %v1308 = vmax.f32 %v1244, 0.0
        %v1309 = vmax.f32 %v1245, 0.0
        %v1310 = vmax.f32 %v1246, 0.0
        %v1311 = vmax.f32 %v1247, 0.0
        %v1312 = vmax.f32 %v1248, 0.0
        %v1313 = vmax.f32 %v1249, 0.0
        %v1314 = vmax.f32 %v1250, 0.0
        %v1315 = vld [vmem:[%s328] sm:$0x1]
        %v1317 = vperm.slane %v1315, 0
        %v1319 = vmul.f32 %v1251, %v1317
        %v1320 = vmul.f32 %v1252, %v1317
        %v1321 = vmul.f32 %v1253, %v1317
        %v1322 = vmul.f32 %v1254, %v1317
        %v1323 = vmul.f32 %v1255, %v1317
        %v1324 = vmul.f32 %v1256, %v1317
        %v1325 = vmul.f32 %v1257, %v1317
        %v1326 = vmul.f32 %v1258, %v1317
        %v1327 = vmul.f32 %v1259, %v1317
        %v1328 = vmul.f32 %v1260, %v1317
        %v1329 = vmul.f32 %v1261, %v1317
        %v1330 = vmul.f32 %v1262, %v1317
        %v1331 = vmul.f32 %v1263, %v1317
        %v1332 = vmul.f32 %v1264, %v1317
        %v1333 = vmul.f32 %v1265, %v1317
        %v1334 = vmul.f32 %v1266, %v1317
        %v1335 = vmul.f32 %v1267, %v1317
        %v1336 = vmul.f32 %v1268, %v1317
        %v1337 = vmul.f32 %v1269, %v1317
        %v1338 = vmul.f32 %v1270, %v1317
        %v1339 = vmul.f32 %v1271, %v1317
        %v1340 = vmul.f32 %v1272, %v1317
        %v1341 = vmul.f32 %v1273, %v1317
        %v1342 = vmul.f32 %v1274, %v1317
        %v1343 = vmul.f32 %v1275, %v1317
        %v1344 = vmul.f32 %v1276, %v1317
        %v1345 = vmul.f32 %v1277, %v1317
        %v1346 = vmul.f32 %v1278, %v1317
        %v1347 = vmul.f32 %v1279, %v1317
        %v1348 = vmul.f32 %v1280, %v1317
        %v1349 = vmul.f32 %v1281, %v1317
        %v1350 = vmul.f32 %v1282, %v1317
        %v1351 = vmul.f32 %v1283, %v1317
        %v1352 = vmul.f32 %v1284, %v1317
        %v1353 = vmul.f32 %v1285, %v1317
        %v1354 = vmul.f32 %v1286, %v1317
        %v1355 = vmul.f32 %v1287, %v1317
        %v1356 = vmul.f32 %v1288, %v1317
        %v1357 = vmul.f32 %v1289, %v1317
        %v1358 = vmul.f32 %v1290, %v1317
        %v1359 = vmul.f32 %v1291, %v1317
        %v1360 = vmul.f32 %v1292, %v1317
        %v1361 = vmul.f32 %v1293, %v1317
        %v1362 = vmul.f32 %v1294, %v1317
        %v1363 = vmul.f32 %v1295, %v1317
        %v1364 = vmul.f32 %v1296, %v1317
        %v1365 = vmul.f32 %v1297, %v1317
        %v1366 = vmul.f32 %v1298, %v1317
        %v1367 = vmul.f32 %v1299, %v1317
        %v1368 = vmul.f32 %v1300, %v1317
        %v1369 = vmul.f32 %v1301, %v1317
        %v1370 = vmul.f32 %v1302, %v1317
        %v1371 = vmul.f32 %v1303, %v1317
        %v1372 = vmul.f32 %v1304, %v1317
        %v1373 = vmul.f32 %v1305, %v1317
        %v1374 = vmul.f32 %v1306, %v1317
        %v1375 = vmul.f32 %v1307, %v1317
        %v1376 = vmul.f32 %v1308, %v1317
        %v1377 = vmul.f32 %v1309, %v1317
        %v1378 = vmul.f32 %v1310, %v1317
        %v1379 = vmul.f32 %v1311, %v1317
        %v1380 = vmul.f32 %v1312, %v1317
        %v1381 = vmul.f32 %v1313, %v1317
        %v1382 = vmul.f32 %v1314, %v1317
        %v1383 = vld [vmem:[%s331] sm:$0x1]
        %v1385 = vperm.slane %v1383, 0
        %v1387 = vadd.f32 %v1319, %v1385
        %v1388 = vadd.f32 %v1320, %v1385
        %v1389 = vadd.f32 %v1321, %v1385
        %v1390 = vadd.f32 %v1322, %v1385
        %v1391 = vadd.f32 %v1323, %v1385
        %v1392 = vadd.f32 %v1324, %v1385
        %v1393 = vadd.f32 %v1325, %v1385
        %v1394 = vadd.f32 %v1326, %v1385
        %v1395 = vadd.f32 %v1327, %v1385
        %v1396 = vadd.f32 %v1328, %v1385
        %v1397 = vadd.f32 %v1329, %v1385
        %v1398 = vadd.f32 %v1330, %v1385
        %v1399 = vadd.f32 %v1331, %v1385
        %v1400 = vadd.f32 %v1332, %v1385
        %v1401 = vadd.f32 %v1333, %v1385
        %v1402 = vadd.f32 %v1334, %v1385
        %v1403 = vadd.f32 %v1335, %v1385
        %v1404 = vadd.f32 %v1336, %v1385
        %v1405 = vadd.f32 %v1337, %v1385
        %v1406 = vadd.f32 %v1338, %v1385
        %v1407 = vadd.f32 %v1339, %v1385
        %v1408 = vadd.f32 %v1340, %v1385
        %v1409 = vadd.f32 %v1341, %v1385
        %v1410 = vadd.f32 %v1342, %v1385
        %v1411 = vadd.f32 %v1343, %v1385
        %v1412 = vadd.f32 %v1344, %v1385
        %v1413 = vadd.f32 %v1345, %v1385
        %v1414 = vadd.f32 %v1346, %v1385
        %v1415 = vadd.f32 %v1347, %v1385
        %v1416 = vadd.f32 %v1348, %v1385
        %v1417 = vadd.f32 %v1349, %v1385
        %v1418 = vadd.f32 %v1350, %v1385
        %v1419 = vadd.f32 %v1351, %v1385
        %v1420 = vadd.f32 %v1352, %v1385
        %v1421 = vadd.f32 %v1353, %v1385
        %v1422 = vadd.f32 %v1354, %v1385
        %v1423 = vadd.f32 %v1355, %v1385
        %v1424 = vadd.f32 %v1356, %v1385
        %v1425 = vadd.f32 %v1357, %v1385
        %v1426 = vadd.f32 %v1358, %v1385
        %v1427 = vadd.f32 %v1359, %v1385
        %v1428 = vadd.f32 %v1360, %v1385
        %v1429 = vadd.f32 %v1361, %v1385
        %v1430 = vadd.f32 %v1362, %v1385
        %v1431 = vadd.f32 %v1363, %v1385
        %v1432 = vadd.f32 %v1364, %v1385
        %v1433 = vadd.f32 %v1365, %v1385
        %v1434 = vadd.f32 %v1366, %v1385
        %v1435 = vadd.f32 %v1367, %v1385
        %v1436 = vadd.f32 %v1368, %v1385
        %v1437 = vadd.f32 %v1369, %v1385
        %v1438 = vadd.f32 %v1370, %v1385
        %v1439 = vadd.f32 %v1371, %v1385
        %v1440 = vadd.f32 %v1372, %v1385
        %v1441 = vadd.f32 %v1373, %v1385
        %v1442 = vadd.f32 %v1374, %v1385
        %v1443 = vadd.f32 %v1375, %v1385
        %v1444 = vadd.f32 %v1376, %v1385
        %v1445 = vadd.f32 %v1377, %v1385
        %v1446 = vadd.f32 %v1378, %v1385
        %v1447 = vadd.f32 %v1379, %v1385
        %v1448 = vadd.f32 %v1380, %v1385
        %v1449 = vadd.f32 %v1381, %v1385
        %v1450 = vadd.f32 %v1382, %v1385
        %1451 = vst [vmem:[%s339] sm:$0xff] %v1387
        %1452 = vst [vmem:[%s339 + $0x8] sm:$0xff] %v1388
        %1453 = vst [vmem:[%s339 + $0x10] sm:$0xff] %v1389
        %1454 = vst [vmem:[%s339 + $0x18] sm:$0xff] %v1390
        %1455 = vst [vmem:[%s339 + $0x20] sm:$0xff] %v1391
        %1456 = vst [vmem:[%s339 + $0x28] sm:$0xff] %v1392
        %1457 = vst [vmem:[%s339 + $0x30] sm:$0xff] %v1393
        %1458 = vst [vmem:[%s339 + $0x38] sm:$0xff] %v1394
        %1459 = vst [vmem:[%s339 + $0x40] sm:$0xff] %v1395
        %1460 = vst [vmem:[%s339 + $0x48] sm:$0xff] %v1396
        %1461 = vst [vmem:[%s339 + $0x50] sm:$0xff] %v1397
        %1462 = vst [vmem:[%s339 + $0x58] sm:$0xff] %v1398
        %1463 = vst [vmem:[%s339 + $0x60] sm:$0xff] %v1399
        %1464 = vst [vmem:[%s339 + $0x68] sm:$0xff] %v1400
        %1465 = vst [vmem:[%s339 + $0x70] sm:$0xff] %v1401
        %1466 = vst [vmem:[%s339 + $0x78] sm:$0xff] %v1402
        %1467 = vst [vmem:[%s339 + $0x80] sm:$0xff] %v1403
        %1468 = vst [vmem:[%s339 + $0x88] sm:$0xff] %v1404
        %1469 = vst [vmem:[%s339 + $0x90] sm:$0xff] %v1405
        %1470 = vst [vmem:[%s339 + $0x98] sm:$0xff] %v1406
        %1471 = vst [vmem:[%s339 + $0xa0] sm:$0xff] %v1407
        %1472 = vst [vmem:[%s339 + $0xa8] sm:$0xff] %v1408
        %1473 = vst [vmem:[%s339 + $0xb0] sm:$0xff] %v1409
        %1474 = vst [vmem:[%s339 + $0xb8] sm:$0xff] %v1410
        %1475 = vst [vmem:[%s339 + $0xc0] sm:$0xff] %v1411
        %1476 = vst [vmem:[%s339 + $0xc8] sm:$0xff] %v1412
        %1477 = vst [vmem:[%s339 + $0xd0] sm:$0xff] %v1413
        %1478 = vst [vmem:[%s339 + $0xd8] sm:$0xff] %v1414
        %1479 = vst [vmem:[%s339 + $0xe0] sm:$0xff] %v1415
        %1480 = vst [vmem:[%s339 + $0xe8] sm:$0xff] %v1416
        %1481 = vst [vmem:[%s339 + $0xf0] sm:$0xff] %v1417
        %1482 = vst [vmem:[%s339 + $0xf8] sm:$0xff] %v1418
        %1483 = vst [vmem:[%s339 + $0x100] sm:$0xff] %v1419
        %1484 = vst [vmem:[%s339 + $0x108] sm:$0xff] %v1420
        %1485 = vst [vmem:[%s339 + $0x110] sm:$0xff] %v1421
        %1486 = vst [vmem:[%s339 + $0x118] sm:$0xff] %v1422
        %1487 = vst [vmem:[%s339 + $0x120] sm:$0xff] %v1423
        %1488 = vst [vmem:[%s339 + $0x128] sm:$0xff] %v1424
        %1489 = vst [vmem:[%s339 + $0x130] sm:$0xff] %v1425
        %1490 = vst [vmem:[%s339 + $0x138] sm:$0xff] %v1426
        %1491 = vst [vmem:[%s339 + $0x140] sm:$0xff] %v1427
        %1492 = vst [vmem:[%s339 + $0x148] sm:$0xff] %v1428
        %1493 = vst [vmem:[%s339 + $0x150] sm:$0xff] %v1429
        %1494 = vst [vmem:[%s339 + $0x158] sm:$0xff] %v1430
        %1495 = vst [vmem:[%s339 + $0x160] sm:$0xff] %v1431
        %1496 = vst [vmem:[%s339 + $0x168] sm:$0xff] %v1432
        %1497 = vst [vmem:[%s339 + $0x170] sm:$0xff] %v1433
        %1498 = vst [vmem:[%s339 + $0x178] sm:$0xff] %v1434
        %1499 = vst [vmem:[%s339 + $0x180] sm:$0xff] %v1435
        %1500 = vst [vmem:[%s339 + $0x188] sm:$0xff] %v1436
        %1501 = vst [vmem:[%s339 + $0x190] sm:$0xff] %v1437
        %1502 = vst [vmem:[%s339 + $0x198] sm:$0xff] %v1438
        %1503 = vst [vmem:[%s339 + $0x1a0] sm:$0xff] %v1439
        %1504 = vst [vmem:[%s339 + $0x1a8] sm:$0xff] %v1440
        %1505 = vst [vmem:[%s339 + $0x1b0] sm:$0xff] %v1441
        %1506 = vst [vmem:[%s339 + $0x1b8] sm:$0xff] %v1442
        %1507 = vst [vmem:[%s339 + $0x1c0] sm:$0xff] %v1443
        %1508 = vst [vmem:[%s339 + $0x1c8] sm:$0xff] %v1444
        %1509 = vst [vmem:[%s339 + $0x1d0] sm:$0xff] %v1445
        %1510 = vst [vmem:[%s339 + $0x1d8] sm:$0xff] %v1446
        %1511 = vst [vmem:[%s339 + $0x1e0] sm:$0xff] %v1447
        %1512 = vst [vmem:[%s339 + $0x1e8] sm:$0xff] %v1448
        %1513 = vst [vmem:[%s339 + $0x1f0] sm:$0xff] %v1449
        %1514 = vst [vmem:[%s339 + $0x1f8] sm:$0xff] %v1450
      $region48: #{_lambda_.7} parent=39 // pred_fallthru
        _
      %s1515 = smul.u32 64, %s21
      %p1516 = scmp.lt.s32.totalorder %s1515, 127
      %s1517 = scalar_select %p1516, %s1515, 127
      %p1518 = scmp.lt.s32.totalorder %s22, 0
      %s1519 = scalar_select %p1518, %s22, 0
      %s1520 = sadd.s32 %s1519, %s1517
      %s1521 = smul.addr %s1520, 8
      %s1522 = scalar_lea.vmem %s5, %s1521
      // Predicated region
      $region49: #{_lambda_.7} parent=39 // pred_check
        %p1523 = pneg %p189
      $region50: #{_lambda_.7} parent=39 // pred_check_branch
        %1525 = sbr.rel (%p1523) target = $region52
      $region51: #{_lambda_.7} parent=39 // pred_region
        %s1526 = smul.u32 64, %s21
      $region52: #{_lambda_.7} parent=39 // pred_fallthru
        _
    $region40: #{_lambda_.7} parent=5 // pred_fallthru
      _
    %p1527 = scmp.le.s32.totalorder 2, %s11
    // Predicated region
    $region53: #{_lambda_.7} parent=5 // pred_check
      %p1528 = pneg %p1527
    $region54: #{_lambda_.7} parent=5 // pred_check_branch
      %1530 = sbr.rel (%p1528) target = $region56
    $region55: #{_lambda_.7} parent=5 // pred_region
      %s1531 = ssub.s32 %s11, 2
      // Predicated region
      $region57: #{_lambda_.7} parent=55 // pred_check
        %p1532 = pneg %p195
      $region58: #{_lambda_.7} parent=55 // pred_check_branch
        %1534 = sbr.rel (%p1532) target = $region60
      $region59: #{_lambda_.7} parent=55 // pred_region
        %s1535 = smul.u32 64, %s24
        %p1536 = scmp.lt.s32.totalorder %s1535, 127
        %s1537 = scalar_select %p1536, %s1535, 127
        %p1538 = scmp.lt.s32.totalorder %s25, 0
        %s1539 = scalar_select %p1538, %s25, 0
        %s1540 = sadd.s32 %s1539, %s1537
        %s1541 = smul.addr %s1540, 8
        %s1542 = scalar_lea.vmem %s5, %s1541
      $region60: #{_lambda_.7} parent=55 // pred_fallthru
        _
    $region56: #{_lambda_.7} parent=5 // pred_fallthru
      _
  $region6: #{_lambda_.7} parent=0 // loop_footer
    %s15 = sadd.s32 1, %s11
  $region7: #{_lambda_.7} parent=0 // loop_footer_branch
    %10 = sbr.rel target = $region3
  $region8: #{_lambda_.7} parent=0 // loop_exit
    _

// kernel: _lambda_.8
$region0: #{_lambda_.8}
  #allocation0 [shape = 'u32[]', space=smem, size = 0x4, offset = 0x4, fixed_abs, tag = 'smem constant byte address 0x4 - core index']
  #allocation1 [shape = 'u32[72,128]{1,0:T(1,128)}', space=vmem, size = 0x9000, scoped, tag = 'internal scratch']
  #allocation2 [shape = 'f32[512,128]{1,0:T(8,128)}', space=vmem, size = 0x40000, scoped, tag = 'scratch operand']
  %s0 = inlined_call_operand.vmem [shape: bf16[1024,72], index: 0, kind: input, shape index: {}]
  %s1 = inlined_call_operand.vmem [shape: bf16[72,128], index: 1, kind: input, shape index: {}]
  %s2 = inlined_call_operand.vmem [shape: f32[1,128], index: 2, kind: input, shape index: {}]
  %s3 = inlined_call_operand.vmem [shape: f32[1,128], index: 3, kind: input, shape index: {}]
  %s4 = inlined_call_operand.vmem [shape: f32[1,128], index: 4, kind: input, shape index: {}]
  %s5 = inlined_call_operand.vmem [shape: f32[1024,128], index: 5, kind: output, shape index: {}]
  %s6 = sld [smem:[#allocation0]]
  $region61: #{_lambda_.8} parent=0
    _
  %s8 = ssub.s32 1, %s6
  %s9 = scalar_select 0, %s8, %s6
  loop: start=0, step=1, limit=4
  $region2: #{_lambda_.8} parent=0 // loop_pre_header
    _
  $region3: #{_lambda_.8} parent=0 // loop_header
    %s11 = sphi 0, %s15
    %p12 = scmp.ge.s32.totalorder %s11, 4
    %s18 = sphi 0, %s37
    %s19 = sphi 0, %s33
    %s20 = sphi 0, %s29
    %s21 = sphi 0, %s18
    %s22 = sphi 0, %s19
    %s23 = sphi 0, %s20
    %s24 = sphi 0, %s21
    %s25 = sphi 0, %s22
    %s26 = sphi 0, %s23
    %s42 = sphi 0, %s44
    %s45 = sphi 0, %s42
    %s46 = sphi 0, %s45
    %s62 = sphi 0, %s46
    %s70 = sphi 0, %s72
    %s73 = sphi 0, %s70
    %s74 = sphi 0, %s73
    %s90 = sphi 0, %s74
    %s96 = sphi 0, %s98
    %s99 = sphi 0, %s96
    %s100 = sphi 0, %s99
    %s116 = sphi 0, %s100
    %s122 = sphi 0, %s124
    %s125 = sphi 0, %s122
    %s126 = sphi 0, %s125
    %s142 = sphi 0, %s126
    %s148 = sphi 0, %s150
    %s151 = sphi 0, %s148
    %s152 = sphi 0, %s151
    %s168 = sphi 0, %s152
    %s176 = sphi 0, %s178
    %s179 = sphi 0, %s176
    %s180 = sphi 0, %s179
    %s196 = sphi 0, %s180
  $region4: #{_lambda_.8} parent=0 // loop_header_branch
    %14 = sbr.rel (%p12) target = $region8
  $region5: #{_lambda_.8} parent=0 // loop_body
    %s16 = ssub.s32 %s11, 1
    %s17 = ssub.s32 %s11, 2
    %s27 = sadd.s32 1, %s20
    %p28 = scmp.ge.s32.totalorder %s27, 1
    %s29 = scalar_select %p28, 0, %s27
    %s30 = sadd.s32 1, %s19
    %s31 = scalar_select %p28, %s30, %s19
    %p32 = scmp.ge.s32.totalorder %s31, 1
    %s33 = scalar_select %p32, 0, %s31
    %s34 = sadd.s32 1, %s18
    %s35 = scalar_select %p32, %s34, %s18
    %p36 = scmp.ge.s32.totalorder %s35, 2
    %s37 = scalar_select %p36, 0, %s35
    %s38 = ssub.s32 %s18, %s37
    %s39 = ssub.s32 %s20, %s29
    %s40 = sor.u32 %s38, %s39
    %p41 = scmp.eq.s32.totalorder %s40, 0
    %s43 = sadd.s32 %s42, 1
    %s44 = scalar_select %p41, %s42, %s43
    %p47 = pneg %p41
    %p48 = scmp.eq.s32.totalorder %s11, 1
    %p49 = por %p47, %p48
    %p50 = scmp.ne.s32.totalorder %s42, %s45
    %p51 = scmp.eq.s32.totalorder %s11, 0
    %p52 = por %p50, %p51
    %p53 = scmp.ne.s32.totalorder %s42, %s45
    %p54 = scmp.eq.s32.totalorder %s16, 1
    %p55 = por %p53, %p54
    %p56 = scmp.ne.s32.totalorder %s45, %s46
    %p57 = scmp.eq.s32.totalorder %s16, 0
    %p58 = por %p56, %p57
    %p59 = scmp.ne.s32.totalorder %s45, %s46
    %p60 = scmp.eq.s32.totalorder %s17, 1
    %p61 = por %p59, %p60
    %p63 = scmp.ne.s32.totalorder %s46, %s62
    %p64 = scmp.eq.s32.totalorder %s17, 0
    %p65 = por %p63, %p64
    %s66 = ssub.s32 %s20, %s29
    %s67 = ssub.s32 %s19, %s33
    %s68 = sor.u32 %s66, %s67
    %p69 = scmp.eq.s32.totalorder %s68, 0
    %s71 = sadd.s32 %s70, 1
    %s72 = scalar_select %p69, %s70, %s71
    %p75 = pneg %p69
    %p76 = scmp.eq.s32.totalorder %s11, 1
    %p77 = por %p75, %p76
    %p78 = scmp.ne.s32.totalorder %s70, %s73
    %p79 = scmp.eq.s32.totalorder %s11, 0
    %p80 = por %p78, %p79
    %p81 = scmp.ne.s32.totalorder %s70, %s73
    %p82 = scmp.eq.s32.totalorder %s16, 1
    %p83 = por %p81, %p82
    %p84 = scmp.ne.s32.totalorder %s73, %s74
    %p85 = scmp.eq.s32.totalorder %s16, 0
    %p86 = por %p84, %p85
    %p87 = scmp.ne.s32.totalorder %s73, %s74
    %p88 = scmp.eq.s32.totalorder %s17, 1
    %p89 = por %p87, %p88
    %p91 = scmp.ne.s32.totalorder %s74, %s90
    %p92 = scmp.eq.s32.totalorder %s17, 0
    %p93 = por %p91, %p92
    %s94 = ssub.s32 %s19, %s33
    %p95 = scmp.eq.s32.totalorder %s94, 0
    %s97 = sadd.s32 %s96, 1
    %s98 = scalar_select %p95, %s96, %s97
    %p101 = pneg %p95
    %p102 = scmp.eq.s32.totalorder %s11, 1
    %p103 = por %p101, %p102
    %p104 = scmp.ne.s32.totalorder %s96, %s99
    %p105 = scmp.eq.s32.totalorder %s11, 0
    %p106 = por %p104, %p105
    %p107 = scmp.ne.s32.totalorder %s96, %s99
    %p108 = scmp.eq.s32.totalorder %s16, 1
    %p109 = por %p107, %p108
    %p110 = scmp.ne.s32.totalorder %s99, %s100
    %p111 = scmp.eq.s32.totalorder %s16, 0
    %p112 = por %p110, %p111
    %p113 = scmp.ne.s32.totalorder %s99, %s100
    %p114 = scmp.eq.s32.totalorder %s17, 1
    %p115 = por %p113, %p114
    %p117 = scmp.ne.s32.totalorder %s100, %s116
    %p118 = scmp.eq.s32.totalorder %s17, 0
    %p119 = por %p117, %p118
    %s120 = ssub.s32 %s19, %s33
    %p121 = scmp.eq.s32.totalorder %s120, 0
    %s123 = sadd.s32 %s122, 1
    %s124 = scalar_select %p121, %s122, %s123
    %p127 = pneg %p121
    %p128 = scmp.eq.s32.totalorder %s11, 1
    %p129 = por %p127, %p128
    %p130 = scmp.ne.s32.totalorder %s122, %s125
    %p131 = scmp.eq.s32.totalorder %s11, 0
    %p132 = por %p130, %p131
    %p133 = scmp.ne.s32.totalorder %s122, %s125
    %p134 = scmp.eq.s32.totalorder %s16, 1
    %p135 = por %p133, %p134
    %p136 = scmp.ne.s32.totalorder %s125, %s126
    %p137 = scmp.eq.s32.totalorder %s16, 0
    %p138 = por %p136, %p137
    %p139 = scmp.ne.s32.totalorder %s125, %s126
    %p140 = scmp.eq.s32.totalorder %s17, 1
    %p141 = por %p139, %p140
    %p143 = scmp.ne.s32.totalorder %s126, %s142
    %p144 = scmp.eq.s32.totalorder %s17, 0
    %p145 = por %p143, %p144
    %s146 = ssub.s32 %s19, %s33
    %p147 = scmp.eq.s32.totalorder %s146, 0
    %s149 = sadd.s32 %s148, 1
    %s150 = scalar_select %p147, %s148, %s149
    %p153 = pneg %p147
    %p154 = scmp.eq.s32.totalorder %s11, 1
    %p155 = por %p153, %p154
    %p156 = scmp.ne.s32.totalorder %s148, %s151
    %p157 = scmp.eq.s32.totalorder %s11, 0
    %p158 = por %p156, %p157
    %p159 = scmp.ne.s32.totalorder %s148, %s151
    %p160 = scmp.eq.s32.totalorder %s16, 1
    %p161 = por %p159, %p160
    %p162 = scmp.ne.s32.totalorder %s151, %s152
    %p163 = scmp.eq.s32.totalorder %s16, 0
    %p164 = por %p162, %p163
    %p165 = scmp.ne.s32.totalorder %s151, %s152
    %p166 = scmp.eq.s32.totalorder %s17, 1
    %p167 = por %p165, %p166
    %p169 = scmp.ne.s32.totalorder %s152, %s168
    %p170 = scmp.eq.s32.totalorder %s17, 0
    %p171 = por %p169, %p170
    %s172 = ssub.s32 %s18, %s37
    %s173 = ssub.s32 %s19, %s33
    %s174 = sor.u32 %s172, %s173
    %p175 = scmp.eq.s32.totalorder %s174, 0
    %s177 = sadd.s32 %s176, 1
    %s178 = scalar_select %p175, %s176, %s177
    %p181 = pneg %p175
    %p182 = scmp.eq.s32.totalorder %s11, 1
    %p183 = por %p181, %p182
    %p184 = scmp.ne.s32.totalorder %s176, %s179
    %p185 = scmp.eq.s32.totalorder %s11, 0
    %p186 = por %p184, %p185
    %p187 = scmp.ne.s32.totalorder %s176, %s179
    %p188 = scmp.eq.s32.totalorder %s16, 1
    %p189 = por %p187, %p188
    %p190 = scmp.ne.s32.totalorder %s179, %s180
    %p191 = scmp.eq.s32.totalorder %s16, 0
    %p192 = por %p190, %p191
    %p193 = scmp.ne.s32.totalorder %s179, %s180
    %p194 = scmp.eq.s32.totalorder %s17, 1
    %p195 = por %p193, %p194
    %p197 = scmp.ne.s32.totalorder %s180, %s196
    %p198 = scmp.eq.s32.totalorder %s17, 0
    %p199 = por %p197, %p198
    %p200 = scmp.le.s32.totalorder 1, %s11
    %p201 = scmp.lt.s32.totalorder %s11, 3
    %p202 = pnand %p200, %p201
    %p203 = pneg %p202
    // Predicated region
    $region9: #{_lambda_.8} parent=5 // pred_check
      _
    $region10: #{_lambda_.8} parent=5 // pred_check_branch
      %205 = sbr.rel (%p202) target = $region12
    $region11: #{_lambda_.8} parent=5 // pred_region
      %s206 = ssub.s32 %s11, 1
      // Predicated region
      $region13: #{_lambda_.8} parent=11 // pred_check
        %p207 = pneg %p86
      $region14: #{_lambda_.8} parent=11 // pred_check_branch
        %209 = sbr.rel (%p207) target = $region16
      $region15: #{_lambda_.8} parent=11 // pred_region
        %s210 = smul.u32 9, %s23
        %p211 = scmp.lt.s32.totalorder %s210, 8
        %s212 = scalar_select %p211, %s210, 8
        %p213 = scmp.lt.s32.totalorder %s22, 0
        %s214 = scalar_select %p213, %s22, 0
        %s215 = sadd.s32 %s214, %s212
        %s216 = smul.addr %s215, 4
        %s217 = scalar_lea.vmem %s1, %s216
        %s218 = smul.u32 9, %s23
      $region16: #{_lambda_.8} parent=11 // pred_fallthru
        _
      // Predicated region
      $region17: #{_lambda_.8} parent=11 // pred_check
        %p219 = pneg %p112
      $region18: #{_lambda_.8} parent=11 // pred_check_branch
        %221 = sbr.rel (%p219) target = $region20
      $region19: #{_lambda_.8} parent=11 // pred_region
        %p222 = scmp.lt.s32.totalorder %s22, 0
        %s223 = scalar_select %p222, %s22, 0
        %s224 = scalar_lea.vmem %s2, %s223
      $region20: #{_lambda_.8} parent=11 // pred_fallthru
        _
      // Predicated region
      $region21: #{_lambda_.8} parent=11 // pred_check
        %p225 = pneg %p138
      $region22: #{_lambda_.8} parent=11 // pred_check_branch
        %227 = sbr.rel (%p225) target = $region24
      $region23: #{_lambda_.8} parent=11 // pred_region
        %p228 = scmp.lt.s32.totalorder %s22, 0
        %s229 = scalar_select %p228, %s22, 0
        %s230 = scalar_lea.vmem %s3, %s229
      $region24: #{_lambda_.8} parent=11 // pred_fallthru
        _
      // Predicated region
      $region25: #{_lambda_.8} parent=11 // pred_check
        %p231 = pneg %p164
      $region26: #{_lambda_.8} parent=11 // pred_check_branch
        %233 = sbr.rel (%p231) target = $region28
      $region27: #{_lambda_.8} parent=11 // pred_region
        %p234 = scmp.lt.s32.totalorder %s22, 0
        %s235 = scalar_select %p234, %s22, 0
        %s236 = scalar_lea.vmem %s4, %s235
      $region28: #{_lambda_.8} parent=11 // pred_fallthru
        _
    $region12: #{_lambda_.8} parent=5 // pred_fallthru
      _
    %p237 = scmp.lt.s32.totalorder %s11, 2
    // Predicated region
    $region29: #{_lambda_.8} parent=5 // pred_check
      %p238 = pneg %p237
    $region30: #{_lambda_.8} parent=5 // pred_check_branch
      %240 = sbr.rel (%p238) target = $region32
    $region31: #{_lambda_.8} parent=5 // pred_region
      // Predicated region
      $region33: #{_lambda_.8} parent=31 // pred_check
        %p241 = pneg %p52
      $region34: #{_lambda_.8} parent=31 // pred_check_branch
        %243 = sbr.rel (%p241) target = $region36
      $region35: #{_lambda_.8} parent=31 // pred_region
        %s244 = smul.u32 64, %s18
        %p245 = scmp.lt.s32.totalorder %s244, 127
        %s246 = scalar_select %p245, %s244, 127
        %p247 = scmp.lt.s32.totalorder %s20, 0
        %s248 = scalar_select %p247, %s20, 0
        %s249 = sadd.s32 %s248, %s246
        %s250 = smul.addr %s249, 4
        %s251 = scalar_lea.vmem %s0, %s250
        %s252 = smul.u32 64, %s18
      $region36: #{_lambda_.8} parent=31 // pred_fallthru
        _
    $region32: #{_lambda_.8} parent=5 // pred_fallthru
      _
    %p253 = scmp.le.s32.totalorder 1, %s11
    %p254 = scmp.lt.s32.totalorder %s11, 3
    %p255 = pnand %p253, %p254
    %p256 = pneg %p255
    // Predicated region
    $region37: #{_lambda_.8} parent=5 // pred_check
      _
    $region38: #{_lambda_.8} parent=5 // pred_check_branch
      %258 = sbr.rel (%p255) target = $region40
    $region39: #{_lambda_.8} parent=5 // pred_region
      %s259 = ssub.s32 %s11, 1
      %s260 = smul.u32 64, %s21
      %p261 = scmp.lt.s32.totalorder %s260, 127
      %s262 = scalar_select %p261, %s260, 127
      %p263 = scmp.lt.s32.totalorder %s23, 0
      %s264 = scalar_select %p263, %s23, 0
      %s265 = sadd.s32 %s264, %s262
      %s266 = smul.addr %s265, 4
      %s267 = scalar_lea.vmem %s0, %s266
      %p268 = pneg %p58
      %p269 = pneg %p55
      %s270 = smul.u32 9, %s23
      %p271 = scmp.lt.s32.totalorder %s270, 8
      %s272 = scalar_select %p271, %s270, 8
      %p273 = scmp.lt.s32.totalorder %s22, 0
      %s274 = scalar_select %p273, %s22, 0
      %s275 = sadd.s32 %s274, %s272
      %s276 = smul.addr %s275, 4
      %s277 = scalar_lea.vmem %s1, %s276
      %p278 = pneg %p86
      %p279 = pneg %p83
      %p280 = scmp.lt.s32.totalorder %s22, 0
      %s281 = scalar_select %p280, %s22, 0
      %s282 = scalar_lea.vmem %s2, %s281
      %p283 = pneg %p112
      %p284 = pneg %p109
      %p285 = scmp.lt.s32.totalorder %s22, 0
      %s286 = scalar_select %p285, %s22, 0
      %s287 = scalar_lea.vmem %s3, %s286
      %p288 = pneg %p138
      %p289 = pneg %p135
      %p290 = scmp.lt.s32.totalorder %s22, 0
      %s291 = scalar_select %p290, %s22, 0
      %s292 = scalar_lea.vmem %s4, %s291
      %p293 = pneg %p164
      %p294 = pneg %p161
      %p295 = pneg %p192
      %p296 = pneg %p189
      %s297 = smul.u32 64, %s21
      %p298 = scmp.lt.s32.totalorder %s297, 127
      %s299 = scalar_select %p298, %s297, 127
      %p300 = scmp.lt.s32.totalorder %s22, 0
      %s301 = scalar_select %p300, %s22, 0
      %s302 = sadd.s32 %s301, %s299
      %s303 = smul.addr %s302, 8
      %s304 = scalar_lea.vmem %s5, %s303
      %s305 = smul.u32 64, %s21
      %p306 = scmp.lt.s32.totalorder %s305, 127
      %s307 = scalar_select %p306, %s305, 127
      %p308 = scmp.lt.s32.totalorder %s23, 0
      %s309 = scalar_select %p308, %s23, 0
      %s310 = sadd.s32 %s309, %s307
      %s311 = smul.addr %s310, 4
      %s312 = scalar_lea.vmem %s0, %s311
      %s313 = smul.u32 64, %s21
      %s314 = smul.u32 9, %s23
      %p315 = scmp.lt.s32.totalorder %s314, 8
      %s316 = scalar_select %p315, %s314, 8
      %p317 = scmp.lt.s32.totalorder %s22, 0
      %s318 = scalar_select %p317, %s22, 0
      %s319 = sadd.s32 %s318, %s316
      %s320 = smul.addr %s319, 4
      %s321 = scalar_lea.vmem %s1, %s320
      %s322 = smul.u32 9, %s23
      %p323 = scmp.lt.s32.totalorder %s22, 0
      %s324 = scalar_select %p323, %s22, 0
      %s325 = scalar_lea.vmem %s2, %s324
      %p326 = scmp.lt.s32.totalorder %s22, 0
      %s327 = scalar_select %p326, %s22, 0
      %s328 = scalar_lea.vmem %s3, %s327
      %p329 = scmp.lt.s32.totalorder %s22, 0
      %s330 = scalar_select %p329, %s22, 0
      %s331 = scalar_lea.vmem %s4, %s330
      %s332 = smul.u32 64, %s21
      %p333 = scmp.lt.s32.totalorder %s332, 127
      %s334 = scalar_select %p333, %s332, 127
      %p335 = scmp.lt.s32.totalorder %s22, 0
      %s336 = scalar_select %p335, %s22, 0
      %s337 = sadd.s32 %s336, %s334
      %s338 = smul.addr %s337, 8
      %s339 = scalar_lea.vmem %s5, %s338
      %s340 = smul.u32 64, %s21
      %p342 = scmp.eq.s32.totalorder %s23, 0
      // Predicated region
      $region41: #{_lambda_.8} parent=39 // pred_check
        %p343 = pneg %p342
      $region42: #{_lambda_.8} parent=39 // pred_check_branch
        %345 = sbr.rel (%p343) target = $region44
      $region43: #{_lambda_.8} parent=39 // pred_region
        %346 = vst [vmem:[#allocation2] sm:$0xff] 0.0
        %347 = vst [vmem:[#allocation2 + $0x8] sm:$0xff] 0.0
        %348 = vst [vmem:[#allocation2 + $0x10] sm:$0xff] 0.0
        %349 = vst [vmem:[#allocation2 + $0x18] sm:$0xff] 0.0
        %350 = vst [vmem:[#allocation2 + $0x20] sm:$0xff] 0.0
        %351 = vst [vmem:[#allocation2 + $0x28] sm:$0xff] 0.0
        %352 = vst [vmem:[#allocation2 + $0x30] sm:$0xff] 0.0
        %353 = vst [vmem:[#allocation2 + $0x38] sm:$0xff] 0.0
        %354 = vst [vmem:[#allocation2 + $0x40] sm:$0xff] 0.0
        %355 = vst [vmem:[#allocation2 + $0x48] sm:$0xff] 0.0
        %356 = vst [vmem:[#allocation2 + $0x50] sm:$0xff] 0.0
        %357 = vst [vmem:[#allocation2 + $0x58] sm:$0xff] 0.0
        %358 = vst [vmem:[#allocation2 + $0x60] sm:$0xff] 0.0
        %359 = vst [vmem:[#allocation2 + $0x68] sm:$0xff] 0.0
        %360 = vst [vmem:[#allocation2 + $0x70] sm:$0xff] 0.0
        %361 = vst [vmem:[#allocation2 + $0x78] sm:$0xff] 0.0
        %362 = vst [vmem:[#allocation2 + $0x80] sm:$0xff] 0.0
        %363 = vst [vmem:[#allocation2 + $0x88] sm:$0xff] 0.0
        %364 = vst [vmem:[#allocation2 + $0x90] sm:$0xff] 0.0
        %365 = vst [vmem:[#allocation2 + $0x98] sm:$0xff] 0.0
        %366 = vst [vmem:[#allocation2 + $0xa0] sm:$0xff] 0.0
        %367 = vst [vmem:[#allocation2 + $0xa8] sm:$0xff] 0.0
        %368 = vst [vmem:[#allocation2 + $0xb0] sm:$0xff] 0.0
        %369 = vst [vmem:[#allocation2 + $0xb8] sm:$0xff] 0.0
        %370 = vst [vmem:[#allocation2 + $0xc0] sm:$0xff] 0.0
        %371 = vst [vmem:[#allocation2 + $0xc8] sm:$0xff] 0.0
        %372 = vst [vmem:[#allocation2 + $0xd0] sm:$0xff] 0.0
        %373 = vst [vmem:[#allocation2 + $0xd8] sm:$0xff] 0.0
        %374 = vst [vmem:[#allocation2 + $0xe0] sm:$0xff] 0.0
        %375 = vst [vmem:[#allocation2 + $0xe8] sm:$0xff] 0.0
        %376 = vst [vmem:[#allocation2 + $0xf0] sm:$0xff] 0.0
        %377 = vst [vmem:[#allocation2 + $0xf8] sm:$0xff] 0.0
        %378 = vst [vmem:[#allocation2 + $0x100] sm:$0xff] 0.0
        %379 = vst [vmem:[#allocation2 + $0x108] sm:$0xff] 0.0
        %380 = vst [vmem:[#allocation2 + $0x110] sm:$0xff] 0.0
        %381 = vst [vmem:[#allocation2 + $0x118] sm:$0xff] 0.0
        %382 = vst [vmem:[#allocation2 + $0x120] sm:$0xff] 0.0
        %383 = vst [vmem:[#allocation2 + $0x128] sm:$0xff] 0.0
        %384 = vst [vmem:[#allocation2 + $0x130] sm:$0xff] 0.0
        %385 = vst [vmem:[#allocation2 + $0x138] sm:$0xff] 0.0
        %386 = vst [vmem:[#allocation2 + $0x140] sm:$0xff] 0.0
        %387 = vst [vmem:[#allocation2 + $0x148] sm:$0xff] 0.0
        %388 = vst [vmem:[#allocation2 + $0x150] sm:$0xff] 0.0
        %389 = vst [vmem:[#allocation2 + $0x158] sm:$0xff] 0.0
        %390 = vst [vmem:[#allocation2 + $0x160] sm:$0xff] 0.0
        %391 = vst [vmem:[#allocation2 + $0x168] sm:$0xff] 0.0
        %392 = vst [vmem:[#allocation2 + $0x170] sm:$0xff] 0.0
        %393 = vst [vmem:[#allocation2 + $0x178] sm:$0xff] 0.0
        %394 = vst [vmem:[#allocation2 + $0x180] sm:$0xff] 0.0
        %395 = vst [vmem:[#allocation2 + $0x188] sm:$0xff] 0.0
        %396 = vst [vmem:[#allocation2 + $0x190] sm:$0xff] 0.0
        %397 = vst [vmem:[#allocation2 + $0x198] sm:$0xff] 0.0
        %398 = vst [vmem:[#allocation2 + $0x1a0] sm:$0xff] 0.0
        %399 = vst [vmem:[#allocation2 + $0x1a8] sm:$0xff] 0.0
        %400 = vst [vmem:[#allocation2 + $0x1b0] sm:$0xff] 0.0
        %401 = vst [vmem:[#allocation2 + $0x1b8] sm:$0xff] 0.0
        %402 = vst [vmem:[#allocation2 + $0x1c0] sm:$0xff] 0.0
        %403 = vst [vmem:[#allocation2 + $0x1c8] sm:$0xff] 0.0
        %404 = vst [vmem:[#allocation2 + $0x1d0] sm:$0xff] 0.0
        %405 = vst [vmem:[#allocation2 + $0x1d8] sm:$0xff] 0.0
        %406 = vst [vmem:[#allocation2 + $0x1e0] sm:$0xff] 0.0
        %407 = vst [vmem:[#allocation2 + $0x1e8] sm:$0xff] 0.0
        %408 = vst [vmem:[#allocation2 + $0x1f0] sm:$0xff] 0.0
        %409 = vst [vmem:[#allocation2 + $0x1f8] sm:$0xff] 0.0
      $region44: #{_lambda_.8} parent=39 // pred_fallthru
        _
      %v410 = vld [vmem:[#allocation2] sm:$0xff]
      %v411 = vld [vmem:[#allocation2 + $0x8] sm:$0xff]
      %v412 = vld [vmem:[#allocation2 + $0x10] sm:$0xff]
      %v413 = vld [vmem:[#allocation2 + $0x18] sm:$0xff]
      %v414 = vld [vmem:[#allocation2 + $0x20] sm:$0xff]
      %v415 = vld [vmem:[#allocation2 + $0x28] sm:$0xff]
      %v416 = vld [vmem:[#allocation2 + $0x30] sm:$0xff]
      %v417 = vld [vmem:[#allocation2 + $0x38] sm:$0xff]
      %v418 = vld [vmem:[#allocation2 + $0x40] sm:$0xff]
      %v419 = vld [vmem:[#allocation2 + $0x48] sm:$0xff]
      %v420 = vld [vmem:[#allocation2 + $0x50] sm:$0xff]
      %v421 = vld [vmem:[#allocation2 + $0x58] sm:$0xff]
      %v422 = vld [vmem:[#allocation2 + $0x60] sm:$0xff]
      %v423 = vld [vmem:[#allocation2 + $0x68] sm:$0xff]
      %v424 = vld [vmem:[#allocation2 + $0x70] sm:$0xff]
      %v425 = vld [vmem:[#allocation2 + $0x78] sm:$0xff]
      %v426 = vld [vmem:[#allocation2 + $0x80] sm:$0xff]
      %v427 = vld [vmem:[#allocation2 + $0x88] sm:$0xff]
      %v428 = vld [vmem:[#allocation2 + $0x90] sm:$0xff]
      %v429 = vld [vmem:[#allocation2 + $0x98] sm:$0xff]
      %v430 = vld [vmem:[#allocation2 + $0xa0] sm:$0xff]
      %v431 = vld [vmem:[#allocation2 + $0xa8] sm:$0xff]
      %v432 = vld [vmem:[#allocation2 + $0xb0] sm:$0xff]
      %v433 = vld [vmem:[#allocation2 + $0xb8] sm:$0xff]
      %v434 = vld [vmem:[#allocation2 + $0xc0] sm:$0xff]
      %v435 = vld [vmem:[#allocation2 + $0xc8] sm:$0xff]
      %v436 = vld [vmem:[#allocation2 + $0xd0] sm:$0xff]
      %v437 = vld [vmem:[#allocation2 + $0xd8] sm:$0xff]
      %v438 = vld [vmem:[#allocation2 + $0xe0] sm:$0xff]
      %v439 = vld [vmem:[#allocation2 + $0xe8] sm:$0xff]
      %v440 = vld [vmem:[#allocation2 + $0xf0] sm:$0xff]
      %v441 = vld [vmem:[#allocation2 + $0xf8] sm:$0xff]
      %v442 = vld [vmem:[#allocation2 + $0x100] sm:$0xff]
      %v443 = vld [vmem:[#allocation2 + $0x108] sm:$0xff]
      %v444 = vld [vmem:[#allocation2 + $0x110] sm:$0xff]
      %v445 = vld [vmem:[#allocation2 + $0x118] sm:$0xff]
      %v446 = vld [vmem:[#allocation2 + $0x120] sm:$0xff]
      %v447 = vld [vmem:[#allocation2 + $0x128] sm:$0xff]
      %v448 = vld [vmem:[#allocation2 + $0x130] sm:$0xff]
      %v449 = vld [vmem:[#allocation2 + $0x138] sm:$0xff]
      %v450 = vld [vmem:[#allocation2 + $0x140] sm:$0xff]
      %v451 = vld [vmem:[#allocation2 + $0x148] sm:$0xff]
      %v452 = vld [vmem:[#allocation2 + $0x150] sm:$0xff]
      %v453 = vld [vmem:[#allocation2 + $0x158] sm:$0xff]
      %v454 = vld [vmem:[#allocation2 + $0x160] sm:$0xff]
      %v455 = vld [vmem:[#allocation2 + $0x168] sm:$0xff]
      %v456 = vld [vmem:[#allocation2 + $0x170] sm:$0xff]
      %v457 = vld [vmem:[#allocation2 + $0x178] sm:$0xff]
      %v458 = vld [vmem:[#allocation2 + $0x180] sm:$0xff]
      %v459 = vld [vmem:[#allocation2 + $0x188] sm:$0xff]
      %v460 = vld [vmem:[#allocation2 + $0x190] sm:$0xff]
      %v461 = vld [vmem:[#allocation2 + $0x198] sm:$0xff]
      %v462 = vld [vmem:[#allocation2 + $0x1a0] sm:$0xff]
      %v463 = vld [vmem:[#allocation2 + $0x1a8] sm:$0xff]
      %v464 = vld [vmem:[#allocation2 + $0x1b0] sm:$0xff]
      %v465 = vld [vmem:[#allocation2 + $0x1b8] sm:$0xff]
      %v466 = vld [vmem:[#allocation2 + $0x1c0] sm:$0xff]
      %v467 = vld [vmem:[#allocation2 + $0x1c8] sm:$0xff]
      %v468 = vld [vmem:[#allocation2 + $0x1d0] sm:$0xff]
      %v469 = vld [vmem:[#allocation2 + $0x1d8] sm:$0xff]
      %v470 = vld [vmem:[#allocation2 + $0x1e0] sm:$0xff]
      %v471 = vld [vmem:[#allocation2 + $0x1e8] sm:$0xff]
      %v472 = vld [vmem:[#allocation2 + $0x1f0] sm:$0xff]
      %v473 = vld [vmem:[#allocation2 + $0x1f8] sm:$0xff]
      %v474 = vld [vmem:[%s312] sm:$0xf]
      %v475 = vld [vmem:[%s312 + $0x4] sm:$0xf]
      %v476 = vld [vmem:[%s312 + $0x8] sm:$0xf]
      %v477 = vld [vmem:[%s312 + $0xc] sm:$0xf]
      %v478 = vld [vmem:[%s312 + $0x10] sm:$0xf]
      %v479 = vld [vmem:[%s312 + $0x14] sm:$0xf]
      %v480 = vld [vmem:[%s312 + $0x18] sm:$0xf]
      %v481 = vld [vmem:[%s312 + $0x1c] sm:$0xf]
      %v482 = vld [vmem:[%s312 + $0x20] sm:$0xf]
      %v483 = vld [vmem:[%s312 + $0x24] sm:$0xf]
      %v484 = vld [vmem:[%s312 + $0x28] sm:$0xf]
      %v485 = vld [vmem:[%s312 + $0x2c] sm:$0xf]
      %v486 = vld [vmem:[%s312 + $0x30] sm:$0xf]
      %v487 = vld [vmem:[%s312 + $0x34] sm:$0xf]
      %v488 = vld [vmem:[%s312 + $0x38] sm:$0xf]
      %v489 = vld [vmem:[%s312 + $0x3c] sm:$0xf]
      %v490 = vld [vmem:[%s312 + $0x40] sm:$0xf]
      %v491 = vld [vmem:[%s312 + $0x44] sm:$0xf]
      %v492 = vld [vmem:[%s312 + $0x48] sm:$0xf]
      %v493 = vld [vmem:[%s312 + $0x4c] sm:$0xf]
      %v494 = vld [vmem:[%s312 + $0x50] sm:$0xf]
      %v495 = vld [vmem:[%s312 + $0x54] sm:$0xf]
      %v496 = vld [vmem:[%s312 + $0x58] sm:$0xf]
      %v497 = vld [vmem:[%s312 + $0x5c] sm:$0xf]
      %v498 = vld [vmem:[%s312 + $0x60] sm:$0xf]
      %v499 = vld [vmem:[%s312 + $0x64] sm:$0xf]
      %v500 = vld [vmem:[%s312 + $0x68] sm:$0xf]
      %v501 = vld [vmem:[%s312 + $0x6c] sm:$0xf]
      %v502 = vld [vmem:[%s312 + $0x70] sm:$0xf]
      %v503 = vld [vmem:[%s312 + $0x74] sm:$0xf]
      %v504 = vld [vmem:[%s312 + $0x78] sm:$0xf]
      %v505 = vld [vmem:[%s312 + $0x7c] sm:$0xf]
      %v506 = vld [vmem:[%s312 + $0x80] sm:$0xf]
      %v507 = vld [vmem:[%s312 + $0x84] sm:$0xf]
      %v508 = vld [vmem:[%s312 + $0x88] sm:$0xf]
      %v509 = vld [vmem:[%s312 + $0x8c] sm:$0xf]
      %v510 = vld [vmem:[%s312 + $0x90] sm:$0xf]
      %v511 = vld [vmem:[%s312 + $0x94] sm:$0xf]
      %v512 = vld [vmem:[%s312 + $0x98] sm:$0xf]
      %v513 = vld [vmem:[%s312 + $0x9c] sm:$0xf]
      %v514 = vld [vmem:[%s312 + $0xa0] sm:$0xf]
      %v515 = vld [vmem:[%s312 + $0xa4] sm:$0xf]
      %v516 = vld [vmem:[%s312 + $0xa8] sm:$0xf]
      %v517 = vld [vmem:[%s312 + $0xac] sm:$0xf]
      %v518 = vld [vmem:[%s312 + $0xb0] sm:$0xf]
      %v519 = vld [vmem:[%s312 + $0xb4] sm:$0xf]
      %v520 = vld [vmem:[%s312 + $0xb8] sm:$0xf]
      %v521 = vld [vmem:[%s312 + $0xbc] sm:$0xf]
      %v522 = vld [vmem:[%s312 + $0xc0] sm:$0xf]
      %v523 = vld [vmem:[%s312 + $0xc4] sm:$0xf]
      %v524 = vld [vmem:[%s312 + $0xc8] sm:$0xf]
      %v525 = vld [vmem:[%s312 + $0xcc] sm:$0xf]
      %v526 = vld [vmem:[%s312 + $0xd0] sm:$0xf]
      %v527 = vld [vmem:[%s312 + $0xd4] sm:$0xf]
      %v528 = vld [vmem:[%s312 + $0xd8] sm:$0xf]
      %v529 = vld [vmem:[%s312 + $0xdc] sm:$0xf]
      %v530 = vld [vmem:[%s312 + $0xe0] sm:$0xf]
      %v531 = vld [vmem:[%s312 + $0xe4] sm:$0xf]
      %v532 = vld [vmem:[%s312 + $0xe8] sm:$0xf]
      %v533 = vld [vmem:[%s312 + $0xec] sm:$0xf]
      %v534 = vld [vmem:[%s312 + $0xf0] sm:$0xf]
      %v535 = vld [vmem:[%s312 + $0xf4] sm:$0xf]
      %v536 = vld [vmem:[%s312 + $0xf8] sm:$0xf]
      %v537 = vld [vmem:[%s312 + $0xfc] sm:$0xf]
      %v538 = vld [vmem:[%s321] sm:$0xf]
      %v539 = vld [vmem:[%s321 + $0x4] sm:$0xf]
      %v540 = vld [vmem:[%s321 + $0x8] sm:$0xf]
      %v541 = vld [vmem:[%s321 + $0xc] sm:$0xf]
      %v542 = vld [vmem:[%s321 + $0x10] sm:$0xf]
      %v543 = vld [vmem:[%s321 + $0x14] sm:$0xf]
      %v544 = vld [vmem:[%s321 + $0x18] sm:$0xf]
      %v545 = vld [vmem:[%s321 + $0x1c] sm:$0xf]
      %v546 = vld [vmem:[%s321 + $0x20] sm:$0xf]
      %v611 = vunpack.c.l.b16 %v474
      %v612 = vunpack.c.l.b16 %v475
      %v613 = vunpack.c.l.b16 %v476
      %v614 = vunpack.c.l.b16 %v477
      %v615 = vunpack.c.l.b16 %v478
      %v616 = vunpack.c.l.b16 %v479
      %v617 = vunpack.c.l.b16 %v480
      %v618 = vunpack.c.l.b16 %v481
      %v619 = vunpack.c.l.b16 %v482
      %v620 = vunpack.c.l.b16 %v483
      %v621 = vunpack.c.l.b16 %v484
      %v622 = vunpack.c.l.b16 %v485
      %v623 = vunpack.c.l.b16 %v486
      %v624 = vunpack.c.l.b16 %v487
      %v625 = vunpack.c.l.b16 %v488
      %v626 = vunpack.c.l.b16 %v489
      %v627 = vunpack.c.l.b16 %v490
      %v628 = vunpack.c.l.b16 %v491
      %v629 = vunpack.c.l.b16 %v492
      %v630 = vunpack.c.l.b16 %v493
      %v631 = vunpack.c.l.b16 %v494
      %v632 = vunpack.c.l.b16 %v495
      %v633 = vunpack.c.l.b16 %v496
      %v634 = vunpack.c.l.b16 %v497
      %v635 = vunpack.c.l.b16 %v498
      %v636 = vunpack.c.l.b16 %v499
      %v637 = vunpack.c.l.b16 %v500
      %v638 = vunpack.c.l.b16 %v501
      %v639 = vunpack.c.l.b16 %v502
      %v640 = vunpack.c.l.b16 %v503
      %v641 = vunpack.c.l.b16 %v504
      %v642 = vunpack.c.l.b16 %v505
      %v643 = vunpack.c.l.b16 %v506
      %v644 = vunpack.c.l.b16 %v507
      %v645 = vunpack.c.l.b16 %v508
      %v646 = vunpack.c.l.b16 %v509
      %v647 = vunpack.c.l.b16 %v510
      %v648 = vunpack.c.l.b16 %v511
      %v649 = vunpack.c.l.b16 %v512
      %v650 = vunpack.c.l.b16 %v513
      %v651 = vunpack.c.l.b16 %v514
      %v652 = vunpack.c.l.b16 %v515
      %v653 = vunpack.c.l.b16 %v516
      %v654 = vunpack.c.l.b16 %v517
      %v655 = vunpack.c.l.b16 %v518
      %v656 = vunpack.c.l.b16 %v519
      %v657 = vunpack.c.l.b16 %v520
      %v658 = vunpack.c.l.b16 %v521
      %v659 = vunpack.c.l.b16 %v522
      %v660 = vunpack.c.l.b16 %v523
      %v661 = vunpack.c.l.b16 %v524
      %v662 = vunpack.c.l.b16 %v525
      %v663 = vunpack.c.l.b16 %v526
      %v664 = vunpack.c.l.b16 %v527
      %v665 = vunpack.c.l.b16 %v528
      %v666 = vunpack.c.l.b16 %v529
      %v667 = vunpack.c.l.b16 %v530
      %v668 = vunpack.c.l.b16 %v531
      %v669 = vunpack.c.l.b16 %v532
      %v670 = vunpack.c.l.b16 %v533
      %v671 = vunpack.c.l.b16 %v534
      %v672 = vunpack.c.l.b16 %v535
      %v673 = vunpack.c.l.b16 %v536
      %v674 = vunpack.c.l.b16 %v537
      %v675 = vpack.c.b16 %v612, %v611
      %v676 = vpack.c.b16 %v614, %v613
      %v677 = vpack.c.b16 %v616, %v615
      %v678 = vpack.c.b16 %v618, %v617
      %v679 = vpack.c.b16 %v620, %v619
      %v680 = vpack.c.b16 %v622, %v621
      %v681 = vpack.c.b16 %v624, %v623
      %v682 = vpack.c.b16 %v626, %v625
      %v683 = vpack.c.b16 %v628, %v627
      %v684 = vpack.c.b16 %v630, %v629
      %v685 = vpack.c.b16 %v632, %v631
      %v686 = vpack.c.b16 %v634, %v633
      %v687 = vpack.c.b16 %v636, %v635
      %v688 = vpack.c.b16 %v638, %v637
      %v689 = vpack.c.b16 %v640, %v639
      %v690 = vpack.c.b16 %v642, %v641
      %v691 = vpack.c.b16 %v644, %v643
      %v692 = vpack.c.b16 %v646, %v645
      %v693 = vpack.c.b16 %v648, %v647
      %v694 = vpack.c.b16 %v650, %v649
      %v695 = vpack.c.b16 %v652, %v651
      %v696 = vpack.c.b16 %v654, %v653
      %v697 = vpack.c.b16 %v656, %v655
      %v698 = vpack.c.b16 %v658, %v657
      %v699 = vpack.c.b16 %v660, %v659
      %v700 = vpack.c.b16 %v662, %v661
      %v701 = vpack.c.b16 %v664, %v663
      %v702 = vpack.c.b16 %v666, %v665
      %v703 = vpack.c.b16 %v668, %v667
      %v704 = vpack.c.b16 %v670, %v669
      %v705 = vpack.c.b16 %v672, %v671
      %v706 = vpack.c.b16 %v674, %v673
      %v716 = vunpack.c.l.b16 %v538
      %v717 = vunpack.c.l.b16 %v539
      %v718 = vunpack.c.l.b16 %v540
      %v719 = vunpack.c.l.b16 %v541
      %v720 = vunpack.c.l.b16 %v542
      %v721 = vunpack.c.l.b16 %v543
      %v722 = vunpack.c.l.b16 %v544
      %v723 = vunpack.c.l.b16 %v545
      %v724 = vunpack.c.l.b16 %v546
      %v725 = vpack.c.b16 %v717, %v716
      %v726 = vpack.c.b16 %v719, %v718
      %v727 = vpack.c.b16 %v721, %v720
      %v728 = vpack.c.b16 %v723, %v722
      %v729 = vpack.c.b16 %v724, %v724
      %vm734 = vcmask 588800
      %v736 = vsel %vm734, %v675, 0
      %v739 = vsel %vm734, %v676, 0
      %v742 = vsel %vm734, %v677, 0
      %v745 = vsel %vm734, %v678, 0
      %v748 = vsel %vm734, %v679, 0
      %v751 = vsel %vm734, %v680, 0
      %v754 = vsel %vm734, %v681, 0
      %v757 = vsel %vm734, %v682, 0
      %v760 = vsel %vm734, %v683, 0
      %v763 = vsel %vm734, %v684, 0
      %v766 = vsel %vm734, %v685, 0
      %v769 = vsel %vm734, %v686, 0
      %v772 = vsel %vm734, %v687, 0
      %v775 = vsel %vm734, %v688, 0
      %v778 = vsel %vm734, %v689, 0
      %v781 = vsel %vm734, %v690, 0
      %v784 = vsel %vm734, %v691, 0
      %v787 = vsel %vm734, %v692, 0
      %v790 = vsel %vm734, %v693, 0
      %v793 = vsel %vm734, %v694, 0
      %v796 = vsel %vm734, %v695, 0
      %v799 = vsel %vm734, %v696, 0
      %v802 = vsel %vm734, %v697, 0
      %v805 = vsel %vm734, %v698, 0
      %v808 = vsel %vm734, %v699, 0
      %v811 = vsel %vm734, %v700, 0
      %v814 = vsel %vm734, %v701, 0
      %v817 = vsel %vm734, %v702, 0
      %v820 = vsel %vm734, %v703, 0
      %v823 = vsel %vm734, %v704, 0
      %v826 = vsel %vm734, %v705, 0
      %v829 = vsel %vm734, %v706, 0
      %vm831 = vcmask 1043456
      %v833 = vsel %vm831, %v729, 0
      %835 = vmatpush.bf16.msra.mxu0 0
      %836 = vmatpush.bf16.msra.mxu0 0
      %837 = vmatpush.bf16.msra.mxu0 0
      %838 = vmatpush.bf16.msra.mxu0 %v833
      %839 = vmatpush.bf16.msra.mxu0 %v728
      %840 = vmatpush.bf16.msra.mxu0 %v727
      %841 = vmatpush.bf16.msra.mxu0 %v726
      %842 = vmatpush.bf16.msra.mxu0 %v725
      %843 = vmatmul.bf16.gmra.mxu0 %v736
      %v844 = vpop.f32.mrf.mxu0
      %v845 = vadd.f32 0.0, %v844
      %v846 = vpop.f32.mrf.mxu0
      %v847 = vadd.f32 0.0, %v846
      %848 = vmatmul.bf16.gmra.mxu0 %v739
      %v849 = vpop.f32.mrf.mxu0
      %v850 = vadd.f32 0.0, %v849
      %v851 = vpop.f32.mrf.mxu0
      %v852 = vadd.f32 0.0, %v851
      %853 = vmatmul.bf16.gmra.mxu0 %v742
      %v854 = vpop.f32.mrf.mxu0
      %v855 = vadd.f32 0.0, %v854
      %v856 = vpop.f32.mrf.mxu0
      %v857 = vadd.f32 0.0, %v856
      %858 = vmatmul.bf16.gmra.mxu0 %v745
      %v859 = vpop.f32.mrf.mxu0
      %v860 = vadd.f32 0.0, %v859
      %v861 = vpop.f32.mrf.mxu0
      %v862 = vadd.f32 0.0, %v861
      %863 = vmatmul.bf16.gmra.mxu0 %v748
      %v864 = vpop.f32.mrf.mxu0
      %v865 = vadd.f32 0.0, %v864
      %v866 = vpop.f32.mrf.mxu0
      %v867 = vadd.f32 0.0, %v866
      %868 = vmatmul.bf16.gmra.mxu0 %v751
      %v869 = vpop.f32.mrf.mxu0
      %v870 = vadd.f32 0.0, %v869
      %v871 = vpop.f32.mrf.mxu0
      %v872 = vadd.f32 0.0, %v871
      %873 = vmatmul.bf16.gmra.mxu0 %v754
      %v874 = vpop.f32.mrf.mxu0
      %v875 = vadd.f32 0.0, %v874
      %v876 = vpop.f32.mrf.mxu0
      %v877 = vadd.f32 0.0, %v876
      %878 = vmatmul.bf16.gmra.mxu0 %v757
      %v879 = vpop.f32.mrf.mxu0
      %v880 = vadd.f32 0.0, %v879
      %v881 = vpop.f32.mrf.mxu0
      %v882 = vadd.f32 0.0, %v881
      %883 = vmatmul.bf16.gmra.mxu0 %v760
      %v884 = vpop.f32.mrf.mxu0
      %v885 = vadd.f32 0.0, %v884
      %v886 = vpop.f32.mrf.mxu0
      %v887 = vadd.f32 0.0, %v886
      %888 = vmatmul.bf16.gmra.mxu0 %v763
      %v889 = vpop.f32.mrf.mxu0
      %v890 = vadd.f32 0.0, %v889
      %v891 = vpop.f32.mrf.mxu0
      %v892 = vadd.f32 0.0, %v891
      %893 = vmatmul.bf16.gmra.mxu0 %v766
      %v894 = vpop.f32.mrf.mxu0
      %v895 = vadd.f32 0.0, %v894
      %v896 = vpop.f32.mrf.mxu0
      %v897 = vadd.f32 0.0, %v896
      %898 = vmatmul.bf16.gmra.mxu0 %v769
      %v899 = vpop.f32.mrf.mxu0
      %v900 = vadd.f32 0.0, %v899
      %v901 = vpop.f32.mrf.mxu0
      %v902 = vadd.f32 0.0, %v901
      %903 = vmatmul.bf16.gmra.mxu0 %v772
      %v904 = vpop.f32.mrf.mxu0
      %v905 = vadd.f32 0.0, %v904
      %v906 = vpop.f32.mrf.mxu0
      %v907 = vadd.f32 0.0, %v906
      %908 = vmatmul.bf16.gmra.mxu0 %v775
      %v909 = vpop.f32.mrf.mxu0
      %v910 = vadd.f32 0.0, %v909
      %v911 = vpop.f32.mrf.mxu0
      %v912 = vadd.f32 0.0, %v911
      %913 = vmatmul.bf16.gmra.mxu0 %v778
      %v914 = vpop.f32.mrf.mxu0
      %v915 = vadd.f32 0.0, %v914
      %v916 = vpop.f32.mrf.mxu0
      %v917 = vadd.f32 0.0, %v916
      %918 = vmatmul.bf16.gmra.mxu0 %v781
      %v919 = vpop.f32.mrf.mxu0
      %v920 = vadd.f32 0.0, %v919
      %v921 = vpop.f32.mrf.mxu0
      %v922 = vadd.f32 0.0, %v921
      %923 = vmatmul.bf16.gmra.mxu0 %v784
      %v924 = vpop.f32.mrf.mxu0
      %v925 = vadd.f32 0.0, %v924
      %v926 = vpop.f32.mrf.mxu0
      %v927 = vadd.f32 0.0, %v926
      %928 = vmatmul.bf16.gmra.mxu0 %v787
      %v929 = vpop.f32.mrf.mxu0
      %v930 = vadd.f32 0.0, %v929
      %v931 = vpop.f32.mrf.mxu0
      %v932 = vadd.f32 0.0, %v931
      %933 = vmatmul.bf16.gmra.mxu0 %v790
      %v934 = vpop.f32.mrf.mxu0
      %v935 = vadd.f32 0.0, %v934
      %v936 = vpop.f32.mrf.mxu0
      %v937 = vadd.f32 0.0, %v936
      %938 = vmatmul.bf16.gmra.mxu0 %v793
      %v939 = vpop.f32.mrf.mxu0
      %v940 = vadd.f32 0.0, %v939
      %v941 = vpop.f32.mrf.mxu0
      %v942 = vadd.f32 0.0, %v941
      %943 = vmatmul.bf16.gmra.mxu0 %v796
      %v944 = vpop.f32.mrf.mxu0
      %v945 = vadd.f32 0.0, %v944
      %v946 = vpop.f32.mrf.mxu0
      %v947 = vadd.f32 0.0, %v946
      %948 = vmatmul.bf16.gmra.mxu0 %v799
      %v949 = vpop.f32.mrf.mxu0
      %v950 = vadd.f32 0.0, %v949
      %v951 = vpop.f32.mrf.mxu0
      %v952 = vadd.f32 0.0, %v951
      %953 = vmatmul.bf16.gmra.mxu0 %v802
      %v954 = vpop.f32.mrf.mxu0
      %v955 = vadd.f32 0.0, %v954
      %v956 = vpop.f32.mrf.mxu0
      %v957 = vadd.f32 0.0, %v956
      %958 = vmatmul.bf16.gmra.mxu0 %v805
      %v959 = vpop.f32.mrf.mxu0
      %v960 = vadd.f32 0.0, %v959
      %v961 = vpop.f32.mrf.mxu0
      %v962 = vadd.f32 0.0, %v961
      %963 = vmatmul.bf16.gmra.mxu0 %v808
      %v964 = vpop.f32.mrf.mxu0
      %v965 = vadd.f32 0.0, %v964
      %v966 = vpop.f32.mrf.mxu0
      %v967 = vadd.f32 0.0, %v966
      %968 = vmatmul.bf16.gmra.mxu0 %v811
      %v969 = vpop.f32.mrf.mxu0
      %v970 = vadd.f32 0.0, %v969
      %v971 = vpop.f32.mrf.mxu0
      %v972 = vadd.f32 0.0, %v971
      %973 = vmatmul.bf16.gmra.mxu0 %v814
      %v974 = vpop.f32.mrf.mxu0
      %v975 = vadd.f32 0.0, %v974
      %v976 = vpop.f32.mrf.mxu0
      %v977 = vadd.f32 0.0, %v976
      %978 = vmatmul.bf16.gmra.mxu0 %v817
      %v979 = vpop.f32.mrf.mxu0
      %v980 = vadd.f32 0.0, %v979
      %v981 = vpop.f32.mrf.mxu0
      %v982 = vadd.f32 0.0, %v981
      %983 = vmatmul.bf16.gmra.mxu0 %v820
      %v984 = vpop.f32.mrf.mxu0
      %v985 = vadd.f32 0.0, %v984
      %v986 = vpop.f32.mrf.mxu0
      %v987 = vadd.f32 0.0, %v986
      %988 = vmatmul.bf16.gmra.mxu0 %v823
      %v989 = vpop.f32.mrf.mxu0
      %v990 = vadd.f32 0.0, %v989
      %v991 = vpop.f32.mrf.mxu0
      %v992 = vadd.f32 0.0, %v991
      %993 = vmatmul.bf16.gmra.mxu0 %v826
      %v994 = vpop.f32.mrf.mxu0
      %v995 = vadd.f32 0.0, %v994
      %v996 = vpop.f32.mrf.mxu0
      %v997 = vadd.f32 0.0, %v996
      %998 = vmatmul.bf16.gmra.mxu0 %v829
      %v999 = vpop.f32.mrf.mxu0
      %v1000 = vadd.f32 0.0, %v999
      %v1001 = vpop.f32.mrf.mxu0
      %v1002 = vadd.f32 0.0, %v1001
      %1003 = vdwg.mxu0
      %v1004 = vadd.f32 %v410, %v845
      %v1005 = vadd.f32 %v411, %v847
      %v1006 = vadd.f32 %v412, %v850
      %v1007 = vadd.f32 %v413, %v852
      %v1008 = vadd.f32 %v414, %v855
      %v1009 = vadd.f32 %v415, %v857
      %v1010 = vadd.f32 %v416, %v860
      %v1011 = vadd.f32 %v417, %v862
      %v1012 = vadd.f32 %v418, %v865
      %v1013 = vadd.f32 %v419, %v867
      %v1014 = vadd.f32 %v420, %v870
      %v1015 = vadd.f32 %v421, %v872
      %v1016 = vadd.f32 %v422, %v875
      %v1017 = vadd.f32 %v423, %v877
      %v1018 = vadd.f32 %v424, %v880
      %v1019 = vadd.f32 %v425, %v882
      %v1020 = vadd.f32 %v426, %v885
      %v1021 = vadd.f32 %v427, %v887
      %v1022 = vadd.f32 %v428, %v890
      %v1023 = vadd.f32 %v429, %v892
      %v1024 = vadd.f32 %v430, %v895
      %v1025 = vadd.f32 %v431, %v897
      %v1026 = vadd.f32 %v432, %v900
      %v1027 = vadd.f32 %v433, %v902
      %v1028 = vadd.f32 %v434, %v905
      %v1029 = vadd.f32 %v435, %v907
      %v1030 = vadd.f32 %v436, %v910
      %v1031 = vadd.f32 %v437, %v912
      %v1032 = vadd.f32 %v438, %v915
      %v1033 = vadd.f32 %v439, %v917
      %v1034 = vadd.f32 %v440, %v920
      %v1035 = vadd.f32 %v441, %v922
      %v1036 = vadd.f32 %v442, %v925
      %v1037 = vadd.f32 %v443, %v927
      %v1038 = vadd.f32 %v444, %v930
      %v1039 = vadd.f32 %v445, %v932
      %v1040 = vadd.f32 %v446, %v935
      %v1041 = vadd.f32 %v447, %v937
      %v1042 = vadd.f32 %v448, %v940
      %v1043 = vadd.f32 %v449, %v942
      %v1044 = vadd.f32 %v450, %v945
      %v1045 = vadd.f32 %v451, %v947
      %v1046 = vadd.f32 %v452, %v950
      %v1047 = vadd.f32 %v453, %v952
      %v1048 = vadd.f32 %v454, %v955
      %v1049 = vadd.f32 %v455, %v957
      %v1050 = vadd.f32 %v456, %v960
      %v1051 = vadd.f32 %v457, %v962
      %v1052 = vadd.f32 %v458, %v965
      %v1053 = vadd.f32 %v459, %v967
      %v1054 = vadd.f32 %v460, %v970
      %v1055 = vadd.f32 %v461, %v972
      %v1056 = vadd.f32 %v462, %v975
      %v1057 = vadd.f32 %v463, %v977
      %v1058 = vadd.f32 %v464, %v980
      %v1059 = vadd.f32 %v465, %v982
      %v1060 = vadd.f32 %v466, %v985
      %v1061 = vadd.f32 %v467, %v987
      %v1062 = vadd.f32 %v468, %v990
      %v1063 = vadd.f32 %v469, %v992
      %v1064 = vadd.f32 %v470, %v995
      %v1065 = vadd.f32 %v471, %v997
      %v1066 = vadd.f32 %v472, %v1000
      %v1067 = vadd.f32 %v473, %v1002
      %1068 = vst [vmem:[#allocation2] sm:$0xff] %v1004
      %1069 = vst [vmem:[#allocation2 + $0x8] sm:$0xff] %v1005
      %1070 = vst [vmem:[#allocation2 + $0x10] sm:$0xff] %v1006
      %1071 = vst [vmem:[#allocation2 + $0x18] sm:$0xff] %v1007
      %1072 = vst [vmem:[#allocation2 + $0x20] sm:$0xff] %v1008
      %1073 = vst [vmem:[#allocation2 + $0x28] sm:$0xff] %v1009
      %1074 = vst [vmem:[#allocation2 + $0x30] sm:$0xff] %v1010
      %1075 = vst [vmem:[#allocation2 + $0x38] sm:$0xff] %v1011
      %1076 = vst [vmem:[#allocation2 + $0x40] sm:$0xff] %v1012
      %1077 = vst [vmem:[#allocation2 + $0x48] sm:$0xff] %v1013
      %1078 = vst [vmem:[#allocation2 + $0x50] sm:$0xff] %v1014
      %1079 = vst [vmem:[#allocation2 + $0x58] sm:$0xff] %v1015
      %1080 = vst [vmem:[#allocation2 + $0x60] sm:$0xff] %v1016
      %1081 = vst [vmem:[#allocation2 + $0x68] sm:$0xff] %v1017
      %1082 = vst [vmem:[#allocation2 + $0x70] sm:$0xff] %v1018
      %1083 = vst [vmem:[#allocation2 + $0x78] sm:$0xff] %v1019
      %1084 = vst [vmem:[#allocation2 + $0x80] sm:$0xff] %v1020
      %1085 = vst [vmem:[#allocation2 + $0x88] sm:$0xff] %v1021
      %1086 = vst [vmem:[#allocation2 + $0x90] sm:$0xff] %v1022
      %1087 = vst [vmem:[#allocation2 + $0x98] sm:$0xff] %v1023
      %1088 = vst [vmem:[#allocation2 + $0xa0] sm:$0xff] %v1024
      %1089 = vst [vmem:[#allocation2 + $0xa8] sm:$0xff] %v1025
      %1090 = vst [vmem:[#allocation2 + $0xb0] sm:$0xff] %v1026
      %1091 = vst [vmem:[#allocation2 + $0xb8] sm:$0xff] %v1027
      %1092 = vst [vmem:[#allocation2 + $0xc0] sm:$0xff] %v1028
      %1093 = vst [vmem:[#allocation2 + $0xc8] sm:$0xff] %v1029
      %1094 = vst [vmem:[#allocation2 + $0xd0] sm:$0xff] %v1030
      %1095 = vst [vmem:[#allocation2 + $0xd8] sm:$0xff] %v1031
      %1096 = vst [vmem:[#allocation2 + $0xe0] sm:$0xff] %v1032
      %1097 = vst [vmem:[#allocation2 + $0xe8] sm:$0xff] %v1033
      %1098 = vst [vmem:[#allocation2 + $0xf0] sm:$0xff] %v1034
      %1099 = vst [vmem:[#allocation2 + $0xf8] sm:$0xff] %v1035
      %1100 = vst [vmem:[#allocation2 + $0x100] sm:$0xff] %v1036
      %1101 = vst [vmem:[#allocation2 + $0x108] sm:$0xff] %v1037
      %1102 = vst [vmem:[#allocation2 + $0x110] sm:$0xff] %v1038
      %1103 = vst [vmem:[#allocation2 + $0x118] sm:$0xff] %v1039
      %1104 = vst [vmem:[#allocation2 + $0x120] sm:$0xff] %v1040
      %1105 = vst [vmem:[#allocation2 + $0x128] sm:$0xff] %v1041
      %1106 = vst [vmem:[#allocation2 + $0x130] sm:$0xff] %v1042
      %1107 = vst [vmem:[#allocation2 + $0x138] sm:$0xff] %v1043
      %1108 = vst [vmem:[#allocation2 + $0x140] sm:$0xff] %v1044
      %1109 = vst [vmem:[#allocation2 + $0x148] sm:$0xff] %v1045
      %1110 = vst [vmem:[#allocation2 + $0x150] sm:$0xff] %v1046
      %1111 = vst [vmem:[#allocation2 + $0x158] sm:$0xff] %v1047
      %1112 = vst [vmem:[#allocation2 + $0x160] sm:$0xff] %v1048
      %1113 = vst [vmem:[#allocation2 + $0x168] sm:$0xff] %v1049
      %1114 = vst [vmem:[#allocation2 + $0x170] sm:$0xff] %v1050
      %1115 = vst [vmem:[#allocation2 + $0x178] sm:$0xff] %v1051
      %1116 = vst [vmem:[#allocation2 + $0x180] sm:$0xff] %v1052
      %1117 = vst [vmem:[#allocation2 + $0x188] sm:$0xff] %v1053
      %1118 = vst [vmem:[#allocation2 + $0x190] sm:$0xff] %v1054
      %1119 = vst [vmem:[#allocation2 + $0x198] sm:$0xff] %v1055
      %1120 = vst [vmem:[#allocation2 + $0x1a0] sm:$0xff] %v1056
      %1121 = vst [vmem:[#allocation2 + $0x1a8] sm:$0xff] %v1057
      %1122 = vst [vmem:[#allocation2 + $0x1b0] sm:$0xff] %v1058
      %1123 = vst [vmem:[#allocation2 + $0x1b8] sm:$0xff] %v1059
      %1124 = vst [vmem:[#allocation2 + $0x1c0] sm:$0xff] %v1060
      %1125 = vst [vmem:[#allocation2 + $0x1c8] sm:$0xff] %v1061
      %1126 = vst [vmem:[#allocation2 + $0x1d0] sm:$0xff] %v1062
      %1127 = vst [vmem:[#allocation2 + $0x1d8] sm:$0xff] %v1063
      %1128 = vst [vmem:[#allocation2 + $0x1e0] sm:$0xff] %v1064
      %1129 = vst [vmem:[#allocation2 + $0x1e8] sm:$0xff] %v1065
      %1130 = vst [vmem:[#allocation2 + $0x1f0] sm:$0xff] %v1066
      %1131 = vst [vmem:[#allocation2 + $0x1f8] sm:$0xff] %v1067
      // Predicated region
      $region45: #{_lambda_.8} parent=39 // pred_check
        %p1132 = pneg %p342
      $region46: #{_lambda_.8} parent=39 // pred_check_branch
        %1134 = sbr.rel (%p1132) target = $region48
      $region47: #{_lambda_.8} parent=39 // pred_region
        %v1135 = vld [vmem:[#allocation2] sm:$0xff]
        %v1136 = vld [vmem:[#allocation2 + $0x8] sm:$0xff]
        %v1137 = vld [vmem:[#allocation2 + $0x10] sm:$0xff]
        %v1138 = vld [vmem:[#allocation2 + $0x18] sm:$0xff]
        %v1139 = vld [vmem:[#allocation2 + $0x20] sm:$0xff]
        %v1140 = vld [vmem:[#allocation2 + $0x28] sm:$0xff]
        %v1141 = vld [vmem:[#allocation2 + $0x30] sm:$0xff]
        %v1142 = vld [vmem:[#allocation2 + $0x38] sm:$0xff]
        %v1143 = vld [vmem:[#allocation2 + $0x40] sm:$0xff]
        %v1144 = vld [vmem:[#allocation2 + $0x48] sm:$0xff]
        %v1145 = vld [vmem:[#allocation2 + $0x50] sm:$0xff]
        %v1146 = vld [vmem:[#allocation2 + $0x58] sm:$0xff]
        %v1147 = vld [vmem:[#allocation2 + $0x60] sm:$0xff]
        %v1148 = vld [vmem:[#allocation2 + $0x68] sm:$0xff]
        %v1149 = vld [vmem:[#allocation2 + $0x70] sm:$0xff]
        %v1150 = vld [vmem:[#allocation2 + $0x78] sm:$0xff]
        %v1151 = vld [vmem:[#allocation2 + $0x80] sm:$0xff]
        %v1152 = vld [vmem:[#allocation2 + $0x88] sm:$0xff]
        %v1153 = vld [vmem:[#allocation2 + $0x90] sm:$0xff]
        %v1154 = vld [vmem:[#allocation2 + $0x98] sm:$0xff]
        %v1155 = vld [vmem:[#allocation2 + $0xa0] sm:$0xff]
        %v1156 = vld [vmem:[#allocation2 + $0xa8] sm:$0xff]
        %v1157 = vld [vmem:[#allocation2 + $0xb0] sm:$0xff]
        %v1158 = vld [vmem:[#allocation2 + $0xb8] sm:$0xff]
        %v1159 = vld [vmem:[#allocation2 + $0xc0] sm:$0xff]
        %v1160 = vld [vmem:[#allocation2 + $0xc8] sm:$0xff]
        %v1161 = vld [vmem:[#allocation2 + $0xd0] sm:$0xff]
        %v1162 = vld [vmem:[#allocation2 + $0xd8] sm:$0xff]
        %v1163 = vld [vmem:[#allocation2 + $0xe0] sm:$0xff]
        %v1164 = vld [vmem:[#allocation2 + $0xe8] sm:$0xff]
        %v1165 = vld [vmem:[#allocation2 + $0xf0] sm:$0xff]
        %v1166 = vld [vmem:[#allocation2 + $0xf8] sm:$0xff]
        %v1167 = vld [vmem:[#allocation2 + $0x100] sm:$0xff]
        %v1168 = vld [vmem:[#allocation2 + $0x108] sm:$0xff]
        %v1169 = vld [vmem:[#allocation2 + $0x110] sm:$0xff]
        %v1170 = vld [vmem:[#allocation2 + $0x118] sm:$0xff]
        %v1171 = vld [vmem:[#allocation2 + $0x120] sm:$0xff]
        %v1172 = vld [vmem:[#allocation2 + $0x128] sm:$0xff]
        %v1173 = vld [vmem:[#allocation2 + $0x130] sm:$0xff]
        %v1174 = vld [vmem:[#allocation2 + $0x138] sm:$0xff]
        %v1175 = vld [vmem:[#allocation2 + $0x140] sm:$0xff]
        %v1176 = vld [vmem:[#allocation2 + $0x148] sm:$0xff]
        %v1177 = vld [vmem:[#allocation2 + $0x150] sm:$0xff]
        %v1178 = vld [vmem:[#allocation2 + $0x158] sm:$0xff]
        %v1179 = vld [vmem:[#allocation2 + $0x160] sm:$0xff]
        %v1180 = vld [vmem:[#allocation2 + $0x168] sm:$0xff]
        %v1181 = vld [vmem:[#allocation2 + $0x170] sm:$0xff]
        %v1182 = vld [vmem:[#allocation2 + $0x178] sm:$0xff]
        %v1183 = vld [vmem:[#allocation2 + $0x180] sm:$0xff]
        %v1184 = vld [vmem:[#allocation2 + $0x188] sm:$0xff]
        %v1185 = vld [vmem:[#allocation2 + $0x190] sm:$0xff]
        %v1186 = vld [vmem:[#allocation2 + $0x198] sm:$0xff]
        %v1187 = vld [vmem:[#allocation2 + $0x1a0] sm:$0xff]
        %v1188 = vld [vmem:[#allocation2 + $0x1a8] sm:$0xff]
        %v1189 = vld [vmem:[#allocation2 + $0x1b0] sm:$0xff]
        %v1190 = vld [vmem:[#allocation2 + $0x1b8] sm:$0xff]
        %v1191 = vld [vmem:[#allocation2 + $0x1c0] sm:$0xff]
        %v1192 = vld [vmem:[#allocation2 + $0x1c8] sm:$0xff]
        %v1193 = vld [vmem:[#allocation2 + $0x1d0] sm:$0xff]
        %v1194 = vld [vmem:[#allocation2 + $0x1d8] sm:$0xff]
        %v1195 = vld [vmem:[#allocation2 + $0x1e0] sm:$0xff]
        %v1196 = vld [vmem:[#allocation2 + $0x1e8] sm:$0xff]
        %v1197 = vld [vmem:[#allocation2 + $0x1f0] sm:$0xff]
        %v1198 = vld [vmem:[#allocation2 + $0x1f8] sm:$0xff]
        %v1199 = vld [vmem:[%s325] sm:$0x1]
        %v1201 = vperm.slane %v1199, 0
        %v1203 = vadd.f32 %v1135, %v1201
        %v1204 = vadd.f32 %v1136, %v1201
        %v1205 = vadd.f32 %v1137, %v1201
        %v1206 = vadd.f32 %v1138, %v1201
        %v1207 = vadd.f32 %v1139, %v1201
        %v1208 = vadd.f32 %v1140, %v1201
        %v1209 = vadd.f32 %v1141, %v1201
        %v1210 = vadd.f32 %v1142, %v1201
        %v1211 = vadd.f32 %v1143, %v1201
        %v1212 = vadd.f32 %v1144, %v1201
        %v1213 = vadd.f32 %v1145, %v1201
        %v1214 = vadd.f32 %v1146, %v1201
        %v1215 = vadd.f32 %v1147, %v1201
        %v1216 = vadd.f32 %v1148, %v1201
        %v1217 = vadd.f32 %v1149, %v1201
        %v1218 = vadd.f32 %v1150, %v1201
        %v1219 = vadd.f32 %v1151, %v1201
        %v1220 = vadd.f32 %v1152, %v1201
        %v1221 = vadd.f32 %v1153, %v1201
        %v1222 = vadd.f32 %v1154, %v1201
        %v1223 = vadd.f32 %v1155, %v1201
        %v1224 = vadd.f32 %v1156, %v1201
        %v1225 = vadd.f32 %v1157, %v1201
        %v1226 = vadd.f32 %v1158, %v1201
        %v1227 = vadd.f32 %v1159, %v1201
        %v1228 = vadd.f32 %v1160, %v1201
        %v1229 = vadd.f32 %v1161, %v1201
        %v1230 = vadd.f32 %v1162, %v1201
        %v1231 = vadd.f32 %v1163, %v1201
        %v1232 = vadd.f32 %v1164, %v1201
        %v1233 = vadd.f32 %v1165, %v1201
        %v1234 = vadd.f32 %v1166, %v1201
        %v1235 = vadd.f32 %v1167, %v1201
        %v1236 = vadd.f32 %v1168, %v1201
        %v1237 = vadd.f32 %v1169, %v1201
        %v1238 = vadd.f32 %v1170, %v1201
        %v1239 = vadd.f32 %v1171, %v1201
        %v1240 = vadd.f32 %v1172, %v1201
        %v1241 = vadd.f32 %v1173, %v1201
        %v1242 = vadd.f32 %v1174, %v1201
        %v1243 = vadd.f32 %v1175, %v1201
        %v1244 = vadd.f32 %v1176, %v1201
        %v1245 = vadd.f32 %v1177, %v1201
        %v1246 = vadd.f32 %v1178, %v1201
        %v1247 = vadd.f32 %v1179, %v1201
        %v1248 = vadd.f32 %v1180, %v1201
        %v1249 = vadd.f32 %v1181, %v1201
        %v1250 = vadd.f32 %v1182, %v1201
        %v1251 = vadd.f32 %v1183, %v1201
        %v1252 = vadd.f32 %v1184, %v1201
        %v1253 = vadd.f32 %v1185, %v1201
        %v1254 = vadd.f32 %v1186, %v1201
        %v1255 = vadd.f32 %v1187, %v1201
        %v1256 = vadd.f32 %v1188, %v1201
        %v1257 = vadd.f32 %v1189, %v1201
        %v1258 = vadd.f32 %v1190, %v1201
        %v1259 = vadd.f32 %v1191, %v1201
        %v1260 = vadd.f32 %v1192, %v1201
        %v1261 = vadd.f32 %v1193, %v1201
        %v1262 = vadd.f32 %v1194, %v1201
        %v1263 = vadd.f32 %v1195, %v1201
        %v1264 = vadd.f32 %v1196, %v1201
        %v1265 = vadd.f32 %v1197, %v1201
        %v1266 = vadd.f32 %v1198, %v1201
        %v1267 = vmax.f32 %v1203, 0.0
        %v1268 = vmax.f32 %v1204, 0.0
        %v1269 = vmax.f32 %v1205, 0.0
        %v1270 = vmax.f32 %v1206, 0.0
        %v1271 = vmax.f32 %v1207, 0.0
        %v1272 = vmax.f32 %v1208, 0.0
        %v1273 = vmax.f32 %v1209, 0.0
        %v1274 = vmax.f32 %v1210, 0.0
        %v1275 = vmax.f32 %v1211, 0.0
        %v1276 = vmax.f32 %v1212, 0.0
        %v1277 = vmax.f32 %v1213, 0.0
        %v1278 = vmax.f32 %v1214, 0.0
        %v1279 = vmax.f32 %v1215, 0.0
        %v1280 = vmax.f32 %v1216, 0.0
        %v1281 = vmax.f32 %v1217, 0.0
        %v1282 = vmax.f32 %v1218, 0.0
        %v1283 = vmax.f32 %v1219, 0.0
        %v1284 = vmax.f32 %v1220, 0.0
        %v1285 = vmax.f32 %v1221, 0.0
        %v1286 = vmax.f32 %v1222, 0.0
        %v1287 = vmax.f32 %v1223, 0.0
        %v1288 = vmax.f32 %v1224, 0.0
        %v1289 = vmax.f32 %v1225, 0.0
        %v1290 = vmax.f32 %v1226, 0.0
        %v1291 = vmax.f32 %v1227, 0.0
        %v1292 = vmax.f32 %v1228, 0.0
        %v1293 = vmax.f32 %v1229, 0.0
        %v1294 = vmax.f32 %v1230, 0.0
        %v1295 = vmax.f32 %v1231, 0.0
        %v1296 = vmax.f32 %v1232, 0.0
        %v1297 = vmax.f32 %v1233, 0.0
        %v1298 = vmax.f32 %v1234, 0.0
        %v1299 = vmax.f32 %v1235, 0.0
        %v1300 = vmax.f32 %v1236, 0.0
        %v1301 = vmax.f32 %v1237, 0.0
        %v1302 = vmax.f32 %v1238, 0.0
        %v1303 = vmax.f32 %v1239, 0.0
        %v1304 = vmax.f32 %v1240, 0.0
        %v1305 = vmax.f32 %v1241, 0.0
        %v1306 = vmax.f32 %v1242, 0.0
        %v1307 = vmax.f32 %v1243, 0.0
        %v1308 = vmax.f32 %v1244, 0.0
        %v1309 = vmax.f32 %v1245, 0.0
        %v1310 = vmax.f32 %v1246, 0.0
        %v1311 = vmax.f32 %v1247, 0.0
        %v1312 = vmax.f32 %v1248, 0.0
        %v1313 = vmax.f32 %v1249, 0.0
        %v1314 = vmax.f32 %v1250, 0.0
        %v1315 = vmax.f32 %v1251, 0.0
        %v1316 = vmax.f32 %v1252, 0.0
        %v1317 = vmax.f32 %v1253, 0.0
        %v1318 = vmax.f32 %v1254, 0.0
        %v1319 = vmax.f32 %v1255, 0.0
        %v1320 = vmax.f32 %v1256, 0.0
        %v1321 = vmax.f32 %v1257, 0.0
        %v1322 = vmax.f32 %v1258, 0.0
        %v1323 = vmax.f32 %v1259, 0.0
        %v1324 = vmax.f32 %v1260, 0.0
        %v1325 = vmax.f32 %v1261, 0.0
        %v1326 = vmax.f32 %v1262, 0.0
        %v1327 = vmax.f32 %v1263, 0.0
        %v1328 = vmax.f32 %v1264, 0.0
        %v1329 = vmax.f32 %v1265, 0.0
        %v1330 = vmax.f32 %v1266, 0.0
        %v1331 = vld [vmem:[%s328] sm:$0x1]
        %v1333 = vperm.slane %v1331, 0
        %v1335 = vmul.f32 %v1267, %v1333
        %v1336 = vmul.f32 %v1268, %v1333
        %v1337 = vmul.f32 %v1269, %v1333
        %v1338 = vmul.f32 %v1270, %v1333
        %v1339 = vmul.f32 %v1271, %v1333
        %v1340 = vmul.f32 %v1272, %v1333
        %v1341 = vmul.f32 %v1273, %v1333
        %v1342 = vmul.f32 %v1274, %v1333
        %v1343 = vmul.f32 %v1275, %v1333
        %v1344 = vmul.f32 %v1276, %v1333
        %v1345 = vmul.f32 %v1277, %v1333
        %v1346 = vmul.f32 %v1278, %v1333
        %v1347 = vmul.f32 %v1279, %v1333
        %v1348 = vmul.f32 %v1280, %v1333
        %v1349 = vmul.f32 %v1281, %v1333
        %v1350 = vmul.f32 %v1282, %v1333
        %v1351 = vmul.f32 %v1283, %v1333
        %v1352 = vmul.f32 %v1284, %v1333
        %v1353 = vmul.f32 %v1285, %v1333
        %v1354 = vmul.f32 %v1286, %v1333
        %v1355 = vmul.f32 %v1287, %v1333
        %v1356 = vmul.f32 %v1288, %v1333
        %v1357 = vmul.f32 %v1289, %v1333
        %v1358 = vmul.f32 %v1290, %v1333
        %v1359 = vmul.f32 %v1291, %v1333
        %v1360 = vmul.f32 %v1292, %v1333
        %v1361 = vmul.f32 %v1293, %v1333
        %v1362 = vmul.f32 %v1294, %v1333
        %v1363 = vmul.f32 %v1295, %v1333
        %v1364 = vmul.f32 %v1296, %v1333
        %v1365 = vmul.f32 %v1297, %v1333
        %v1366 = vmul.f32 %v1298, %v1333
        %v1367 = vmul.f32 %v1299, %v1333
        %v1368 = vmul.f32 %v1300, %v1333
        %v1369 = vmul.f32 %v1301, %v1333
        %v1370 = vmul.f32 %v1302, %v1333
        %v1371 = vmul.f32 %v1303, %v1333
        %v1372 = vmul.f32 %v1304, %v1333
        %v1373 = vmul.f32 %v1305, %v1333
        %v1374 = vmul.f32 %v1306, %v1333
        %v1375 = vmul.f32 %v1307, %v1333
        %v1376 = vmul.f32 %v1308, %v1333
        %v1377 = vmul.f32 %v1309, %v1333
        %v1378 = vmul.f32 %v1310, %v1333
        %v1379 = vmul.f32 %v1311, %v1333
        %v1380 = vmul.f32 %v1312, %v1333
        %v1381 = vmul.f32 %v1313, %v1333
        %v1382 = vmul.f32 %v1314, %v1333
        %v1383 = vmul.f32 %v1315, %v1333
        %v1384 = vmul.f32 %v1316, %v1333
        %v1385 = vmul.f32 %v1317, %v1333
        %v1386 = vmul.f32 %v1318, %v1333
        %v1387 = vmul.f32 %v1319, %v1333
        %v1388 = vmul.f32 %v1320, %v1333
        %v1389 = vmul.f32 %v1321, %v1333
        %v1390 = vmul.f32 %v1322, %v1333
        %v1391 = vmul.f32 %v1323, %v1333
        %v1392 = vmul.f32 %v1324, %v1333
        %v1393 = vmul.f32 %v1325, %v1333
        %v1394 = vmul.f32 %v1326, %v1333
        %v1395 = vmul.f32 %v1327, %v1333
        %v1396 = vmul.f32 %v1328, %v1333
        %v1397 = vmul.f32 %v1329, %v1333
        %v1398 = vmul.f32 %v1330, %v1333
        %v1399 = vld [vmem:[%s331] sm:$0x1]
        %v1401 = vperm.slane %v1399, 0
        %v1403 = vadd.f32 %v1335, %v1401
        %v1404 = vadd.f32 %v1336, %v1401
        %v1405 = vadd.f32 %v1337, %v1401
        %v1406 = vadd.f32 %v1338, %v1401
        %v1407 = vadd.f32 %v1339, %v1401
        %v1408 = vadd.f32 %v1340, %v1401
        %v1409 = vadd.f32 %v1341, %v1401
        %v1410 = vadd.f32 %v1342, %v1401
        %v1411 = vadd.f32 %v1343, %v1401
        %v1412 = vadd.f32 %v1344, %v1401
        %v1413 = vadd.f32 %v1345, %v1401
        %v1414 = vadd.f32 %v1346, %v1401
        %v1415 = vadd.f32 %v1347, %v1401
        %v1416 = vadd.f32 %v1348, %v1401
        %v1417 = vadd.f32 %v1349, %v1401
        %v1418 = vadd.f32 %v1350, %v1401
        %v1419 = vadd.f32 %v1351, %v1401
        %v1420 = vadd.f32 %v1352, %v1401
        %v1421 = vadd.f32 %v1353, %v1401
        %v1422 = vadd.f32 %v1354, %v1401
        %v1423 = vadd.f32 %v1355, %v1401
        %v1424 = vadd.f32 %v1356, %v1401
        %v1425 = vadd.f32 %v1357, %v1401
        %v1426 = vadd.f32 %v1358, %v1401
        %v1427 = vadd.f32 %v1359, %v1401
        %v1428 = vadd.f32 %v1360, %v1401
        %v1429 = vadd.f32 %v1361, %v1401
        %v1430 = vadd.f32 %v1362, %v1401
        %v1431 = vadd.f32 %v1363, %v1401
        %v1432 = vadd.f32 %v1364, %v1401
        %v1433 = vadd.f32 %v1365, %v1401
        %v1434 = vadd.f32 %v1366, %v1401
        %v1435 = vadd.f32 %v1367, %v1401
        %v1436 = vadd.f32 %v1368, %v1401
        %v1437 = vadd.f32 %v1369, %v1401
        %v1438 = vadd.f32 %v1370, %v1401
        %v1439 = vadd.f32 %v1371, %v1401
        %v1440 = vadd.f32 %v1372, %v1401
        %v1441 = vadd.f32 %v1373, %v1401
        %v1442 = vadd.f32 %v1374, %v1401
        %v1443 = vadd.f32 %v1375, %v1401
        %v1444 = vadd.f32 %v1376, %v1401
        %v1445 = vadd.f32 %v1377, %v1401
        %v1446 = vadd.f32 %v1378, %v1401
        %v1447 = vadd.f32 %v1379, %v1401
        %v1448 = vadd.f32 %v1380, %v1401
        %v1449 = vadd.f32 %v1381, %v1401
        %v1450 = vadd.f32 %v1382, %v1401
        %v1451 = vadd.f32 %v1383, %v1401
        %v1452 = vadd.f32 %v1384, %v1401
        %v1453 = vadd.f32 %v1385, %v1401
        %v1454 = vadd.f32 %v1386, %v1401
        %v1455 = vadd.f32 %v1387, %v1401
        %v1456 = vadd.f32 %v1388, %v1401
        %v1457 = vadd.f32 %v1389, %v1401
        %v1458 = vadd.f32 %v1390, %v1401
        %v1459 = vadd.f32 %v1391, %v1401
        %v1460 = vadd.f32 %v1392, %v1401
        %v1461 = vadd.f32 %v1393, %v1401
        %v1462 = vadd.f32 %v1394, %v1401
        %v1463 = vadd.f32 %v1395, %v1401
        %v1464 = vadd.f32 %v1396, %v1401
        %v1465 = vadd.f32 %v1397, %v1401
        %v1466 = vadd.f32 %v1398, %v1401
        %1467 = vst [vmem:[%s339] sm:$0xff] %v1403
        %1468 = vst [vmem:[%s339 + $0x8] sm:$0xff] %v1404
        %1469 = vst [vmem:[%s339 + $0x10] sm:$0xff] %v1405
        %1470 = vst [vmem:[%s339 + $0x18] sm:$0xff] %v1406
        %1471 = vst [vmem:[%s339 + $0x20] sm:$0xff] %v1407
        %1472 = vst [vmem:[%s339 + $0x28] sm:$0xff] %v1408
        %1473 = vst [vmem:[%s339 + $0x30] sm:$0xff] %v1409
        %1474 = vst [vmem:[%s339 + $0x38] sm:$0xff] %v1410
        %1475 = vst [vmem:[%s339 + $0x40] sm:$0xff] %v1411
        %1476 = vst [vmem:[%s339 + $0x48] sm:$0xff] %v1412
        %1477 = vst [vmem:[%s339 + $0x50] sm:$0xff] %v1413
        %1478 = vst [vmem:[%s339 + $0x58] sm:$0xff] %v1414
        %1479 = vst [vmem:[%s339 + $0x60] sm:$0xff] %v1415
        %1480 = vst [vmem:[%s339 + $0x68] sm:$0xff] %v1416
        %1481 = vst [vmem:[%s339 + $0x70] sm:$0xff] %v1417
        %1482 = vst [vmem:[%s339 + $0x78] sm:$0xff] %v1418
        %1483 = vst [vmem:[%s339 + $0x80] sm:$0xff] %v1419
        %1484 = vst [vmem:[%s339 + $0x88] sm:$0xff] %v1420
        %1485 = vst [vmem:[%s339 + $0x90] sm:$0xff] %v1421
        %1486 = vst [vmem:[%s339 + $0x98] sm:$0xff] %v1422
        %1487 = vst [vmem:[%s339 + $0xa0] sm:$0xff] %v1423
        %1488 = vst [vmem:[%s339 + $0xa8] sm:$0xff] %v1424
        %1489 = vst [vmem:[%s339 + $0xb0] sm:$0xff] %v1425
        %1490 = vst [vmem:[%s339 + $0xb8] sm:$0xff] %v1426
        %1491 = vst [vmem:[%s339 + $0xc0] sm:$0xff] %v1427
        %1492 = vst [vmem:[%s339 + $0xc8] sm:$0xff] %v1428
        %1493 = vst [vmem:[%s339 + $0xd0] sm:$0xff] %v1429
        %1494 = vst [vmem:[%s339 + $0xd8] sm:$0xff] %v1430
        %1495 = vst [vmem:[%s339 + $0xe0] sm:$0xff] %v1431
        %1496 = vst [vmem:[%s339 + $0xe8] sm:$0xff] %v1432
        %1497 = vst [vmem:[%s339 + $0xf0] sm:$0xff] %v1433
        %1498 = vst [vmem:[%s339 + $0xf8] sm:$0xff] %v1434
        %1499 = vst [vmem:[%s339 + $0x100] sm:$0xff] %v1435
        %1500 = vst [vmem:[%s339 + $0x108] sm:$0xff] %v1436
        %1501 = vst [vmem:[%s339 + $0x110] sm:$0xff] %v1437
        %1502 = vst [vmem:[%s339 + $0x118] sm:$0xff] %v1438
        %1503 = vst [vmem:[%s339 + $0x120] sm:$0xff] %v1439
        %1504 = vst [vmem:[%s339 + $0x128] sm:$0xff] %v1440
        %1505 = vst [vmem:[%s339 + $0x130] sm:$0xff] %v1441
        %1506 = vst [vmem:[%s339 + $0x138] sm:$0xff] %v1442
        %1507 = vst [vmem:[%s339 + $0x140] sm:$0xff] %v1443
        %1508 = vst [vmem:[%s339 + $0x148] sm:$0xff] %v1444
        %1509 = vst [vmem:[%s339 + $0x150] sm:$0xff] %v1445
        %1510 = vst [vmem:[%s339 + $0x158] sm:$0xff] %v1446
        %1511 = vst [vmem:[%s339 + $0x160] sm:$0xff] %v1447
        %1512 = vst [vmem:[%s339 + $0x168] sm:$0xff] %v1448
        %1513 = vst [vmem:[%s339 + $0x170] sm:$0xff] %v1449
        %1514 = vst [vmem:[%s339 + $0x178] sm:$0xff] %v1450
        %1515 = vst [vmem:[%s339 + $0x180] sm:$0xff] %v1451
        %1516 = vst [vmem:[%s339 + $0x188] sm:$0xff] %v1452
        %1517 = vst [vmem:[%s339 + $0x190] sm:$0xff] %v1453
        %1518 = vst [vmem:[%s339 + $0x198] sm:$0xff] %v1454
        %1519 = vst [vmem:[%s339 + $0x1a0] sm:$0xff] %v1455
        %1520 = vst [vmem:[%s339 + $0x1a8] sm:$0xff] %v1456
        %1521 = vst [vmem:[%s339 + $0x1b0] sm:$0xff] %v1457
        %1522 = vst [vmem:[%s339 + $0x1b8] sm:$0xff] %v1458
        %1523 = vst [vmem:[%s339 + $0x1c0] sm:$0xff] %v1459
        %1524 = vst [vmem:[%s339 + $0x1c8] sm:$0xff] %v1460
        %1525 = vst [vmem:[%s339 + $0x1d0] sm:$0xff] %v1461
        %1526 = vst [vmem:[%s339 + $0x1d8] sm:$0xff] %v1462
        %1527 = vst [vmem:[%s339 + $0x1e0] sm:$0xff] %v1463
        %1528 = vst [vmem:[%s339 + $0x1e8] sm:$0xff] %v1464
        %1529 = vst [vmem:[%s339 + $0x1f0] sm:$0xff] %v1465
        %1530 = vst [vmem:[%s339 + $0x1f8] sm:$0xff] %v1466
      $region48: #{_lambda_.8} parent=39 // pred_fallthru
        _
      %s1531 = smul.u32 64, %s21
      %p1532 = scmp.lt.s32.totalorder %s1531, 127
      %s1533 = scalar_select %p1532, %s1531, 127
      %p1534 = scmp.lt.s32.totalorder %s22, 0
      %s1535 = scalar_select %p1534, %s22, 0
      %s1536 = sadd.s32 %s1535, %s1533
      %s1537 = smul.addr %s1536, 8
      %s1538 = scalar_lea.vmem %s5, %s1537
      // Predicated region
      $region49: #{_lambda_.8} parent=39 // pred_check
        %p1539 = pneg %p189
      $region50: #{_lambda_.8} parent=39 // pred_check_branch
        %1541 = sbr.rel (%p1539) target = $region52
      $region51: #{_lambda_.8} parent=39 // pred_region
        %s1542 = smul.u32 64, %s21
      $region52: #{_lambda_.8} parent=39 // pred_fallthru
        _
    $region40: #{_lambda_.8} parent=5 // pred_fallthru
      _
    %p1543 = scmp.le.s32.totalorder 2, %s11
    // Predicated region
    $region53: #{_lambda_.8} parent=5 // pred_check
      %p1544 = pneg %p1543
    $region54: #{_lambda_.8} parent=5 // pred_check_branch
      %1546 = sbr.rel (%p1544) target = $region56
    $region55: #{_lambda_.8} parent=5 // pred_region
      %s1547 = ssub.s32 %s11, 2
      // Predicated region
      $region57: #{_lambda_.8} parent=55 // pred_check
        %p1548 = pneg %p195
      $region58: #{_lambda_.8} parent=55 // pred_check_branch
        %1550 = sbr.rel (%p1548) target = $region60
      $region59: #{_lambda_.8} parent=55 // pred_region
        %s1551 = smul.u32 64, %s24
        %p1552 = scmp.lt.s32.totalorder %s1551, 127
        %s1553 = scalar_select %p1552, %s1551, 127
        %p1554 = scmp.lt.s32.totalorder %s25, 0
        %s1555 = scalar_select %p1554, %s25, 0
        %s1556 = sadd.s32 %s1555, %s1553
        %s1557 = smul.addr %s1556, 8
        %s1558 = scalar_lea.vmem %s5, %s1557
      $region60: #{_lambda_.8} parent=55 // pred_fallthru
        _
    $region56: #{_lambda_.8} parent=5 // pred_fallthru
      _
  $region6: #{_lambda_.8} parent=0 // loop_footer
    %s15 = sadd.s32 1, %s11
  $region7: #{_lambda_.8} parent=0 // loop_footer_branch
    %10 = sbr.rel target = $region3
  $region8: #{_lambda_.8} parent=0 // loop_exit
    _

// kernel: _lambda_.10
$region0: #{_lambda_.10}
  #allocation0 [shape = 'u32[]', space=smem, size = 0x4, offset = 0x4, fixed_abs, tag = 'smem constant byte address 0x4 - core index']
  #allocation1 [shape = 'u32[72,128]{1,0:T(1,128)}', space=vmem, size = 0x9000, scoped, tag = 'internal scratch']
  #allocation2 [shape = 'f32[8,256]{1,0:T(8,128)}', space=vmem, size = 0x2000, scoped, tag = 'scratch operand']
  %s0 = inlined_call_operand.vmem [shape: bf16[8,504], index: 0, kind: input, shape index: {}]
  %s1 = inlined_call_operand.vmem [shape: bf16[504,512], index: 1, kind: input, shape index: {}]
  %s2 = inlined_call_operand.vmem [shape: f32[1,512], index: 2, kind: input, shape index: {}]
  %s3 = inlined_call_operand.vmem [shape: f32[8,512], index: 3, kind: output, shape index: {}]
  %s4 = sld [smem:[#allocation0]]
  $region91: #{_lambda_.10} parent=0
    _
  %s6 = ssub.s32 1, %s4
  %s7 = scalar_select 0, %s6, %s4
  $region1: #{_lambda_.10} parent=0
    #allocation3 [shape = 'u8[516096]{0}', space=vmem, size = 0x7e000, scoped, tag = 'input window, operand 1']
    loop: start=0, step=1, limit=4
    $region2: #{_lambda_.10} parent=1 // loop_pre_header
      _
    $region3: #{_lambda_.10} parent=1 // loop_header
      %s9 = sphi 0, %s13
      %p10 = scmp.ge.s32.totalorder %s9, 4
      %s16 = sphi 0, %s35
      %s17 = sphi 0, %s31
      %s18 = sphi 0, %s27
      %s19 = sphi 0, %s16
      %s20 = sphi 0, %s17
      %s21 = sphi 0, %s18
      %s22 = sphi 0, %s19
      %s23 = sphi 0, %s20
      %s24 = sphi 0, %s21
      %s40 = sphi 0, %s42
      %s43 = sphi 0, %s40
      %s44 = sphi 0, %s43
      %s60 = sphi 0, %s44
      %s68 = sphi 0, %s70
      %s71 = sphi 0, %s68
      %s72 = sphi 0, %s71
      %s88 = sphi 0, %s72
      %s94 = sphi 0, %s96
      %s97 = sphi 0, %s94
      %s98 = sphi 0, %s97
      %s114 = sphi 0, %s98
      %s122 = sphi 0, %s124
      %s125 = sphi 0, %s122
      %s126 = sphi 0, %s125
      %s142 = sphi 0, %s126
    $region4: #{_lambda_.10} parent=1 // loop_header_branch
      %12 = sbr.rel (%p10) target = $region8
    $region5: #{_lambda_.10} parent=1 // loop_body
      %s14 = ssub.s32 %s9, 1
      %s15 = ssub.s32 %s9, 2
      %s25 = sadd.s32 1, %s18
      %p26 = scmp.ge.s32.totalorder %s25, 1
      %s27 = scalar_select %p26, 0, %s25
      %s28 = sadd.s32 1, %s17
      %s29 = scalar_select %p26, %s28, %s17
      %p30 = scmp.ge.s32.totalorder %s29, 2
      %s31 = scalar_select %p30, 0, %s29
      %s32 = sadd.s32 1, %s16
      %s33 = scalar_select %p30, %s32, %s16
      %p34 = scmp.ge.s32.totalorder %s33, 1
      %s35 = scalar_select %p34, 0, %s33
      %s36 = ssub.s32 %s16, %s35
      %s37 = ssub.s32 %s18, %s27
      %s38 = sor.u32 %s36, %s37
      %p39 = scmp.eq.s32.totalorder %s38, 0
      %s41 = sadd.s32 %s40, 1
      %s42 = scalar_select %p39, %s40, %s41
      %p45 = pneg %p39
      %p46 = scmp.eq.s32.totalorder %s9, 1
      %p47 = por %p45, %p46
      %p48 = scmp.ne.s32.totalorder %s40, %s43
      %p49 = scmp.eq.s32.totalorder %s9, 0
      %p50 = por %p48, %p49
      %p51 = scmp.ne.s32.totalorder %s40, %s43
      %p52 = scmp.eq.s32.totalorder %s14, 1
      %p53 = por %p51, %p52
      %p54 = scmp.ne.s32.totalorder %s43, %s44
      %p55 = scmp.eq.s32.totalorder %s14, 0
      %p56 = por %p54, %p55
      %p57 = scmp.ne.s32.totalorder %s43, %s44
      %p58 = scmp.eq.s32.totalorder %s15, 1
      %p59 = por %p57, %p58
      %p61 = scmp.ne.s32.totalorder %s44, %s60
      %p62 = scmp.eq.s32.totalorder %s15, 0
      %p63 = por %p61, %p62
      %s64 = ssub.s32 %s18, %s27
      %s65 = ssub.s32 %s17, %s31
      %s66 = sor.u32 %s64, %s65
      %p67 = scmp.eq.s32.totalorder %s66, 0
      %s69 = sadd.s32 %s68, 1
      %s70 = scalar_select %p67, %s68, %s69
      %p73 = pneg %p67
      %p74 = scmp.eq.s32.totalorder %s9, 1
      %p75 = por %p73, %p74
      %p76 = scmp.ne.s32.totalorder %s68, %s71
      %p77 = scmp.eq.s32.totalorder %s9, 0
      %p78 = por %p76, %p77
      %p79 = scmp.ne.s32.totalorder %s68, %s71
      %p80 = scmp.eq.s32.totalorder %s14, 1
      %p81 = por %p79, %p80
      %p82 = scmp.ne.s32.totalorder %s71, %s72
      %p83 = scmp.eq.s32.totalorder %s14, 0
      %p84 = por %p82, %p83
      %p85 = scmp.ne.s32.totalorder %s71, %s72
      %p86 = scmp.eq.s32.totalorder %s15, 1
      %p87 = por %p85, %p86
      %p89 = scmp.ne.s32.totalorder %s72, %s88
      %p90 = scmp.eq.s32.totalorder %s15, 0
      %p91 = por %p89, %p90
      %s92 = ssub.s32 %s17, %s31
      %p93 = scmp.eq.s32.totalorder %s92, 0
      %s95 = sadd.s32 %s94, 1
      %s96 = scalar_select %p93, %s94, %s95
      %p99 = pneg %p93
      %p100 = scmp.eq.s32.totalorder %s9, 1
      %p101 = por %p99, %p100
      %p102 = scmp.ne.s32.totalorder %s94, %s97
      %p103 = scmp.eq.s32.totalorder %s9, 0
      %p104 = por %p102, %p103
      %p105 = scmp.ne.s32.totalorder %s94, %s97
      %p106 = scmp.eq.s32.totalorder %s14, 1
      %p107 = por %p105, %p106
      %p108 = scmp.ne.s32.totalorder %s97, %s98
      %p109 = scmp.eq.s32.totalorder %s14, 0
      %p110 = por %p108, %p109
      %p111 = scmp.ne.s32.totalorder %s97, %s98
      %p112 = scmp.eq.s32.totalorder %s15, 1
      %p113 = por %p111, %p112
      %p115 = scmp.ne.s32.totalorder %s98, %s114
      %p116 = scmp.eq.s32.totalorder %s15, 0
      %p117 = por %p115, %p116
      %s118 = ssub.s32 %s16, %s35
      %s119 = ssub.s32 %s17, %s31
      %s120 = sor.u32 %s118, %s119
      %p121 = scmp.eq.s32.totalorder %s120, 0
      %s123 = sadd.s32 %s122, 1
      %s124 = scalar_select %p121, %s122, %s123
      %p127 = pneg %p121
      %p128 = scmp.eq.s32.totalorder %s9, 1
      %p129 = por %p127, %p128
      %p130 = scmp.ne.s32.totalorder %s122, %s125
      %p131 = scmp.eq.s32.totalorder %s9, 0
      %p132 = por %p130, %p131
      %p133 = scmp.ne.s32.totalorder %s122, %s125
      %p134 = scmp.eq.s32.totalorder %s14, 1
      %p135 = por %p133, %p134
      %p136 = scmp.ne.s32.totalorder %s125, %s126
      %p137 = scmp.eq.s32.totalorder %s14, 0
      %p138 = por %p136, %p137
      %p139 = scmp.ne.s32.totalorder %s125, %s126
      %p140 = scmp.eq.s32.totalorder %s15, 1
      %p141 = por %p139, %p140
      %p143 = scmp.ne.s32.totalorder %s126, %s142
      %p144 = scmp.eq.s32.totalorder %s15, 0
      %p145 = por %p143, %p144
      %p146 = scmp.le.s32.totalorder 1, %s9
      %p147 = scmp.lt.s32.totalorder %s9, 3
      %p148 = pnand %p146, %p147
      %p149 = pneg %p148
      // Predicated region
      $region9: #{_lambda_.10} parent=5 // pred_check
        _
      $region10: #{_lambda_.10} parent=5 // pred_check_branch
        %151 = sbr.rel (%p148) target = $region12
      $region11: #{_lambda_.10} parent=5 // pred_region
        %s152 = ssub.s32 %s9, 1
        // Predicated region
        $region13: #{_lambda_.10} parent=11 // pred_check
          %p153 = pneg %p56
        $region14: #{_lambda_.10} parent=11 // pred_check_branch
          %155 = sbr.rel (%p153) target = $region16
        $region15: #{_lambda_.10} parent=11 // pred_region
          %s156 = smul.u32 4, %s21
          %p157 = scmp.lt.s32.totalorder %s19, 0
          %s158 = scalar_select %p157, %s19, 0
          %p159 = scmp.lt.s32.totalorder %s156, 3
          %s160 = scalar_select %p159, %s156, 3
          %s161 = smul.addr %s158, 4
          %s162 = sadd.s32 %s160, %s161
          %s163 = smul.addr %s162, 4
          %s164 = scalar_lea.vmem %s0, %s163
          %s165 = smul.u32 4, %s21
        $region16: #{_lambda_.10} parent=11 // pred_fallthru
          _
      $region12: #{_lambda_.10} parent=5 // pred_fallthru
        _
      %p166 = scmp.lt.s32.totalorder %s9, 2
      // Predicated region
      $region17: #{_lambda_.10} parent=5 // pred_check
        %p167 = pneg %p166
      $region18: #{_lambda_.10} parent=5 // pred_check_branch
        %169 = sbr.rel (%p167) target = $region20
      $region19: #{_lambda_.10} parent=5 // pred_region
        // Predicated region
        $region21: #{_lambda_.10} parent=19 // pred_check
          %p170 = pneg %p78
        $region22: #{_lambda_.10} parent=19 // pred_check_branch
          %172 = sbr.rel (%p170) target = $region24
        $region23: #{_lambda_.10} parent=19 // pred_region
          %s173 = sand.u32 %s68, 1
          %s174 = sand.u32 %s68, 1
          %s175 = smul.addr %s174, 504
          %s176 = scalar_lea.vmem [#allocation3], %s175
          %s177 = smul.u32 63, %s18
          %s178 = smul.u32 2, %s17
          %s179 = smul.addr %s177, 4
          %s180 = sadd.s32 %s178, %s179
          %s181 = smul.addr %s180, 4
          %s182 = scalar_lea.vmem %s1, %s181
          // Predicated region
          $region25: #{_lambda_.10} parent=23 // pred_check
            _
          $region26: #{_lambda_.10} parent=23 // pred_check_branch
            %184 = sbr.rel (0) target = $region28
          $region27: #{_lambda_.10} parent=23 // pred_region
            // Predicated region
            $region29: #{_lambda_.10} parent=27 // pred_check
              _
            $region30: #{_lambda_.10} parent=27 // pred_check_branch
              %186 = sbr.rel (0) target = $region32
            $region31: #{_lambda_.10} parent=27 // pred_region
              // Predicated region
              $region44: #{_lambda_.10} parent=31 // pred_check
                _
              $region45: #{_lambda_.10} parent=31 // pred_check_branch
                %326 = sbr.rel (0) target = $region47
              $region46: #{_lambda_.10} parent=31 // pred_region
                loop: start=0, step=1, limit=1
                $region48: #{_lambda_.10} parent=46 // loop_pre_header
                  _
                $region49: #{_lambda_.10} parent=46 // loop_header
                  %s328 = sphi 0, %s332
                  %p329 = scmp.ge.s32.totalorder %s328, 1
                  %s333 = sphi %s182, %s182
                  %s334 = sphi %s176, %s176
                $region50: #{_lambda_.10} parent=46 // loop_header_branch
                  %331 = sbr.rel (%p329) target = $region54
                $region51: #{_lambda_.10} parent=46 // loop_body
                  %v335 = vld [vmem:[%s333] sm:$0xff]
                  %336 = vst [vmem:[%s334] sm:$0xff] %v335
                  %v337 = vld [vmem:[%s333 + $0x10] sm:$0xff]
                  %338 = vst [vmem:[%s334 + $0x8] sm:$0xff] %v337
                  %v339 = vld [vmem:[%s333 + $0x20] sm:$0xff]
                  %340 = vst [vmem:[%s334 + $0x10] sm:$0xff] %v339
                  %v341 = vld [vmem:[%s333 + $0x30] sm:$0xff]
                  %342 = vst [vmem:[%s334 + $0x18] sm:$0xff] %v341
                  %v343 = vld [vmem:[%s333 + $0x40] sm:$0xff]
                  %344 = vst [vmem:[%s334 + $0x20] sm:$0xff] %v343
                  %v345 = vld [vmem:[%s333 + $0x50] sm:$0xff]
                  %346 = vst [vmem:[%s334 + $0x28] sm:$0xff] %v345
                  %v347 = vld [vmem:[%s333 + $0x60] sm:$0xff]
                  %348 = vst [vmem:[%s334 + $0x30] sm:$0xff] %v347
                  %v349 = vld [vmem:[%s333 + $0x70] sm:$0xff]
                  %350 = vst [vmem:[%s334 + $0x38] sm:$0xff] %v349
                  %v351 = vld [vmem:[%s333 + $0x80] sm:$0xff]
                  %352 = vst [vmem:[%s334 + $0x40] sm:$0xff] %v351
                  %v353 = vld [vmem:[%s333 + $0x90] sm:$0xff]
                  %354 = vst [vmem:[%s334 + $0x48] sm:$0xff] %v353
                  %v355 = vld [vmem:[%s333 + $0xa0] sm:$0xff]
                  %356 = vst [vmem:[%s334 + $0x50] sm:$0xff] %v355
                  %v357 = vld [vmem:[%s333 + $0xb0] sm:$0xff]
                  %358 = vst [vmem:[%s334 + $0x58] sm:$0xff] %v357
                  %v359 = vld [vmem:[%s333 + $0xc0] sm:$0xff]
                  %360 = vst [vmem:[%s334 + $0x60] sm:$0xff] %v359
                  %v361 = vld [vmem:[%s333 + $0xd0] sm:$0xff]
                  %362 = vst [vmem:[%s334 + $0x68] sm:$0xff] %v361
                  %v363 = vld [vmem:[%s333 + $0xe0] sm:$0xff]
                  %364 = vst [vmem:[%s334 + $0x70] sm:$0xff] %v363
                  %v365 = vld [vmem:[%s333 + $0xf0] sm:$0xff]
                  %366 = vst [vmem:[%s334 + $0x78] sm:$0xff] %v365
                  %v367 = vld [vmem:[%s333 + $0x100] sm:$0xff]
                  %368 = vst [vmem:[%s334 + $0x80] sm:$0xff] %v367
                  %v369 = vld [vmem:[%s333 + $0x110] sm:$0xff]
                  %370 = vst [vmem:[%s334 + $0x88] sm:$0xff] %v369
                  %v371 = vld [vmem:[%s333 + $0x120] sm:$0xff]
                  %372 = vst [vmem:[%s334 + $0x90] sm:$0xff] %v371
                  %v373 = vld [vmem:[%s333 + $0x130] sm:$0xff]
                  %374 = vst [vmem:[%s334 + $0x98] sm:$0xff] %v373
                  %v375 = vld [vmem:[%s333 + $0x140] sm:$0xff]
                  %376 = vst [vmem:[%s334 + $0xa0] sm:$0xff] %v375
                  %v377 = vld [vmem:[%s333 + $0x150] sm:$0xff]
                  %378 = vst [vmem:[%s334 + $0xa8] sm:$0xff] %v377
                  %v379 = vld [vmem:[%s333 + $0x160] sm:$0xff]
                  %380 = vst [vmem:[%s334 + $0xb0] sm:$0xff] %v379
                  %v381 = vld [vmem:[%s333 + $0x170] sm:$0xff]
                  %382 = vst [vmem:[%s334 + $0xb8] sm:$0xff] %v381
                  %v383 = vld [vmem:[%s333 + $0x180] sm:$0xff]
                  %384 = vst [vmem:[%s334 + $0xc0] sm:$0xff] %v383
                  %v385 = vld [vmem:[%s333 + $0x190] sm:$0xff]
                  %386 = vst [vmem:[%s334 + $0xc8] sm:$0xff] %v385
                  %v387 = vld [vmem:[%s333 + $0x1a0] sm:$0xff]
                  %388 = vst [vmem:[%s334 + $0xd0] sm:$0xff] %v387
                  %v389 = vld [vmem:[%s333 + $0x1b0] sm:$0xff]
                  %390 = vst [vmem:[%s334 + $0xd8] sm:$0xff] %v389
                  %v391 = vld [vmem:[%s333 + $0x1c0] sm:$0xff]
                  %392 = vst [vmem:[%s334 + $0xe0] sm:$0xff] %v391
                  %v393 = vld [vmem:[%s333 + $0x1d0] sm:$0xff]
                  %394 = vst [vmem:[%s334 + $0xe8] sm:$0xff] %v393
                  %v395 = vld [vmem:[%s333 + $0x1e0] sm:$0xff]
                  %396 = vst [vmem:[%s334 + $0xf0] sm:$0xff] %v395
                  %v397 = vld [vmem:[%s333 + $0x1f0] sm:$0xff]
                  %398 = vst [vmem:[%s334 + $0xf8] sm:$0xff] %v397
                  %v399 = vld [vmem:[%s333 + $0x200] sm:$0xff]
                  %400 = vst [vmem:[%s334 + $0x100] sm:$0xff] %v399
                  %v401 = vld [vmem:[%s333 + $0x210] sm:$0xff]
                  %402 = vst [vmem:[%s334 + $0x108] sm:$0xff] %v401
                  %v403 = vld [vmem:[%s333 + $0x220] sm:$0xff]
                  %404 = vst [vmem:[%s334 + $0x110] sm:$0xff] %v403
                  %v405 = vld [vmem:[%s333 + $0x230] sm:$0xff]
                  %406 = vst [vmem:[%s334 + $0x118] sm:$0xff] %v405
                  %v407 = vld [vmem:[%s333 + $0x240] sm:$0xff]
                  %408 = vst [vmem:[%s334 + $0x120] sm:$0xff] %v407
                  %v409 = vld [vmem:[%s333 + $0x250] sm:$0xff]
                  %410 = vst [vmem:[%s334 + $0x128] sm:$0xff] %v409
                  %v411 = vld [vmem:[%s333 + $0x260] sm:$0xff]
                  %412 = vst [vmem:[%s334 + $0x130] sm:$0xff] %v411
                  %v413 = vld [vmem:[%s333 + $0x270] sm:$0xff]
                  %414 = vst [vmem:[%s334 + $0x138] sm:$0xff] %v413
                  %v415 = vld [vmem:[%s333 + $0x280] sm:$0xff]
                  %416 = vst [vmem:[%s334 + $0x140] sm:$0xff] %v415
                  %v417 = vld [vmem:[%s333 + $0x290] sm:$0xff]
                  %418 = vst [vmem:[%s334 + $0x148] sm:$0xff] %v417
                  %v419 = vld [vmem:[%s333 + $0x2a0] sm:$0xff]
                  %420 = vst [vmem:[%s334 + $0x150] sm:$0xff] %v419
                  %v421 = vld [vmem:[%s333 + $0x2b0] sm:$0xff]
                  %422 = vst [vmem:[%s334 + $0x158] sm:$0xff] %v421
                  %v423 = vld [vmem:[%s333 + $0x2c0] sm:$0xff]
                  %424 = vst [vmem:[%s334 + $0x160] sm:$0xff] %v423
                  %v425 = vld [vmem:[%s333 + $0x2d0] sm:$0xff]
                  %426 = vst [vmem:[%s334 + $0x168] sm:$0xff] %v425
                  %v427 = vld [vmem:[%s333 + $0x2e0] sm:$0xff]
                  %428 = vst [vmem:[%s334 + $0x170] sm:$0xff] %v427
                  %v429 = vld [vmem:[%s333 + $0x2f0] sm:$0xff]
                  %430 = vst [vmem:[%s334 + $0x178] sm:$0xff] %v429
                  %v431 = vld [vmem:[%s333 + $0x300] sm:$0xff]
                  %432 = vst [vmem:[%s334 + $0x180] sm:$0xff] %v431
                  %v433 = vld [vmem:[%s333 + $0x310] sm:$0xff]
                  %434 = vst [vmem:[%s334 + $0x188] sm:$0xff] %v433
                  %v435 = vld [vmem:[%s333 + $0x320] sm:$0xff]
                  %436 = vst [vmem:[%s334 + $0x190] sm:$0xff] %v435
                  %v437 = vld [vmem:[%s333 + $0x330] sm:$0xff]
                  %438 = vst [vmem:[%s334 + $0x198] sm:$0xff] %v437
                  %v439 = vld [vmem:[%s333 + $0x340] sm:$0xff]
                  %440 = vst [vmem:[%s334 + $0x1a0] sm:$0xff] %v439
                  %v441 = vld [vmem:[%s333 + $0x350] sm:$0xff]
                  %442 = vst [vmem:[%s334 + $0x1a8] sm:$0xff] %v441
                  %v443 = vld [vmem:[%s333 + $0x360] sm:$0xff]
                  %444 = vst [vmem:[%s334 + $0x1b0] sm:$0xff] %v443
                  %v445 = vld [vmem:[%s333 + $0x370] sm:$0xff]
                  %446 = vst [vmem:[%s334 + $0x1b8] sm:$0xff] %v445
                  %v447 = vld [vmem:[%s333 + $0x380] sm:$0xff]
                  %448 = vst [vmem:[%s334 + $0x1c0] sm:$0xff] %v447
                  %v449 = vld [vmem:[%s333 + $0x390] sm:$0xff]
                  %450 = vst [vmem:[%s334 + $0x1c8] sm:$0xff] %v449
                  %v451 = vld [vmem:[%s333 + $0x3a0] sm:$0xff]
                  %452 = vst [vmem:[%s334 + $0x1d0] sm:$0xff] %v451
                  %v453 = vld [vmem:[%s333 + $0x3b0] sm:$0xff]
                  %454 = vst [vmem:[%s334 + $0x1d8] sm:$0xff] %v453
                  %v455 = vld [vmem:[%s333 + $0x3c0] sm:$0xff]
                  %456 = vst [vmem:[%s334 + $0x1e0] sm:$0xff] %v455
                  %v457 = vld [vmem:[%s333 + $0x3d0] sm:$0xff]
                  %458 = vst [vmem:[%s334 + $0x1e8] sm:$0xff] %v457
                  %v459 = vld [vmem:[%s333 + $0x3e0] sm:$0xff]
                  %460 = vst [vmem:[%s334 + $0x1f0] sm:$0xff] %v459
                $region52: #{_lambda_.10} parent=46 // loop_footer
                  %s332 = sadd.s32 1, %s328
                $region53: #{_lambda_.10} parent=46 // loop_footer_branch
                  %327 = sbr.rel target = $region49
                $region54: #{_lambda_.10} parent=46 // loop_exit
                  _
              $region47: #{_lambda_.10} parent=31 // pred_fallthru
                _
              // Predicated region
              $region55: #{_lambda_.10} parent=31 // pred_check
                _
              $region56: #{_lambda_.10} parent=31 // pred_check_branch
                %462 = sbr.rel target = $region58
              $region57: #{_lambda_.10} parent=31 // pred_region
                _
              $region58: #{_lambda_.10} parent=31 // pred_fallthru
                _
            $region32: #{_lambda_.10} parent=27 // pred_fallthru
              _
            // Predicated region
            $region33: #{_lambda_.10} parent=27 // pred_check
              _
            $region34: #{_lambda_.10} parent=27 // pred_check_branch
              %188 = sbr.rel target = $region36
            $region35: #{_lambda_.10} parent=27 // pred_region
              %s190 = ssub.s32 256, 1
              loop: start=0, step=1, limit=1
              $region37: #{_lambda_.10} parent=35 // loop_pre_header
                _
              $region38: #{_lambda_.10} parent=35 // loop_header
                %s192 = sphi 0, %s196
                %p193 = scmp.ge.s32.totalorder %s192, 1
                %s197 = sphi %s182, %s182
                %s198 = sphi %s176, %s176
              $region39: #{_lambda_.10} parent=35 // loop_header_branch
                %195 = sbr.rel (%p193) target = $region43
              $region40: #{_lambda_.10} parent=35 // loop_body
                %v199 = vld [vmem:[%s197] sm:%s190]
                %200 = vst [vmem:[%s198] sm:%s190] %v199
                %v201 = vld [vmem:[%s197 + $0x10] sm:%s190]
                %202 = vst [vmem:[%s198 + $0x8] sm:%s190] %v201
                %v203 = vld [vmem:[%s197 + $0x20] sm:%s190]
                %204 = vst [vmem:[%s198 + $0x10] sm:%s190] %v203
                %v205 = vld [vmem:[%s197 + $0x30] sm:%s190]
                %206 = vst [vmem:[%s198 + $0x18] sm:%s190] %v205
                %v207 = vld [vmem:[%s197 + $0x40] sm:%s190]
                %208 = vst [vmem:[%s198 + $0x20] sm:%s190] %v207
                %v209 = vld [vmem:[%s197 + $0x50] sm:%s190]
                %210 = vst [vmem:[%s198 + $0x28] sm:%s190] %v209
                %v211 = vld [vmem:[%s197 + $0x60] sm:%s190]
                %212 = vst [vmem:[%s198 + $0x30] sm:%s190] %v211
                %v213 = vld [vmem:[%s197 + $0x70] sm:%s190]
                %214 = vst [vmem:[%s198 + $0x38] sm:%s190] %v213
                %v215 = vld [vmem:[%s197 + $0x80] sm:%s190]
                %216 = vst [vmem:[%s198 + $0x40] sm:%s190] %v215
                %v217 = vld [vmem:[%s197 + $0x90] sm:%s190]
                %218 = vst [vmem:[%s198 + $0x48] sm:%s190] %v217
                %v219 = vld [vmem:[%s197 + $0xa0] sm:%s190]
                %220 = vst [vmem:[%s198 + $0x50] sm:%s190] %v219
                %v221 = vld [vmem:[%s197 + $0xb0] sm:%s190]
                %222 = vst [vmem:[%s198 + $0x58] sm:%s190] %v221
                %v223 = vld [vmem:[%s197 + $0xc0] sm:%s190]
                %224 = vst [vmem:[%s198 + $0x60] sm:%s190] %v223
                %v225 = vld [vmem:[%s197 + $0xd0] sm:%s190]
                %226 = vst [vmem:[%s198 + $0x68] sm:%s190] %v225
                %v227 = vld [vmem:[%s197 + $0xe0] sm:%s190]
                %228 = vst [vmem:[%s198 + $0x70] sm:%s190] %v227
                %v229 = vld [vmem:[%s197 + $0xf0] sm:%s190]
                %230 = vst [vmem:[%s198 + $0x78] sm:%s190] %v229
                %v231 = vld [vmem:[%s197 + $0x100] sm:%s190]
                %232 = vst [vmem:[%s198 + $0x80] sm:%s190] %v231
                %v233 = vld [vmem:[%s197 + $0x110] sm:%s190]
                %234 = vst [vmem:[%s198 + $0x88] sm:%s190] %v233
                %v235 = vld [vmem:[%s197 + $0x120] sm:%s190]
                %236 = vst [vmem:[%s198 + $0x90] sm:%s190] %v235
                %v237 = vld [vmem:[%s197 + $0x130] sm:%s190]
                %238 = vst [vmem:[%s198 + $0x98] sm:%s190] %v237
                %v239 = vld [vmem:[%s197 + $0x140] sm:%s190]
                %240 = vst [vmem:[%s198 + $0xa0] sm:%s190] %v239
                %v241 = vld [vmem:[%s197 + $0x150] sm:%s190]
                %242 = vst [vmem:[%s198 + $0xa8] sm:%s190] %v241
                %v243 = vld [vmem:[%s197 + $0x160] sm:%s190]
                %244 = vst [vmem:[%s198 + $0xb0] sm:%s190] %v243
                %v245 = vld [vmem:[%s197 + $0x170] sm:%s190]
                %246 = vst [vmem:[%s198 + $0xb8] sm:%s190] %v245
                %v247 = vld [vmem:[%s197 + $0x180] sm:%s190]
                %248 = vst [vmem:[%s198 + $0xc0] sm:%s190] %v247
                %v249 = vld [vmem:[%s197 + $0x190] sm:%s190]
                %250 = vst [vmem:[%s198 + $0xc8] sm:%s190] %v249
                %v251 = vld [vmem:[%s197 + $0x1a0] sm:%s190]
                %252 = vst [vmem:[%s198 + $0xd0] sm:%s190] %v251
                %v253 = vld [vmem:[%s197 + $0x1b0] sm:%s190]
                %254 = vst [vmem:[%s198 + $0xd8] sm:%s190] %v253
                %v255 = vld [vmem:[%s197 + $0x1c0] sm:%s190]
                %256 = vst [vmem:[%s198 + $0xe0] sm:%s190] %v255
                %v257 = vld [vmem:[%s197 + $0x1d0] sm:%s190]
                %258 = vst [vmem:[%s198 + $0xe8] sm:%s190] %v257
                %v259 = vld [vmem:[%s197 + $0x1e0] sm:%s190]
                %260 = vst [vmem:[%s198 + $0xf0] sm:%s190] %v259
                %v261 = vld [vmem:[%s197 + $0x1f0] sm:%s190]
                %262 = vst [vmem:[%s198 + $0xf8] sm:%s190] %v261
                %v263 = vld [vmem:[%s197 + $0x200] sm:%s190]
                %264 = vst [vmem:[%s198 + $0x100] sm:%s190] %v263
                %v265 = vld [vmem:[%s197 + $0x210] sm:%s190]
                %266 = vst [vmem:[%s198 + $0x108] sm:%s190] %v265
                %v267 = vld [vmem:[%s197 + $0x220] sm:%s190]
                %268 = vst [vmem:[%s198 + $0x110] sm:%s190] %v267
                %v269 = vld [vmem:[%s197 + $0x230] sm:%s190]
                %270 = vst [vmem:[%s198 + $0x118] sm:%s190] %v269
                %v271 = vld [vmem:[%s197 + $0x240] sm:%s190]
                %272 = vst [vmem:[%s198 + $0x120] sm:%s190] %v271
                %v273 = vld [vmem:[%s197 + $0x250] sm:%s190]
                %274 = vst [vmem:[%s198 + $0x128] sm:%s190] %v273
                %v275 = vld [vmem:[%s197 + $0x260] sm:%s190]
                %276 = vst [vmem:[%s198 + $0x130] sm:%s190] %v275
                %v277 = vld [vmem:[%s197 + $0x270] sm:%s190]
                %278 = vst [vmem:[%s198 + $0x138] sm:%s190] %v277
                %v279 = vld [vmem:[%s197 + $0x280] sm:%s190]
                %280 = vst [vmem:[%s198 + $0x140] sm:%s190] %v279
                %v281 = vld [vmem:[%s197 + $0x290] sm:%s190]
                %282 = vst [vmem:[%s198 + $0x148] sm:%s190] %v281
                %v283 = vld [vmem:[%s197 + $0x2a0] sm:%s190]
                %284 = vst [vmem:[%s198 + $0x150] sm:%s190] %v283
                %v285 = vld [vmem:[%s197 + $0x2b0] sm:%s190]
                %286 = vst [vmem:[%s198 + $0x158] sm:%s190] %v285
                %v287 = vld [vmem:[%s197 + $0x2c0] sm:%s190]
                %288 = vst [vmem:[%s198 + $0x160] sm:%s190] %v287
                %v289 = vld [vmem:[%s197 + $0x2d0] sm:%s190]
                %290 = vst [vmem:[%s198 + $0x168] sm:%s190] %v289
                %v291 = vld [vmem:[%s197 + $0x2e0] sm:%s190]
                %292 = vst [vmem:[%s198 + $0x170] sm:%s190] %v291
                %v293 = vld [vmem:[%s197 + $0x2f0] sm:%s190]
                %294 = vst [vmem:[%s198 + $0x178] sm:%s190] %v293
                %v295 = vld [vmem:[%s197 + $0x300] sm:%s190]
                %296 = vst [vmem:[%s198 + $0x180] sm:%s190] %v295
                %v297 = vld [vmem:[%s197 + $0x310] sm:%s190]
                %298 = vst [vmem:[%s198 + $0x188] sm:%s190] %v297
                %v299 = vld [vmem:[%s197 + $0x320] sm:%s190]
                %300 = vst [vmem:[%s198 + $0x190] sm:%s190] %v299
                %v301 = vld [vmem:[%s197 + $0x330] sm:%s190]
                %302 = vst [vmem:[%s198 + $0x198] sm:%s190] %v301
                %v303 = vld [vmem:[%s197 + $0x340] sm:%s190]
                %304 = vst [vmem:[%s198 + $0x1a0] sm:%s190] %v303
                %v305 = vld [vmem:[%s197 + $0x350] sm:%s190]
                %306 = vst [vmem:[%s198 + $0x1a8] sm:%s190] %v305
                %v307 = vld [vmem:[%s197 + $0x360] sm:%s190]
                %308 = vst [vmem:[%s198 + $0x1b0] sm:%s190] %v307
                %v309 = vld [vmem:[%s197 + $0x370] sm:%s190]
                %310 = vst [vmem:[%s198 + $0x1b8] sm:%s190] %v309
                %v311 = vld [vmem:[%s197 + $0x380] sm:%s190]
                %312 = vst [vmem:[%s198 + $0x1c0] sm:%s190] %v311
                %v313 = vld [vmem:[%s197 + $0x390] sm:%s190]
                %314 = vst [vmem:[%s198 + $0x1c8] sm:%s190] %v313
                %v315 = vld [vmem:[%s197 + $0x3a0] sm:%s190]
                %316 = vst [vmem:[%s198 + $0x1d0] sm:%s190] %v315
                %v317 = vld [vmem:[%s197 + $0x3b0] sm:%s190]
                %318 = vst [vmem:[%s198 + $0x1d8] sm:%s190] %v317
                %v319 = vld [vmem:[%s197 + $0x3c0] sm:%s190]
                %320 = vst [vmem:[%s198 + $0x1e0] sm:%s190] %v319
                %v321 = vld [vmem:[%s197 + $0x3d0] sm:%s190]
                %322 = vst [vmem:[%s198 + $0x1e8] sm:%s190] %v321
                %v323 = vld [vmem:[%s197 + $0x3e0] sm:%s190]
                %324 = vst [vmem:[%s198 + $0x1f0] sm:%s190] %v323
              $region41: #{_lambda_.10} parent=35 // loop_footer
                %s196 = sadd.s32 1, %s192
              $region42: #{_lambda_.10} parent=35 // loop_footer_branch
                %191 = sbr.rel target = $region38
              $region43: #{_lambda_.10} parent=35 // loop_exit
                _
            $region36: #{_lambda_.10} parent=27 // pred_fallthru
              _
          $region28: #{_lambda_.10} parent=23 // pred_fallthru
            _
          %463 = vnop
        $region24: #{_lambda_.10} parent=19 // pred_fallthru
          _
        // Predicated region
        $region59: #{_lambda_.10} parent=19 // pred_check
          %p464 = pneg %p104
        $region60: #{_lambda_.10} parent=19 // pred_check_branch
          %466 = sbr.rel (%p464) target = $region62
        $region61: #{_lambda_.10} parent=19 // pred_region
          %s467 = smul.u32 2, %s17
          %p468 = scmp.lt.s32.totalorder %s467, 3
          %s469 = scalar_select %p468, %s467, 3
          %s470 = scalar_lea.vmem %s2, %s469
          %s471 = smul.u32 2, %s17
        $region62: #{_lambda_.10} parent=19 // pred_fallthru
          _
      $region20: #{_lambda_.10} parent=5 // pred_fallthru
        _
      %p472 = scmp.le.s32.totalorder 1, %s9
      %p473 = scmp.lt.s32.totalorder %s9, 3
      %p474 = pnand %p472, %p473
      %p475 = pneg %p474
      // Predicated region
      $region63: #{_lambda_.10} parent=5 // pred_check
        _
      $region64: #{_lambda_.10} parent=5 // pred_check_branch
        %477 = sbr.rel (%p474) target = $region66
      $region65: #{_lambda_.10} parent=5 // pred_region
        %s478 = ssub.s32 %s9, 1
        %s479 = sand.u32 %s71, 1
        %s480 = sand.u32 %s71, 1
        %s481 = smul.addr %s480, 504
        %s482 = scalar_lea.vmem [#allocation3], %s481
        // Predicated region
        $region67: #{_lambda_.10} parent=65 // pred_check
          %p483 = pneg %p84
        $region68: #{_lambda_.10} parent=65 // pred_check_branch
          %485 = sbr.rel (%p483) target = $region70
        $region69: #{_lambda_.10} parent=65 // pred_region
          _
        $region70: #{_lambda_.10} parent=65 // pred_fallthru
          _
        %s486 = smul.u32 4, %s21
        %p487 = scmp.lt.s32.totalorder %s19, 0
        %s488 = scalar_select %p487, %s19, 0
        %p489 = scmp.lt.s32.totalorder %s486, 3
        %s490 = scalar_select %p489, %s486, 3
        %s491 = smul.addr %s488, 4
        %s492 = sadd.s32 %s490, %s491
        %s493 = smul.addr %s492, 4
        %s494 = scalar_lea.vmem %s0, %s493
        %p495 = pneg %p56
        %p496 = pneg %p53
        %s497 = sand.u32 %s71, 1
        %s498 = sand.u32 %s71, 1
        %s499 = smul.addr %s498, 504
        %s500 = scalar_lea.vmem [#allocation3], %s499
        %p501 = pneg %p84
        %p502 = pneg %p81
        %s503 = smul.u32 2, %s20
        %p504 = scmp.lt.s32.totalorder %s503, 3
        %s505 = scalar_select %p504, %s503, 3
        %s506 = scalar_lea.vmem %s2, %s505
        %p507 = pneg %p110
        %p508 = pneg %p107
        %p509 = pneg %p138
        %p510 = pneg %p135
        %s511 = smul.u32 2, %s20
        %p512 = scmp.lt.s32.totalorder %s19, 0
        %s513 = scalar_select %p512, %s19, 0
        %p514 = scmp.lt.s32.totalorder %s511, 3
        %s515 = scalar_select %p514, %s511, 3
        %s516 = smul.addr %s513, 4
        %s517 = sadd.s32 %s515, %s516
        %s518 = smul.addr %s517, 8
        %s519 = scalar_lea.vmem %s3, %s518
        %s520 = smul.u32 4, %s21
        %p521 = scmp.lt.s32.totalorder %s19, 0
        %s522 = scalar_select %p521, %s19, 0
        %p523 = scmp.lt.s32.totalorder %s520, 3
        %s524 = scalar_select %p523, %s520, 3
        %s525 = smul.addr %s522, 4
        %s526 = sadd.s32 %s524, %s525
        %s527 = smul.addr %s526, 4
        %s528 = scalar_lea.vmem %s0, %s527
        %s529 = smul.u32 4, %s21
        %s530 = smul.u32 63, %s21
        %s531 = smul.u32 2, %s20
        %s532 = smul.u32 2, %s20
        %p533 = scmp.lt.s32.totalorder %s532, 3
        %s534 = scalar_select %p533, %s532, 3
        %s535 = scalar_lea.vmem %s2, %s534
        %s536 = smul.u32 2, %s20
        %s537 = smul.u32 2, %s20
        %p538 = scmp.lt.s32.totalorder %s19, 0
        %s539 = scalar_select %p538, %s19, 0
        %p540 = scmp.lt.s32.totalorder %s537, 3
        %s541 = scalar_select %p540, %s537, 3
        %s542 = smul.addr %s539, 4
        %s543 = sadd.s32 %s541, %s542
        %s544 = smul.addr %s543, 8
        %s545 = scalar_lea.vmem %s3, %s544
        %s546 = smul.u32 2, %s20
        %p547 = scmp.eq.s32.totalorder %s21, 0
        // Predicated region
        $region71: #{_lambda_.10} parent=65 // pred_check
          %p548 = pneg %p547
        $region72: #{_lambda_.10} parent=65 // pred_check_branch
          %550 = sbr.rel (%p548) target = $region74
        $region73: #{_lambda_.10} parent=65 // pred_region
          %551 = vst [vmem:[#allocation2] sm:$0xff] 0.0
          %552 = vst [vmem:[#allocation2 + $0x8] sm:$0xff] 0.0
        $region74: #{_lambda_.10} parent=65 // pred_fallthru
          _
        %v553 = vld [vmem:[#allocation2] sm:$0xff]
        %v554 = vld [vmem:[#allocation2 + $0x8] sm:$0xff]
        %v555 = vld [vmem:[%s528] sm:$0xff]
        %v556 = vld [vmem:[%s528 + $0x8] sm:$0xff]
        %v557 = vld [vmem:[%s482] sm:$0xff]
        %v558 = vld [vmem:[%s482 + $0x8] sm:$0xff]
        %v559 = vld [vmem:[%s482 + $0x10] sm:$0xff]
        %v560 = vld [vmem:[%s482 + $0x18] sm:$0xff]
        %v561 = vld [vmem:[%s482 + $0x20] sm:$0xff]
        %v562 = vld [vmem:[%s482 + $0x28] sm:$0xff]
        %v563 = vld [vmem:[%s482 + $0x30] sm:$0xff]
        %v564 = vld [vmem:[%s482 + $0x38] sm:$0xff]
        %v565 = vld [vmem:[%s482 + $0x40] sm:$0xff]
        %v566 = vld [vmem:[%s482 + $0x48] sm:$0xff]
        %v567 = vld [vmem:[%s482 + $0x50] sm:$0xff]
        %v568 = vld [vmem:[%s482 + $0x58] sm:$0xff]
        %v569 = vld [vmem:[%s482 + $0x60] sm:$0xff]
        %v570 = vld [vmem:[%s482 + $0x68] sm:$0xff]
        %v571 = vld [vmem:[%s482 + $0x70] sm:$0xff]
        %v572 = vld [vmem:[%s482 + $0x78] sm:$0xff]
        %v573 = vld [vmem:[%s482 + $0x80] sm:$0xff]
        %v574 = vld [vmem:[%s482 + $0x88] sm:$0xff]
        %v575 = vld [vmem:[%s482 + $0x90] sm:$0xff]
        %v576 = vld [vmem:[%s482 + $0x98] sm:$0xff]
        %v577 = vld [vmem:[%s482 + $0xa0] sm:$0xff]
        %v578 = vld [vmem:[%s482 + $0xa8] sm:$0xff]
        %v579 = vld [vmem:[%s482 + $0xb0] sm:$0xff]
        %v580 = vld [vmem:[%s482 + $0xb8] sm:$0xff]
        %v581 = vld [vmem:[%s482 + $0xc0] sm:$0xff]
        %v582 = vld [vmem:[%s482 + $0xc8] sm:$0xff]
        %v583 = vld [vmem:[%s482 + $0xd0] sm:$0xff]
        %v584 = vld [vmem:[%s482 + $0xd8] sm:$0xff]
        %v585 = vld [vmem:[%s482 + $0xe0] sm:$0xff]
        %v586 = vld [vmem:[%s482 + $0xe8] sm:$0xff]
        %v587 = vld [vmem:[%s482 + $0xf0] sm:$0xff]
        %v588 = vld [vmem:[%s482 + $0xf8] sm:$0xff]
        %v589 = vld [vmem:[%s482 + $0x100] sm:$0xff]
        %v590 = vld [vmem:[%s482 + $0x108] sm:$0xff]
        %v591 = vld [vmem:[%s482 + $0x110] sm:$0xff]
        %v592 = vld [vmem:[%s482 + $0x118] sm:$0xff]
        %v593 = vld [vmem:[%s482 + $0x120] sm:$0xff]
        %v594 = vld [vmem:[%s482 + $0x128] sm:$0xff]
        %v595 = vld [vmem:[%s482 + $0x130] sm:$0xff]
        %v596 = vld [vmem:[%s482 + $0x138] sm:$0xff]
        %v597 = vld [vmem:[%s482 + $0x140] sm:$0xff]
        %v598 = vld [vmem:[%s482 + $0x148] sm:$0xff]
        %v599 = vld [vmem:[%s482 + $0x150] sm:$0xff]
        %v600 = vld [vmem:[%s482 + $0x158] sm:$0xff]
        %v601 = vld [vmem:[%s482 + $0x160] sm:$0xff]
        %v602 = vld [vmem:[%s482 + $0x168] sm:$0xff]
        %v603 = vld [vmem:[%s482 + $0x170] sm:$0xff]
        %v604 = vld [vmem:[%s482 + $0x178] sm:$0xff]
        %v605 = vld [vmem:[%s482 + $0x180] sm:$0xff]
        %v606 = vld [vmem:[%s482 + $0x188] sm:$0xff]
        %v607 = vld [vmem:[%s482 + $0x190] sm:$0xff]
        %v608 = vld [vmem:[%s482 + $0x198] sm:$0xff]
        %v609 = vld [vmem:[%s482 + $0x1a0] sm:$0xff]
        %v610 = vld [vmem:[%s482 + $0x1a8] sm:$0xff]
        %v611 = vld [vmem:[%s482 + $0x1b0] sm:$0xff]
        %v612 = vld [vmem:[%s482 + $0x1b8] sm:$0xff]
        %v613 = vld [vmem:[%s482 + $0x1c0] sm:$0xff]
        %v614 = vld [vmem:[%s482 + $0x1c8] sm:$0xff]
        %v615 = vld [vmem:[%s482 + $0x1d0] sm:$0xff]
        %v616 = vld [vmem:[%s482 + $0x1d8] sm:$0xff]
        %v617 = vld [vmem:[%s482 + $0x1e0] sm:$0xff]
        %v618 = vld [vmem:[%s482 + $0x1e8] sm:$0xff]
        %v619 = vld [vmem:[%s482 + $0x1f0] sm:$0xff]
        %v622 = vunpack.c.l.b16 %v555
        %v623 = vunpack.c.h.b16 %v555
        %v624 = vunpack.c.l.b16 %v556
        %v625 = vunpack.c.h.b16 %v556
        %v626 = vpack.c.b16 %v622, %v622
        %v627 = vpack.c.b16 %v623, %v623
        %v628 = vpack.c.b16 %v624, %v624
        %v629 = vpack.c.b16 %v625, %v625
        %v696 = vunpack.c.l.b16 %v557
        %v697 = vunpack.c.h.b16 %v557
        %v698 = vunpack.c.l.b16 %v558
        %v699 = vunpack.c.h.b16 %v558
        %v700 = vunpack.c.l.b16 %v559
        %v701 = vunpack.c.h.b16 %v559
        %v702 = vunpack.c.l.b16 %v560
        %v703 = vunpack.c.h.b16 %v560
        %v704 = vunpack.c.l.b16 %v561
        %v705 = vunpack.c.h.b16 %v561
        %v706 = vunpack.c.l.b16 %v562
        %v707 = vunpack.c.h.b16 %v562
        %v708 = vunpack.c.l.b16 %v563
        %v709 = vunpack.c.h.b16 %v563
        %v710 = vunpack.c.l.b16 %v564
        %v711 = vunpack.c.h.b16 %v564
        %v712 = vunpack.c.l.b16 %v565
        %v713 = vunpack.c.h.b16 %v565
        %v714 = vunpack.c.l.b16 %v566
        %v715 = vunpack.c.h.b16 %v566
        %v716 = vunpack.c.l.b16 %v567
        %v717 = vunpack.c.h.b16 %v567
        %v718 = vunpack.c.l.b16 %v568
        %v719 = vunpack.c.h.b16 %v568
        %v720 = vunpack.c.l.b16 %v569
        %v721 = vunpack.c.h.b16 %v569
        %v722 = vunpack.c.l.b16 %v570
        %v723 = vunpack.c.h.b16 %v570
        %v724 = vunpack.c.l.b16 %v571
        %v725 = vunpack.c.h.b16 %v571
        %v726 = vunpack.c.l.b16 %v572
        %v727 = vunpack.c.h.b16 %v572
        %v728 = vunpack.c.l.b16 %v573
        %v729 = vunpack.c.h.b16 %v573
        %v730 = vunpack.c.l.b16 %v574
        %v731 = vunpack.c.h.b16 %v574
        %v732 = vunpack.c.l.b16 %v575
        %v733 = vunpack.c.h.b16 %v575
        %v734 = vunpack.c.l.b16 %v576
        %v735 = vunpack.c.h.b16 %v576
        %v736 = vunpack.c.l.b16 %v577
        %v737 = vunpack.c.h.b16 %v577
        %v738 = vunpack.c.l.b16 %v578
        %v739 = vunpack.c.h.b16 %v578
        %v740 = vunpack.c.l.b16 %v579
        %v741 = vunpack.c.h.b16 %v579
        %v742 = vunpack.c.l.b16 %v580
        %v743 = vunpack.c.h.b16 %v580
        %v744 = vunpack.c.l.b16 %v581
        %v745 = vunpack.c.h.b16 %v581
        %v746 = vunpack.c.l.b16 %v582
        %v747 = vunpack.c.h.b16 %v582
        %v748 = vunpack.c.l.b16 %v583
        %v749 = vunpack.c.h.b16 %v583
        %v750 = vunpack.c.l.b16 %v584
        %v751 = vunpack.c.h.b16 %v584
        %v752 = vunpack.c.l.b16 %v585
        %v753 = vunpack.c.h.b16 %v585
        %v754 = vunpack.c.l.b16 %v586
        %v755 = vunpack.c.h.b16 %v586
        %v756 = vunpack.c.l.b16 %v587
        %v757 = vunpack.c.h.b16 %v587
        %v758 = vunpack.c.l.b16 %v588
        %v759 = vunpack.c.h.b16 %v588
        %v760 = vunpack.c.l.b16 %v589
        %v761 = vunpack.c.h.b16 %v589
        %v762 = vunpack.c.l.b16 %v590
        %v763 = vunpack.c.h.b16 %v590
        %v764 = vunpack.c.l.b16 %v591
        %v765 = vunpack.c.h.b16 %v591
        %v766 = vunpack.c.l.b16 %v592
        %v767 = vunpack.c.h.b16 %v592
        %v768 = vunpack.c.l.b16 %v593
        %v769 = vunpack.c.h.b16 %v593
        %v770 = vunpack.c.l.b16 %v594
        %v771 = vunpack.c.h.b16 %v594
        %v772 = vunpack.c.l.b16 %v595
        %v773 = vunpack.c.h.b16 %v595
        %v774 = vunpack.c.l.b16 %v596
        %v775 = vunpack.c.h.b16 %v596
        %v776 = vunpack.c.l.b16 %v597
        %v777 = vunpack.c.h.b16 %v597
        %v778 = vunpack.c.l.b16 %v598
        %v779 = vunpack.c.h.b16 %v598
        %v780 = vunpack.c.l.b16 %v599
        %v781 = vunpack.c.h.b16 %v599
        %v782 = vunpack.c.l.b16 %v600
        %v783 = vunpack.c.h.b16 %v600
        %v784 = vunpack.c.l.b16 %v601
        %v785 = vunpack.c.h.b16 %v601
        %v786 = vunpack.c.l.b16 %v602
        %v787 = vunpack.c.h.b16 %v602
        %v788 = vunpack.c.l.b16 %v603
        %v789 = vunpack.c.h.b16 %v603
        %v790 = vunpack.c.l.b16 %v604
        %v791 = vunpack.c.h.b16 %v604
        %v792 = vunpack.c.l.b16 %v605
        %v793 = vunpack.c.h.b16 %v605
        %v794 = vunpack.c.l.b16 %v606
        %v795 = vunpack.c.h.b16 %v606
        %v796 = vunpack.c.l.b16 %v607
        %v797 = vunpack.c.h.b16 %v607
        %v798 = vunpack.c.l.b16 %v608
        %v799 = vunpack.c.h.b16 %v608
        %v800 = vunpack.c.l.b16 %v609
        %v801 = vunpack.c.h.b16 %v609
        %v802 = vunpack.c.l.b16 %v610
        %v803 = vunpack.c.h.b16 %v610
        %v804 = vunpack.c.l.b16 %v611
        %v805 = vunpack.c.h.b16 %v611
        %v806 = vunpack.c.l.b16 %v612
        %v807 = vunpack.c.h.b16 %v612
        %v808 = vunpack.c.l.b16 %v613
        %v809 = vunpack.c.h.b16 %v613
        %v810 = vunpack.c.l.b16 %v614
        %v811 = vunpack.c.h.b16 %v614
        %v812 = vunpack.c.l.b16 %v615
        %v813 = vunpack.c.h.b16 %v615
        %v814 = vunpack.c.l.b16 %v616
        %v815 = vunpack.c.h.b16 %v616
        %v816 = vunpack.c.l.b16 %v617
        %v817 = vunpack.c.h.b16 %v617
        %v818 = vunpack.c.l.b16 %v618
        %v819 = vunpack.c.h.b16 %v618
        %v820 = vunpack.c.l.b16 %v619
        %v821 = vunpack.c.h.b16 %v619
        %v822 = vpack.c.b16 %v698, %v696
        %v823 = vpack.c.b16 %v699, %v697
        %v824 = vpack.c.b16 %v702, %v700
        %v825 = vpack.c.b16 %v703, %v701
        %v826 = vpack.c.b16 %v706, %v704
        %v827 = vpack.c.b16 %v707, %v705
        %v828 = vpack.c.b16 %v710, %v708
        %v829 = vpack.c.b16 %v711, %v709
        %v830 = vpack.c.b16 %v714, %v712
        %v831 = vpack.c.b16 %v715, %v713
        %v832 = vpack.c.b16 %v718, %v716
        %v833 = vpack.c.b16 %v719, %v717
        %v834 = vpack.c.b16 %v722, %v720
        %v835 = vpack.c.b16 %v723, %v721
        %v836 = vpack.c.b16 %v726, %v724
        %v837 = vpack.c.b16 %v727, %v725
        %v838 = vpack.c.b16 %v730, %v728
        %v839 = vpack.c.b16 %v731, %v729
        %v840 = vpack.c.b16 %v734, %v732
        %v841 = vpack.c.b16 %v735, %v733
        %v842 = vpack.c.b16 %v738, %v736
        %v843 = vpack.c.b16 %v739, %v737
        %v844 = vpack.c.b16 %v742, %v740
        %v845 = vpack.c.b16 %v743, %v741
        %v846 = vpack.c.b16 %v746, %v744
        %v847 = vpack.c.b16 %v747, %v745
        %v848 = vpack.c.b16 %v750, %v748
        %v849 = vpack.c.b16 %v751, %v749
        %v850 = vpack.c.b16 %v754, %v752
        %v851 = vpack.c.b16 %v755, %v753
        %v852 = vpack.c.b16 %v758, %v756
        %v853 = vpack.c.b16 %v759, %v757
        %v854 = vpack.c.b16 %v762, %v760
        %v855 = vpack.c.b16 %v763, %v761
        %v856 = vpack.c.b16 %v766, %v764
        %v857 = vpack.c.b16 %v767, %v765
        %v858 = vpack.c.b16 %v770, %v768
        %v859 = vpack.c.b16 %v771, %v769
        %v860 = vpack.c.b16 %v774, %v772
        %v861 = vpack.c.b16 %v775, %v773
        %v862 = vpack.c.b16 %v778, %v776
        %v863 = vpack.c.b16 %v779, %v777
        %v864 = vpack.c.b16 %v782, %v780
        %v865 = vpack.c.b16 %v783, %v781
        %v866 = vpack.c.b16 %v786, %v784
        %v867 = vpack.c.b16 %v787, %v785
        %v868 = vpack.c.b16 %v790, %v788
        %v869 = vpack.c.b16 %v791, %v789
        %v870 = vpack.c.b16 %v794, %v792
        %v871 = vpack.c.b16 %v795, %v793
        %v872 = vpack.c.b16 %v798, %v796
        %v873 = vpack.c.b16 %v799, %v797
        %v874 = vpack.c.b16 %v802, %v800
        %v875 = vpack.c.b16 %v803, %v801
        %v876 = vpack.c.b16 %v806, %v804
        %v877 = vpack.c.b16 %v807, %v805
        %v878 = vpack.c.b16 %v810, %v808
        %v879 = vpack.c.b16 %v811, %v809
        %v880 = vpack.c.b16 %v814, %v812
        %v881 = vpack.c.b16 %v815, %v813
        %v882 = vpack.c.b16 %v818, %v816
        %v883 = vpack.c.b16 %v819, %v817
        %v884 = vpack.c.b16 %v820, %v820
        %v885 = vpack.c.b16 %v821, %v821
        %vm948 = vcmask 982016
        %v950 = vsel %vm948, %v629, 0
        %vm952 = vcmask 1043456
        %v954 = vsel %vm952, %v884, 0
        %v957 = vsel %vm952, %v885, 0
        %959 = vmatpush.bf16.msra.mxu0 %v836
        %960 = vmatpush.bf16.msra.mxu0 %v834
        %961 = vmatpush.bf16.msra.mxu0 %v832
        %962 = vmatpush.bf16.msra.mxu0 %v830
        %963 = vmatpush.bf16.msra.mxu0 %v828
        %964 = vmatpush.bf16.msra.mxu0 %v826
        %965 = vmatpush.bf16.msra.mxu0 %v824
        %966 = vmatpush.bf16.msra.mxu0 %v822
        %967 = vmatmul.bf16.gmra.mxu0 %v626
        %v968 = vpop.f32.mrf.mxu0
        %v969 = vadd.f32 0.0, %v968
        %v970 = vpop.f32.mrf.mxu0
        %971 = vdwg.mxu0
        %972 = vmatpush.bf16.msra.mxu0 %v852
        %973 = vmatpush.bf16.msra.mxu0 %v850
        %974 = vmatpush.bf16.msra.mxu0 %v848
        %975 = vmatpush.bf16.msra.mxu0 %v846
        %976 = vmatpush.bf16.msra.mxu0 %v844
        %977 = vmatpush.bf16.msra.mxu0 %v842
        %978 = vmatpush.bf16.msra.mxu0 %v840
        %979 = vmatpush.bf16.msra.mxu0 %v838
        %980 = vmatmul.bf16.gmra.mxu0 %v627
        %v981 = vpop.f32.mrf.mxu0
        %v982 = vadd.f32 %v969, %v981
        %v983 = vpop.f32.mrf.mxu0
        %984 = vdwg.mxu0
        %985 = vmatpush.bf16.msra.mxu0 %v868
        %986 = vmatpush.bf16.msra.mxu0 %v866
        %987 = vmatpush.bf16.msra.mxu0 %v864
        %988 = vmatpush.bf16.msra.mxu0 %v862
        %989 = vmatpush.bf16.msra.mxu0 %v860
        %990 = vmatpush.bf16.msra.mxu0 %v858
        %991 = vmatpush.bf16.msra.mxu0 %v856
        %992 = vmatpush.bf16.msra.mxu0 %v854
        %993 = vmatmul.bf16.gmra.mxu0 %v628
        %v994 = vpop.f32.mrf.mxu0
        %v995 = vadd.f32 %v982, %v994
        %v996 = vpop.f32.mrf.mxu0
        %997 = vdwg.mxu0
        %998 = vmatpush.bf16.msra.mxu0 %v954
        %999 = vmatpush.bf16.msra.mxu0 %v882
        %1000 = vmatpush.bf16.msra.mxu0 %v880
        %1001 = vmatpush.bf16.msra.mxu0 %v878
        %1002 = vmatpush.bf16.msra.mxu0 %v876
        %1003 = vmatpush.bf16.msra.mxu0 %v874
        %1004 = vmatpush.bf16.msra.mxu0 %v872
        %1005 = vmatpush.bf16.msra.mxu0 %v870
        %1006 = vmatmul.bf16.gmra.mxu0 %v950
        %v1007 = vpop.f32.mrf.mxu0
        %v1008 = vadd.f32 %v995, %v1007
        %v1009 = vpop.f32.mrf.mxu0
        %1010 = vdwg.mxu0
        %1011 = vmatpush.bf16.msra.mxu0 %v837
        %1012 = vmatpush.bf16.msra.mxu0 %v835
        %1013 = vmatpush.bf16.msra.mxu0 %v833
        %1014 = vmatpush.bf16.msra.mxu0 %v831
        %1015 = vmatpush.bf16.msra.mxu0 %v829
        %1016 = vmatpush.bf16.msra.mxu0 %v827
        %1017 = vmatpush.bf16.msra.mxu0 %v825
        %1018 = vmatpush.bf16.msra.mxu0 %v823
        %1019 = vmatmul.bf16.gmra.mxu0 %v626
        %v1020 = vpop.f32.mrf.mxu0
        %v1021 = vadd.f32 0.0, %v1020
        %v1022 = vpop.f32.mrf.mxu0
        %1023 = vdwg.mxu0
        %1024 = vmatpush.bf16.msra.mxu0 %v853
        %1025 = vmatpush.bf16.msra.mxu0 %v851
        %1026 = vmatpush.bf16.msra.mxu0 %v849
        %1027 = vmatpush.bf16.msra.mxu0 %v847
        %1028 = vmatpush.bf16.msra.mxu0 %v845
        %1029 = vmatpush.bf16.msra.mxu0 %v843
        %1030 = vmatpush.bf16.msra.mxu0 %v841
        %1031 = vmatpush.bf16.msra.mxu0 %v839
        %1032 = vmatmul.bf16.gmra.mxu0 %v627
        %v1033 = vpop.f32.mrf.mxu0
        %v1034 = vadd.f32 %v1021, %v1033
        %v1035 = vpop.f32.mrf.mxu0
        %1036 = vdwg.mxu0
        %1037 = vmatpush.bf16.msra.mxu0 %v869
        %1038 = vmatpush.bf16.msra.mxu0 %v867
        %1039 = vmatpush.bf16.msra.mxu0 %v865
        %1040 = vmatpush.bf16.msra.mxu0 %v863
        %1041 = vmatpush.bf16.msra.mxu0 %v861
        %1042 = vmatpush.bf16.msra.mxu0 %v859
        %1043 = vmatpush.bf16.msra.mxu0 %v857
        %1044 = vmatpush.bf16.msra.mxu0 %v855
        %1045 = vmatmul.bf16.gmra.mxu0 %v628
        %v1046 = vpop.f32.mrf.mxu0
        %v1047 = vadd.f32 %v1034, %v1046
        %v1048 = vpop.f32.mrf.mxu0
        %1049 = vdwg.mxu0
        %1050 = vmatpush.bf16.msra.mxu0 %v957
        %1051 = vmatpush.bf16.msra.mxu0 %v883
        %1052 = vmatpush.bf16.msra.mxu0 %v881
        %1053 = vmatpush.bf16.msra.mxu0 %v879
        %1054 = vmatpush.bf16.msra.mxu0 %v877
        %1055 = vmatpush.bf16.msra.mxu0 %v875
        %1056 = vmatpush.bf16.msra.mxu0 %v873
        %1057 = vmatpush.bf16.msra.mxu0 %v871
        %1058 = vmatmul.bf16.gmra.mxu0 %v950
        %v1059 = vpop.f32.mrf.mxu0
        %v1060 = vadd.f32 %v1047, %v1059
        %v1061 = vpop.f32.mrf.mxu0
        %1062 = vdwg.mxu0
        %v1063 = vadd.f32 %v553, %v1008
        %v1064 = vadd.f32 %v554, %v1060
        %1065 = vst [vmem:[#allocation2] sm:$0xff] %v1063
        %1066 = vst [vmem:[#allocation2 + $0x8] sm:$0xff] %v1064
        // Predicated region
        $region75: #{_lambda_.10} parent=65 // pred_check
          %p1067 = pneg %p547
        $region76: #{_lambda_.10} parent=65 // pred_check_branch
          %1069 = sbr.rel (%p1067) target = $region78
        $region77: #{_lambda_.10} parent=65 // pred_region
          %v1070 = vld [vmem:[#allocation2] sm:$0xff]
          %v1071 = vld [vmem:[#allocation2 + $0x8] sm:$0xff]
          %v1072 = vld [vmem:[%s535] sm:$0x3]
          %v1074 = vperm.slane %v1072, 0
          %v1075 = vperm.slane %v1072, 1
          %v1078 = vadd.f32 %v1070, %v1074
          %v1079 = vadd.f32 %v1071, %v1075
          %v1080 = vmax.f32 %v1078, 0.0
          %v1081 = vmax.f32 %v1079, 0.0
          %1082 = vst [vmem:[%s545] sm:$0xff] %v1080
          %1083 = vst [vmem:[%s545 + $0x8] sm:$0xff] %v1081
        $region78: #{_lambda_.10} parent=65 // pred_fallthru
          _
        %s1084 = smul.u32 2, %s20
        %p1085 = scmp.lt.s32.totalorder %s19, 0
        %s1086 = scalar_select %p1085, %s19, 0
        %p1087 = scmp.lt.s32.totalorder %s1084, 3
        %s1088 = scalar_select %p1087, %s1084, 3
        %s1089 = smul.addr %s1086, 4
        %s1090 = sadd.s32 %s1088, %s1089
        %s1091 = smul.addr %s1090, 8
        %s1092 = scalar_lea.vmem %s3, %s1091
        // Predicated region
        $region79: #{_lambda_.10} parent=65 // pred_check
          %p1093 = pneg %p135
        $region80: #{_lambda_.10} parent=65 // pred_check_branch
          %1095 = sbr.rel (%p1093) target = $region82
        $region81: #{_lambda_.10} parent=65 // pred_region
          %s1096 = smul.u32 2, %s20
        $region82: #{_lambda_.10} parent=65 // pred_fallthru
          _
      $region66: #{_lambda_.10} parent=5 // pred_fallthru
        _
      %p1097 = scmp.le.s32.totalorder 2, %s9
      // Predicated region
      $region83: #{_lambda_.10} parent=5 // pred_check
        %p1098 = pneg %p1097
      $region84: #{_lambda_.10} parent=5 // pred_check_branch
        %1100 = sbr.rel (%p1098) target = $region86
      $region85: #{_lambda_.10} parent=5 // pred_region
        %s1101 = ssub.s32 %s9, 2
        // Predicated region
        $region87: #{_lambda_.10} parent=85 // pred_check
          %p1102 = pneg %p141
        $region88: #{_lambda_.10} parent=85 // pred_check_branch
          %1104 = sbr.rel (%p1102) target = $region90
        $region89: #{_lambda_.10} parent=85 // pred_region
          %s1105 = smul.u32 2, %s23
          %p1106 = scmp.lt.s32.totalorder %s22, 0
          %s1107 = scalar_select %p1106, %s22, 0
          %p1108 = scmp.lt.s32.totalorder %s1105, 3
          %s1109 = scalar_select %p1108, %s1105, 3
          %s1110 = smul.addr %s1107, 4
          %s1111 = sadd.s32 %s1109, %s1110
          %s1112 = smul.addr %s1111, 8
          %s1113 = scalar_lea.vmem %s3, %s1112
        $region90: #{_lambda_.10} parent=85 // pred_fallthru
          _
      $region86: #{_lambda_.10} parent=5 // pred_fallthru
        _
    $region6: #{_lambda_.10} parent=1 // loop_footer
      %s13 = sadd.s32 1, %s9
    $region7: #{_lambda_.10} parent=1 // loop_footer_branch
      %8 = sbr.rel target = $region3
    $region8: #{_lambda_.10} parent=1 // loop_exit
      _

// kernel: _lambda_.11
$region0: #{_lambda_.11}
  #allocation0 [shape = 'u32[]', space=smem, size = 0x4, offset = 0x4, fixed_abs, tag = 'smem constant byte address 0x4 - core index']
  #allocation1 [shape = 'u32[72,128]{1,0:T(1,128)}', space=vmem, size = 0x9000, scoped, tag = 'internal scratch']
  #allocation2 [shape = 'f32[8,128]{1,0:T(8,128)}', space=vmem, size = 0x1000, scoped, tag = 'scratch operand']
  %s0 = inlined_call_operand.vmem [shape: bf16[8,504], index: 0, kind: input, shape index: {}]
  %s1 = inlined_call_operand.vmem [shape: bf16[504,128], index: 1, kind: input, shape index: {}]
  %s2 = inlined_call_operand.vmem [shape: f32[1,128], index: 2, kind: input, shape index: {}]
  %s3 = inlined_call_operand.vmem [shape: f32[8,128], index: 3, kind: output, shape index: {}]
  %s4 = sld [smem:[#allocation0]]
  $region30: #{_lambda_.11} parent=0
    _
  %s6 = ssub.s32 1, %s4
  %s7 = scalar_select 0, %s6, %s4
  // Predicated region
  $region2: #{_lambda_.11} parent=0 // pred_check
    _
  $region3: #{_lambda_.11} parent=0 // pred_check_branch
    %9 = sbr.rel (0) target = $region5
  $region4: #{_lambda_.11} parent=0 // pred_region
    _
  $region5: #{_lambda_.11} parent=0 // pred_fallthru
    _
  // Predicated region
  $region6: #{_lambda_.11} parent=0 // pred_check
    _
  $region7: #{_lambda_.11} parent=0 // pred_check_branch
    %11 = sbr.rel (0) target = $region9
  $region8: #{_lambda_.11} parent=0 // pred_region
    _
  $region9: #{_lambda_.11} parent=0 // pred_fallthru
    _
  // Predicated region
  $region10: #{_lambda_.11} parent=0 // pred_check
    _
  $region11: #{_lambda_.11} parent=0 // pred_check_branch
    %13 = sbr.rel (0) target = $region13
  $region12: #{_lambda_.11} parent=0 // pred_region
    _
  $region13: #{_lambda_.11} parent=0 // pred_fallthru
    _
  %p14 = scmp.eq.s32.totalorder 0, 0
  // Predicated region
  $region14: #{_lambda_.11} parent=0 // pred_check
    %p15 = pneg %p14
  $region15: #{_lambda_.11} parent=0 // pred_check_branch
    %17 = sbr.rel (%p15) target = $region17
  $region16: #{_lambda_.11} parent=0 // pred_region
    %18 = vst [vmem:[#allocation2] sm:$0xff] 0.0
  $region17: #{_lambda_.11} parent=0 // pred_fallthru
    _
  %v19 = vld [vmem:[#allocation2] sm:$0xff]
  %v20 = vld [vmem:[%s0] sm:$0xff]
  %v21 = vld [vmem:[%s0 + $0x8] sm:$0xff]
  %v22 = vld [vmem:[%s1] sm:$0xf]
  %v23 = vld [vmem:[%s1 + $0x4] sm:$0xf]
  %v24 = vld [vmem:[%s1 + $0x8] sm:$0xf]
  %v25 = vld [vmem:[%s1 + $0xc] sm:$0xf]
  %v26 = vld [vmem:[%s1 + $0x10] sm:$0xf]
  %v27 = vld [vmem:[%s1 + $0x14] sm:$0xf]
  %v28 = vld [vmem:[%s1 + $0x18] sm:$0xf]
  %v29 = vld [vmem:[%s1 + $0x1c] sm:$0xf]
  %v30 = vld [vmem:[%s1 + $0x20] sm:$0xf]
  %v31 = vld [vmem:[%s1 + $0x24] sm:$0xf]
  %v32 = vld [vmem:[%s1 + $0x28] sm:$0xf]
  %v33 = vld [vmem:[%s1 + $0x2c] sm:$0xf]
  %v34 = vld [vmem:[%s1 + $0x30] sm:$0xf]
  %v35 = vld [vmem:[%s1 + $0x34] sm:$0xf]
  %v36 = vld [vmem:[%s1 + $0x38] sm:$0xf]
  %v37 = vld [vmem:[%s1 + $0x3c] sm:$0xf]
  %v38 = vld [vmem:[%s1 + $0x40] sm:$0xf]
  %v39 = vld [vmem:[%s1 + $0x44] sm:$0xf]
  %v40 = vld [vmem:[%s1 + $0x48] sm:$0xf]
  %v41 = vld [vmem:[%s1 + $0x4c] sm:$0xf]
  %v42 = vld [vmem:[%s1 + $0x50] sm:$0xf]
  %v43 = vld [vmem:[%s1 + $0x54] sm:$0xf]
  %v44 = vld [vmem:[%s1 + $0x58] sm:$0xf]
  %v45 = vld [vmem:[%s1 + $0x5c] sm:$0xf]
  %v46 = vld [vmem:[%s1 + $0x60] sm:$0xf]
  %v47 = vld [vmem:[%s1 + $0x64] sm:$0xf]
  %v48 = vld [vmem:[%s1 + $0x68] sm:$0xf]
  %v49 = vld [vmem:[%s1 + $0x6c] sm:$0xf]
  %v50 = vld [vmem:[%s1 + $0x70] sm:$0xf]
  %v51 = vld [vmem:[%s1 + $0x74] sm:$0xf]
  %v52 = vld [vmem:[%s1 + $0x78] sm:$0xf]
  %v53 = vld [vmem:[%s1 + $0x7c] sm:$0xf]
  %v54 = vld [vmem:[%s1 + $0x80] sm:$0xf]
  %v55 = vld [vmem:[%s1 + $0x84] sm:$0xf]
  %v56 = vld [vmem:[%s1 + $0x88] sm:$0xf]
  %v57 = vld [vmem:[%s1 + $0x8c] sm:$0xf]
  %v58 = vld [vmem:[%s1 + $0x90] sm:$0xf]
  %v59 = vld [vmem:[%s1 + $0x94] sm:$0xf]
  %v60 = vld [vmem:[%s1 + $0x98] sm:$0xf]
  %v61 = vld [vmem:[%s1 + $0x9c] sm:$0xf]
  %v62 = vld [vmem:[%s1 + $0xa0] sm:$0xf]
  %v63 = vld [vmem:[%s1 + $0xa4] sm:$0xf]
  %v64 = vld [vmem:[%s1 + $0xa8] sm:$0xf]
  %v65 = vld [vmem:[%s1 + $0xac] sm:$0xf]
  %v66 = vld [vmem:[%s1 + $0xb0] sm:$0xf]
  %v67 = vld [vmem:[%s1 + $0xb4] sm:$0xf]
  %v68 = vld [vmem:[%s1 + $0xb8] sm:$0xf]
  %v69 = vld [vmem:[%s1 + $0xbc] sm:$0xf]
  %v70 = vld [vmem:[%s1 + $0xc0] sm:$0xf]
  %v71 = vld [vmem:[%s1 + $0xc4] sm:$0xf]
  %v72 = vld [vmem:[%s1 + $0xc8] sm:$0xf]
  %v73 = vld [vmem:[%s1 + $0xcc] sm:$0xf]
  %v74 = vld [vmem:[%s1 + $0xd0] sm:$0xf]
  %v75 = vld [vmem:[%s1 + $0xd4] sm:$0xf]
  %v76 = vld [vmem:[%s1 + $0xd8] sm:$0xf]
  %v77 = vld [vmem:[%s1 + $0xdc] sm:$0xf]
  %v78 = vld [vmem:[%s1 + $0xe0] sm:$0xf]
  %v79 = vld [vmem:[%s1 + $0xe4] sm:$0xf]
  %v80 = vld [vmem:[%s1 + $0xe8] sm:$0xf]
  %v81 = vld [vmem:[%s1 + $0xec] sm:$0xf]
  %v82 = vld [vmem:[%s1 + $0xf0] sm:$0xf]
  %v83 = vld [vmem:[%s1 + $0xf4] sm:$0xf]
  %v84 = vld [vmem:[%s1 + $0xf8] sm:$0xf]
  %v87 = vunpack.c.l.b16 %v20
  %v88 = vunpack.c.h.b16 %v20
  %v89 = vunpack.c.l.b16 %v21
  %v90 = vunpack.c.h.b16 %v21
  %v91 = vpack.c.b16 %v87, %v87
  %v92 = vpack.c.b16 %v88, %v88
  %v93 = vpack.c.b16 %v89, %v89
  %v94 = vpack.c.b16 %v90, %v90
  %v161 = vunpack.c.l.b16 %v22
  %v162 = vunpack.c.l.b16 %v23
  %v163 = vunpack.c.l.b16 %v24
  %v164 = vunpack.c.l.b16 %v25
  %v165 = vunpack.c.l.b16 %v26
  %v166 = vunpack.c.l.b16 %v27
  %v167 = vunpack.c.l.b16 %v28
  %v168 = vunpack.c.l.b16 %v29
  %v169 = vunpack.c.l.b16 %v30
  %v170 = vunpack.c.l.b16 %v31
  %v171 = vunpack.c.l.b16 %v32
  %v172 = vunpack.c.l.b16 %v33
  %v173 = vunpack.c.l.b16 %v34
  %v174 = vunpack.c.l.b16 %v35
  %v175 = vunpack.c.l.b16 %v36
  %v176 = vunpack.c.l.b16 %v37
  %v177 = vunpack.c.l.b16 %v38
  %v178 = vunpack.c.l.b16 %v39
  %v179 = vunpack.c.l.b16 %v40
  %v180 = vunpack.c.l.b16 %v41
  %v181 = vunpack.c.l.b16 %v42
  %v182 = vunpack.c.l.b16 %v43
  %v183 = vunpack.c.l.b16 %v44
  %v184 = vunpack.c.l.b16 %v45
  %v185 = vunpack.c.l.b16 %v46
  %v186 = vunpack.c.l.b16 %v47
  %v187 = vunpack.c.l.b16 %v48
  %v188 = vunpack.c.l.b16 %v49
  %v189 = vunpack.c.l.b16 %v50
  %v190 = vunpack.c.l.b16 %v51
  %v191 = vunpack.c.l.b16 %v52
  %v192 = vunpack.c.l.b16 %v53
  %v193 = vunpack.c.l.b16 %v54
  %v194 = vunpack.c.l.b16 %v55
  %v195 = vunpack.c.l.b16 %v56
  %v196 = vunpack.c.l.b16 %v57
  %v197 = vunpack.c.l.b16 %v58
  %v198 = vunpack.c.l.b16 %v59
  %v199 = vunpack.c.l.b16 %v60
  %v200 = vunpack.c.l.b16 %v61
  %v201 = vunpack.c.l.b16 %v62
  %v202 = vunpack.c.l.b16 %v63
  %v203 = vunpack.c.l.b16 %v64
  %v204 = vunpack.c.l.b16 %v65
  %v205 = vunpack.c.l.b16 %v66
  %v206 = vunpack.c.l.b16 %v67
  %v207 = vunpack.c.l.b16 %v68
  %v208 = vunpack.c.l.b16 %v69
  %v209 = vunpack.c.l.b16 %v70
  %v210 = vunpack.c.l.b16 %v71
  %v211 = vunpack.c.l.b16 %v72
  %v212 = vunpack.c.l.b16 %v73
  %v213 = vunpack.c.l.b16 %v74
  %v214 = vunpack.c.l.b16 %v75
  %v215 = vunpack.c.l.b16 %v76
  %v216 = vunpack.c.l.b16 %v77
  %v217 = vunpack.c.l.b16 %v78
  %v218 = vunpack.c.l.b16 %v79
  %v219 = vunpack.c.l.b16 %v80
  %v220 = vunpack.c.l.b16 %v81
  %v221 = vunpack.c.l.b16 %v82
  %v222 = vunpack.c.l.b16 %v83
  %v223 = vunpack.c.l.b16 %v84
  %v224 = vpack.c.b16 %v162, %v161
  %v225 = vpack.c.b16 %v164, %v163
  %v226 = vpack.c.b16 %v166, %v165
  %v227 = vpack.c.b16 %v168, %v167
  %v228 = vpack.c.b16 %v170, %v169
  %v229 = vpack.c.b16 %v172, %v171
  %v230 = vpack.c.b16 %v174, %v173
  %v231 = vpack.c.b16 %v176, %v175
  %v232 = vpack.c.b16 %v178, %v177
  %v233 = vpack.c.b16 %v180, %v179
  %v234 = vpack.c.b16 %v182, %v181
  %v235 = vpack.c.b16 %v184, %v183
  %v236 = vpack.c.b16 %v186, %v185
  %v237 = vpack.c.b16 %v188, %v187
  %v238 = vpack.c.b16 %v190, %v189
  %v239 = vpack.c.b16 %v192, %v191
  %v240 = vpack.c.b16 %v194, %v193
  %v241 = vpack.c.b16 %v196, %v195
  %v242 = vpack.c.b16 %v198, %v197
  %v243 = vpack.c.b16 %v200, %v199
  %v244 = vpack.c.b16 %v202, %v201
  %v245 = vpack.c.b16 %v204, %v203
  %v246 = vpack.c.b16 %v206, %v205
  %v247 = vpack.c.b16 %v208, %v207
  %v248 = vpack.c.b16 %v210, %v209
  %v249 = vpack.c.b16 %v212, %v211
  %v250 = vpack.c.b16 %v214, %v213
  %v251 = vpack.c.b16 %v216, %v215
  %v252 = vpack.c.b16 %v218, %v217
  %v253 = vpack.c.b16 %v220, %v219
  %v254 = vpack.c.b16 %v222, %v221
  %v255 = vpack.c.b16 %v223, %v223
  %vm287 = vcmask 982016
  %v289 = vsel %vm287, %v94, 0
  %vm291 = vcmask 1043456
  %v293 = vsel %vm291, %v255, 0
  %295 = vmatpush.bf16.msra.mxu0 %v231
  %296 = vmatpush.bf16.msra.mxu0 %v230
  %297 = vmatpush.bf16.msra.mxu0 %v229
  %298 = vmatpush.bf16.msra.mxu0 %v228
  %299 = vmatpush.bf16.msra.mxu0 %v227
  %300 = vmatpush.bf16.msra.mxu0 %v226
  %301 = vmatpush.bf16.msra.mxu0 %v225
  %302 = vmatpush.bf16.msra.mxu0 %v224
  %303 = vmatmul.bf16.gmra.mxu0 %v91
  %v304 = vpop.f32.mrf.mxu0
  %v305 = vadd.f32 0.0, %v304
  %v306 = vpop.f32.mrf.mxu0
  %307 = vdwg.mxu0
  %308 = vmatpush.bf16.msra.mxu0 %v239
  %309 = vmatpush.bf16.msra.mxu0 %v238
  %310 = vmatpush.bf16.msra.mxu0 %v237
  %311 = vmatpush.bf16.msra.mxu0 %v236
  %312 = vmatpush.bf16.msra.mxu0 %v235
  %313 = vmatpush.bf16.msra.mxu0 %v234
  %314 = vmatpush.bf16.msra.mxu0 %v233
  %315 = vmatpush.bf16.msra.mxu0 %v232
  %316 = vmatmul.bf16.gmra.mxu0 %v92
  %v317 = vpop.f32.mrf.mxu0
  %v318 = vadd.f32 %v305, %v317
  %v319 = vpop.f32.mrf.mxu0
  %320 = vdwg.mxu0
  %321 = vmatpush.bf16.msra.mxu0 %v247
  %322 = vmatpush.bf16.msra.mxu0 %v246
  %323 = vmatpush.bf16.msra.mxu0 %v245
  %324 = vmatpush.bf16.msra.mxu0 %v244
  %325 = vmatpush.bf16.msra.mxu0 %v243
  %326 = vmatpush.bf16.msra.mxu0 %v242
  %327 = vmatpush.bf16.msra.mxu0 %v241
  %328 = vmatpush.bf16.msra.mxu0 %v240
  %329 = vmatmul.bf16.gmra.mxu0 %v93
  %v330 = vpop.f32.mrf.mxu0
  %v331 = vadd.f32 %v318, %v330
  %v332 = vpop.f32.mrf.mxu0
  %333 = vdwg.mxu0
  %334 = vmatpush.bf16.msra.mxu0 %v293
  %335 = vmatpush.bf16.msra.mxu0 %v254
  %336 = vmatpush.bf16.msra.mxu0 %v253
  %337 = vmatpush.bf16.msra.mxu0 %v252
  %338 = vmatpush.bf16.msra.mxu0 %v251
  %339 = vmatpush.bf16.msra.mxu0 %v250
  %340 = vmatpush.bf16.msra.mxu0 %v249
  %341 = vmatpush.bf16.msra.mxu0 %v248
  %342 = vmatmul.bf16.gmra.mxu0 %v289
  %v343 = vpop.f32.mrf.mxu0
  %v344 = vadd.f32 %v331, %v343
  %v345 = vpop.f32.mrf.mxu0
  %346 = vdwg.mxu0
  %v347 = vadd.f32 %v19, %v344
  %348 = vst [vmem:[#allocation2] sm:$0xff] %v347
  // Predicated region
  $region18: #{_lambda_.11} parent=0 // pred_check
    %p349 = pneg %p14
  $region19: #{_lambda_.11} parent=0 // pred_check_branch
    %351 = sbr.rel (%p349) target = $region21
  $region20: #{_lambda_.11} parent=0 // pred_region
    %v352 = vld [vmem:[#allocation2] sm:$0xff]
    %v353 = vld [vmem:[%s2] sm:$0x1]
    %v355 = vperm.slane %v353, 0
    %v357 = vadd.f32 %v352, %v355
    %358 = vst [vmem:[%s3] sm:$0xff] %v357
  $region21: #{_lambda_.11} parent=0 // pred_fallthru
    _
  // Predicated region
  $region22: #{_lambda_.11} parent=0 // pred_check
    _
  $region23: #{_lambda_.11} parent=0 // pred_check_branch
    %360 = sbr.rel (0) target = $region25
  $region24: #{_lambda_.11} parent=0 // pred_region
    _
  $region25: #{_lambda_.11} parent=0 // pred_fallthru
    _
  // Predicated region
  $region26: #{_lambda_.11} parent=0 // pred_check
    _
  $region27: #{_lambda_.11} parent=0 // pred_check_branch
    %362 = sbr.rel (0) target = $region29
  $region28: #{_lambda_.11} parent=0 // pred_region
    _
  $region29: #{_lambda_.11} parent=0 // pred_fallthru
    _

// kernel: _lambda_.9
$region0: #{_lambda_.9}
  #allocation0 [shape = 'u32[]', space=smem, size = 0x4, offset = 0x4, fixed_abs, tag = 'smem constant byte address 0x4 - core index']
  #allocation1 [shape = 'u32[72,128]{1,0:T(1,128)}', space=vmem, size = 0x9000, scoped, tag = 'internal scratch']
  #allocation2 [shape = 'f32[8,256]{1,0:T(8,128)}', space=vmem, size = 0x2000, scoped, tag = 'scratch operand']
  %s0 = inlined_call_operand.vmem [shape: bf16[8,2048], index: 0, kind: input, shape index: {}]
  %s1 = inlined_call_operand.vmem [shape: bf16[2048,512], index: 1, kind: input, shape index: {}]
  %s2 = inlined_call_operand.vmem [shape: f32[1,512], index: 2, kind: input, shape index: {}]
  %s3 = inlined_call_operand.vmem [shape: f32[8,512], index: 3, kind: output, shape index: {}]
  %s4 = sld [smem:[#allocation0]]
  $region91: #{_lambda_.9} parent=0
    _
  %s6 = ssub.s32 1, %s4
  %s7 = scalar_select 0, %s6, %s4
  $region1: #{_lambda_.9} parent=0
    #allocation3 [shape = 'u8[1048576]{0}', space=vmem, size = 0x100000, scoped, tag = 'input window, operand 1']
    loop: start=0, step=1, limit=6
    $region2: #{_lambda_.9} parent=1 // loop_pre_header
      _
    $region3: #{_lambda_.9} parent=1 // loop_header
      %s9 = sphi 0, %s13
      %p10 = scmp.ge.s32.totalorder %s9, 6
      %s16 = sphi 0, %s35
      %s17 = sphi 0, %s31
      %s18 = sphi 0, %s27
      %s19 = sphi 0, %s16
      %s20 = sphi 0, %s17
      %s21 = sphi 0, %s18
      %s22 = sphi 0, %s19
      %s23 = sphi 0, %s20
      %s24 = sphi 0, %s21
      %s40 = sphi 0, %s42
      %s43 = sphi 0, %s40
      %s44 = sphi 0, %s43
      %s60 = sphi 0, %s44
      %s68 = sphi 0, %s70
      %s71 = sphi 0, %s68
      %s72 = sphi 0, %s71
      %s88 = sphi 0, %s72
      %s94 = sphi 0, %s96
      %s97 = sphi 0, %s94
      %s98 = sphi 0, %s97
      %s114 = sphi 0, %s98
      %s122 = sphi 0, %s124
      %s125 = sphi 0, %s122
      %s126 = sphi 0, %s125
      %s142 = sphi 0, %s126
    $region4: #{_lambda_.9} parent=1 // loop_header_branch
      %12 = sbr.rel (%p10) target = $region8
    $region5: #{_lambda_.9} parent=1 // loop_body
      %s14 = ssub.s32 %s9, 1
      %s15 = ssub.s32 %s9, 2
      %s25 = sadd.s32 1, %s18
      %p26 = scmp.ge.s32.totalorder %s25, 2
      %s27 = scalar_select %p26, 0, %s25
      %s28 = sadd.s32 1, %s17
      %s29 = scalar_select %p26, %s28, %s17
      %p30 = scmp.ge.s32.totalorder %s29, 2
      %s31 = scalar_select %p30, 0, %s29
      %s32 = sadd.s32 1, %s16
      %s33 = scalar_select %p30, %s32, %s16
      %p34 = scmp.ge.s32.totalorder %s33, 1
      %s35 = scalar_select %p34, 0, %s33
      %s36 = ssub.s32 %s16, %s35
      %s37 = ssub.s32 %s18, %s27
      %s38 = sor.u32 %s36, %s37
      %p39 = scmp.eq.s32.totalorder %s38, 0
      %s41 = sadd.s32 %s40, 1
      %s42 = scalar_select %p39, %s40, %s41
      %p45 = pneg %p39
      %p46 = scmp.eq.s32.totalorder %s9, 3
      %p47 = por %p45, %p46
      %p48 = scmp.ne.s32.totalorder %s40, %s43
      %p49 = scmp.eq.s32.totalorder %s9, 0
      %p50 = por %p48, %p49
      %p51 = scmp.ne.s32.totalorder %s40, %s43
      %p52 = scmp.eq.s32.totalorder %s14, 3
      %p53 = por %p51, %p52
      %p54 = scmp.ne.s32.totalorder %s43, %s44
      %p55 = scmp.eq.s32.totalorder %s14, 0
      %p56 = por %p54, %p55
      %p57 = scmp.ne.s32.totalorder %s43, %s44
      %p58 = scmp.eq.s32.totalorder %s15, 3
      %p59 = por %p57, %p58
      %p61 = scmp.ne.s32.totalorder %s44, %s60
      %p62 = scmp.eq.s32.totalorder %s15, 0
      %p63 = por %p61, %p62
      %s64 = ssub.s32 %s18, %s27
      %s65 = ssub.s32 %s17, %s31
      %s66 = sor.u32 %s64, %s65
      %p67 = scmp.eq.s32.totalorder %s66, 0
      %s69 = sadd.s32 %s68, 1
      %s70 = scalar_select %p67, %s68, %s69
      %p73 = pneg %p67
      %p74 = scmp.eq.s32.totalorder %s9, 3
      %p75 = por %p73, %p74
      %p76 = scmp.ne.s32.totalorder %s68, %s71
      %p77 = scmp.eq.s32.totalorder %s9, 0
      %p78 = por %p76, %p77
      %p79 = scmp.ne.s32.totalorder %s68, %s71
      %p80 = scmp.eq.s32.totalorder %s14, 3
      %p81 = por %p79, %p80
      %p82 = scmp.ne.s32.totalorder %s71, %s72
      %p83 = scmp.eq.s32.totalorder %s14, 0
      %p84 = por %p82, %p83
      %p85 = scmp.ne.s32.totalorder %s71, %s72
      %p86 = scmp.eq.s32.totalorder %s15, 3
      %p87 = por %p85, %p86
      %p89 = scmp.ne.s32.totalorder %s72, %s88
      %p90 = scmp.eq.s32.totalorder %s15, 0
      %p91 = por %p89, %p90
      %s92 = ssub.s32 %s17, %s31
      %p93 = scmp.eq.s32.totalorder %s92, 0
      %s95 = sadd.s32 %s94, 1
      %s96 = scalar_select %p93, %s94, %s95
      %p99 = pneg %p93
      %p100 = scmp.eq.s32.totalorder %s9, 3
      %p101 = por %p99, %p100
      %p102 = scmp.ne.s32.totalorder %s94, %s97
      %p103 = scmp.eq.s32.totalorder %s9, 0
      %p104 = por %p102, %p103
      %p105 = scmp.ne.s32.totalorder %s94, %s97
      %p106 = scmp.eq.s32.totalorder %s14, 3
      %p107 = por %p105, %p106
      %p108 = scmp.ne.s32.totalorder %s97, %s98
      %p109 = scmp.eq.s32.totalorder %s14, 0
      %p110 = por %p108, %p109
      %p111 = scmp.ne.s32.totalorder %s97, %s98
      %p112 = scmp.eq.s32.totalorder %s15, 3
      %p113 = por %p111, %p112
      %p115 = scmp.ne.s32.totalorder %s98, %s114
      %p116 = scmp.eq.s32.totalorder %s15, 0
      %p117 = por %p115, %p116
      %s118 = ssub.s32 %s16, %s35
      %s119 = ssub.s32 %s17, %s31
      %s120 = sor.u32 %s118, %s119
      %p121 = scmp.eq.s32.totalorder %s120, 0
      %s123 = sadd.s32 %s122, 1
      %s124 = scalar_select %p121, %s122, %s123
      %p127 = pneg %p121
      %p128 = scmp.eq.s32.totalorder %s9, 3
      %p129 = por %p127, %p128
      %p130 = scmp.ne.s32.totalorder %s122, %s125
      %p131 = scmp.eq.s32.totalorder %s9, 0
      %p132 = por %p130, %p131
      %p133 = scmp.ne.s32.totalorder %s122, %s125
      %p134 = scmp.eq.s32.totalorder %s14, 3
      %p135 = por %p133, %p134
      %p136 = scmp.ne.s32.totalorder %s125, %s126
      %p137 = scmp.eq.s32.totalorder %s14, 0
      %p138 = por %p136, %p137
      %p139 = scmp.ne.s32.totalorder %s125, %s126
      %p140 = scmp.eq.s32.totalorder %s15, 3
      %p141 = por %p139, %p140
      %p143 = scmp.ne.s32.totalorder %s126, %s142
      %p144 = scmp.eq.s32.totalorder %s15, 0
      %p145 = por %p143, %p144
      %p146 = scmp.le.s32.totalorder 1, %s9
      %p147 = scmp.lt.s32.totalorder %s9, 5
      %p148 = pnand %p146, %p147
      %p149 = pneg %p148
      // Predicated region
      $region9: #{_lambda_.9} parent=5 // pred_check
        _
      $region10: #{_lambda_.9} parent=5 // pred_check_branch
        %151 = sbr.rel (%p148) target = $region12
      $region11: #{_lambda_.9} parent=5 // pred_region
        %s152 = ssub.s32 %s9, 1
      $region12: #{_lambda_.9} parent=5 // pred_fallthru
        _
      %p153 = scmp.lt.s32.totalorder %s9, 4
      // Predicated region
      $region13: #{_lambda_.9} parent=5 // pred_check
        %p154 = pneg %p153
      $region14: #{_lambda_.9} parent=5 // pred_check_branch
        %156 = sbr.rel (%p154) target = $region16
      $region15: #{_lambda_.9} parent=5 // pred_region
        // Predicated region
        $region17: #{_lambda_.9} parent=15 // pred_check
          %p157 = pneg %p50
        $region18: #{_lambda_.9} parent=15 // pred_check_branch
          %159 = sbr.rel (%p157) target = $region20
        $region19: #{_lambda_.9} parent=15 // pred_region
          %s160 = smul.u32 8, %s18
          %p161 = scmp.lt.s32.totalorder %s16, 0
          %s162 = scalar_select %p161, %s16, 0
          %p163 = scmp.lt.s32.totalorder %s160, 15
          %s164 = scalar_select %p163, %s160, 15
          %s165 = smul.addr %s162, 16
          %s166 = sadd.s32 %s164, %s165
          %s167 = smul.addr %s166, 4
          %s168 = scalar_lea.vmem %s0, %s167
          %s169 = smul.u32 8, %s18
        $region20: #{_lambda_.9} parent=15 // pred_fallthru
          _
        // Predicated region
        $region21: #{_lambda_.9} parent=15 // pred_check
          %p170 = pneg %p78
        $region22: #{_lambda_.9} parent=15 // pred_check_branch
          %172 = sbr.rel (%p170) target = $region24
        $region23: #{_lambda_.9} parent=15 // pred_region
          %s173 = sand.u32 %s68, 1
          %s174 = sand.u32 %s68, 1
          %s175 = smul.addr %s174, 1024
          %s176 = scalar_lea.vmem [#allocation3], %s175
          %s177 = smul.u32 128, %s18
          %s178 = smul.u32 2, %s17
          %s179 = smul.addr %s177, 4
          %s180 = sadd.s32 %s178, %s179
          %s181 = smul.addr %s180, 4
          %s182 = scalar_lea.vmem %s1, %s181
          // Predicated region
          $region25: #{_lambda_.9} parent=23 // pred_check
            _
          $region26: #{_lambda_.9} parent=23 // pred_check_branch
            %184 = sbr.rel (0) target = $region28
          $region27: #{_lambda_.9} parent=23 // pred_region
            // Predicated region
            $region29: #{_lambda_.9} parent=27 // pred_check
              _
            $region30: #{_lambda_.9} parent=27 // pred_check_branch
              %186 = sbr.rel (0) target = $region32
            $region31: #{_lambda_.9} parent=27 // pred_region
              // Predicated region
              $region44: #{_lambda_.9} parent=31 // pred_check
                _
              $region45: #{_lambda_.9} parent=31 // pred_check_branch
                %456 = sbr.rel (0) target = $region47
              $region46: #{_lambda_.9} parent=31 // pred_region
                loop: start=0, step=1, limit=1
                $region48: #{_lambda_.9} parent=46 // loop_pre_header
                  _
                $region49: #{_lambda_.9} parent=46 // loop_header
                  %s458 = sphi 0, %s462
                  %p459 = scmp.ge.s32.totalorder %s458, 1
                  %s463 = sphi %s182, %s182
                  %s464 = sphi %s176, %s176
                $region50: #{_lambda_.9} parent=46 // loop_header_branch
                  %461 = sbr.rel (%p459) target = $region54
                $region51: #{_lambda_.9} parent=46 // loop_body
                  %v465 = vld [vmem:[%s463] sm:$0xff]
                  %466 = vst [vmem:[%s464] sm:$0xff] %v465
                  %v467 = vld [vmem:[%s463 + $0x10] sm:$0xff]
                  %468 = vst [vmem:[%s464 + $0x8] sm:$0xff] %v467
                  %v469 = vld [vmem:[%s463 + $0x20] sm:$0xff]
                  %470 = vst [vmem:[%s464 + $0x10] sm:$0xff] %v469
                  %v471 = vld [vmem:[%s463 + $0x30] sm:$0xff]
                  %472 = vst [vmem:[%s464 + $0x18] sm:$0xff] %v471
                  %v473 = vld [vmem:[%s463 + $0x40] sm:$0xff]
                  %474 = vst [vmem:[%s464 + $0x20] sm:$0xff] %v473
                  %v475 = vld [vmem:[%s463 + $0x50] sm:$0xff]
                  %476 = vst [vmem:[%s464 + $0x28] sm:$0xff] %v475
                  %v477 = vld [vmem:[%s463 + $0x60] sm:$0xff]
                  %478 = vst [vmem:[%s464 + $0x30] sm:$0xff] %v477
                  %v479 = vld [vmem:[%s463 + $0x70] sm:$0xff]
                  %480 = vst [vmem:[%s464 + $0x38] sm:$0xff] %v479
                  %v481 = vld [vmem:[%s463 + $0x80] sm:$0xff]
                  %482 = vst [vmem:[%s464 + $0x40] sm:$0xff] %v481
                  %v483 = vld [vmem:[%s463 + $0x90] sm:$0xff]
                  %484 = vst [vmem:[%s464 + $0x48] sm:$0xff] %v483
                  %v485 = vld [vmem:[%s463 + $0xa0] sm:$0xff]
                  %486 = vst [vmem:[%s464 + $0x50] sm:$0xff] %v485
                  %v487 = vld [vmem:[%s463 + $0xb0] sm:$0xff]
                  %488 = vst [vmem:[%s464 + $0x58] sm:$0xff] %v487
                  %v489 = vld [vmem:[%s463 + $0xc0] sm:$0xff]
                  %490 = vst [vmem:[%s464 + $0x60] sm:$0xff] %v489
                  %v491 = vld [vmem:[%s463 + $0xd0] sm:$0xff]
                  %492 = vst [vmem:[%s464 + $0x68] sm:$0xff] %v491
                  %v493 = vld [vmem:[%s463 + $0xe0] sm:$0xff]
                  %494 = vst [vmem:[%s464 + $0x70] sm:$0xff] %v493
                  %v495 = vld [vmem:[%s463 + $0xf0] sm:$0xff]
                  %496 = vst [vmem:[%s464 + $0x78] sm:$0xff] %v495
                  %v497 = vld [vmem:[%s463 + $0x100] sm:$0xff]
                  %498 = vst [vmem:[%s464 + $0x80] sm:$0xff] %v497
                  %v499 = vld [vmem:[%s463 + $0x110] sm:$0xff]
                  %500 = vst [vmem:[%s464 + $0x88] sm:$0xff] %v499
                  %v501 = vld [vmem:[%s463 + $0x120] sm:$0xff]
                  %502 = vst [vmem:[%s464 + $0x90] sm:$0xff] %v501
                  %v503 = vld [vmem:[%s463 + $0x130] sm:$0xff]
                  %504 = vst [vmem:[%s464 + $0x98] sm:$0xff] %v503
                  %v505 = vld [vmem:[%s463 + $0x140] sm:$0xff]
                  %506 = vst [vmem:[%s464 + $0xa0] sm:$0xff] %v505
                  %v507 = vld [vmem:[%s463 + $0x150] sm:$0xff]
                  %508 = vst [vmem:[%s464 + $0xa8] sm:$0xff] %v507
                  %v509 = vld [vmem:[%s463 + $0x160] sm:$0xff]
                  %510 = vst [vmem:[%s464 + $0xb0] sm:$0xff] %v509
                  %v511 = vld [vmem:[%s463 + $0x170] sm:$0xff]
                  %512 = vst [vmem:[%s464 + $0xb8] sm:$0xff] %v511
                  %v513 = vld [vmem:[%s463 + $0x180] sm:$0xff]
                  %514 = vst [vmem:[%s464 + $0xc0] sm:$0xff] %v513
                  %v515 = vld [vmem:[%s463 + $0x190] sm:$0xff]
                  %516 = vst [vmem:[%s464 + $0xc8] sm:$0xff] %v515
                  %v517 = vld [vmem:[%s463 + $0x1a0] sm:$0xff]
                  %518 = vst [vmem:[%s464 + $0xd0] sm:$0xff] %v517
                  %v519 = vld [vmem:[%s463 + $0x1b0] sm:$0xff]
                  %520 = vst [vmem:[%s464 + $0xd8] sm:$0xff] %v519
                  %v521 = vld [vmem:[%s463 + $0x1c0] sm:$0xff]
                  %522 = vst [vmem:[%s464 + $0xe0] sm:$0xff] %v521
                  %v523 = vld [vmem:[%s463 + $0x1d0] sm:$0xff]
                  %524 = vst [vmem:[%s464 + $0xe8] sm:$0xff] %v523
                  %v525 = vld [vmem:[%s463 + $0x1e0] sm:$0xff]
                  %526 = vst [vmem:[%s464 + $0xf0] sm:$0xff] %v525
                  %v527 = vld [vmem:[%s463 + $0x1f0] sm:$0xff]
                  %528 = vst [vmem:[%s464 + $0xf8] sm:$0xff] %v527
                  %v529 = vld [vmem:[%s463 + $0x200] sm:$0xff]
                  %530 = vst [vmem:[%s464 + $0x100] sm:$0xff] %v529
                  %v531 = vld [vmem:[%s463 + $0x210] sm:$0xff]
                  %532 = vst [vmem:[%s464 + $0x108] sm:$0xff] %v531
                  %v533 = vld [vmem:[%s463 + $0x220] sm:$0xff]
                  %534 = vst [vmem:[%s464 + $0x110] sm:$0xff] %v533
                  %v535 = vld [vmem:[%s463 + $0x230] sm:$0xff]
                  %536 = vst [vmem:[%s464 + $0x118] sm:$0xff] %v535
                  %v537 = vld [vmem:[%s463 + $0x240] sm:$0xff]
                  %538 = vst [vmem:[%s464 + $0x120] sm:$0xff] %v537
                  %v539 = vld [vmem:[%s463 + $0x250] sm:$0xff]
                  %540 = vst [vmem:[%s464 + $0x128] sm:$0xff] %v539
                  %v541 = vld [vmem:[%s463 + $0x260] sm:$0xff]
                  %542 = vst [vmem:[%s464 + $0x130] sm:$0xff] %v541
                  %v543 = vld [vmem:[%s463 + $0x270] sm:$0xff]
                  %544 = vst [vmem:[%s464 + $0x138] sm:$0xff] %v543
                  %v545 = vld [vmem:[%s463 + $0x280] sm:$0xff]
                  %546 = vst [vmem:[%s464 + $0x140] sm:$0xff] %v545
                  %v547 = vld [vmem:[%s463 + $0x290] sm:$0xff]
                  %548 = vst [vmem:[%s464 + $0x148] sm:$0xff] %v547
                  %v549 = vld [vmem:[%s463 + $0x2a0] sm:$0xff]
                  %550 = vst [vmem:[%s464 + $0x150] sm:$0xff] %v549
                  %v551 = vld [vmem:[%s463 + $0x2b0] sm:$0xff]
                  %552 = vst [vmem:[%s464 + $0x158] sm:$0xff] %v551
                  %v553 = vld [vmem:[%s463 + $0x2c0] sm:$0xff]
                  %554 = vst [vmem:[%s464 + $0x160] sm:$0xff] %v553
                  %v555 = vld [vmem:[%s463 + $0x2d0] sm:$0xff]
                  %556 = vst [vmem:[%s464 + $0x168] sm:$0xff] %v555
                  %v557 = vld [vmem:[%s463 + $0x2e0] sm:$0xff]
                  %558 = vst [vmem:[%s464 + $0x170] sm:$0xff] %v557
                  %v559 = vld [vmem:[%s463 + $0x2f0] sm:$0xff]
                  %560 = vst [vmem:[%s464 + $0x178] sm:$0xff] %v559
                  %v561 = vld [vmem:[%s463 + $0x300] sm:$0xff]
                  %562 = vst [vmem:[%s464 + $0x180] sm:$0xff] %v561
                  %v563 = vld [vmem:[%s463 + $0x310] sm:$0xff]
                  %564 = vst [vmem:[%s464 + $0x188] sm:$0xff] %v563
                  %v565 = vld [vmem:[%s463 + $0x320] sm:$0xff]
                  %566 = vst [vmem:[%s464 + $0x190] sm:$0xff] %v565
                  %v567 = vld [vmem:[%s463 + $0x330] sm:$0xff]
                  %568 = vst [vmem:[%s464 + $0x198] sm:$0xff] %v567
                  %v569 = vld [vmem:[%s463 + $0x340] sm:$0xff]
                  %570 = vst [vmem:[%s464 + $0x1a0] sm:$0xff] %v569
                  %v571 = vld [vmem:[%s463 + $0x350] sm:$0xff]
                  %572 = vst [vmem:[%s464 + $0x1a8] sm:$0xff] %v571
                  %v573 = vld [vmem:[%s463 + $0x360] sm:$0xff]
                  %574 = vst [vmem:[%s464 + $0x1b0] sm:$0xff] %v573
                  %v575 = vld [vmem:[%s463 + $0x370] sm:$0xff]
                  %576 = vst [vmem:[%s464 + $0x1b8] sm:$0xff] %v575
                  %v577 = vld [vmem:[%s463 + $0x380] sm:$0xff]
                  %578 = vst [vmem:[%s464 + $0x1c0] sm:$0xff] %v577
                  %v579 = vld [vmem:[%s463 + $0x390] sm:$0xff]
                  %580 = vst [vmem:[%s464 + $0x1c8] sm:$0xff] %v579
                  %v581 = vld [vmem:[%s463 + $0x3a0] sm:$0xff]
                  %582 = vst [vmem:[%s464 + $0x1d0] sm:$0xff] %v581
                  %v583 = vld [vmem:[%s463 + $0x3b0] sm:$0xff]
                  %584 = vst [vmem:[%s464 + $0x1d8] sm:$0xff] %v583
                  %v585 = vld [vmem:[%s463 + $0x3c0] sm:$0xff]
                  %586 = vst [vmem:[%s464 + $0x1e0] sm:$0xff] %v585
                  %v587 = vld [vmem:[%s463 + $0x3d0] sm:$0xff]
                  %588 = vst [vmem:[%s464 + $0x1e8] sm:$0xff] %v587
                  %v589 = vld [vmem:[%s463 + $0x3e0] sm:$0xff]
                  %590 = vst [vmem:[%s464 + $0x1f0] sm:$0xff] %v589
                  %v591 = vld [vmem:[%s463 + $0x3f0] sm:$0xff]
                  %592 = vst [vmem:[%s464 + $0x1f8] sm:$0xff] %v591
                  %v593 = vld [vmem:[%s463 + $0x400] sm:$0xff]
                  %594 = vst [vmem:[%s464 + $0x200] sm:$0xff] %v593
                  %v595 = vld [vmem:[%s463 + $0x410] sm:$0xff]
                  %596 = vst [vmem:[%s464 + $0x208] sm:$0xff] %v595
                  %v597 = vld [vmem:[%s463 + $0x420] sm:$0xff]
                  %598 = vst [vmem:[%s464 + $0x210] sm:$0xff] %v597
                  %v599 = vld [vmem:[%s463 + $0x430] sm:$0xff]
                  %600 = vst [vmem:[%s464 + $0x218] sm:$0xff] %v599
                  %v601 = vld [vmem:[%s463 + $0x440] sm:$0xff]
                  %602 = vst [vmem:[%s464 + $0x220] sm:$0xff] %v601
                  %v603 = vld [vmem:[%s463 + $0x450] sm:$0xff]
                  %604 = vst [vmem:[%s464 + $0x228] sm:$0xff] %v603
                  %v605 = vld [vmem:[%s463 + $0x460] sm:$0xff]
                  %606 = vst [vmem:[%s464 + $0x230] sm:$0xff] %v605
                  %v607 = vld [vmem:[%s463 + $0x470] sm:$0xff]
                  %608 = vst [vmem:[%s464 + $0x238] sm:$0xff] %v607
                  %v609 = vld [vmem:[%s463 + $0x480] sm:$0xff]
                  %610 = vst [vmem:[%s464 + $0x240] sm:$0xff] %v609
                  %v611 = vld [vmem:[%s463 + $0x490] sm:$0xff]
                  %612 = vst [vmem:[%s464 + $0x248] sm:$0xff] %v611
                  %v613 = vld [vmem:[%s463 + $0x4a0] sm:$0xff]
                  %614 = vst [vmem:[%s464 + $0x250] sm:$0xff] %v613
                  %v615 = vld [vmem:[%s463 + $0x4b0] sm:$0xff]
                  %616 = vst [vmem:[%s464 + $0x258] sm:$0xff] %v615
                  %v617 = vld [vmem:[%s463 + $0x4c0] sm:$0xff]
                  %618 = vst [vmem:[%s464 + $0x260] sm:$0xff] %v617
                  %v619 = vld [vmem:[%s463 + $0x4d0] sm:$0xff]
                  %620 = vst [vmem:[%s464 + $0x268] sm:$0xff] %v619
                  %v621 = vld [vmem:[%s463 + $0x4e0] sm:$0xff]
                  %622 = vst [vmem:[%s464 + $0x270] sm:$0xff] %v621
                  %v623 = vld [vmem:[%s463 + $0x4f0] sm:$0xff]
                  %624 = vst [vmem:[%s464 + $0x278] sm:$0xff] %v623
                  %v625 = vld [vmem:[%s463 + $0x500] sm:$0xff]
                  %626 = vst [vmem:[%s464 + $0x280] sm:$0xff] %v625
                  %v627 = vld [vmem:[%s463 + $0x510] sm:$0xff]
                  %628 = vst [vmem:[%s464 + $0x288] sm:$0xff] %v627
                  %v629 = vld [vmem:[%s463 + $0x520] sm:$0xff]
                  %630 = vst [vmem:[%s464 + $0x290] sm:$0xff] %v629
                  %v631 = vld [vmem:[%s463 + $0x530] sm:$0xff]
                  %632 = vst [vmem:[%s464 + $0x298] sm:$0xff] %v631
                  %v633 = vld [vmem:[%s463 + $0x540] sm:$0xff]
                  %634 = vst [vmem:[%s464 + $0x2a0] sm:$0xff] %v633
                  %v635 = vld [vmem:[%s463 + $0x550] sm:$0xff]
                  %636 = vst [vmem:[%s464 + $0x2a8] sm:$0xff] %v635
                  %v637 = vld [vmem:[%s463 + $0x560] sm:$0xff]
                  %638 = vst [vmem:[%s464 + $0x2b0] sm:$0xff] %v637
                  %v639 = vld [vmem:[%s463 + $0x570] sm:$0xff]
                  %640 = vst [vmem:[%s464 + $0x2b8] sm:$0xff] %v639
                  %v641 = vld [vmem:[%s463 + $0x580] sm:$0xff]
                  %642 = vst [vmem:[%s464 + $0x2c0] sm:$0xff] %v641
                  %v643 = vld [vmem:[%s463 + $0x590] sm:$0xff]
                  %644 = vst [vmem:[%s464 + $0x2c8] sm:$0xff] %v643
                  %v645 = vld [vmem:[%s463 + $0x5a0] sm:$0xff]
                  %646 = vst [vmem:[%s464 + $0x2d0] sm:$0xff] %v645
                  %v647 = vld [vmem:[%s463 + $0x5b0] sm:$0xff]
                  %648 = vst [vmem:[%s464 + $0x2d8] sm:$0xff] %v647
                  %v649 = vld [vmem:[%s463 + $0x5c0] sm:$0xff]
                  %650 = vst [vmem:[%s464 + $0x2e0] sm:$0xff] %v649
                  %v651 = vld [vmem:[%s463 + $0x5d0] sm:$0xff]
                  %652 = vst [vmem:[%s464 + $0x2e8] sm:$0xff] %v651
                  %v653 = vld [vmem:[%s463 + $0x5e0] sm:$0xff]
                  %654 = vst [vmem:[%s464 + $0x2f0] sm:$0xff] %v653
                  %v655 = vld [vmem:[%s463 + $0x5f0] sm:$0xff]
                  %656 = vst [vmem:[%s464 + $0x2f8] sm:$0xff] %v655
                  %v657 = vld [vmem:[%s463 + $0x600] sm:$0xff]
                  %658 = vst [vmem:[%s464 + $0x300] sm:$0xff] %v657
                  %v659 = vld [vmem:[%s463 + $0x610] sm:$0xff]
                  %660 = vst [vmem:[%s464 + $0x308] sm:$0xff] %v659
                  %v661 = vld [vmem:[%s463 + $0x620] sm:$0xff]
                  %662 = vst [vmem:[%s464 + $0x310] sm:$0xff] %v661
                  %v663 = vld [vmem:[%s463 + $0x630] sm:$0xff]
                  %664 = vst [vmem:[%s464 + $0x318] sm:$0xff] %v663
                  %v665 = vld [vmem:[%s463 + $0x640] sm:$0xff]
                  %666 = vst [vmem:[%s464 + $0x320] sm:$0xff] %v665
                  %v667 = vld [vmem:[%s463 + $0x650] sm:$0xff]
                  %668 = vst [vmem:[%s464 + $0x328] sm:$0xff] %v667
                  %v669 = vld [vmem:[%s463 + $0x660] sm:$0xff]
                  %670 = vst [vmem:[%s464 + $0x330] sm:$0xff] %v669
                  %v671 = vld [vmem:[%s463 + $0x670] sm:$0xff]
                  %672 = vst [vmem:[%s464 + $0x338] sm:$0xff] %v671
                  %v673 = vld [vmem:[%s463 + $0x680] sm:$0xff]
                  %674 = vst [vmem:[%s464 + $0x340] sm:$0xff] %v673
                  %v675 = vld [vmem:[%s463 + $0x690] sm:$0xff]
                  %676 = vst [vmem:[%s464 + $0x348] sm:$0xff] %v675
                  %v677 = vld [vmem:[%s463 + $0x6a0] sm:$0xff]
                  %678 = vst [vmem:[%s464 + $0x350] sm:$0xff] %v677
                  %v679 = vld [vmem:[%s463 + $0x6b0] sm:$0xff]
                  %680 = vst [vmem:[%s464 + $0x358] sm:$0xff] %v679
                  %v681 = vld [vmem:[%s463 + $0x6c0] sm:$0xff]
                  %682 = vst [vmem:[%s464 + $0x360] sm:$0xff] %v681
                  %v683 = vld [vmem:[%s463 + $0x6d0] sm:$0xff]
                  %684 = vst [vmem:[%s464 + $0x368] sm:$0xff] %v683
                  %v685 = vld [vmem:[%s463 + $0x6e0] sm:$0xff]
                  %686 = vst [vmem:[%s464 + $0x370] sm:$0xff] %v685
                  %v687 = vld [vmem:[%s463 + $0x6f0] sm:$0xff]
                  %688 = vst [vmem:[%s464 + $0x378] sm:$0xff] %v687
                  %v689 = vld [vmem:[%s463 + $0x700] sm:$0xff]
                  %690 = vst [vmem:[%s464 + $0x380] sm:$0xff] %v689
                  %v691 = vld [vmem:[%s463 + $0x710] sm:$0xff]
                  %692 = vst [vmem:[%s464 + $0x388] sm:$0xff] %v691
                  %v693 = vld [vmem:[%s463 + $0x720] sm:$0xff]
                  %694 = vst [vmem:[%s464 + $0x390] sm:$0xff] %v693
                  %v695 = vld [vmem:[%s463 + $0x730] sm:$0xff]
                  %696 = vst [vmem:[%s464 + $0x398] sm:$0xff] %v695
                  %v697 = vld [vmem:[%s463 + $0x740] sm:$0xff]
                  %698 = vst [vmem:[%s464 + $0x3a0] sm:$0xff] %v697
                  %v699 = vld [vmem:[%s463 + $0x750] sm:$0xff]
                  %700 = vst [vmem:[%s464 + $0x3a8] sm:$0xff] %v699
                  %v701 = vld [vmem:[%s463 + $0x760] sm:$0xff]
                  %702 = vst [vmem:[%s464 + $0x3b0] sm:$0xff] %v701
                  %v703 = vld [vmem:[%s463 + $0x770] sm:$0xff]
                  %704 = vst [vmem:[%s464 + $0x3b8] sm:$0xff] %v703
                  %v705 = vld [vmem:[%s463 + $0x780] sm:$0xff]
                  %706 = vst [vmem:[%s464 + $0x3c0] sm:$0xff] %v705
                  %v707 = vld [vmem:[%s463 + $0x790] sm:$0xff]
                  %708 = vst [vmem:[%s464 + $0x3c8] sm:$0xff] %v707
                  %v709 = vld [vmem:[%s463 + $0x7a0] sm:$0xff]
                  %710 = vst [vmem:[%s464 + $0x3d0] sm:$0xff] %v709
                  %v711 = vld [vmem:[%s463 + $0x7b0] sm:$0xff]
                  %712 = vst [vmem:[%s464 + $0x3d8] sm:$0xff] %v711
                  %v713 = vld [vmem:[%s463 + $0x7c0] sm:$0xff]
                  %714 = vst [vmem:[%s464 + $0x3e0] sm:$0xff] %v713
                  %v715 = vld [vmem:[%s463 + $0x7d0] sm:$0xff]
                  %716 = vst [vmem:[%s464 + $0x3e8] sm:$0xff] %v715
                  %v717 = vld [vmem:[%s463 + $0x7e0] sm:$0xff]
                  %718 = vst [vmem:[%s464 + $0x3f0] sm:$0xff] %v717
                  %v719 = vld [vmem:[%s463 + $0x7f0] sm:$0xff]
                  %720 = vst [vmem:[%s464 + $0x3f8] sm:$0xff] %v719
                $region52: #{_lambda_.9} parent=46 // loop_footer
                  %s462 = sadd.s32 1, %s458
                $region53: #{_lambda_.9} parent=46 // loop_footer_branch
                  %457 = sbr.rel target = $region49
                $region54: #{_lambda_.9} parent=46 // loop_exit
                  _
              $region47: #{_lambda_.9} parent=31 // pred_fallthru
                _
              // Predicated region
              $region55: #{_lambda_.9} parent=31 // pred_check
                _
              $region56: #{_lambda_.9} parent=31 // pred_check_branch
                %722 = sbr.rel target = $region58
              $region57: #{_lambda_.9} parent=31 // pred_region
                _
              $region58: #{_lambda_.9} parent=31 // pred_fallthru
                _
            $region32: #{_lambda_.9} parent=27 // pred_fallthru
              _
            // Predicated region
            $region33: #{_lambda_.9} parent=27 // pred_check
              _
            $region34: #{_lambda_.9} parent=27 // pred_check_branch
              %188 = sbr.rel target = $region36
            $region35: #{_lambda_.9} parent=27 // pred_region
              %s190 = ssub.s32 256, 1
              loop: start=0, step=1, limit=1
              $region37: #{_lambda_.9} parent=35 // loop_pre_header
                _
              $region38: #{_lambda_.9} parent=35 // loop_header
                %s192 = sphi 0, %s196
                %p193 = scmp.ge.s32.totalorder %s192, 1
                %s197 = sphi %s182, %s182
                %s198 = sphi %s176, %s176
              $region39: #{_lambda_.9} parent=35 // loop_header_branch
                %195 = sbr.rel (%p193) target = $region43
              $region40: #{_lambda_.9} parent=35 // loop_body
                %v199 = vld [vmem:[%s197] sm:%s190]
                %200 = vst [vmem:[%s198] sm:%s190] %v199
                %v201 = vld [vmem:[%s197 + $0x10] sm:%s190]
                %202 = vst [vmem:[%s198 + $0x8] sm:%s190] %v201
                %v203 = vld [vmem:[%s197 + $0x20] sm:%s190]
                %204 = vst [vmem:[%s198 + $0x10] sm:%s190] %v203
                %v205 = vld [vmem:[%s197 + $0x30] sm:%s190]
                %206 = vst [vmem:[%s198 + $0x18] sm:%s190] %v205
                %v207 = vld [vmem:[%s197 + $0x40] sm:%s190]
                %208 = vst [vmem:[%s198 + $0x20] sm:%s190] %v207
                %v209 = vld [vmem:[%s197 + $0x50] sm:%s190]
                %210 = vst [vmem:[%s198 + $0x28] sm:%s190] %v209
                %v211 = vld [vmem:[%s197 + $0x60] sm:%s190]
                %212 = vst [vmem:[%s198 + $0x30] sm:%s190] %v211
                %v213 = vld [vmem:[%s197 + $0x70] sm:%s190]
                %214 = vst [vmem:[%s198 + $0x38] sm:%s190] %v213
                %v215 = vld [vmem:[%s197 + $0x80] sm:%s190]
                %216 = vst [vmem:[%s198 + $0x40] sm:%s190] %v215
                %v217 = vld [vmem:[%s197 + $0x90] sm:%s190]
                %218 = vst [vmem:[%s198 + $0x48] sm:%s190] %v217
                %v219 = vld [vmem:[%s197 + $0xa0] sm:%s190]
                %220 = vst [vmem:[%s198 + $0x50] sm:%s190] %v219
                %v221 = vld [vmem:[%s197 + $0xb0] sm:%s190]
                %222 = vst [vmem:[%s198 + $0x58] sm:%s190] %v221
                %v223 = vld [vmem:[%s197 + $0xc0] sm:%s190]
                %224 = vst [vmem:[%s198 + $0x60] sm:%s190] %v223
                %v225 = vld [vmem:[%s197 + $0xd0] sm:%s190]
                %226 = vst [vmem:[%s198 + $0x68] sm:%s190] %v225
                %v227 = vld [vmem:[%s197 + $0xe0] sm:%s190]
                %228 = vst [vmem:[%s198 + $0x70] sm:%s190] %v227
                %v229 = vld [vmem:[%s197 + $0xf0] sm:%s190]
                %230 = vst [vmem:[%s198 + $0x78] sm:%s190] %v229
                %v231 = vld [vmem:[%s197 + $0x100] sm:%s190]
                %232 = vst [vmem:[%s198 + $0x80] sm:%s190] %v231
                %v233 = vld [vmem:[%s197 + $0x110] sm:%s190]
                %234 = vst [vmem:[%s198 + $0x88] sm:%s190] %v233
                %v235 = vld [vmem:[%s197 + $0x120] sm:%s190]
                %236 = vst [vmem:[%s198 + $0x90] sm:%s190] %v235
                %v237 = vld [vmem:[%s197 + $0x130] sm:%s190]
                %238 = vst [vmem:[%s198 + $0x98] sm:%s190] %v237
                %v239 = vld [vmem:[%s197 + $0x140] sm:%s190]
                %240 = vst [vmem:[%s198 + $0xa0] sm:%s190] %v239
                %v241 = vld [vmem:[%s197 + $0x150] sm:%s190]
                %242 = vst [vmem:[%s198 + $0xa8] sm:%s190] %v241
                %v243 = vld [vmem:[%s197 + $0x160] sm:%s190]
                %244 = vst [vmem:[%s198 + $0xb0] sm:%s190] %v243
                %v245 = vld [vmem:[%s197 + $0x170] sm:%s190]
                %246 = vst [vmem:[%s198 + $0xb8] sm:%s190] %v245
                %v247 = vld [vmem:[%s197 + $0x180] sm:%s190]
                %248 = vst [vmem:[%s198 + $0xc0] sm:%s190] %v247
                %v249 = vld [vmem:[%s197 + $0x190] sm:%s190]
                %250 = vst [vmem:[%s198 + $0xc8] sm:%s190] %v249
                %v251 = vld [vmem:[%s197 + $0x1a0] sm:%s190]
                %252 = vst [vmem:[%s198 + $0xd0] sm:%s190] %v251
                %v253 = vld [vmem:[%s197 + $0x1b0] sm:%s190]
                %254 = vst [vmem:[%s198 + $0xd8] sm:%s190] %v253
                %v255 = vld [vmem:[%s197 + $0x1c0] sm:%s190]
                %256 = vst [vmem:[%s198 + $0xe0] sm:%s190] %v255
                %v257 = vld [vmem:[%s197 + $0x1d0] sm:%s190]
                %258 = vst [vmem:[%s198 + $0xe8] sm:%s190] %v257
                %v259 = vld [vmem:[%s197 + $0x1e0] sm:%s190]
                %260 = vst [vmem:[%s198 + $0xf0] sm:%s190] %v259
                %v261 = vld [vmem:[%s197 + $0x1f0] sm:%s190]
                %262 = vst [vmem:[%s198 + $0xf8] sm:%s190] %v261
                %v263 = vld [vmem:[%s197 + $0x200] sm:%s190]
                %264 = vst [vmem:[%s198 + $0x100] sm:%s190] %v263
                %v265 = vld [vmem:[%s197 + $0x210] sm:%s190]
                %266 = vst [vmem:[%s198 + $0x108] sm:%s190] %v265
                %v267 = vld [vmem:[%s197 + $0x220] sm:%s190]
                %268 = vst [vmem:[%s198 + $0x110] sm:%s190] %v267
                %v269 = vld [vmem:[%s197 + $0x230] sm:%s190]
                %270 = vst [vmem:[%s198 + $0x118] sm:%s190] %v269
                %v271 = vld [vmem:[%s197 + $0x240] sm:%s190]
                %272 = vst [vmem:[%s198 + $0x120] sm:%s190] %v271
                %v273 = vld [vmem:[%s197 + $0x250] sm:%s190]
                %274 = vst [vmem:[%s198 + $0x128] sm:%s190] %v273
                %v275 = vld [vmem:[%s197 + $0x260] sm:%s190]
                %276 = vst [vmem:[%s198 + $0x130] sm:%s190] %v275
                %v277 = vld [vmem:[%s197 + $0x270] sm:%s190]
                %278 = vst [vmem:[%s198 + $0x138] sm:%s190] %v277
                %v279 = vld [vmem:[%s197 + $0x280] sm:%s190]
                %280 = vst [vmem:[%s198 + $0x140] sm:%s190] %v279
                %v281 = vld [vmem:[%s197 + $0x290] sm:%s190]
                %282 = vst [vmem:[%s198 + $0x148] sm:%s190] %v281
                %v283 = vld [vmem:[%s197 + $0x2a0] sm:%s190]
                %284 = vst [vmem:[%s198 + $0x150] sm:%s190] %v283
                %v285 = vld [vmem:[%s197 + $0x2b0] sm:%s190]
                %286 = vst [vmem:[%s198 + $0x158] sm:%s190] %v285
                %v287 = vld [vmem:[%s197 + $0x2c0] sm:%s190]
                %288 = vst [vmem:[%s198 + $0x160] sm:%s190] %v287
                %v289 = vld [vmem:[%s197 + $0x2d0] sm:%s190]
                %290 = vst [vmem:[%s198 + $0x168] sm:%s190] %v289
                %v291 = vld [vmem:[%s197 + $0x2e0] sm:%s190]
                %292 = vst [vmem:[%s198 + $0x170] sm:%s190] %v291
                %v293 = vld [vmem:[%s197 + $0x2f0] sm:%s190]
                %294 = vst [vmem:[%s198 + $0x178] sm:%s190] %v293
                %v295 = vld [vmem:[%s197 + $0x300] sm:%s190]
                %296 = vst [vmem:[%s198 + $0x180] sm:%s190] %v295
                %v297 = vld [vmem:[%s197 + $0x310] sm:%s190]
                %298 = vst [vmem:[%s198 + $0x188] sm:%s190] %v297
                %v299 = vld [vmem:[%s197 + $0x320] sm:%s190]
                %300 = vst [vmem:[%s198 + $0x190] sm:%s190] %v299
                %v301 = vld [vmem:[%s197 + $0x330] sm:%s190]
                %302 = vst [vmem:[%s198 + $0x198] sm:%s190] %v301
                %v303 = vld [vmem:[%s197 + $0x340] sm:%s190]
                %304 = vst [vmem:[%s198 + $0x1a0] sm:%s190] %v303
                %v305 = vld [vmem:[%s197 + $0x350] sm:%s190]
                %306 = vst [vmem:[%s198 + $0x1a8] sm:%s190] %v305
                %v307 = vld [vmem:[%s197 + $0x360] sm:%s190]
                %308 = vst [vmem:[%s198 + $0x1b0] sm:%s190] %v307
                %v309 = vld [vmem:[%s197 + $0x370] sm:%s190]
                %310 = vst [vmem:[%s198 + $0x1b8] sm:%s190] %v309
                %v311 = vld [vmem:[%s197 + $0x380] sm:%s190]
                %312 = vst [vmem:[%s198 + $0x1c0] sm:%s190] %v311
                %v313 = vld [vmem:[%s197 + $0x390] sm:%s190]
                %314 = vst [vmem:[%s198 + $0x1c8] sm:%s190] %v313
                %v315 = vld [vmem:[%s197 + $0x3a0] sm:%s190]
                %316 = vst [vmem:[%s198 + $0x1d0] sm:%s190] %v315
                %v317 = vld [vmem:[%s197 + $0x3b0] sm:%s190]
                %318 = vst [vmem:[%s198 + $0x1d8] sm:%s190] %v317
                %v319 = vld [vmem:[%s197 + $0x3c0] sm:%s190]
                %320 = vst [vmem:[%s198 + $0x1e0] sm:%s190] %v319
                %v321 = vld [vmem:[%s197 + $0x3d0] sm:%s190]
                %322 = vst [vmem:[%s198 + $0x1e8] sm:%s190] %v321
                %v323 = vld [vmem:[%s197 + $0x3e0] sm:%s190]
                %324 = vst [vmem:[%s198 + $0x1f0] sm:%s190] %v323
                %v325 = vld [vmem:[%s197 + $0x3f0] sm:%s190]
                %326 = vst [vmem:[%s198 + $0x1f8] sm:%s190] %v325
                %v327 = vld [vmem:[%s197 + $0x400] sm:%s190]
                %328 = vst [vmem:[%s198 + $0x200] sm:%s190] %v327
                %v329 = vld [vmem:[%s197 + $0x410] sm:%s190]
                %330 = vst [vmem:[%s198 + $0x208] sm:%s190] %v329
                %v331 = vld [vmem:[%s197 + $0x420] sm:%s190]
                %332 = vst [vmem:[%s198 + $0x210] sm:%s190] %v331
                %v333 = vld [vmem:[%s197 + $0x430] sm:%s190]
                %334 = vst [vmem:[%s198 + $0x218] sm:%s190] %v333
                %v335 = vld [vmem:[%s197 + $0x440] sm:%s190]
                %336 = vst [vmem:[%s198 + $0x220] sm:%s190] %v335
                %v337 = vld [vmem:[%s197 + $0x450] sm:%s190]
                %338 = vst [vmem:[%s198 + $0x228] sm:%s190] %v337
                %v339 = vld [vmem:[%s197 + $0x460] sm:%s190]
                %340 = vst [vmem:[%s198 + $0x230] sm:%s190] %v339
                %v341 = vld [vmem:[%s197 + $0x470] sm:%s190]
                %342 = vst [vmem:[%s198 + $0x238] sm:%s190] %v341
                %v343 = vld [vmem:[%s197 + $0x480] sm:%s190]
                %344 = vst [vmem:[%s198 + $0x240] sm:%s190] %v343
                %v345 = vld [vmem:[%s197 + $0x490] sm:%s190]
                %346 = vst [vmem:[%s198 + $0x248] sm:%s190] %v345
                %v347 = vld [vmem:[%s197 + $0x4a0] sm:%s190]
                %348 = vst [vmem:[%s198 + $0x250] sm:%s190] %v347
                %v349 = vld [vmem:[%s197 + $0x4b0] sm:%s190]
                %350 = vst [vmem:[%s198 + $0x258] sm:%s190] %v349
                %v351 = vld [vmem:[%s197 + $0x4c0] sm:%s190]
                %352 = vst [vmem:[%s198 + $0x260] sm:%s190] %v351
                %v353 = vld [vmem:[%s197 + $0x4d0] sm:%s190]
                %354 = vst [vmem:[%s198 + $0x268] sm:%s190] %v353
                %v355 = vld [vmem:[%s197 + $0x4e0] sm:%s190]
                %356 = vst [vmem:[%s198 + $0x270] sm:%s190] %v355
                %v357 = vld [vmem:[%s197 + $0x4f0] sm:%s190]
                %358 = vst [vmem:[%s198 + $0x278] sm:%s190] %v357
                %v359 = vld [vmem:[%s197 + $0x500] sm:%s190]
                %360 = vst [vmem:[%s198 + $0x280] sm:%s190] %v359
                %v361 = vld [vmem:[%s197 + $0x510] sm:%s190]
                %362 = vst [vmem:[%s198 + $0x288] sm:%s190] %v361
                %v363 = vld [vmem:[%s197 + $0x520] sm:%s190]
                %364 = vst [vmem:[%s198 + $0x290] sm:%s190] %v363
                %v365 = vld [vmem:[%s197 + $0x530] sm:%s190]
                %366 = vst [vmem:[%s198 + $0x298] sm:%s190] %v365
                %v367 = vld [vmem:[%s197 + $0x540] sm:%s190]
                %368 = vst [vmem:[%s198 + $0x2a0] sm:%s190] %v367
                %v369 = vld [vmem:[%s197 + $0x550] sm:%s190]
                %370 = vst [vmem:[%s198 + $0x2a8] sm:%s190] %v369
                %v371 = vld [vmem:[%s197 + $0x560] sm:%s190]
                %372 = vst [vmem:[%s198 + $0x2b0] sm:%s190] %v371
                %v373 = vld [vmem:[%s197 + $0x570] sm:%s190]
                %374 = vst [vmem:[%s198 + $0x2b8] sm:%s190] %v373
                %v375 = vld [vmem:[%s197 + $0x580] sm:%s190]
                %376 = vst [vmem:[%s198 + $0x2c0] sm:%s190] %v375
                %v377 = vld [vmem:[%s197 + $0x590] sm:%s190]
                %378 = vst [vmem:[%s198 + $0x2c8] sm:%s190] %v377
                %v379 = vld [vmem:[%s197 + $0x5a0] sm:%s190]
                %380 = vst [vmem:[%s198 + $0x2d0] sm:%s190] %v379
                %v381 = vld [vmem:[%s197 + $0x5b0] sm:%s190]
                %382 = vst [vmem:[%s198 + $0x2d8] sm:%s190] %v381
                %v383 = vld [vmem:[%s197 + $0x5c0] sm:%s190]
                %384 = vst [vmem:[%s198 + $0x2e0] sm:%s190] %v383
                %v385 = vld [vmem:[%s197 + $0x5d0] sm:%s190]
                %386 = vst [vmem:[%s198 + $0x2e8] sm:%s190] %v385
                %v387 = vld [vmem:[%s197 + $0x5e0] sm:%s190]
                %388 = vst [vmem:[%s198 + $0x2f0] sm:%s190] %v387
                %v389 = vld [vmem:[%s197 + $0x5f0] sm:%s190]
                %390 = vst [vmem:[%s198 + $0x2f8] sm:%s190] %v389
                %v391 = vld [vmem:[%s197 + $0x600] sm:%s190]
                %392 = vst [vmem:[%s198 + $0x300] sm:%s190] %v391
                %v393 = vld [vmem:[%s197 + $0x610] sm:%s190]
                %394 = vst [vmem:[%s198 + $0x308] sm:%s190] %v393
                %v395 = vld [vmem:[%s197 + $0x620] sm:%s190]
                %396 = vst [vmem:[%s198 + $0x310] sm:%s190] %v395
                %v397 = vld [vmem:[%s197 + $0x630] sm:%s190]
                %398 = vst [vmem:[%s198 + $0x318] sm:%s190] %v397
                %v399 = vld [vmem:[%s197 + $0x640] sm:%s190]
                %400 = vst [vmem:[%s198 + $0x320] sm:%s190] %v399
                %v401 = vld [vmem:[%s197 + $0x650] sm:%s190]
                %402 = vst [vmem:[%s198 + $0x328] sm:%s190] %v401
                %v403 = vld [vmem:[%s197 + $0x660] sm:%s190]
                %404 = vst [vmem:[%s198 + $0x330] sm:%s190] %v403
                %v405 = vld [vmem:[%s197 + $0x670] sm:%s190]
                %406 = vst [vmem:[%s198 + $0x338] sm:%s190] %v405
                %v407 = vld [vmem:[%s197 + $0x680] sm:%s190]
                %408 = vst [vmem:[%s198 + $0x340] sm:%s190] %v407
                %v409 = vld [vmem:[%s197 + $0x690] sm:%s190]
                %410 = vst [vmem:[%s198 + $0x348] sm:%s190] %v409
                %v411 = vld [vmem:[%s197 + $0x6a0] sm:%s190]
                %412 = vst [vmem:[%s198 + $0x350] sm:%s190] %v411
                %v413 = vld [vmem:[%s197 + $0x6b0] sm:%s190]
                %414 = vst [vmem:[%s198 + $0x358] sm:%s190] %v413
                %v415 = vld [vmem:[%s197 + $0x6c0] sm:%s190]
                %416 = vst [vmem:[%s198 + $0x360] sm:%s190] %v415
                %v417 = vld [vmem:[%s197 + $0x6d0] sm:%s190]
                %418 = vst [vmem:[%s198 + $0x368] sm:%s190] %v417
                %v419 = vld [vmem:[%s197 + $0x6e0] sm:%s190]
                %420 = vst [vmem:[%s198 + $0x370] sm:%s190] %v419
                %v421 = vld [vmem:[%s197 + $0x6f0] sm:%s190]
                %422 = vst [vmem:[%s198 + $0x378] sm:%s190] %v421
                %v423 = vld [vmem:[%s197 + $0x700] sm:%s190]
                %424 = vst [vmem:[%s198 + $0x380] sm:%s190] %v423
                %v425 = vld [vmem:[%s197 + $0x710] sm:%s190]
                %426 = vst [vmem:[%s198 + $0x388] sm:%s190] %v425
                %v427 = vld [vmem:[%s197 + $0x720] sm:%s190]
                %428 = vst [vmem:[%s198 + $0x390] sm:%s190] %v427
                %v429 = vld [vmem:[%s197 + $0x730] sm:%s190]
                %430 = vst [vmem:[%s198 + $0x398] sm:%s190] %v429
                %v431 = vld [vmem:[%s197 + $0x740] sm:%s190]
                %432 = vst [vmem:[%s198 + $0x3a0] sm:%s190] %v431
                %v433 = vld [vmem:[%s197 + $0x750] sm:%s190]
                %434 = vst [vmem:[%s198 + $0x3a8] sm:%s190] %v433
                %v435 = vld [vmem:[%s197 + $0x760] sm:%s190]
                %436 = vst [vmem:[%s198 + $0x3b0] sm:%s190] %v435
                %v437 = vld [vmem:[%s197 + $0x770] sm:%s190]
                %438 = vst [vmem:[%s198 + $0x3b8] sm:%s190] %v437
                %v439 = vld [vmem:[%s197 + $0x780] sm:%s190]
                %440 = vst [vmem:[%s198 + $0x3c0] sm:%s190] %v439
                %v441 = vld [vmem:[%s197 + $0x790] sm:%s190]
                %442 = vst [vmem:[%s198 + $0x3c8] sm:%s190] %v441
                %v443 = vld [vmem:[%s197 + $0x7a0] sm:%s190]
                %444 = vst [vmem:[%s198 + $0x3d0] sm:%s190] %v443
                %v445 = vld [vmem:[%s197 + $0x7b0] sm:%s190]
                %446 = vst [vmem:[%s198 + $0x3d8] sm:%s190] %v445
                %v447 = vld [vmem:[%s197 + $0x7c0] sm:%s190]
                %448 = vst [vmem:[%s198 + $0x3e0] sm:%s190] %v447
                %v449 = vld [vmem:[%s197 + $0x7d0] sm:%s190]
                %450 = vst [vmem:[%s198 + $0x3e8] sm:%s190] %v449
                %v451 = vld [vmem:[%s197 + $0x7e0] sm:%s190]
                %452 = vst [vmem:[%s198 + $0x3f0] sm:%s190] %v451
                %v453 = vld [vmem:[%s197 + $0x7f0] sm:%s190]
                %454 = vst [vmem:[%s198 + $0x3f8] sm:%s190] %v453
              $region41: #{_lambda_.9} parent=35 // loop_footer
                %s196 = sadd.s32 1, %s192
              $region42: #{_lambda_.9} parent=35 // loop_footer_branch
                %191 = sbr.rel target = $region38
              $region43: #{_lambda_.9} parent=35 // loop_exit
                _
            $region36: #{_lambda_.9} parent=27 // pred_fallthru
              _
          $region28: #{_lambda_.9} parent=23 // pred_fallthru
            _
          %723 = vnop
        $region24: #{_lambda_.9} parent=15 // pred_fallthru
          _
        // Predicated region
        $region59: #{_lambda_.9} parent=15 // pred_check
          %p724 = pneg %p104
        $region60: #{_lambda_.9} parent=15 // pred_check_branch
          %726 = sbr.rel (%p724) target = $region62
        $region61: #{_lambda_.9} parent=15 // pred_region
          %s727 = smul.u32 2, %s17
          %p728 = scmp.lt.s32.totalorder %s727, 3
          %s729 = scalar_select %p728, %s727, 3
          %s730 = scalar_lea.vmem %s2, %s729
          %s731 = smul.u32 2, %s17
        $region62: #{_lambda_.9} parent=15 // pred_fallthru
          _
      $region16: #{_lambda_.9} parent=5 // pred_fallthru
        _
      %p732 = scmp.le.s32.totalorder 1, %s9
      %p733 = scmp.lt.s32.totalorder %s9, 5
      %p734 = pnand %p732, %p733
      %p735 = pneg %p734
      // Predicated region
      $region63: #{_lambda_.9} parent=5 // pred_check
        _
      $region64: #{_lambda_.9} parent=5 // pred_check_branch
        %737 = sbr.rel (%p734) target = $region66
      $region65: #{_lambda_.9} parent=5 // pred_region
        %s738 = ssub.s32 %s9, 1
        %s739 = sand.u32 %s71, 1
        %s740 = sand.u32 %s71, 1
        %s741 = smul.addr %s740, 1024
        %s742 = scalar_lea.vmem [#allocation3], %s741
        // Predicated region
        $region67: #{_lambda_.9} parent=65 // pred_check
          %p743 = pneg %p84
        $region68: #{_lambda_.9} parent=65 // pred_check_branch
          %745 = sbr.rel (%p743) target = $region70
        $region69: #{_lambda_.9} parent=65 // pred_region
          _
        $region70: #{_lambda_.9} parent=65 // pred_fallthru
          _
        %s746 = smul.u32 8, %s21
        %p747 = scmp.lt.s32.totalorder %s19, 0
        %s748 = scalar_select %p747, %s19, 0
        %p749 = scmp.lt.s32.totalorder %s746, 15
        %s750 = scalar_select %p749, %s746, 15
        %s751 = smul.addr %s748, 16
        %s752 = sadd.s32 %s750, %s751
        %s753 = smul.addr %s752, 4
        %s754 = scalar_lea.vmem %s0, %s753
        %p755 = pneg %p56
        %p756 = pneg %p53
        %s757 = sand.u32 %s71, 1
        %s758 = sand.u32 %s71, 1
        %s759 = smul.addr %s758, 1024
        %s760 = scalar_lea.vmem [#allocation3], %s759
        %p761 = pneg %p84
        %p762 = pneg %p81
        %s763 = smul.u32 2, %s20
        %p764 = scmp.lt.s32.totalorder %s763, 3
        %s765 = scalar_select %p764, %s763, 3
        %s766 = scalar_lea.vmem %s2, %s765
        %p767 = pneg %p110
        %p768 = pneg %p107
        %p769 = pneg %p138
        %p770 = pneg %p135
        %s771 = smul.u32 2, %s20
        %p772 = scmp.lt.s32.totalorder %s19, 0
        %s773 = scalar_select %p772, %s19, 0
        %p774 = scmp.lt.s32.totalorder %s771, 3
        %s775 = scalar_select %p774, %s771, 3
        %s776 = smul.addr %s773, 4
        %s777 = sadd.s32 %s775, %s776
        %s778 = smul.addr %s777, 8
        %s779 = scalar_lea.vmem %s3, %s778
        %s780 = smul.u32 8, %s21
        %p781 = scmp.lt.s32.totalorder %s19, 0
        %s782 = scalar_select %p781, %s19, 0
        %p783 = scmp.lt.s32.totalorder %s780, 15
        %s784 = scalar_select %p783, %s780, 15
        %s785 = smul.addr %s782, 16
        %s786 = sadd.s32 %s784, %s785
        %s787 = smul.addr %s786, 4
        %s788 = scalar_lea.vmem %s0, %s787
        %s789 = smul.u32 8, %s21
        %s790 = smul.u32 128, %s21
        %s791 = smul.u32 2, %s20
        %s792 = smul.u32 2, %s20
        %p793 = scmp.lt.s32.totalorder %s792, 3
        %s794 = scalar_select %p793, %s792, 3
        %s795 = scalar_lea.vmem %s2, %s794
        %s796 = smul.u32 2, %s20
        %s797 = smul.u32 2, %s20
        %p798 = scmp.lt.s32.totalorder %s19, 0
        %s799 = scalar_select %p798, %s19, 0
        %p800 = scmp.lt.s32.totalorder %s797, 3
        %s801 = scalar_select %p800, %s797, 3
        %s802 = smul.addr %s799, 4
        %s803 = sadd.s32 %s801, %s802
        %s804 = smul.addr %s803, 8
        %s805 = scalar_lea.vmem %s3, %s804
        %s806 = smul.u32 2, %s20
        %p807 = scmp.eq.s32.totalorder %s21, 0
        // Predicated region
        $region71: #{_lambda_.9} parent=65 // pred_check
          %p808 = pneg %p807
        $region72: #{_lambda_.9} parent=65 // pred_check_branch
          %810 = sbr.rel (%p808) target = $region74
        $region73: #{_lambda_.9} parent=65 // pred_region
          %811 = vst [vmem:[#allocation2] sm:$0xff] 0.0
          %812 = vst [vmem:[#allocation2 + $0x8] sm:$0xff] 0.0
        $region74: #{_lambda_.9} parent=65 // pred_fallthru
          _
        %v813 = vld [vmem:[#allocation2] sm:$0xff]
        %v814 = vld [vmem:[#allocation2 + $0x8] sm:$0xff]
        %v815 = vld [vmem:[%s788] sm:$0xff]
        %v816 = vld [vmem:[%s788 + $0x8] sm:$0xff]
        %v817 = vld [vmem:[%s788 + $0x10] sm:$0xff]
        %v818 = vld [vmem:[%s788 + $0x18] sm:$0xff]
        %v819 = vld [vmem:[%s742] sm:$0xff]
        %v820 = vld [vmem:[%s742 + $0x8] sm:$0xff]
        %v821 = vld [vmem:[%s742 + $0x10] sm:$0xff]
        %v822 = vld [vmem:[%s742 + $0x18] sm:$0xff]
        %v823 = vld [vmem:[%s742 + $0x20] sm:$0xff]
        %v824 = vld [vmem:[%s742 + $0x28] sm:$0xff]
        %v825 = vld [vmem:[%s742 + $0x30] sm:$0xff]
        %v826 = vld [vmem:[%s742 + $0x38] sm:$0xff]
        %v827 = vld [vmem:[%s742 + $0x40] sm:$0xff]
        %v828 = vld [vmem:[%s742 + $0x48] sm:$0xff]
        %v829 = vld [vmem:[%s742 + $0x50] sm:$0xff]
        %v830 = vld [vmem:[%s742 + $0x58] sm:$0xff]
        %v831 = vld [vmem:[%s742 + $0x60] sm:$0xff]
        %v832 = vld [vmem:[%s742 + $0x68] sm:$0xff]
        %v833 = vld [vmem:[%s742 + $0x70] sm:$0xff]
        %v834 = vld [vmem:[%s742 + $0x78] sm:$0xff]
        %v835 = vld [vmem:[%s742 + $0x80] sm:$0xff]
        %v836 = vld [vmem:[%s742 + $0x88] sm:$0xff]
        %v837 = vld [vmem:[%s742 + $0x90] sm:$0xff]
        %v838 = vld [vmem:[%s742 + $0x98] sm:$0xff]
        %v839 = vld [vmem:[%s742 + $0xa0] sm:$0xff]
        %v840 = vld [vmem:[%s742 + $0xa8] sm:$0xff]
        %v841 = vld [vmem:[%s742 + $0xb0] sm:$0xff]
        %v842 = vld [vmem:[%s742 + $0xb8] sm:$0xff]
        %v843 = vld [vmem:[%s742 + $0xc0] sm:$0xff]
        %v844 = vld [vmem:[%s742 + $0xc8] sm:$0xff]
        %v845 = vld [vmem:[%s742 + $0xd0] sm:$0xff]
        %v846 = vld [vmem:[%s742 + $0xd8] sm:$0xff]
        %v847 = vld [vmem:[%s742 + $0xe0] sm:$0xff]
        %v848 = vld [vmem:[%s742 + $0xe8] sm:$0xff]
        %v849 = vld [vmem:[%s742 + $0xf0] sm:$0xff]
        %v850 = vld [vmem:[%s742 + $0xf8] sm:$0xff]
        %v851 = vld [vmem:[%s742 + $0x100] sm:$0xff]
        %v852 = vld [vmem:[%s742 + $0x108] sm:$0xff]
        %v853 = vld [vmem:[%s742 + $0x110] sm:$0xff]
        %v854 = vld [vmem:[%s742 + $0x118] sm:$0xff]
        %v855 = vld [vmem:[%s742 + $0x120] sm:$0xff]
        %v856 = vld [vmem:[%s742 + $0x128] sm:$0xff]
        %v857 = vld [vmem:[%s742 + $0x130] sm:$0xff]
        %v858 = vld [vmem:[%s742 + $0x138] sm:$0xff]
        %v859 = vld [vmem:[%s742 + $0x140] sm:$0xff]
        %v860 = vld [vmem:[%s742 + $0x148] sm:$0xff]
        %v861 = vld [vmem:[%s742 + $0x150] sm:$0xff]
        %v862 = vld [vmem:[%s742 + $0x158] sm:$0xff]
        %v863 = vld [vmem:[%s742 + $0x160] sm:$0xff]
        %v864 = vld [vmem:[%s742 + $0x168] sm:$0xff]
        %v865 = vld [vmem:[%s742 + $0x170] sm:$0xff]
        %v866 = vld [vmem:[%s742 + $0x178] sm:$0xff]
        %v867 = vld [vmem:[%s742 + $0x180] sm:$0xff]
        %v868 = vld [vmem:[%s742 + $0x188] sm:$0xff]
        %v869 = vld [vmem:[%s742 + $0x190] sm:$0xff]
        %v870 = vld [vmem:[%s742 + $0x198] sm:$0xff]
        %v871 = vld [vmem:[%s742 + $0x1a0] sm:$0xff]
        %v872 = vld [vmem:[%s742 + $0x1a8] sm:$0xff]
        %v873 = vld [vmem:[%s742 + $0x1b0] sm:$0xff]
        %v874 = vld [vmem:[%s742 + $0x1b8] sm:$0xff]
        %v875 = vld [vmem:[%s742 + $0x1c0] sm:$0xff]
        %v876 = vld [vmem:[%s742 + $0x1c8] sm:$0xff]
        %v877 = vld [vmem:[%s742 + $0x1d0] sm:$0xff]
        %v878 = vld [vmem:[%s742 + $0x1d8] sm:$0xff]
        %v879 = vld [vmem:[%s742 + $0x1e0] sm:$0xff]
        %v880 = vld [vmem:[%s742 + $0x1e8] sm:$0xff]
        %v881 = vld [vmem:[%s742 + $0x1f0] sm:$0xff]
        %v882 = vld [vmem:[%s742 + $0x1f8] sm:$0xff]
        %v883 = vld [vmem:[%s742 + $0x200] sm:$0xff]
        %v884 = vld [vmem:[%s742 + $0x208] sm:$0xff]
        %v885 = vld [vmem:[%s742 + $0x210] sm:$0xff]
        %v886 = vld [vmem:[%s742 + $0x218] sm:$0xff]
        %v887 = vld [vmem:[%s742 + $0x220] sm:$0xff]
        %v888 = vld [vmem:[%s742 + $0x228] sm:$0xff]
        %v889 = vld [vmem:[%s742 + $0x230] sm:$0xff]
        %v890 = vld [vmem:[%s742 + $0x238] sm:$0xff]
        %v891 = vld [vmem:[%s742 + $0x240] sm:$0xff]
        %v892 = vld [vmem:[%s742 + $0x248] sm:$0xff]
        %v893 = vld [vmem:[%s742 + $0x250] sm:$0xff]
        %v894 = vld [vmem:[%s742 + $0x258] sm:$0xff]
        %v895 = vld [vmem:[%s742 + $0x260] sm:$0xff]
        %v896 = vld [vmem:[%s742 + $0x268] sm:$0xff]
        %v897 = vld [vmem:[%s742 + $0x270] sm:$0xff]
        %v898 = vld [vmem:[%s742 + $0x278] sm:$0xff]
        %v899 = vld [vmem:[%s742 + $0x280] sm:$0xff]
        %v900 = vld [vmem:[%s742 + $0x288] sm:$0xff]
        %v901 = vld [vmem:[%s742 + $0x290] sm:$0xff]
        %v902 = vld [vmem:[%s742 + $0x298] sm:$0xff]
        %v903 = vld [vmem:[%s742 + $0x2a0] sm:$0xff]
        %v904 = vld [vmem:[%s742 + $0x2a8] sm:$0xff]
        %v905 = vld [vmem:[%s742 + $0x2b0] sm:$0xff]
        %v906 = vld [vmem:[%s742 + $0x2b8] sm:$0xff]
        %v907 = vld [vmem:[%s742 + $0x2c0] sm:$0xff]
        %v908 = vld [vmem:[%s742 + $0x2c8] sm:$0xff]
        %v909 = vld [vmem:[%s742 + $0x2d0] sm:$0xff]
        %v910 = vld [vmem:[%s742 + $0x2d8] sm:$0xff]
        %v911 = vld [vmem:[%s742 + $0x2e0] sm:$0xff]
        %v912 = vld [vmem:[%s742 + $0x2e8] sm:$0xff]
        %v913 = vld [vmem:[%s742 + $0x2f0] sm:$0xff]
        %v914 = vld [vmem:[%s742 + $0x2f8] sm:$0xff]
        %v915 = vld [vmem:[%s742 + $0x300] sm:$0xff]
        %v916 = vld [vmem:[%s742 + $0x308] sm:$0xff]
        %v917 = vld [vmem:[%s742 + $0x310] sm:$0xff]
        %v918 = vld [vmem:[%s742 + $0x318] sm:$0xff]
        %v919 = vld [vmem:[%s742 + $0x320] sm:$0xff]
        %v920 = vld [vmem:[%s742 + $0x328] sm:$0xff]
        %v921 = vld [vmem:[%s742 + $0x330] sm:$0xff]
        %v922 = vld [vmem:[%s742 + $0x338] sm:$0xff]
        %v923 = vld [vmem:[%s742 + $0x340] sm:$0xff]
        %v924 = vld [vmem:[%s742 + $0x348] sm:$0xff]
        %v925 = vld [vmem:[%s742 + $0x350] sm:$0xff]
        %v926 = vld [vmem:[%s742 + $0x358] sm:$0xff]
        %v927 = vld [vmem:[%s742 + $0x360] sm:$0xff]
        %v928 = vld [vmem:[%s742 + $0x368] sm:$0xff]
        %v929 = vld [vmem:[%s742 + $0x370] sm:$0xff]
        %v930 = vld [vmem:[%s742 + $0x378] sm:$0xff]
        %v931 = vld [vmem:[%s742 + $0x380] sm:$0xff]
        %v932 = vld [vmem:[%s742 + $0x388] sm:$0xff]
        %v933 = vld [vmem:[%s742 + $0x390] sm:$0xff]
        %v934 = vld [vmem:[%s742 + $0x398] sm:$0xff]
        %v935 = vld [vmem:[%s742 + $0x3a0] sm:$0xff]
        %v936 = vld [vmem:[%s742 + $0x3a8] sm:$0xff]
        %v937 = vld [vmem:[%s742 + $0x3b0] sm:$0xff]
        %v938 = vld [vmem:[%s742 + $0x3b8] sm:$0xff]
        %v939 = vld [vmem:[%s742 + $0x3c0] sm:$0xff]
        %v940 = vld [vmem:[%s742 + $0x3c8] sm:$0xff]
        %v941 = vld [vmem:[%s742 + $0x3d0] sm:$0xff]
        %v942 = vld [vmem:[%s742 + $0x3d8] sm:$0xff]
        %v943 = vld [vmem:[%s742 + $0x3e0] sm:$0xff]
        %v944 = vld [vmem:[%s742 + $0x3e8] sm:$0xff]
        %v945 = vld [vmem:[%s742 + $0x3f0] sm:$0xff]
        %v946 = vld [vmem:[%s742 + $0x3f8] sm:$0xff]
        %v951 = vunpack.c.l.b16 %v815
        %v952 = vunpack.c.h.b16 %v815
        %v953 = vunpack.c.l.b16 %v816
        %v954 = vunpack.c.h.b16 %v816
        %v955 = vunpack.c.l.b16 %v817
        %v956 = vunpack.c.h.b16 %v817
        %v957 = vunpack.c.l.b16 %v818
        %v958 = vunpack.c.h.b16 %v818
        %v959 = vpack.c.b16 %v951, %v951
        %v960 = vpack.c.b16 %v952, %v952
        %v961 = vpack.c.b16 %v953, %v953
        %v962 = vpack.c.b16 %v954, %v954
        %v963 = vpack.c.b16 %v955, %v955
        %v964 = vpack.c.b16 %v956, %v956
        %v965 = vpack.c.b16 %v957, %v957
        %v966 = vpack.c.b16 %v958, %v958
        %v1103 = vunpack.c.l.b16 %v819
        %v1104 = vunpack.c.h.b16 %v819
        %v1105 = vunpack.c.l.b16 %v820
        %v1106 = vunpack.c.h.b16 %v820
        %v1107 = vunpack.c.l.b16 %v821
        %v1108 = vunpack.c.h.b16 %v821
        %v1109 = vunpack.c.l.b16 %v822
        %v1110 = vunpack.c.h.b16 %v822
        %v1111 = vunpack.c.l.b16 %v823
        %v1112 = vunpack.c.h.b16 %v823
        %v1113 = vunpack.c.l.b16 %v824
        %v1114 = vunpack.c.h.b16 %v824
        %v1115 = vunpack.c.l.b16 %v825
        %v1116 = vunpack.c.h.b16 %v825
        %v1117 = vunpack.c.l.b16 %v826
        %v1118 = vunpack.c.h.b16 %v826
        %v1119 = vunpack.c.l.b16 %v827
        %v1120 = vunpack.c.h.b16 %v827
        %v1121 = vunpack.c.l.b16 %v828
        %v1122 = vunpack.c.h.b16 %v828
        %v1123 = vunpack.c.l.b16 %v829
        %v1124 = vunpack.c.h.b16 %v829
        %v1125 = vunpack.c.l.b16 %v830
        %v1126 = vunpack.c.h.b16 %v830
        %v1127 = vunpack.c.l.b16 %v831
        %v1128 = vunpack.c.h.b16 %v831
        %v1129 = vunpack.c.l.b16 %v832
        %v1130 = vunpack.c.h.b16 %v832
        %v1131 = vunpack.c.l.b16 %v833
        %v1132 = vunpack.c.h.b16 %v833
        %v1133 = vunpack.c.l.b16 %v834
        %v1134 = vunpack.c.h.b16 %v834
        %v1135 = vunpack.c.l.b16 %v835
        %v1136 = vunpack.c.h.b16 %v835
        %v1137 = vunpack.c.l.b16 %v836
        %v1138 = vunpack.c.h.b16 %v836
        %v1139 = vunpack.c.l.b16 %v837
        %v1140 = vunpack.c.h.b16 %v837
        %v1141 = vunpack.c.l.b16 %v838
        %v1142 = vunpack.c.h.b16 %v838
        %v1143 = vunpack.c.l.b16 %v839
        %v1144 = vunpack.c.h.b16 %v839
        %v1145 = vunpack.c.l.b16 %v840
        %v1146 = vunpack.c.h.b16 %v840
        %v1147 = vunpack.c.l.b16 %v841
        %v1148 = vunpack.c.h.b16 %v841
        %v1149 = vunpack.c.l.b16 %v842
        %v1150 = vunpack.c.h.b16 %v842
        %v1151 = vunpack.c.l.b16 %v843
        %v1152 = vunpack.c.h.b16 %v843
        %v1153 = vunpack.c.l.b16 %v844
        %v1154 = vunpack.c.h.b16 %v844
        %v1155 = vunpack.c.l.b16 %v845
        %v1156 = vunpack.c.h.b16 %v845
        %v1157 = vunpack.c.l.b16 %v846
        %v1158 = vunpack.c.h.b16 %v846
        %v1159 = vunpack.c.l.b16 %v847
        %v1160 = vunpack.c.h.b16 %v847
        %v1161 = vunpack.c.l.b16 %v848
        %v1162 = vunpack.c.h.b16 %v848
        %v1163 = vunpack.c.l.b16 %v849
        %v1164 = vunpack.c.h.b16 %v849
        %v1165 = vunpack.c.l.b16 %v850
        %v1166 = vunpack.c.h.b16 %v850
        %v1167 = vunpack.c.l.b16 %v851
        %v1168 = vunpack.c.h.b16 %v851
        %v1169 = vunpack.c.l.b16 %v852
        %v1170 = vunpack.c.h.b16 %v852
        %v1171 = vunpack.c.l.b16 %v853
        %v1172 = vunpack.c.h.b16 %v853
        %v1173 = vunpack.c.l.b16 %v854
        %v1174 = vunpack.c.h.b16 %v854
        %v1175 = vunpack.c.l.b16 %v855
        %v1176 = vunpack.c.h.b16 %v855
        %v1177 = vunpack.c.l.b16 %v856
        %v1178 = vunpack.c.h.b16 %v856
        %v1179 = vunpack.c.l.b16 %v857
        %v1180 = vunpack.c.h.b16 %v857
        %v1181 = vunpack.c.l.b16 %v858
        %v1182 = vunpack.c.h.b16 %v858
        %v1183 = vunpack.c.l.b16 %v859
        %v1184 = vunpack.c.h.b16 %v859
        %v1185 = vunpack.c.l.b16 %v860
        %v1186 = vunpack.c.h.b16 %v860
        %v1187 = vunpack.c.l.b16 %v861
        %v1188 = vunpack.c.h.b16 %v861
        %v1189 = vunpack.c.l.b16 %v862
        %v1190 = vunpack.c.h.b16 %v862
        %v1191 = vunpack.c.l.b16 %v863
        %v1192 = vunpack.c.h.b16 %v863
        %v1193 = vunpack.c.l.b16 %v864
        %v1194 = vunpack.c.h.b16 %v864
        %v1195 = vunpack.c.l.b16 %v865
        %v1196 = vunpack.c.h.b16 %v865
        %v1197 = vunpack.c.l.b16 %v866
        %v1198 = vunpack.c.h.b16 %v866
        %v1199 = vunpack.c.l.b16 %v867
        %v1200 = vunpack.c.h.b16 %v867
        %v1201 = vunpack.c.l.b16 %v868
        %v1202 = vunpack.c.h.b16 %v868
        %v1203 = vunpack.c.l.b16 %v869
        %v1204 = vunpack.c.h.b16 %v869
        %v1205 = vunpack.c.l.b16 %v870
        %v1206 = vunpack.c.h.b16 %v870
        %v1207 = vunpack.c.l.b16 %v871
        %v1208 = vunpack.c.h.b16 %v871
        %v1209 = vunpack.c.l.b16 %v872
        %v1210 = vunpack.c.h.b16 %v872
        %v1211 = vunpack.c.l.b16 %v873
        %v1212 = vunpack.c.h.b16 %v873
        %v1213 = vunpack.c.l.b16 %v874
        %v1214 = vunpack.c.h.b16 %v874
        %v1215 = vunpack.c.l.b16 %v875
        %v1216 = vunpack.c.h.b16 %v875
        %v1217 = vunpack.c.l.b16 %v876
        %v1218 = vunpack.c.h.b16 %v876
        %v1219 = vunpack.c.l.b16 %v877
        %v1220 = vunpack.c.h.b16 %v877
        %v1221 = vunpack.c.l.b16 %v878
        %v1222 = vunpack.c.h.b16 %v878
        %v1223 = vunpack.c.l.b16 %v879
        %v1224 = vunpack.c.h.b16 %v879
        %v1225 = vunpack.c.l.b16 %v880
        %v1226 = vunpack.c.h.b16 %v880
        %v1227 = vunpack.c.l.b16 %v881
        %v1228 = vunpack.c.h.b16 %v881
        %v1229 = vunpack.c.l.b16 %v882
        %v1230 = vunpack.c.h.b16 %v882
        %v1231 = vunpack.c.l.b16 %v883
        %v1232 = vunpack.c.h.b16 %v883
        %v1233 = vunpack.c.l.b16 %v884
        %v1234 = vunpack.c.h.b16 %v884
        %v1235 = vunpack.c.l.b16 %v885
        %v1236 = vunpack.c.h.b16 %v885
        %v1237 = vunpack.c.l.b16 %v886
        %v1238 = vunpack.c.h.b16 %v886
        %v1239 = vunpack.c.l.b16 %v887
        %v1240 = vunpack.c.h.b16 %v887
        %v1241 = vunpack.c.l.b16 %v888
        %v1242 = vunpack.c.h.b16 %v888
        %v1243 = vunpack.c.l.b16 %v889
        %v1244 = vunpack.c.h.b16 %v889
        %v1245 = vunpack.c.l.b16 %v890
        %v1246 = vunpack.c.h.b16 %v890
        %v1247 = vunpack.c.l.b16 %v891
        %v1248 = vunpack.c.h.b16 %v891
        %v1249 = vunpack.c.l.b16 %v892
        %v1250 = vunpack.c.h.b16 %v892
        %v1251 = vunpack.c.l.b16 %v893
        %v1252 = vunpack.c.h.b16 %v893
        %v1253 = vunpack.c.l.b16 %v894
        %v1254 = vunpack.c.h.b16 %v894
        %v1255 = vunpack.c.l.b16 %v895
        %v1256 = vunpack.c.h.b16 %v895
        %v1257 = vunpack.c.l.b16 %v896
        %v1258 = vunpack.c.h.b16 %v896
        %v1259 = vunpack.c.l.b16 %v897
        %v1260 = vunpack.c.h.b16 %v897
        %v1261 = vunpack.c.l.b16 %v898
        %v1262 = vunpack.c.h.b16 %v898
        %v1263 = vunpack.c.l.b16 %v899
        %v1264 = vunpack.c.h.b16 %v899
        %v1265 = vunpack.c.l.b16 %v900
        %v1266 = vunpack.c.h.b16 %v900
        %v1267 = vunpack.c.l.b16 %v901
        %v1268 = vunpack.c.h.b16 %v901
        %v1269 = vunpack.c.l.b16 %v902
        %v1270 = vunpack.c.h.b16 %v902
        %v1271 = vunpack.c.l.b16 %v903
        %v1272 = vunpack.c.h.b16 %v903
        %v1273 = vunpack.c.l.b16 %v904
        %v1274 = vunpack.c.h.b16 %v904
        %v1275 = vunpack.c.l.b16 %v905
        %v1276 = vunpack.c.h.b16 %v905
        %v1277 = vunpack.c.l.b16 %v906
        %v1278 = vunpack.c.h.b16 %v906
        %v1279 = vunpack.c.l.b16 %v907
        %v1280 = vunpack.c.h.b16 %v907
        %v1281 = vunpack.c.l.b16 %v908
        %v1282 = vunpack.c.h.b16 %v908
        %v1283 = vunpack.c.l.b16 %v909
        %v1284 = vunpack.c.h.b16 %v909
        %v1285 = vunpack.c.l.b16 %v910
        %v1286 = vunpack.c.h.b16 %v910
        %v1287 = vunpack.c.l.b16 %v911
        %v1288 = vunpack.c.h.b16 %v911
        %v1289 = vunpack.c.l.b16 %v912
        %v1290 = vunpack.c.h.b16 %v912
        %v1291 = vunpack.c.l.b16 %v913
        %v1292 = vunpack.c.h.b16 %v913
        %v1293 = vunpack.c.l.b16 %v914
        %v1294 = vunpack.c.h.b16 %v914
        %v1295 = vunpack.c.l.b16 %v915
        %v1296 = vunpack.c.h.b16 %v915
        %v1297 = vunpack.c.l.b16 %v916
        %v1298 = vunpack.c.h.b16 %v916
        %v1299 = vunpack.c.l.b16 %v917
        %v1300 = vunpack.c.h.b16 %v917
        %v1301 = vunpack.c.l.b16 %v918
        %v1302 = vunpack.c.h.b16 %v918
        %v1303 = vunpack.c.l.b16 %v919
        %v1304 = vunpack.c.h.b16 %v919
        %v1305 = vunpack.c.l.b16 %v920
        %v1306 = vunpack.c.h.b16 %v920
        %v1307 = vunpack.c.l.b16 %v921
        %v1308 = vunpack.c.h.b16 %v921
        %v1309 = vunpack.c.l.b16 %v922
        %v1310 = vunpack.c.h.b16 %v922
        %v1311 = vunpack.c.l.b16 %v923
        %v1312 = vunpack.c.h.b16 %v923
        %v1313 = vunpack.c.l.b16 %v924
        %v1314 = vunpack.c.h.b16 %v924
        %v1315 = vunpack.c.l.b16 %v925
        %v1316 = vunpack.c.h.b16 %v925
        %v1317 = vunpack.c.l.b16 %v926
        %v1318 = vunpack.c.h.b16 %v926
        %v1319 = vunpack.c.l.b16 %v927
        %v1320 = vunpack.c.h.b16 %v927
        %v1321 = vunpack.c.l.b16 %v928
        %v1322 = vunpack.c.h.b16 %v928
        %v1323 = vunpack.c.l.b16 %v929
        %v1324 = vunpack.c.h.b16 %v929
        %v1325 = vunpack.c.l.b16 %v930
        %v1326 = vunpack.c.h.b16 %v930
        %v1327 = vunpack.c.l.b16 %v931
        %v1328 = vunpack.c.h.b16 %v931
        %v1329 = vunpack.c.l.b16 %v932
        %v1330 = vunpack.c.h.b16 %v932
        %v1331 = vunpack.c.l.b16 %v933
        %v1332 = vunpack.c.h.b16 %v933
        %v1333 = vunpack.c.l.b16 %v934
        %v1334 = vunpack.c.h.b16 %v934
        %v1335 = vunpack.c.l.b16 %v935
        %v1336 = vunpack.c.h.b16 %v935
        %v1337 = vunpack.c.l.b16 %v936
        %v1338 = vunpack.c.h.b16 %v936
        %v1339 = vunpack.c.l.b16 %v937
        %v1340 = vunpack.c.h.b16 %v937
        %v1341 = vunpack.c.l.b16 %v938
        %v1342 = vunpack.c.h.b16 %v938
        %v1343 = vunpack.c.l.b16 %v939
        %v1344 = vunpack.c.h.b16 %v939
        %v1345 = vunpack.c.l.b16 %v940
        %v1346 = vunpack.c.h.b16 %v940
        %v1347 = vunpack.c.l.b16 %v941
        %v1348 = vunpack.c.h.b16 %v941
        %v1349 = vunpack.c.l.b16 %v942
        %v1350 = vunpack.c.h.b16 %v942
        %v1351 = vunpack.c.l.b16 %v943
        %v1352 = vunpack.c.h.b16 %v943
        %v1353 = vunpack.c.l.b16 %v944
        %v1354 = vunpack.c.h.b16 %v944
        %v1355 = vunpack.c.l.b16 %v945
        %v1356 = vunpack.c.h.b16 %v945
        %v1357 = vunpack.c.l.b16 %v946
        %v1358 = vunpack.c.h.b16 %v946
        %v1359 = vpack.c.b16 %v1105, %v1103
        %v1360 = vpack.c.b16 %v1106, %v1104
        %v1361 = vpack.c.b16 %v1109, %v1107
        %v1362 = vpack.c.b16 %v1110, %v1108
        %v1363 = vpack.c.b16 %v1113, %v1111
        %v1364 = vpack.c.b16 %v1114, %v1112
        %v1365 = vpack.c.b16 %v1117, %v1115
        %v1366 = vpack.c.b16 %v1118, %v1116
        %v1367 = vpack.c.b16 %v1121, %v1119
        %v1368 = vpack.c.b16 %v1122, %v1120
        %v1369 = vpack.c.b16 %v1125, %v1123
        %v1370 = vpack.c.b16 %v1126, %v1124
        %v1371 = vpack.c.b16 %v1129, %v1127
        %v1372 = vpack.c.b16 %v1130, %v1128
        %v1373 = vpack.c.b16 %v1133, %v1131
        %v1374 = vpack.c.b16 %v1134, %v1132
        %v1375 = vpack.c.b16 %v1137, %v1135
        %v1376 = vpack.c.b16 %v1138, %v1136
        %v1377 = vpack.c.b16 %v1141, %v1139
        %v1378 = vpack.c.b16 %v1142, %v1140
        %v1379 = vpack.c.b16 %v1145, %v1143
        %v1380 = vpack.c.b16 %v1146, %v1144
        %v1381 = vpack.c.b16 %v1149, %v1147
        %v1382 = vpack.c.b16 %v1150, %v1148
        %v1383 = vpack.c.b16 %v1153, %v1151
        %v1384 = vpack.c.b16 %v1154, %v1152
        %v1385 = vpack.c.b16 %v1157, %v1155
        %v1386 = vpack.c.b16 %v1158, %v1156
        %v1387 = vpack.c.b16 %v1161, %v1159
        %v1388 = vpack.c.b16 %v1162, %v1160
        %v1389 = vpack.c.b16 %v1165, %v1163
        %v1390 = vpack.c.b16 %v1166, %v1164
        %v1391 = vpack.c.b16 %v1169, %v1167
        %v1392 = vpack.c.b16 %v1170, %v1168
        %v1393 = vpack.c.b16 %v1173, %v1171
        %v1394 = vpack.c.b16 %v1174, %v1172
        %v1395 = vpack.c.b16 %v1177, %v1175
        %v1396 = vpack.c.b16 %v1178, %v1176
        %v1397 = vpack.c.b16 %v1181, %v1179
        %v1398 = vpack.c.b16 %v1182, %v1180
        %v1399 = vpack.c.b16 %v1185, %v1183
        %v1400 = vpack.c.b16 %v1186, %v1184
        %v1401 = vpack.c.b16 %v1189, %v1187
        %v1402 = vpack.c.b16 %v1190, %v1188
        %v1403 = vpack.c.b16 %v1193, %v1191
        %v1404 = vpack.c.b16 %v1194, %v1192
        %v1405 = vpack.c.b16 %v1197, %v1195
        %v1406 = vpack.c.b16 %v1198, %v1196
        %v1407 = vpack.c.b16 %v1201, %v1199
        %v1408 = vpack.c.b16 %v1202, %v1200
        %v1409 = vpack.c.b16 %v1205, %v1203
        %v1410 = vpack.c.b16 %v1206, %v1204
        %v1411 = vpack.c.b16 %v1209, %v1207
        %v1412 = vpack.c.b16 %v1210, %v1208
        %v1413 = vpack.c.b16 %v1213, %v1211
        %v1414 = vpack.c.b16 %v1214, %v1212
        %v1415 = vpack.c.b16 %v1217, %v1215
        %v1416 = vpack.c.b16 %v1218, %v1216
        %v1417 = vpack.c.b16 %v1221, %v1219
        %v1418 = vpack.c.b16 %v1222, %v1220
        %v1419 = vpack.c.b16 %v1225, %v1223
        %v1420 = vpack.c.b16 %v1226, %v1224
        %v1421 = vpack.c.b16 %v1229, %v1227
        %v1422 = vpack.c.b16 %v1230, %v1228
        %v1423 = vpack.c.b16 %v1233, %v1231
        %v1424 = vpack.c.b16 %v1234, %v1232
        %v1425 = vpack.c.b16 %v1237, %v1235
        %v1426 = vpack.c.b16 %v1238, %v1236
        %v1427 = vpack.c.b16 %v1241, %v1239
        %v1428 = vpack.c.b16 %v1242, %v1240
        %v1429 = vpack.c.b16 %v1245, %v1243
        %v1430 = vpack.c.b16 %v1246, %v1244
        %v1431 = vpack.c.b16 %v1249, %v1247
        %v1432 = vpack.c.b16 %v1250, %v1248
        %v1433 = vpack.c.b16 %v1253, %v1251
        %v1434 = vpack.c.b16 %v1254, %v1252
        %v1435 = vpack.c.b16 %v1257, %v1255
        %v1436 = vpack.c.b16 %v1258, %v1256
        %v1437 = vpack.c.b16 %v1261, %v1259
        %v1438 = vpack.c.b16 %v1262, %v1260
        %v1439 = vpack.c.b16 %v1265, %v1263
        %v1440 = vpack.c.b16 %v1266, %v1264
        %v1441 = vpack.c.b16 %v1269, %v1267
        %v1442 = vpack.c.b16 %v1270, %v1268
        %v1443 = vpack.c.b16 %v1273, %v1271
        %v1444 = vpack.c.b16 %v1274, %v1272
        %v1445 = vpack.c.b16 %v1277, %v1275
        %v1446 = vpack.c.b16 %v1278, %v1276
        %v1447 = vpack.c.b16 %v1281, %v1279
        %v1448 = vpack.c.b16 %v1282, %v1280
        %v1449 = vpack.c.b16 %v1285, %v1283
        %v1450 = vpack.c.b16 %v1286, %v1284
        %v1451 = vpack.c.b16 %v1289, %v1287
        %v1452 = vpack.c.b16 %v1290, %v1288
        %v1453 = vpack.c.b16 %v1293, %v1291
        %v1454 = vpack.c.b16 %v1294, %v1292
        %v1455 = vpack.c.b16 %v1297, %v1295
        %v1456 = vpack.c.b16 %v1298, %v1296
        %v1457 = vpack.c.b16 %v1301, %v1299
        %v1458 = vpack.c.b16 %v1302, %v1300
        %v1459 = vpack.c.b16 %v1305, %v1303
        %v1460 = vpack.c.b16 %v1306, %v1304
        %v1461 = vpack.c.b16 %v1309, %v1307
        %v1462 = vpack.c.b16 %v1310, %v1308
        %v1463 = vpack.c.b16 %v1313, %v1311
        %v1464 = vpack.c.b16 %v1314, %v1312
        %v1465 = vpack.c.b16 %v1317, %v1315
        %v1466 = vpack.c.b16 %v1318, %v1316
        %v1467 = vpack.c.b16 %v1321, %v1319
        %v1468 = vpack.c.b16 %v1322, %v1320
        %v1469 = vpack.c.b16 %v1325, %v1323
        %v1470 = vpack.c.b16 %v1326, %v1324
        %v1471 = vpack.c.b16 %v1329, %v1327
        %v1472 = vpack.c.b16 %v1330, %v1328
        %v1473 = vpack.c.b16 %v1333, %v1331
        %v1474 = vpack.c.b16 %v1334, %v1332
        %v1475 = vpack.c.b16 %v1337, %v1335
        %v1476 = vpack.c.b16 %v1338, %v1336
        %v1477 = vpack.c.b16 %v1341, %v1339
        %v1478 = vpack.c.b16 %v1342, %v1340
        %v1479 = vpack.c.b16 %v1345, %v1343
        %v1480 = vpack.c.b16 %v1346, %v1344
        %v1481 = vpack.c.b16 %v1349, %v1347
        %v1482 = vpack.c.b16 %v1350, %v1348
        %v1483 = vpack.c.b16 %v1353, %v1351
        %v1484 = vpack.c.b16 %v1354, %v1352
        %v1485 = vpack.c.b16 %v1357, %v1355
        %v1486 = vpack.c.b16 %v1358, %v1356
        %1615 = vmatpush.bf16.msra.mxu0 %v1373
        %1616 = vmatpush.bf16.msra.mxu0 %v1371
        %1617 = vmatpush.bf16.msra.mxu0 %v1369
        %1618 = vmatpush.bf16.msra.mxu0 %v1367
        %1619 = vmatpush.bf16.msra.mxu0 %v1365
        %1620 = vmatpush.bf16.msra.mxu0 %v1363
        %1621 = vmatpush.bf16.msra.mxu0 %v1361
        %1622 = vmatpush.bf16.msra.mxu0 %v1359
        %1623 = vmatmul.bf16.gmra.mxu0 %v959
        %v1624 = vpop.f32.mrf.mxu0
        %v1625 = vadd.f32 0.0, %v1624
        %v1626 = vpop.f32.mrf.mxu0
        %1627 = vdwg.mxu0
        %1628 = vmatpush.bf16.msra.mxu0 %v1389
        %1629 = vmatpush.bf16.msra.mxu0 %v1387
        %1630 = vmatpush.bf16.msra.mxu0 %v1385
        %1631 = vmatpush.bf16.msra.mxu0 %v1383
        %1632 = vmatpush.bf16.msra.mxu0 %v1381
        %1633 = vmatpush.bf16.msra.mxu0 %v1379
        %1634 = vmatpush.bf16.msra.mxu0 %v1377
        %1635 = vmatpush.bf16.msra.mxu0 %v1375
        %1636 = vmatmul.bf16.gmra.mxu0 %v960
        %v1637 = vpop.f32.mrf.mxu0
        %v1638 = vadd.f32 %v1625, %v1637
        %v1639 = vpop.f32.mrf.mxu0
        %1640 = vdwg.mxu0
        %1641 = vmatpush.bf16.msra.mxu0 %v1405
        %1642 = vmatpush.bf16.msra.mxu0 %v1403
        %1643 = vmatpush.bf16.msra.mxu0 %v1401
        %1644 = vmatpush.bf16.msra.mxu0 %v1399
        %1645 = vmatpush.bf16.msra.mxu0 %v1397
        %1646 = vmatpush.bf16.msra.mxu0 %v1395
        %1647 = vmatpush.bf16.msra.mxu0 %v1393
        %1648 = vmatpush.bf16.msra.mxu0 %v1391
        %1649 = vmatmul.bf16.gmra.mxu0 %v961
        %v1650 = vpop.f32.mrf.mxu0
        %v1651 = vadd.f32 %v1638, %v1650
        %v1652 = vpop.f32.mrf.mxu0
        %1653 = vdwg.mxu0
        %1654 = vmatpush.bf16.msra.mxu0 %v1421
        %1655 = vmatpush.bf16.msra.mxu0 %v1419
        %1656 = vmatpush.bf16.msra.mxu0 %v1417
        %1657 = vmatpush.bf16.msra.mxu0 %v1415
        %1658 = vmatpush.bf16.msra.mxu0 %v1413
        %1659 = vmatpush.bf16.msra.mxu0 %v1411
        %1660 = vmatpush.bf16.msra.mxu0 %v1409
        %1661 = vmatpush.bf16.msra.mxu0 %v1407
        %1662 = vmatmul.bf16.gmra.mxu0 %v962
        %v1663 = vpop.f32.mrf.mxu0
        %v1664 = vadd.f32 %v1651, %v1663
        %v1665 = vpop.f32.mrf.mxu0
        %1666 = vdwg.mxu0
        %1667 = vmatpush.bf16.msra.mxu0 %v1437
        %1668 = vmatpush.bf16.msra.mxu0 %v1435
        %1669 = vmatpush.bf16.msra.mxu0 %v1433
        %1670 = vmatpush.bf16.msra.mxu0 %v1431
        %1671 = vmatpush.bf16.msra.mxu0 %v1429
        %1672 = vmatpush.bf16.msra.mxu0 %v1427
        %1673 = vmatpush.bf16.msra.mxu0 %v1425
        %1674 = vmatpush.bf16.msra.mxu0 %v1423
        %1675 = vmatmul.bf16.gmra.mxu0 %v963
        %v1676 = vpop.f32.mrf.mxu0
        %v1677 = vadd.f32 %v1664, %v1676
        %v1678 = vpop.f32.mrf.mxu0
        %1679 = vdwg.mxu0
        %1680 = vmatpush.bf16.msra.mxu0 %v1453
        %1681 = vmatpush.bf16.msra.mxu0 %v1451
        %1682 = vmatpush.bf16.msra.mxu0 %v1449
        %1683 = vmatpush.bf16.msra.mxu0 %v1447
        %1684 = vmatpush.bf16.msra.mxu0 %v1445
        %1685 = vmatpush.bf16.msra.mxu0 %v1443
        %1686 = vmatpush.bf16.msra.mxu0 %v1441
        %1687 = vmatpush.bf16.msra.mxu0 %v1439
        %1688 = vmatmul.bf16.gmra.mxu0 %v964
        %v1689 = vpop.f32.mrf.mxu0
        %v1690 = vadd.f32 %v1677, %v1689
        %v1691 = vpop.f32.mrf.mxu0
        %1692 = vdwg.mxu0
        %1693 = vmatpush.bf16.msra.mxu0 %v1469
        %1694 = vmatpush.bf16.msra.mxu0 %v1467
        %1695 = vmatpush.bf16.msra.mxu0 %v1465
        %1696 = vmatpush.bf16.msra.mxu0 %v1463
        %1697 = vmatpush.bf16.msra.mxu0 %v1461
        %1698 = vmatpush.bf16.msra.mxu0 %v1459
        %1699 = vmatpush.bf16.msra.mxu0 %v1457
        %1700 = vmatpush.bf16.msra.mxu0 %v1455
        %1701 = vmatmul.bf16.gmra.mxu0 %v965
        %v1702 = vpop.f32.mrf.mxu0
        %v1703 = vadd.f32 %v1690, %v1702
        %v1704 = vpop.f32.mrf.mxu0
        %1705 = vdwg.mxu0
        %1706 = vmatpush.bf16.msra.mxu0 %v1485
        %1707 = vmatpush.bf16.msra.mxu0 %v1483
        %1708 = vmatpush.bf16.msra.mxu0 %v1481
        %1709 = vmatpush.bf16.msra.mxu0 %v1479
        %1710 = vmatpush.bf16.msra.mxu0 %v1477
        %1711 = vmatpush.bf16.msra.mxu0 %v1475
        %1712 = vmatpush.bf16.msra.mxu0 %v1473
        %1713 = vmatpush.bf16.msra.mxu0 %v1471
        %1714 = vmatmul.bf16.gmra.mxu0 %v966
        %v1715 = vpop.f32.mrf.mxu0
        %v1716 = vadd.f32 %v1703, %v1715
        %v1717 = vpop.f32.mrf.mxu0
        %1718 = vdwg.mxu0
        %1719 = vmatpush.bf16.msra.mxu0 %v1374
        %1720 = vmatpush.bf16.msra.mxu0 %v1372
        %1721 = vmatpush.bf16.msra.mxu0 %v1370
        %1722 = vmatpush.bf16.msra.mxu0 %v1368
        %1723 = vmatpush.bf16.msra.mxu0 %v1366
        %1724 = vmatpush.bf16.msra.mxu0 %v1364
        %1725 = vmatpush.bf16.msra.mxu0 %v1362
        %1726 = vmatpush.bf16.msra.mxu0 %v1360
        %1727 = vmatmul.bf16.gmra.mxu0 %v959
        %v1728 = vpop.f32.mrf.mxu0
        %v1729 = vadd.f32 0.0, %v1728
        %v1730 = vpop.f32.mrf.mxu0
        %1731 = vdwg.mxu0
        %1732 = vmatpush.bf16.msra.mxu0 %v1390
        %1733 = vmatpush.bf16.msra.mxu0 %v1388
        %1734 = vmatpush.bf16.msra.mxu0 %v1386
        %1735 = vmatpush.bf16.msra.mxu0 %v1384
        %1736 = vmatpush.bf16.msra.mxu0 %v1382
        %1737 = vmatpush.bf16.msra.mxu0 %v1380
        %1738 = vmatpush.bf16.msra.mxu0 %v1378
        %1739 = vmatpush.bf16.msra.mxu0 %v1376
        %1740 = vmatmul.bf16.gmra.mxu0 %v960
        %v1741 = vpop.f32.mrf.mxu0
        %v1742 = vadd.f32 %v1729, %v1741
        %v1743 = vpop.f32.mrf.mxu0
        %1744 = vdwg.mxu0
        %1745 = vmatpush.bf16.msra.mxu0 %v1406
        %1746 = vmatpush.bf16.msra.mxu0 %v1404
        %1747 = vmatpush.bf16.msra.mxu0 %v1402
        %1748 = vmatpush.bf16.msra.mxu0 %v1400
        %1749 = vmatpush.bf16.msra.mxu0 %v1398
        %1750 = vmatpush.bf16.msra.mxu0 %v1396
        %1751 = vmatpush.bf16.msra.mxu0 %v1394
        %1752 = vmatpush.bf16.msra.mxu0 %v1392
        %1753 = vmatmul.bf16.gmra.mxu0 %v961
        %v1754 = vpop.f32.mrf.mxu0
        %v1755 = vadd.f32 %v1742, %v1754
        %v1756 = vpop.f32.mrf.mxu0
        %1757 = vdwg.mxu0
        %1758 = vmatpush.bf16.msra.mxu0 %v1422
        %1759 = vmatpush.bf16.msra.mxu0 %v1420
        %1760 = vmatpush.bf16.msra.mxu0 %v1418
        %1761 = vmatpush.bf16.msra.mxu0 %v1416
        %1762 = vmatpush.bf16.msra.mxu0 %v1414
        %1763 = vmatpush.bf16.msra.mxu0 %v1412
        %1764 = vmatpush.bf16.msra.mxu0 %v1410
        %1765 = vmatpush.bf16.msra.mxu0 %v1408
        %1766 = vmatmul.bf16.gmra.mxu0 %v962
        %v1767 = vpop.f32.mrf.mxu0
        %v1768 = vadd.f32 %v1755, %v1767
        %v1769 = vpop.f32.mrf.mxu0
        %1770 = vdwg.mxu0
        %1771 = vmatpush.bf16.msra.mxu0 %v1438
        %1772 = vmatpush.bf16.msra.mxu0 %v1436
        %1773 = vmatpush.bf16.msra.mxu0 %v1434
        %1774 = vmatpush.bf16.msra.mxu0 %v1432
        %1775 = vmatpush.bf16.msra.mxu0 %v1430
        %1776 = vmatpush.bf16.msra.mxu0 %v1428
        %1777 = vmatpush.bf16.msra.mxu0 %v1426
        %1778 = vmatpush.bf16.msra.mxu0 %v1424
        %1779 = vmatmul.bf16.gmra.mxu0 %v963
        %v1780 = vpop.f32.mrf.mxu0
        %v1781 = vadd.f32 %v1768, %v1780
        %v1782 = vpop.f32.mrf.mxu0
        %1783 = vdwg.mxu0
        %1784 = vmatpush.bf16.msra.mxu0 %v1454
        %1785 = vmatpush.bf16.msra.mxu0 %v1452
        %1786 = vmatpush.bf16.msra.mxu0 %v1450
        %1787 = vmatpush.bf16.msra.mxu0 %v1448
        %1788 = vmatpush.bf16.msra.mxu0 %v1446
        %1789 = vmatpush.bf16.msra.mxu0 %v1444
        %1790 = vmatpush.bf16.msra.mxu0 %v1442
        %1791 = vmatpush.bf16.msra.mxu0 %v1440
        %1792 = vmatmul.bf16.gmra.mxu0 %v964
        %v1793 = vpop.f32.mrf.mxu0
        %v1794 = vadd.f32 %v1781, %v1793
        %v1795 = vpop.f32.mrf.mxu0
        %1796 = vdwg.mxu0
        %1797 = vmatpush.bf16.msra.mxu0 %v1470
        %1798 = vmatpush.bf16.msra.mxu0 %v1468
        %1799 = vmatpush.bf16.msra.mxu0 %v1466
        %1800 = vmatpush.bf16.msra.mxu0 %v1464
        %1801 = vmatpush.bf16.msra.mxu0 %v1462
        %1802 = vmatpush.bf16.msra.mxu0 %v1460
        %1803 = vmatpush.bf16.msra.mxu0 %v1458
        %1804 = vmatpush.bf16.msra.mxu0 %v1456
        %1805 = vmatmul.bf16.gmra.mxu0 %v965
        %v1806 = vpop.f32.mrf.mxu0
        %v1807 = vadd.f32 %v1794, %v1806
        %v1808 = vpop.f32.mrf.mxu0
        %1809 = vdwg.mxu0
        %1810 = vmatpush.bf16.msra.mxu0 %v1486
        %1811 = vmatpush.bf16.msra.mxu0 %v1484
        %1812 = vmatpush.bf16.msra.mxu0 %v1482
        %1813 = vmatpush.bf16.msra.mxu0 %v1480
        %1814 = vmatpush.bf16.msra.mxu0 %v1478
        %1815 = vmatpush.bf16.msra.mxu0 %v1476
        %1816 = vmatpush.bf16.msra.mxu0 %v1474
        %1817 = vmatpush.bf16.msra.mxu0 %v1472
        %1818 = vmatmul.bf16.gmra.mxu0 %v966
        %v1819 = vpop.f32.mrf.mxu0
        %v1820 = vadd.f32 %v1807, %v1819
        %v1821 = vpop.f32.mrf.mxu0
        %1822 = vdwg.mxu0
        %v1823 = vadd.f32 %v813, %v1716
        %v1824 = vadd.f32 %v814, %v1820
        %1825 = vst [vmem:[#allocation2] sm:$0xff] %v1823
        %1826 = vst [vmem:[#allocation2 + $0x8] sm:$0xff] %v1824
        %p1827 = scmp.eq.s32.totalorder %s21, 1
        // Predicated region
        $region75: #{_lambda_.9} parent=65 // pred_check
          %p1828 = pneg %p1827
        $region76: #{_lambda_.9} parent=65 // pred_check_branch
          %1830 = sbr.rel (%p1828) target = $region78
        $region77: #{_lambda_.9} parent=65 // pred_region
          %v1831 = vld [vmem:[#allocation2] sm:$0xff]
          %v1832 = vld [vmem:[#allocation2 + $0x8] sm:$0xff]
          %v1833 = vld [vmem:[%s795] sm:$0x3]
          %v1835 = vperm.slane %v1833, 0
          %v1836 = vperm.slane %v1833, 1
          %v1839 = vadd.f32 %v1831, %v1835
          %v1840 = vadd.f32 %v1832, %v1836
          %v1841 = vmax.f32 %v1839, 0.0
          %v1842 = vmax.f32 %v1840, 0.0
          %1843 = vst [vmem:[%s805] sm:$0xff] %v1841
          %1844 = vst [vmem:[%s805 + $0x8] sm:$0xff] %v1842
        $region78: #{_lambda_.9} parent=65 // pred_fallthru
          _
        %s1845 = smul.u32 2, %s20
        %p1846 = scmp.lt.s32.totalorder %s19, 0
        %s1847 = scalar_select %p1846, %s19, 0
        %p1848 = scmp.lt.s32.totalorder %s1845, 3
        %s1849 = scalar_select %p1848, %s1845, 3
        %s1850 = smul.addr %s1847, 4
        %s1851 = sadd.s32 %s1849, %s1850
        %s1852 = smul.addr %s1851, 8
        %s1853 = scalar_lea.vmem %s3, %s1852
        // Predicated region
        $region79: #{_lambda_.9} parent=65 // pred_check
          %p1854 = pneg %p135
        $region80: #{_lambda_.9} parent=65 // pred_check_branch
          %1856 = sbr.rel (%p1854) target = $region82
        $region81: #{_lambda_.9} parent=65 // pred_region
          %s1857 = smul.u32 2, %s20
        $region82: #{_lambda_.9} parent=65 // pred_fallthru
          _
      $region66: #{_lambda_.9} parent=5 // pred_fallthru
        _
      %p1858 = scmp.le.s32.totalorder 2, %s9
      // Predicated region
      $region83: #{_lambda_.9} parent=5 // pred_check
        %p1859 = pneg %p1858
      $region84: #{_lambda_.9} parent=5 // pred_check_branch
        %1861 = sbr.rel (%p1859) target = $region86
      $region85: #{_lambda_.9} parent=5 // pred_region
        %s1862 = ssub.s32 %s9, 2
        // Predicated region
        $region87: #{_lambda_.9} parent=85 // pred_check
          %p1863 = pneg %p141
        $region88: #{_lambda_.9} parent=85 // pred_check_branch
          %1865 = sbr.rel (%p1863) target = $region90
        $region89: #{_lambda_.9} parent=85 // pred_region
          %s1866 = smul.u32 2, %s23
          %p1867 = scmp.lt.s32.totalorder %s22, 0
          %s1868 = scalar_select %p1867, %s22, 0
          %p1869 = scmp.lt.s32.totalorder %s1866, 3
          %s1870 = scalar_select %p1869, %s1866, 3
          %s1871 = smul.addr %s1868, 4
          %s1872 = sadd.s32 %s1870, %s1871
          %s1873 = smul.addr %s1872, 8
          %s1874 = scalar_lea.vmem %s3, %s1873
        $region90: #{_lambda_.9} parent=85 // pred_fallthru
          _
      $region86: #{_lambda_.9} parent=5 // pred_fallthru
        _
    $region6: #{_lambda_.9} parent=1 // loop_footer
      %s13 = sadd.s32 1, %s9
    $region7: #{_lambda_.9} parent=1 // loop_footer_branch
      %8 = sbr.rel target = $region3
    $region8: #{_lambda_.9} parent=1 // loop_exit
      _

</llo_original>
